<compile_context>
chip_gen: v6e
topology: v6e:2x2x1
jax: 0.10.0
libtpu: 0.0.40
codegen_flags: <defaults>
</compile_context>

<pallas_src>
import functools

import jax
import jax.numpy as jnp
from jax.experimental import pallas as pl
from jax.experimental.pallas import tpu as pltpu


# -----------------------------------------------------------------------------
# Kernel A: projection + specific/invariant MLPs + mean-pool + D0 discriminator
# -----------------------------------------------------------------------------
def _modality_kernel(x_ref, pw_ref, pb_ref,
                     sw1_ref, sb1_ref, sw2_ref, sb2_ref,
                     iw1_ref, ib1_ref, iw2_ref, ib2_ref,
                     d0w_ref, d0b_ref,
                     spec_ref, inv_ref, d0i_ref, d0s_ref,
                     *, batch, seq):
    x = x_ref[0]                                                    # [BT, KP] bf16
    proj = (jnp.dot(x, pw_ref[0], preferred_element_type=jnp.float32)
            + pb_ref[0]).astype(jnp.bfloat16)                       # dropout -> id (eval)

    def mlp2(h, w1, b1, w2, b2):
        y = jnp.dot(h, w1, preferred_element_type=jnp.float32) + b1
        y = jnp.where(y > 0, y, 0.1 * y)                            # LeakyReLU(0.1)
        return jnp.dot(y.astype(jnp.bfloat16), w2,
                       preferred_element_type=jnp.float32) + b2

    spec = mlp2(proj, sw1_ref[0], sb1_ref[0], sw2_ref[0], sb2_ref[0])   # [BT,128] f32
    inv = mlp2(proj, iw1_ref[0], ib1_ref[0], iw2_ref[0], ib2_ref[0])    # [BT,128] f32

    spec3 = spec.reshape(batch, seq, spec.shape[-1])
    inv3 = inv.reshape(batch, seq, inv.shape[-1])

    # lane/layout-dense stores directly in downstream-consumable layouts (bf16)
    spec_ref[...] = spec3.astype(spec_ref.dtype)      # -> feat_exclusive slab [B,T,128]
    inv_ref[...] = inv3.astype(inv_ref.dtype)         # -> channel-concat slab [B,T,128]

    # fused epilogue: time mean-pool + domain discriminator (output lane-padded to 128)
    d0w = d0w_ref[...]
    d0b = d0b_ref[...]
    inv_mean = jnp.mean(inv3, axis=1).astype(jnp.bfloat16)          # [B,128]
    spec_mean = jnp.mean(spec3, axis=1).astype(jnp.bfloat16)        # [B,128]
    d0i_ref[0] = jnp.dot(inv_mean, d0w, preferred_element_type=jnp.float32) + d0b
    d0s_ref[0] = jnp.dot(spec_mean, d0w, preferred_element_type=jnp.float32) + d0b


def pallas_modality_stack(x_stack, p, *, batch, seq):
    """x_stack: [3, B*T, KP] bf16 -> (feat_exclusive, inv_concat, d0_inv, d0_spec)."""
    G, BT, KP = x_stack.shape
    D = 128
    return pl.pallas_call(
        functools.partial(_modality_kernel, batch=batch, seq=seq),
        out_shape=(
            jax.ShapeDtypeStruct((batch, G * seq, D), jnp.bfloat16),   # feat_exclusive
            jax.ShapeDtypeStruct((batch, seq, G * D), jnp.bfloat16),   # invariant concat
            jax.ShapeDtypeStruct((G, batch, D), jnp.float32),          # D0(invariant mean)
            jax.ShapeDtypeStruct((G, batch, D), jnp.float32),          # D0(specific mean)
        ),
        grid=(G,),
        in_specs=[
            pl.BlockSpec((1, BT, KP), lambda g: (g, 0, 0)),      # x (per modality)
            pl.BlockSpec((1, KP, 256), lambda g: (g, 0, 0)),     # proj_w
            pl.BlockSpec((1, 1, 256), lambda g: (g, 0, 0)),      # proj_b
            pl.BlockSpec((1, 256, 128), lambda g: (g, 0, 0)),    # spec_w1 (per modality)
            pl.BlockSpec((1, 1, 128), lambda g: (g, 0, 0)),      # spec_b1
            pl.BlockSpec((1, 128, 128), lambda g: (g, 0, 0)),    # spec_w2
            pl.BlockSpec((1, 1, 128), lambda g: (g, 0, 0)),      # spec_b2
            pl.BlockSpec((1, 256, 128), lambda g: (0, 0, 0)),    # inv_w1 (shared)
            pl.BlockSpec((1, 1, 128), lambda g: (0, 0, 0)),      # inv_b1
            pl.BlockSpec((1, 128, 128), lambda g: (0, 0, 0)),    # inv_w2
            pl.BlockSpec((1, 1, 128), lambda g: (0, 0, 0)),      # inv_b2
            pl.BlockSpec((128, 128), lambda g: (0, 0)),          # D0_w (shared)
            pl.BlockSpec((1, 128), lambda g: (0, 0)),            # D0_b
        ],
        out_specs=(
            pl.BlockSpec((batch, seq, D), lambda g: (0, g, 0)),  # seq-concat slab
            pl.BlockSpec((batch, seq, D), lambda g: (0, 0, g)),  # channel-concat slab
            pl.BlockSpec((1, batch, D), lambda g: (g, 0, 0)),
            pl.BlockSpec((1, batch, D), lambda g: (g, 0, 0)),
        ),
        compiler_params=pltpu.CompilerParams(dimension_semantics=("parallel",)),
    )(x_stack, p["proj_w"], p["proj_b"],
      p["spec_w1"], p["spec_b1"], p["spec_w2"], p["spec_b2"],
      p["inv_w1"], p["inv_b1"], p["inv_w2"], p["inv_b2"],
      p["D0_w"], p["D0_b"])


# -----------------------------------------------------------------------------
# Kernel B: common-fusion MLP + full depth-1 CrossTransformer + mean + cls head
# -----------------------------------------------------------------------------
def _fused_block_kernel(inv_ref, spec_ref,
                        fw1_ref, fb1_ref, fw2_ref, fb2_ref,
                        prefix_ref, poss_ref, post_ref,
                        lnq_g_ref, lnq_b_ref, wq_ref, bq_ref,
                        lnkv_g_ref, lnkv_b_ref, wkv_ref, bkv_ref,
                        wo_ref, bo_ref, ln2_g_ref, ln2_b_ref,
                        ffw1_ref, ffb1_ref, ffw2_ref, ffb2_ref,
                        clsw_ref, clsb_ref, o_ref, *, heads):
    f32 = jnp.float32
    bf16 = jnp.bfloat16

    def layernorm(x, g, b):
        mu = jnp.mean(x, axis=-1, keepdims=True)
        var = jnp.mean(jnp.square(x - mu), axis=-1, keepdims=True)
        return (x - mu) * jax.lax.rsqrt(var + 1e-5) * g + b

    # --- common fusion MLP: [T, 3*128] -> [T, 128] (LeakyReLU(0.1)) ---
    x = inv_ref[0]                                                   # [T, 384] bf16
    h = jnp.dot(x, fw1_ref[...], preferred_element_type=f32) + fb1_ref[...]
    h = jnp.where(h > 0, h, 0.1 * h)
    tgt = jnp.dot(h.astype(bf16), fw2_ref[...],
                  preferred_element_type=f32) + fb2_ref[...]         # [T, 128] f32

    # --- pos-embeddings + extra token (all in-kernel, no XLA adds) ---
    # The (pos-embedded) extra token is appended LAST so the sublane concat is
    # 8-aligned; attention is permutation-invariant over keys, so this is
    # numerically identical to prepending it.
    src = spec_ref[0].astype(f32) + poss_ref[...]                    # [Ns, 128]
    src = jnp.concatenate([src, prefix_ref[...]], axis=0)            # [Ns+1, 128]
    tgt = tgt + post_ref[...]                                        # [T, 128]
    # emb_dropout -> identity (inference)

    # --- pre-norm cross attention: Q from target, K/V from source ---
    q = jnp.dot(layernorm(tgt, lnq_g_ref[...], lnq_b_ref[...]).astype(bf16),
                wq_ref[...], preferred_element_type=f32) + bq_ref[...]      # [T, 128]
    kv = jnp.dot(layernorm(src, lnkv_g_ref[...], lnkv_b_ref[...]).astype(bf16),
                 wkv_ref[...], preferred_element_type=f32) + bkv_ref[...]   # [Nk, 256]
    D = q.shape[-1]
    k = kv[:, :D]
    v = kv[:, D:]

    dh = D // heads
    scale = float(dh) ** -0.5
    outs = []
    for hd in range(heads):                                          # unrolled, heads on lanes
        lo, hi = hd * dh, (hd + 1) * dh
        qh = q[:, lo:hi].astype(bf16)                                # [T, dh]
        kh = k[:, lo:hi].astype(bf16)                                # [Nk, dh]
        vh = v[:, lo:hi].astype(bf16)                                # [Nk, dh]
        s = jax.lax.dot_general(qh, kh, (((1,), (1,)), ((), ())),
                                preferred_element_type=f32) * scale  # [T, Nk]
        m = jnp.max(s, axis=-1, keepdims=True)
        e = jnp.exp(s - m)
        pr = e * pl.reciprocal(jnp.sum(e, axis=-1, keepdims=True), approx=True)
        outs.append(jnp.dot(pr.astype(bf16), vh, preferred_element_type=f32))
    attn = jnp.concatenate(outs, axis=-1)                            # [T, 128] lane-dense

    o = jnp.dot(attn.astype(bf16), wo_ref[...],
                preferred_element_type=f32) + bo_ref[...]
    tgt = tgt + o                                                    # residual

    # --- pre-norm FFN: Linear -> GELU -> Linear ---
    xn = layernorm(tgt, ln2_g_ref[...], ln2_b_ref[...])
    h1 = jnp.dot(xn.astype(bf16), ffw1_ref[...],
                 preferred_element_type=f32) + ffb1_ref[...]
    # TODO(synk): nn.GELU defaults to exact erf; tanh approximation used here.
    c = 0.7978845608028654  # sqrt(2/pi)
    h1 = 0.5 * h1 * (1.0 + jnp.tanh(c * (h1 + 0.044715 * h1 * h1 * h1)))
    h2 = jnp.dot(h1.astype(bf16), ffw2_ref[...],
                 preferred_element_type=f32) + ffb2_ref[...]
    tgt = tgt + h2                                                   # residual, [T, 128]

    # --- time mean + cls head (output lane-padded to 128) ---
    feat = jnp.mean(tgt, axis=0, keepdims=True).astype(bf16)         # [1, 128]
    o_ref[0] = (jnp.dot(feat, clsw_ref[...], preferred_element_type=f32)
                + clsb_ref[...])


def pallas_fused_common_ct_cls(inv_cat, spec_cat, prefix, pos_s_rest, pos_t, p,
                               *, heads=8):
    """inv_cat: [B,T,384] bf16, spec_cat: [B,Ns,128] bf16 -> cls logits [B,1,128] f32."""
    B, T, F3 = inv_cat.shape
    Ns, D = spec_cat.shape[1], spec_cat.shape[2]

    def full(a):
        nd = a.ndim
        return pl.BlockSpec(a.shape, lambda b, _n=nd: (0,) * _n)

    weights = [p["fuse_w1"], p["fuse_b1"], p["fuse_w2"], p["fuse_b2"],
               prefix, pos_s_rest, pos_t,
               p["ct_ln_q_g"], p["ct_ln_q_b"], p["ct_wq"], p["ct_bq"],
               p["ct_ln_kv_g"], p["ct_ln_kv_b"], p["ct_wkv"], p["ct_bkv"],
               p["ct_wo"], p["ct_bo"], p["ct_ln2_g"], p["ct_ln2_b"],
               p["ct_ffn_w1"], p["ct_ffn_b1"], p["ct_ffn_w2"], p["ct_ffn_b2"],
               p["cls_w"], p["cls_b"]]

    return pl.pallas_call(
        functools.partial(_fused_block_kernel, heads=heads),
        out_shape=jax.ShapeDtypeStruct((B, 1, 128), jnp.float32),
        grid=(B,),
        in_specs=[pl.BlockSpec((1, T, F3), lambda b: (b, 0, 0)),
                  pl.BlockSpec((1, Ns, D), lambda b: (b, 0, 0))]
                 + [full(a) for a in weights],
        out_specs=pl.BlockSpec((1, 1, 128), lambda b: (b, 0, 0)),
        compiler_params=pltpu.CompilerParams(dimension_semantics=("parallel",)),
    )(inv_cat, spec_cat, *weights)


# -----------------------------------------------------------------------------
# Model glue
# -----------------------------------------------------------------------------
def mmt_forward(p, x_vision, x_audio, x_text, *, num_class, num_domain=3, heads=8):
    """MMT.forward (eval mode)."""
    B, T, _ = x_vision.shape
    BT = B * T
    KP = p["proj_w"].shape[1]                                        # 768

    def pad_k(x):
        pad = KP - x.shape[-1]
        return jnp.pad(x, ((0, 0), (0, 0), (0, pad))) if pad else x

    # TODO(synk): audio's K=33 is padded to 768 here; for larger T/B switch to a
    #             K-block reduction grid with per-modality K counts delivered
    #             via PrefetchScalarGridSpec to avoid wasted MXU/DMA over zeros.
    x_stack = jnp.stack([pad_k(x_vision), pad_k(x_audio), pad_k(x_text)], axis=0)
    x_stack = x_stack.reshape(3, BT, KP).astype(jnp.bfloat16)

    # one fused kernel: proj -> (spec MLP, inv MLP) -> mean-pool -> D0
    spec_cat, inv_cat, d0_inv, d0_spec = pallas_modality_stack(
        x_stack, p, batch=B, seq=T)
    # .detach()/GradReverse -> identity in forward; dropout -> identity (eval)

    D0_visual_op = d0_inv[0, :, :num_domain]
    D0_audio_op = d0_inv[1, :, :num_domain]
    D0_text_op = d0_inv[2, :, :num_domain]
    D2_visual_op = d0_spec[0, :, :num_domain]
    D2_audio_op = d0_spec[1, :, :num_domain]
    D2_text_op = d0_spec[2, :, :num_domain]

    # cross-transformer inputs: pos-emb slices / extra-token prefix (tiny constants)
    Ns = 3 * T
    pos_s = p["ct_pos_s"][0, :Ns + 1]                    # [Ns+1, 128]
    prefix = p["ct_extra_token"][0] + pos_s[:1]          # extra token carries pos[0]
    pos_s_rest = pos_s[1:]                               # [Ns, 128]
    pos_t = p["ct_pos_t"][0, :T]                         # [T, 128]

    # one fused kernel: fusion MLP + CrossTransformer block + mean + cls head
    cls = pallas_fused_common_ct_cls(inv_cat, spec_cat, prefix, pos_s_rest, pos_t,
                                     p, heads=heads)
    cls_output = cls[:, 0, :num_class]

    return (D0_visual_op, D0_audio_op, D0_text_op,
            D2_visual_op, D2_audio_op, D2_text_op, cls_output)


# -----------------------------------------------------------------------------
# Deterministic parameter init (synthetic, no checkpoint). Weights bf16, rest f32.
# -----------------------------------------------------------------------------
def init_params(key, num_class, num_domain=3):
    p = {}
    keys = iter(jax.random.split(key, 64))

    def w(shape, scale=0.02):
        return (scale * jax.random.normal(next(keys), shape, jnp.float32)
                ).astype(jnp.bfloat16)

    D, HID, MLP_DIM, KP = 128, 128, 256, 768

    # stacked modality projections: vision 709, audio 33, text 768 (K padded to 768)
    pw = jnp.zeros((3, KP, 256), jnp.float32)
    pw = pw.at[0, :709].set(0.02 * jax.random.normal(next(keys), (709, 256)))
    pw = pw.at[1, :33].set(0.02 * jax.random.normal(next(keys), (33, 256)))
    pw = pw.at[2, :768].set(0.02 * jax.random.normal(next(keys), (768, 256)))
    p["proj_w"] = pw.astype(jnp.bfloat16)
    p["proj_b"] = 0.02 * jax.random.normal(next(keys), (3, 1, 256), jnp.float32)

    # specific (per-modality) and invariant (shared) fused MLPs
    p["spec_w1"] = w((3, 256, HID)); p["spec_b1"] = jnp.zeros((3, 1, HID), jnp.float32)
    p["spec_w2"] = w((3, HID, D));   p["spec_b2"] = jnp.zeros((3, 1, D), jnp.float32)
    p["inv_w1"] = w((1, 256, HID));  p["inv_b1"] = jnp.zeros((1, 1, HID), jnp.float32)
    p["inv_w2"] = w((1, HID, D));    p["inv_b2"] = jnp.zeros((1, 1, D), jnp.float32)

    # common fusion layer (384 -> 128 -> 128)
    p["fuse_w1"] = w((3 * D, HID)); p["fuse_b1"] = jnp.zeros((1, HID), jnp.float32)
    p["fuse_w2"] = w((HID, D));     p["fuse_b2"] = jnp.zeros((1, D), jnp.float32)

    # D0 discriminator (3 domains) and cls_head, lane-padded to 128 outputs
    d0 = jnp.zeros((D, D), jnp.float32).at[:, :num_domain].set(
        0.02 * jax.random.normal(next(keys), (D, num_domain)))
    p["D0_w"] = d0.astype(jnp.bfloat16); p["D0_b"] = jnp.zeros((1, D), jnp.float32)
    cw = jnp.zeros((D, D), jnp.float32).at[:, :num_class].set(
        0.02 * jax.random.normal(next(keys), (D, num_class)))
    p["cls_w"] = cw.astype(jnp.bfloat16); p["cls_b"] = jnp.zeros((1, D), jnp.float32)

    # CrossTransformer (source_num_frames=150, tgt_num_frames=50, dim=128,
    # depth=1, heads=8, mlp_dim=256)
    p["ct_pos_s"] = 0.02 * jax.random.normal(next(keys), (1, 151, D), jnp.float32)
    p["ct_pos_t"] = 0.02 * jax.random.normal(next(keys), (1, 51, D), jnp.float32)
    p["ct_extra_token"] = 0.02 * jax.random.normal(next(keys), (1, 1, D), jnp.float32)
    for ln in ("ct_ln_q", "ct_ln_kv", "ct_ln2"):
        p[ln + "_g"] = jnp.ones((1, D), jnp.float32)
        p[ln + "_b"] = jnp.zeros((1, D), jnp.float32)
    p["ct_wq"] = w((D, D));      p["ct_bq"] = jnp.zeros((1, D), jnp.float32)
    p["ct_wkv"] = w((D, 2 * D)); p["ct_bkv"] = jnp.zeros((1, 2 * D), jnp.float32)
    p["ct_wo"] = w((D, D));      p["ct_bo"] = jnp.zeros((1, D), jnp.float32)
    p["ct_ffn_w1"] = w((D, MLP_DIM)); p["ct_ffn_b1"] = jnp.zeros((1, MLP_DIM), jnp.float32)
    p["ct_ffn_w2"] = w((MLP_DIM, D)); p["ct_ffn_b2"] = jnp.zeros((1, D), jnp.float32)
    return p


# -----------------------------------------------------------------------------
if __name__ == "__main__":
    key = jax.random.PRNGKey(0)
    kp, kv, ka, kt = jax.random.split(key, 4)

    B, T = 2, 8                 # small seq-len (module default is 50)
    NUM_CLASS = 4
    # feature dims fixed by the module's Linear layers
    x_vision = jax.random.normal(kv, (B, T, 709), jnp.float32)
    x_audio = jax.random.normal(ka, (B, T, 33), jnp.float32)
    x_text = jax.random.normal(kt, (B, T, 768), jnp.float32)

    params = init_params(kp, NUM_CLASS)

    fwd = jax.jit(functools.partial(mmt_forward, num_class=NUM_CLASS))
    outs = jax.block_until_ready(fwd(params, x_vision, x_audio, x_text))

    expected = [(B, 3)] * 6 + [(B, NUM_CLASS)]
    assert len(outs) == 7
    for o, s in zip(outs, expected):
        assert o.shape == s, (o.shape, s)
        assert bool(jnp.all(jnp.isfinite(o))), "non-finite output"

    print("KERNEL_OK")
</pallas_src>

<mosaic_0001>
module attributes {stable_mosaic.version = 11 : i64} {
  func.func @_modality_kernel(%arg0: i32, %arg1: memref<1x16x768xbf16, #tpu.memory_space<vmem>>, %arg2: memref<1x768x256xbf16, #tpu.memory_space<vmem>>, %arg3: memref<1x1x256xf32, #tpu.memory_space<vmem>>, %arg4: memref<1x256x128xbf16, #tpu.memory_space<vmem>>, %arg5: memref<1x1x128xf32, #tpu.memory_space<vmem>>, %arg6: memref<1x128x128xbf16, #tpu.memory_space<vmem>>, %arg7: memref<1x1x128xf32, #tpu.memory_space<vmem>>, %arg8: memref<1x256x128xbf16, #tpu.memory_space<vmem>>, %arg9: memref<1x1x128xf32, #tpu.memory_space<vmem>>, %arg10: memref<1x128x128xbf16, #tpu.memory_space<vmem>>, %arg11: memref<1x1x128xf32, #tpu.memory_space<vmem>>, %arg12: memref<128x128xbf16, #tpu.memory_space<vmem>>, %arg13: memref<1x128xf32, #tpu.memory_space<vmem>>, %arg14: memref<2x8x128xbf16, #tpu.memory_space<vmem>>, %arg15: memref<2x8x128xbf16, #tpu.memory_space<vmem>>, %arg16: memref<1x2x128xf32, #tpu.memory_space<vmem>>, %arg17: memref<1x2x128xf32, #tpu.memory_space<vmem>>) attributes {dimension_semantics = [#tpu.dimension_semantics<parallel>], iteration_bounds = array<i64: 3>, scalar_prefetch = 0 : i64, scratch_operands = 0 : i64, tpu.core_type = #tpu.core_type<tc>, window_params = [{transform_indices = @transform_0, window_bounds = array<i64: 1, 16, 768>}, {transform_indices = @transform_1, window_bounds = array<i64: 1, 768, 256>}, {transform_indices = @transform_2, window_bounds = array<i64: 1, 1, 256>}, {transform_indices = @transform_3, window_bounds = array<i64: 1, 256, 128>}, {transform_indices = @transform_4, window_bounds = array<i64: 1, 1, 128>}, {transform_indices = @transform_5, window_bounds = array<i64: 1, 128, 128>}, {transform_indices = @transform_6, window_bounds = array<i64: 1, 1, 128>}, {pipeline_mode = #tpu.pipeline_mode<synchronous>, transform_indices = @transform_7, window_bounds = array<i64: 1, 256, 128>}, {pipeline_mode = #tpu.pipeline_mode<synchronous>, transform_indices = @transform_8, window_bounds = array<i64: 1, 1, 128>}, {pipeline_mode = #tpu.pipeline_mode<synchronous>, transform_indices = @transform_9, window_bounds = array<i64: 1, 128, 128>}, {pipeline_mode = #tpu.pipeline_mode<synchronous>, transform_indices = @transform_10, window_bounds = array<i64: 1, 1, 128>}, {pipeline_mode = #tpu.pipeline_mode<synchronous>, transform_indices = @transform_11, window_bounds = array<i64: 128, 128>}, {pipeline_mode = #tpu.pipeline_mode<synchronous>, transform_indices = @transform_12, window_bounds = array<i64: 1, 128>}, {transform_indices = @transform_13, window_bounds = array<i64: 2, 8, 128>}, {transform_indices = @transform_14, window_bounds = array<i64: 2, 8, 128>}, {transform_indices = @transform_15, window_bounds = array<i64: 1, 2, 128>}, {transform_indices = @transform_16, window_bounds = array<i64: 1, 2, 128>}]} {
    %c0 = arith.constant 0 : index
    %c0_0 = arith.constant 0 : index
    %c0_1 = arith.constant 0 : index
    %0 = vector.load %arg1[%c0, %c0_0, %c0_1] : memref<1x16x768xbf16, #tpu.memory_space<vmem>>, vector<1x16x768xbf16>
    %1 = vector.shape_cast %0 : vector<1x16x768xbf16> to vector<16x768xbf16>
    %c0_2 = arith.constant 0 : index
    %c0_3 = arith.constant 0 : index
    %c0_4 = arith.constant 0 : index
    %2 = vector.load %arg2[%c0_2, %c0_3, %c0_4] : memref<1x768x256xbf16, #tpu.memory_space<vmem>>, vector<1x768x256xbf16>
    %3 = vector.shape_cast %2 : vector<1x768x256xbf16> to vector<768x256xbf16>
    %cst = arith.constant dense<0.000000e+00> : vector<16x256xf32>
    %4 = tpu.matmul %1, %3, %cst {dimension_numbers = #tpu.dot_dimension_numbers<[1], [0], [0], [1], [0, 0, 1, 1], [], []>} : vector<16x768xbf16>, vector<768x256xbf16>, vector<16x256xf32> -> vector<16x256xf32>
    %c0_5 = arith.constant 0 : index
    %c0_6 = arith.constant 0 : index
    %c0_7 = arith.constant 0 : index
    %5 = vector.load %arg3[%c0_5, %c0_6, %c0_7] : memref<1x1x256xf32, #tpu.memory_space<vmem>>, vector<1x1x256xf32>
    %6 = vector.shape_cast %5 : vector<1x1x256xf32> to vector<1x256xf32>
    %7 = vector.broadcast %6 : vector<1x256xf32> to vector<16x256xf32>
    %8 = arith.addf %4, %7 : vector<16x256xf32>
    %9 = arith.truncf %8 : vector<16x256xf32> to vector<16x256xbf16>
    %c0_8 = arith.constant 0 : index
    %c0_9 = arith.constant 0 : index
    %c0_10 = arith.constant 0 : index
    %10 = vector.load %arg4[%c0_8, %c0_9, %c0_10] : memref<1x256x128xbf16, #tpu.memory_space<vmem>>, vector<1x256x128xbf16>
    %11 = vector.shape_cast %10 : vector<1x256x128xbf16> to vector<256x128xbf16>
    %c0_11 = arith.constant 0 : index
    %c0_12 = arith.constant 0 : index
    %c0_13 = arith.constant 0 : index
    %12 = vector.load %arg5[%c0_11, %c0_12, %c0_13] : memref<1x1x128xf32, #tpu.memory_space<vmem>>, vector<1x1x128xf32>
    %13 = vector.shape_cast %12 : vector<1x1x128xf32> to vector<1x128xf32>
    %c0_14 = arith.constant 0 : index
    %c0_15 = arith.constant 0 : index
    %c0_16 = arith.constant 0 : index
    %14 = vector.load %arg6[%c0_14, %c0_15, %c0_16] : memref<1x128x128xbf16, #tpu.memory_space<vmem>>, vector<1x128x128xbf16>
    %15 = vector.shape_cast %14 : vector<1x128x128xbf16> to vector<128x128xbf16>
    %c0_17 = arith.constant 0 : index
    %c0_18 = arith.constant 0 : index
    %c0_19 = arith.constant 0 : index
    %16 = vector.load %arg7[%c0_17, %c0_18, %c0_19] : memref<1x1x128xf32, #tpu.memory_space<vmem>>, vector<1x1x128xf32>
    %17 = vector.shape_cast %16 : vector<1x1x128xf32> to vector<1x128xf32>
    %cst_20 = arith.constant dense<0.000000e+00> : vector<16x128xf32>
    %18 = tpu.matmul %9, %11, %cst_20 {dimension_numbers = #tpu.dot_dimension_numbers<[1], [0], [0], [1], [0, 0, 1, 1], [], []>} : vector<16x256xbf16>, vector<256x128xbf16>, vector<16x128xf32> -> vector<16x128xf32>
    %19 = vector.broadcast %13 : vector<1x128xf32> to vector<16x128xf32>
    %20 = arith.addf %18, %19 : vector<16x128xf32>
    %cst_21 = arith.constant 0.000000e+00 : f32
    %21 = vector.broadcast %cst_21 : f32 to vector<16x128xf32>
    %22 = arith.cmpf ogt, %20, %21 : vector<16x128xf32>
    %cst_22 = arith.constant 1.000000e-01 : f32
    %23 = vector.broadcast %cst_22 : f32 to vector<16x128xf32>
    %24 = arith.mulf %23, %20 : vector<16x128xf32>
    %25 = arith.select %22, %20, %24 : vector<16x128xi1>, vector<16x128xf32>
    %26 = arith.truncf %25 : vector<16x128xf32> to vector<16x128xbf16>
    %cst_23 = arith.constant dense<0.000000e+00> : vector<16x128xf32>
    %27 = tpu.matmul %26, %15, %cst_23 {dimension_numbers = #tpu.dot_dimension_numbers<[1], [0], [0], [1], [0, 0, 1, 1], [], []>} : vector<16x128xbf16>, vector<128x128xbf16>, vector<16x128xf32> -> vector<16x128xf32>
    %28 = vector.broadcast %17 : vector<1x128xf32> to vector<16x128xf32>
    %29 = arith.addf %27, %28 : vector<16x128xf32>
    %c0_24 = arith.constant 0 : index
    %c0_25 = arith.constant 0 : index
    %c0_26 = arith.constant 0 : index
    %30 = vector.load %arg8[%c0_24, %c0_25, %c0_26] : memref<1x256x128xbf16, #tpu.memory_space<vmem>>, vector<1x256x128xbf16>
    %31 = vector.shape_cast %30 : vector<1x256x128xbf16> to vector<256x128xbf16>
    %c0_27 = arith.constant 0 : index
    %c0_28 = arith.constant 0 : index
    %c0_29 = arith.constant 0 : index
    %32 = vector.load %arg9[%c0_27, %c0_28, %c0_29] : memref<1x1x128xf32, #tpu.memory_space<vmem>>, vector<1x1x128xf32>
    %33 = vector.shape_cast %32 : vector<1x1x128xf32> to vector<1x128xf32>
    %c0_30 = arith.constant 0 : index
    %c0_31 = arith.constant 0 : index
    %c0_32 = arith.constant 0 : index
    %34 = vector.load %arg10[%c0_30, %c0_31, %c0_32] : memref<1x128x128xbf16, #tpu.memory_space<vmem>>, vector<1x128x128xbf16>
    %35 = vector.shape_cast %34 : vector<1x128x128xbf16> to vector<128x128xbf16>
    %c0_33 = arith.constant 0 : index
    %c0_34 = arith.constant 0 : index
    %c0_35 = arith.constant 0 : index
    %36 = vector.load %arg11[%c0_33, %c0_34, %c0_35] : memref<1x1x128xf32, #tpu.memory_space<vmem>>, vector<1x1x128xf32>
    %37 = vector.shape_cast %36 : vector<1x1x128xf32> to vector<1x128xf32>
    %cst_36 = arith.constant dense<0.000000e+00> : vector<16x128xf32>
    %38 = tpu.matmul %9, %31, %cst_36 {dimension_numbers = #tpu.dot_dimension_numbers<[1], [0], [0], [1], [0, 0, 1, 1], [], []>} : vector<16x256xbf16>, vector<256x128xbf16>, vector<16x128xf32> -> vector<16x128xf32>
    %39 = vector.broadcast %33 : vector<1x128xf32> to vector<16x128xf32>
    %40 = arith.addf %38, %39 : vector<16x128xf32>
    %cst_37 = arith.constant 0.000000e+00 : f32
    %41 = vector.broadcast %cst_37 : f32 to vector<16x128xf32>
    %42 = arith.cmpf ogt, %40, %41 : vector<16x128xf32>
    %cst_38 = arith.constant 1.000000e-01 : f32
    %43 = vector.broadcast %cst_38 : f32 to vector<16x128xf32>
    %44 = arith.mulf %43, %40 : vector<16x128xf32>
    %45 = arith.select %42, %40, %44 : vector<16x128xi1>, vector<16x128xf32>
    %46 = arith.truncf %45 : vector<16x128xf32> to vector<16x128xbf16>
    %cst_39 = arith.constant dense<0.000000e+00> : vector<16x128xf32>
    %47 = tpu.matmul %46, %35, %cst_39 {dimension_numbers = #tpu.dot_dimension_numbers<[1], [0], [0], [1], [0, 0, 1, 1], [], []>} : vector<16x128xbf16>, vector<128x128xbf16>, vector<16x128xf32> -> vector<16x128xf32>
    %48 = vector.broadcast %37 : vector<1x128xf32> to vector<16x128xf32>
    %49 = arith.addf %47, %48 : vector<16x128xf32>
    %50 = vector.shape_cast %29 : vector<16x128xf32> to vector<2x8x128xf32>
    %51 = vector.shape_cast %49 : vector<16x128xf32> to vector<2x8x128xf32>
    %52 = arith.truncf %50 : vector<2x8x128xf32> to vector<2x8x128xbf16>
    %c0_40 = arith.constant 0 : index
    %c0_41 = arith.constant 0 : index
    %c0_42 = arith.constant 0 : index
    %53 = vector.load %arg14[%c0_40, %c0_41, %c0_42] : memref<2x8x128xbf16, #tpu.memory_space<vmem>>, vector<2x8x128xbf16>
    tpu.vector_store %arg14[%c0_40, %c0_41, %c0_42], %52 {strides = array<i32>} : memref<2x8x128xbf16, #tpu.memory_space<vmem>>, vector<2x8x128xbf16>,
    %54 = arith.truncf %51 : vector<2x8x128xf32> to vector<2x8x128xbf16>
    %c0_43 = arith.constant 0 : index
    %c0_44 = arith.constant 0 : index
    %c0_45 = arith.constant 0 : index
    %55 = vector.load %arg15[%c0_43, %c0_44, %c0_45] : memref<2x8x128xbf16, #tpu.memory_space<vmem>>, vector<2x8x128xbf16>
    tpu.vector_store %arg15[%c0_43, %c0_44, %c0_45], %54 {strides = array<i32>} : memref<2x8x128xbf16, #tpu.memory_space<vmem>>, vector<2x8x128xbf16>,
    %c0_46 = arith.constant 0 : index
    %c0_47 = arith.constant 0 : index
    %56 = vector.load %arg12[%c0_46, %c0_47] : memref<128x128xbf16, #tpu.memory_space<vmem>>, vector<128x128xbf16>
    %c0_48 = arith.constant 0 : index
    %c0_49 = arith.constant 0 : index
    %57 = vector.load %arg13[%c0_48, %c0_49] : memref<1x128xf32, #tpu.memory_space<vmem>>, vector<1x128xf32>
    %cst_50 = arith.constant dense<0.000000e+00> : vector<2x128xf32>
    %58 = vector.multi_reduction <add>, %51, %cst_50 [1] : vector<2x8x128xf32> to vector<2x128xf32>
    %cst_51 = arith.constant 8.000000e+00 : f32
    %59 = vector.broadcast %cst_51 : f32 to vector<2x128xf32>
    %60 = arith.divf %58, %59 : vector<2x128xf32>
    %61 = arith.truncf %60 : vector<2x128xf32> to vector<2x128xbf16>
    %cst_52 = arith.constant dense<0.000000e+00> : vector<2x128xf32>
    %62 = vector.multi_reduction <add>, %50, %cst_52 [1] : vector<2x8x128xf32> to vector<2x128xf32>
    %cst_53 = arith.constant 8.000000e+00 : f32
    %63 = vector.broadcast %cst_53 : f32 to vector<2x128xf32>
    %64 = arith.divf %62, %63 : vector<2x128xf32>
    %65 = arith.truncf %64 : vector<2x128xf32> to vector<2x128xbf16>
    %cst_54 = arith.constant dense<0.000000e+00> : vector<2x128xf32>
    %66 = tpu.matmul %61, %56, %cst_54 {dimension_numbers = #tpu.dot_dimension_numbers<[1], [0], [0], [1], [0, 0, 1, 1], [], []>} : vector<2x128xbf16>, vector<128x128xbf16>, vector<2x128xf32> -> vector<2x128xf32>
    %67 = vector.broadcast %57 : vector<1x128xf32> to vector<2x128xf32>
    %68 = arith.addf %66, %67 : vector<2x128xf32>
    %c0_55 = arith.constant 0 : index
    %c0_56 = arith.constant 0 : index
    %c0_57 = arith.constant 0 : index
    %69 = vector.load %arg16[%c0_55, %c0_56, %c0_57] : memref<1x2x128xf32, #tpu.memory_space<vmem>>, vector<1x2x128xf32>
    %70 = vector.shape_cast %69 : vector<1x2x128xf32> to vector<2x128xf32>
    %71 = vector.shape_cast %68 : vector<2x128xf32> to vector<1x2x128xf32>
    tpu.vector_store %arg16[%c0_55, %c0_56, %c0_57], %71 {strides = array<i32>} : memref<1x2x128xf32, #tpu.memory_space<vmem>>, vector<1x2x128xf32>,
    %cst_58 = arith.constant dense<0.000000e+00> : vector<2x128xf32>
    %72 = tpu.matmul %65, %56, %cst_58 {dimension_numbers = #tpu.dot_dimension_numbers<[1], [0], [0], [1], [0, 0, 1, 1], [], []>} : vector<2x128xbf16>, vector<128x128xbf16>, vector<2x128xf32> -> vector<2x128xf32>
    %73 = vector.broadcast %57 : vector<1x128xf32> to vector<2x128xf32>
    %74 = arith.addf %72, %73 : vector<2x128xf32>
    %c0_59 = arith.constant 0 : index
    %c0_60 = arith.constant 0 : index
    %c0_61 = arith.constant 0 : index
    %75 = vector.load %arg17[%c0_59, %c0_60, %c0_61] : memref<1x2x128xf32, #tpu.memory_space<vmem>>, vector<1x2x128xf32>
    %76 = vector.shape_cast %75 : vector<1x2x128xf32> to vector<2x128xf32>
    %77 = vector.shape_cast %74 : vector<2x128xf32> to vector<1x2x128xf32>
    tpu.vector_store %arg17[%c0_59, %c0_60, %c0_61], %77 {strides = array<i32>} : memref<1x2x128xf32, #tpu.memory_space<vmem>>, vector<1x2x128xf32>,
    return
  }
  func.func @transform_0(%arg0: i32) -> (i32, i32, i32) {
    %c0_i32 = arith.constant 0 : i32
    %c0_i32_0 = arith.constant 0 : i32
    %c0_i32_1 = arith.constant 0 : i32
    return %arg0, %c0_i32, %c0_i32_0 : i32, i32, i32
  }
  func.func @transform_1(%arg0: i32) -> (i32, i32, i32) {
    %c0_i32 = arith.constant 0 : i32
    %c0_i32_0 = arith.constant 0 : i32
    %c0_i32_1 = arith.constant 0 : i32
    return %arg0, %c0_i32, %c0_i32_0 : i32, i32, i32
  }
  func.func @transform_2(%arg0: i32) -> (i32, i32, i32) {
    %c0_i32 = arith.constant 0 : i32
    %c0_i32_0 = arith.constant 0 : i32
    %c0_i32_1 = arith.constant 0 : i32
    return %arg0, %c0_i32, %c0_i32_0 : i32, i32, i32
  }
  func.func @transform_3(%arg0: i32) -> (i32, i32, i32) {
    %c0_i32 = arith.constant 0 : i32
    %c0_i32_0 = arith.constant 0 : i32
    %c0_i32_1 = arith.constant 0 : i32
    return %arg0, %c0_i32, %c0_i32_0 : i32, i32, i32
  }
  func.func @transform_4(%arg0: i32) -> (i32, i32, i32) {
    %c0_i32 = arith.constant 0 : i32
    %c0_i32_0 = arith.constant 0 : i32
    %c0_i32_1 = arith.constant 0 : i32
    return %arg0, %c0_i32, %c0_i32_0 : i32, i32, i32
  }
  func.func @transform_5(%arg0: i32) -> (i32, i32, i32) {
    %c0_i32 = arith.constant 0 : i32
    %c0_i32_0 = arith.constant 0 : i32
    %c0_i32_1 = arith.constant 0 : i32
    return %arg0, %c0_i32, %c0_i32_0 : i32, i32, i32
  }
  func.func @transform_6(%arg0: i32) -> (i32, i32, i32) {
    %c0_i32 = arith.constant 0 : i32
    %c0_i32_0 = arith.constant 0 : i32
    %c0_i32_1 = arith.constant 0 : i32
    return %arg0, %c0_i32, %c0_i32_0 : i32, i32, i32
  }
  func.func @transform_7(%arg0: i32) -> (i32, i32, i32) {
    %c0_i32 = arith.constant 0 : i32
    %c0_i32_0 = arith.constant 0 : i32
    %c0_i32_1 = arith.constant 0 : i32
    %c0_i32_2 = arith.constant 0 : i32
    return %c0_i32, %c0_i32_0, %c0_i32_1 : i32, i32, i32
  }
  func.func @transform_8(%arg0: i32) -> (i32, i32, i32) {
    %c0_i32 = arith.constant 0 : i32
    %c0_i32_0 = arith.constant 0 : i32
    %c0_i32_1 = arith.constant 0 : i32
    %c0_i32_2 = arith.constant 0 : i32
    return %c0_i32, %c0_i32_0, %c0_i32_1 : i32, i32, i32
  }
  func.func @transform_9(%arg0: i32) -> (i32, i32, i32) {
    %c0_i32 = arith.constant 0 : i32
    %c0_i32_0 = arith.constant 0 : i32
    %c0_i32_1 = arith.constant 0 : i32
    %c0_i32_2 = arith.constant 0 : i32
    return %c0_i32, %c0_i32_0, %c0_i32_1 : i32, i32, i32
  }
  func.func @transform_10(%arg0: i32) -> (i32, i32, i32) {
    %c0_i32 = arith.constant 0 : i32
    %c0_i32_0 = arith.constant 0 : i32
    %c0_i32_1 = arith.constant 0 : i32
    %c0_i32_2 = arith.constant 0 : i32
    return %c0_i32, %c0_i32_0, %c0_i32_1 : i32, i32, i32
  }
  func.func @transform_11(%arg0: i32) -> (i32, i32) {
    %c0_i32 = arith.constant 0 : i32
    %c0_i32_0 = arith.constant 0 : i32
    %c0_i32_1 = arith.constant 0 : i32
    return %c0_i32, %c0_i32_0 : i32, i32
  }
  func.func @transform_12(%arg0: i32) -> (i32, i32) {
    %c0_i32 = arith.constant 0 : i32
    %c0_i32_0 = arith.constant 0 : i32
    %c0_i32_1 = arith.constant 0 : i32
    return %c0_i32, %c0_i32_0 : i32, i32
  }
  func.func @transform_13(%arg0: i32) -> (i32, i32, i32) {
    %c0_i32 = arith.constant 0 : i32
    %c0_i32_0 = arith.constant 0 : i32
    %c0_i32_1 = arith.constant 0 : i32
    return %c0_i32, %arg0, %c0_i32_0 : i32, i32, i32
  }
  func.func @transform_14(%arg0: i32) -> (i32, i32, i32) {
    %c0_i32 = arith.constant 0 : i32
    %c0_i32_0 = arith.constant 0 : i32
    %c0_i32_1 = arith.constant 0 : i32
    return %c0_i32, %c0_i32_0, %arg0 : i32, i32, i32
  }
  func.func @transform_15(%arg0: i32) -> (i32, i32, i32) {
    %c0_i32 = arith.constant 0 : i32
    %c0_i32_0 = arith.constant 0 : i32
    %c0_i32_1 = arith.constant 0 : i32
    return %arg0, %c0_i32, %c0_i32_0 : i32, i32, i32
  }
  func.func @transform_16(%arg0: i32) -> (i32, i32, i32) {
    %c0_i32 = arith.constant 0 : i32
    %c0_i32_0 = arith.constant 0 : i32
    %c0_i32_1 = arith.constant 0 : i32
    return %arg0, %c0_i32, %c0_i32_0 : i32, i32, i32
  }
}

module attributes {stable_mosaic.version = 11 : i64} {
  func.func @_fused_block_kernel(%arg0: i32, %arg1: memref<1x8x384xbf16, #tpu.memory_space<vmem>>, %arg2: memref<1x24x128xbf16, #tpu.memory_space<vmem>>, %arg3: memref<384x128xbf16, #tpu.memory_space<vmem>>, %arg4: memref<1x128xf32, #tpu.memory_space<vmem>>, %arg5: memref<128x128xbf16, #tpu.memory_space<vmem>>, %arg6: memref<1x128xf32, #tpu.memory_space<vmem>>, %arg7: memref<1x128xf32, #tpu.memory_space<vmem>>, %arg8: memref<24x128xf32, #tpu.memory_space<vmem>>, %arg9: memref<8x128xf32, #tpu.memory_space<vmem>>, %arg10: memref<1x128xf32, #tpu.memory_space<vmem>>, %arg11: memref<1x128xf32, #tpu.memory_space<vmem>>, %arg12: memref<128x128xbf16, #tpu.memory_space<vmem>>, %arg13: memref<1x128xf32, #tpu.memory_space<vmem>>, %arg14: memref<1x128xf32, #tpu.memory_space<vmem>>, %arg15: memref<1x128xf32, #tpu.memory_space<vmem>>, %arg16: memref<128x256xbf16, #tpu.memory_space<vmem>>, %arg17: memref<1x256xf32, #tpu.memory_space<vmem>>, %arg18: memref<128x128xbf16, #tpu.memory_space<vmem>>, %arg19: memref<1x128xf32, #tpu.memory_space<vmem>>, %arg20: memref<1x128xf32, #tpu.memory_space<vmem>>, %arg21: memref<1x128xf32, #tpu.memory_space<vmem>>, %arg22: memref<128x256xbf16, #tpu.memory_space<vmem>>, %arg23: memref<1x256xf32, #tpu.memory_space<vmem>>, %arg24: memref<256x128xbf16, #tpu.memory_space<vmem>>, %arg25: memref<1x128xf32, #tpu.memory_space<vmem>>, %arg26: memref<128x128xbf16, #tpu.memory_space<vmem>>, %arg27: memref<1x128xf32, #tpu.memory_space<vmem>>, %arg28: memref<1x1x128xf32, #tpu.memory_space<vmem>>) attributes {dimension_semantics = [#tpu.dimension_semantics<parallel>], iteration_bounds = array<i64: 2>, scalar_prefetch = 0 : i64, scratch_operands = 0 : i64, tpu.core_type = #tpu.core_type<tc>, window_params = [{transform_indices = @transform_0, window_bounds = array<i64: 1, 8, 384>}, {transform_indices = @transform_1, window_bounds = array<i64: 1, 24, 128>}, {pipeline_mode = #tpu.pipeline_mode<synchronous>, transform_indices = @transform_2, window_bounds = array<i64: 384, 128>}, {pipeline_mode = #tpu.pipeline_mode<synchronous>, transform_indices = @transform_3, window_bounds = array<i64: 1, 128>}, {pipeline_mode = #tpu.pipeline_mode<synchronous>, transform_indices = @transform_4, window_bounds = array<i64: 128, 128>}, {pipeline_mode = #tpu.pipeline_mode<synchronous>, transform_indices = @transform_5, window_bounds = array<i64: 1, 128>}, {pipeline_mode = #tpu.pipeline_mode<synchronous>, transform_indices = @transform_6, window_bounds = array<i64: 1, 128>}, {pipeline_mode = #tpu.pipeline_mode<synchronous>, transform_indices = @transform_7, window_bounds = array<i64: 24, 128>}, {pipeline_mode = #tpu.pipeline_mode<synchronous>, transform_indices = @transform_8, window_bounds = array<i64: 8, 128>}, {pipeline_mode = #tpu.pipeline_mode<synchronous>, transform_indices = @transform_9, window_bounds = array<i64: 1, 128>}, {pipeline_mode = #tpu.pipeline_mode<synchronous>, transform_indices = @transform_10, window_bounds = array<i64: 1, 128>}, {pipeline_mode = #tpu.pipeline_mode<synchronous>, transform_indices = @transform_11, window_bounds = array<i64: 128, 128>}, {pipeline_mode = #tpu.pipeline_mode<synchronous>, transform_indices = @transform_12, window_bounds = array<i64: 1, 128>}, {pipeline_mode = #tpu.pipeline_mode<synchronous>, transform_indices = @transform_13, window_bounds = array<i64: 1, 128>}, {pipeline_mode = #tpu.pipeline_mode<synchronous>, transform_indices = @transform_14, window_bounds = array<i64: 1, 128>}, {pipeline_mode = #tpu.pipeline_mode<synchronous>, transform_indices = @transform_15, window_bounds = array<i64: 128, 256>}, {pipeline_mode = #tpu.pipeline_mode<synchronous>, transform_indices = @transform_16, window_bounds = array<i64: 1, 256>}, {pipeline_mode = #tpu.pipeline_mode<synchronous>, transform_indices = @transform_17, window_bounds = array<i64: 128, 128>}, {pipeline_mode = #tpu.pipeline_mode<synchronous>, transform_indices = @transform_18, window_bounds = array<i64: 1, 128>}, {pipeline_mode = #tpu.pipeline_mode<synchronous>, transform_indices = @transform_19, window_bounds = array<i64: 1, 128>}, {pipeline_mode = #tpu.pipeline_mode<synchronous>, transform_indices = @transform_20, window_bounds = array<i64: 1, 128>}, {pipeline_mode = #tpu.pipeline_mode<synchronous>, transform_indices = @transform_21, window_bounds = array<i64: 128, 256>}, {pipeline_mode = #tpu.pipeline_mode<synchronous>, transform_indices = @transform_22, window_bounds = array<i64: 1, 256>}, {pipeline_mode = #tpu.pipeline_mode<synchronous>, transform_indices = @transform_23, window_bounds = array<i64: 256, 128>}, {pipeline_mode = #tpu.pipeline_mode<synchronous>, transform_indices = @transform_24, window_bounds = array<i64: 1, 128>}, {pipeline_mode = #tpu.pipeline_mode<synchronous>, transform_indices = @transform_25, window_bounds = array<i64: 128, 128>}, {pipeline_mode = #tpu.pipeline_mode<synchronous>, transform_indices = @transform_26, window_bounds = array<i64: 1, 128>}, {transform_indices = @transform_27, window_bounds = array<i64: 1, 1, 128>}]} {
    %c0 = arith.constant 0 : index
    %c0_0 = arith.constant 0 : index
    %c0_1 = arith.constant 0 : index
    %0 = vector.load %arg1[%c0, %c0_0, %c0_1] : memref<1x8x384xbf16, #tpu.memory_space<vmem>>, vector<1x8x384xbf16>
    %1 = vector.shape_cast %0 : vector<1x8x384xbf16> to vector<8x384xbf16>
    %c0_2 = arith.constant 0 : index
    %c0_3 = arith.constant 0 : index
    %2 = vector.load %arg3[%c0_2, %c0_3] : memref<384x128xbf16, #tpu.memory_space<vmem>>, vector<384x128xbf16>
    %cst = arith.constant dense<0.000000e+00> : vector<8x128xf32>
    %3 = tpu.matmul %1, %2, %cst {dimension_numbers = #tpu.dot_dimension_numbers<[1], [0], [0], [1], [0, 0, 1, 1], [], []>} : vector<8x384xbf16>, vector<384x128xbf16>, vector<8x128xf32> -> vector<8x128xf32>
    %c0_4 = arith.constant 0 : index
    %c0_5 = arith.constant 0 : index
    %4 = vector.load %arg4[%c0_4, %c0_5] : memref<1x128xf32, #tpu.memory_space<vmem>>, vector<1x128xf32>
    %5 = vector.broadcast %4 : vector<1x128xf32> to vector<8x128xf32>
    %6 = arith.addf %3, %5 : vector<8x128xf32>
    %cst_6 = arith.constant 0.000000e+00 : f32
    %7 = vector.broadcast %cst_6 : f32 to vector<8x128xf32>
    %8 = arith.cmpf ogt, %6, %7 : vector<8x128xf32>
    %cst_7 = arith.constant 1.000000e-01 : f32
    %9 = vector.broadcast %cst_7 : f32 to vector<8x128xf32>
    %10 = arith.mulf %9, %6 : vector<8x128xf32>
    %11 = arith.select %8, %6, %10 : vector<8x128xi1>, vector<8x128xf32>
    %12 = arith.truncf %11 : vector<8x128xf32> to vector<8x128xbf16>
    %c0_8 = arith.constant 0 : index
    %c0_9 = arith.constant 0 : index
    %13 = vector.load %arg5[%c0_8, %c0_9] : memref<128x128xbf16, #tpu.memory_space<vmem>>, vector<128x128xbf16>
    %cst_10 = arith.constant dense<0.000000e+00> : vector<8x128xf32>
    %14 = tpu.matmul %12, %13, %cst_10 {dimension_numbers = #tpu.dot_dimension_numbers<[1], [0], [0], [1], [0, 0, 1, 1], [], []>} : vector<8x128xbf16>, vector<128x128xbf16>, vector<8x128xf32> -> vector<8x128xf32>
    %c0_11 = arith.constant 0 : index
    %c0_12 = arith.constant 0 : index
    %15 = vector.load %arg6[%c0_11, %c0_12] : memref<1x128xf32, #tpu.memory_space<vmem>>, vector<1x128xf32>
    %16 = vector.broadcast %15 : vector<1x128xf32> to vector<8x128xf32>
    %17 = arith.addf %14, %16 : vector<8x128xf32>
    %c0_13 = arith.constant 0 : index
    %c0_14 = arith.constant 0 : index
    %c0_15 = arith.constant 0 : index
    %18 = vector.load %arg2[%c0_13, %c0_14, %c0_15] : memref<1x24x128xbf16, #tpu.memory_space<vmem>>, vector<1x24x128xbf16>
    %19 = vector.shape_cast %18 : vector<1x24x128xbf16> to vector<24x128xbf16>
    %20 = arith.extf %19 : vector<24x128xbf16> to vector<24x128xf32>
    %c0_16 = arith.constant 0 : index
    %c0_17 = arith.constant 0 : index
    %21 = vector.load %arg8[%c0_16, %c0_17] : memref<24x128xf32, #tpu.memory_space<vmem>>, vector<24x128xf32>
    %22 = arith.addf %20, %21 : vector<24x128xf32>
    %c0_18 = arith.constant 0 : index
    %c0_19 = arith.constant 0 : index
    %23 = vector.load %arg7[%c0_18, %c0_19] : memref<1x128xf32, #tpu.memory_space<vmem>>, vector<1x128xf32>
    %24 = tpu.concatenate %22, %23 in 0 : vector<24x128xf32>, vector<1x128xf32> -> vector<25x128xf32>
    %c0_20 = arith.constant 0 : index
    %c0_21 = arith.constant 0 : index
    %25 = vector.load %arg9[%c0_20, %c0_21] : memref<8x128xf32, #tpu.memory_space<vmem>>, vector<8x128xf32>
    %26 = arith.addf %17, %25 : vector<8x128xf32>
    %c0_22 = arith.constant 0 : index
    %c0_23 = arith.constant 0 : index
    %27 = vector.load %arg10[%c0_22, %c0_23] : memref<1x128xf32, #tpu.memory_space<vmem>>, vector<1x128xf32>
    %c0_24 = arith.constant 0 : index
    %c0_25 = arith.constant 0 : index
    %28 = vector.load %arg11[%c0_24, %c0_25] : memref<1x128xf32, #tpu.memory_space<vmem>>, vector<1x128xf32>
    %cst_26 = arith.constant dense<0.000000e+00> : vector<8xf32>
    %29 = vector.multi_reduction <add>, %26, %cst_26 [1] : vector<8x128xf32> to vector<8xf32>
    %30 = vector.shape_cast %29 : vector<8xf32> to vector<8x1xf32>
    %cst_27 = arith.constant 1.280000e+02 : f32
    %31 = vector.broadcast %cst_27 : f32 to vector<8x1xf32>
    %32 = arith.divf %30, %31 : vector<8x1xf32>
    %33 = vector.broadcast %32 : vector<8x1xf32> to vector<8x128xf32>
    %34 = arith.subf %26, %33 : vector<8x128xf32>
    %35 = arith.mulf %34, %34 : vector<8x128xf32>
    %cst_28 = arith.constant dense<0.000000e+00> : vector<8xf32>
    %36 = vector.multi_reduction <add>, %35, %cst_28 [1] : vector<8x128xf32> to vector<8xf32>
    %37 = vector.shape_cast %36 : vector<8xf32> to vector<8x1xf32>
    %cst_29 = arith.constant 1.280000e+02 : f32
    %38 = vector.broadcast %cst_29 : f32 to vector<8x1xf32>
    %39 = arith.divf %37, %38 : vector<8x1xf32>
    %40 = vector.broadcast %32 : vector<8x1xf32> to vector<8x128xf32>
    %41 = arith.subf %26, %40 : vector<8x128xf32>
    %cst_30 = arith.constant 9.99999974E-6 : f32
    %42 = vector.broadcast %cst_30 : f32 to vector<8x1xf32>
    %43 = arith.addf %39, %42 : vector<8x1xf32>
    %44 = math.rsqrt %43 : vector<8x1xf32>
    %45 = vector.broadcast %44 : vector<8x1xf32> to vector<8x128xf32>
    %46 = arith.mulf %41, %45 : vector<8x128xf32>
    %47 = vector.broadcast %27 : vector<1x128xf32> to vector<8x128xf32>
    %48 = arith.mulf %46, %47 : vector<8x128xf32>
    %49 = vector.broadcast %28 : vector<1x128xf32> to vector<8x128xf32>
    %50 = arith.addf %48, %49 : vector<8x128xf32>
    %51 = arith.truncf %50 : vector<8x128xf32> to vector<8x128xbf16>
    %c0_31 = arith.constant 0 : index
    %c0_32 = arith.constant 0 : index
    %52 = vector.load %arg12[%c0_31, %c0_32] : memref<128x128xbf16, #tpu.memory_space<vmem>>, vector<128x128xbf16>
    %cst_33 = arith.constant dense<0.000000e+00> : vector<8x128xf32>
    %53 = tpu.matmul %51, %52, %cst_33 {dimension_numbers = #tpu.dot_dimension_numbers<[1], [0], [0], [1], [0, 0, 1, 1], [], []>} : vector<8x128xbf16>, vector<128x128xbf16>, vector<8x128xf32> -> vector<8x128xf32>
    %c0_34 = arith.constant 0 : index
    %c0_35 = arith.constant 0 : index
    %54 = vector.load %arg13[%c0_34, %c0_35] : memref<1x128xf32, #tpu.memory_space<vmem>>, vector<1x128xf32>
    %55 = vector.broadcast %54 : vector<1x128xf32> to vector<8x128xf32>
    %56 = arith.addf %53, %55 : vector<8x128xf32>
    %c0_36 = arith.constant 0 : index
    %c0_37 = arith.constant 0 : index
    %57 = vector.load %arg14[%c0_36, %c0_37] : memref<1x128xf32, #tpu.memory_space<vmem>>, vector<1x128xf32>
    %c0_38 = arith.constant 0 : index
    %c0_39 = arith.constant 0 : index
    %58 = vector.load %arg15[%c0_38, %c0_39] : memref<1x128xf32, #tpu.memory_space<vmem>>, vector<1x128xf32>
    %cst_40 = arith.constant dense<0.000000e+00> : vector<25xf32>
    %59 = vector.multi_reduction <add>, %24, %cst_40 [1] : vector<25x128xf32> to vector<25xf32>
    %60 = vector.shape_cast %59 : vector<25xf32> to vector<25x1xf32>
    %cst_41 = arith.constant 1.280000e+02 : f32
    %61 = vector.broadcast %cst_41 : f32 to vector<25x1xf32>
    %62 = arith.divf %60, %61 : vector<25x1xf32>
    %63 = vector.broadcast %62 : vector<25x1xf32> to vector<25x128xf32>
    %64 = arith.subf %24, %63 : vector<25x128xf32>
    %65 = arith.mulf %64, %64 : vector<25x128xf32>
    %cst_42 = arith.constant dense<0.000000e+00> : vector<25xf32>
    %66 = vector.multi_reduction <add>, %65, %cst_42 [1] : vector<25x128xf32> to vector<25xf32>
    %67 = vector.shape_cast %66 : vector<25xf32> to vector<25x1xf32>
    %cst_43 = arith.constant 1.280000e+02 : f32
    %68 = vector.broadcast %cst_43 : f32 to vector<25x1xf32>
    %69 = arith.divf %67, %68 : vector<25x1xf32>
    %70 = vector.broadcast %62 : vector<25x1xf32> to vector<25x128xf32>
    %71 = arith.subf %24, %70 : vector<25x128xf32>
    %cst_44 = arith.constant 9.99999974E-6 : f32
    %72 = vector.broadcast %cst_44 : f32 to vector<25x1xf32>
    %73 = arith.addf %69, %72 : vector<25x1xf32>
    %74 = math.rsqrt %73 : vector<25x1xf32>
    %75 = vector.broadcast %74 : vector<25x1xf32> to vector<25x128xf32>
    %76 = arith.mulf %71, %75 : vector<25x128xf32>
    %77 = vector.broadcast %57 : vector<1x128xf32> to vector<25x128xf32>
    %78 = arith.mulf %76, %77 : vector<25x128xf32>
    %79 = vector.broadcast %58 : vector<1x128xf32> to vector<25x128xf32>
    %80 = arith.addf %78, %79 : vector<25x128xf32>
    %81 = arith.truncf %80 : vector<25x128xf32> to vector<25x128xbf16>
    %c0_45 = arith.constant 0 : index
    %c0_46 = arith.constant 0 : index
    %82 = vector.load %arg16[%c0_45, %c0_46] : memref<128x256xbf16, #tpu.memory_space<vmem>>, vector<128x256xbf16>
    %cst_47 = arith.constant dense<0.000000e+00> : vector<25x256xf32>
    %83 = tpu.matmul %81, %82, %cst_47 {dimension_numbers = #tpu.dot_dimension_numbers<[1], [0], [0], [1], [0, 0, 1, 1], [], []>} : vector<25x128xbf16>, vector<128x256xbf16>, vector<25x256xf32> -> vector<25x256xf32>
    %c0_48 = arith.constant 0 : index
    %c0_49 = arith.constant 0 : index
    %84 = vector.load %arg17[%c0_48, %c0_49] : memref<1x256xf32, #tpu.memory_space<vmem>>, vector<1x256xf32>
    %85 = vector.broadcast %84 : vector<1x256xf32> to vector<25x256xf32>
    %86 = arith.addf %83, %85 : vector<25x256xf32>
    %87 = vector.extract_strided_slice %86 {offsets = [0, 0], sizes = [25, 128], strides = [1, 1]} : vector<25x256xf32> to vector<25x128xf32>
    %88 = vector.extract_strided_slice %86 {offsets = [0, 128], sizes = [25, 128], strides = [1, 1]} : vector<25x256xf32> to vector<25x128xf32>
    %89 = vector.extract_strided_slice %56 {offsets = [0, 0], sizes = [8, 16], strides = [1, 1]} : vector<8x128xf32> to vector<8x16xf32>
    %90 = arith.truncf %89 : vector<8x16xf32> to vector<8x16xbf16>
    %91 = vector.extract_strided_slice %87 {offsets = [0, 0], sizes = [25, 16], strides = [1, 1]} : vector<25x128xf32> to vector<25x16xf32>
    %92 = arith.truncf %91 : vector<25x16xf32> to vector<25x16xbf16>
    %93 = vector.extract_strided_slice %88 {offsets = [0, 0], sizes = [25, 16], strides = [1, 1]} : vector<25x128xf32> to vector<25x16xf32>
    %94 = arith.truncf %93 : vector<25x16xf32> to vector<25x16xbf16>
    %cst_50 = arith.constant dense<0.000000e+00> : vector<8x25xf32>
    %95 = tpu.matmul %90, %92, %cst_50 {dimension_numbers = #tpu.dot_dimension_numbers<[1], [1], [0], [0], [0, 0, 1, 0], [], []>} : vector<8x16xbf16>, vector<25x16xbf16>, vector<8x25xf32> -> vector<8x25xf32>
    %cst_51 = arith.constant 2.500000e-01 : f32
    %96 = vector.broadcast %cst_51 : f32 to vector<8x25xf32>
    %97 = arith.mulf %95, %96 : vector<8x25xf32>
    %cst_52 = arith.constant dense<0xFF800000> : vector<8xf32>
    %98 = vector.multi_reduction <maximumf>, %97, %cst_52 [1] : vector<8x25xf32> to vector<8xf32>
    %99 = vector.shape_cast %98 : vector<8xf32> to vector<8x1xf32>
    %100 = vector.broadcast %99 : vector<8x1xf32> to vector<8x25xf32>
    %101 = arith.subf %97, %100 : vector<8x25xf32>
    %102 = math.exp %101 : vector<8x25xf32>
    %cst_53 = arith.constant dense<0.000000e+00> : vector<8xf32>
    %103 = vector.multi_reduction <add>, %102, %cst_53 [1] : vector<8x25xf32> to vector<8xf32>
    %104 = vector.shape_cast %103 : vector<8xf32> to vector<8x1xf32>
    %105 = tpu.reciprocal %104 {approx = true} : vector<8x1xf32> -> vector<8x1xf32>
    %106 = vector.broadcast %105 : vector<8x1xf32> to vector<8x25xf32>
    %107 = arith.mulf %102, %106 : vector<8x25xf32>
    %108 = arith.truncf %107 : vector<8x25xf32> to vector<8x25xbf16>
    %cst_54 = arith.constant dense<0.000000e+00> : vector<8x16xf32>
    %109 = tpu.matmul %108, %94, %cst_54 {dimension_numbers = #tpu.dot_dimension_numbers<[1], [0], [0], [1], [0, 0, 1, 1], [], []>} : vector<8x25xbf16>, vector<25x16xbf16>, vector<8x16xf32> -> vector<8x16xf32>
    %110 = vector.extract_strided_slice %56 {offsets = [0, 16], sizes = [8, 16], strides = [1, 1]} : vector<8x128xf32> to vector<8x16xf32>
    %111 = arith.truncf %110 : vector<8x16xf32> to vector<8x16xbf16>
    %112 = vector.extract_strided_slice %87 {offsets = [0, 16], sizes = [25, 16], strides = [1, 1]} : vector<25x128xf32> to vector<25x16xf32>
    %113 = arith.truncf %112 : vector<25x16xf32> to vector<25x16xbf16>
    %114 = vector.extract_strided_slice %88 {offsets = [0, 16], sizes = [25, 16], strides = [1, 1]} : vector<25x128xf32> to vector<25x16xf32>
    %115 = arith.truncf %114 : vector<25x16xf32> to vector<25x16xbf16>
    %cst_55 = arith.constant dense<0.000000e+00> : vector<8x25xf32>
    %116 = tpu.matmul %111, %113, %cst_55 {dimension_numbers = #tpu.dot_dimension_numbers<[1], [1], [0], [0], [0, 0, 1, 0], [], []>} : vector<8x16xbf16>, vector<25x16xbf16>, vector<8x25xf32> -> vector<8x25xf32>
    %cst_56 = arith.constant 2.500000e-01 : f32
    %117 = vector.broadcast %cst_56 : f32 to vector<8x25xf32>
    %118 = arith.mulf %116, %117 : vector<8x25xf32>
    %cst_57 = arith.constant dense<0xFF800000> : vector<8xf32>
    %119 = vector.multi_reduction <maximumf>, %118, %cst_57 [1] : vector<8x25xf32> to vector<8xf32>
    %120 = vector.shape_cast %119 : vector<8xf32> to vector<8x1xf32>
    %121 = vector.broadcast %120 : vector<8x1xf32> to vector<8x25xf32>
    %122 = arith.subf %118, %121 : vector<8x25xf32>
    %123 = math.exp %122 : vector<8x25xf32>
    %cst_58 = arith.constant dense<0.000000e+00> : vector<8xf32>
    %124 = vector.multi_reduction <add>, %123, %cst_58 [1] : vector<8x25xf32> to vector<8xf32>
    %125 = vector.shape_cast %124 : vector<8xf32> to vector<8x1xf32>
    %126 = tpu.reciprocal %125 {approx = true} : vector<8x1xf32> -> vector<8x1xf32>
    %127 = vector.broadcast %126 : vector<8x1xf32> to vector<8x25xf32>
    %128 = arith.mulf %123, %127 : vector<8x25xf32>
    %129 = arith.truncf %128 : vector<8x25xf32> to vector<8x25xbf16>
    %cst_59 = arith.constant dense<0.000000e+00> : vector<8x16xf32>
    %130 = tpu.matmul %129, %115, %cst_59 {dimension_numbers = #tpu.dot_dimension_numbers<[1], [0], [0], [1], [0, 0, 1, 1], [], []>} : vector<8x25xbf16>, vector<25x16xbf16>, vector<8x16xf32> -> vector<8x16xf32>
    %131 = vector.extract_strided_slice %56 {offsets = [0, 32], sizes = [8, 16], strides = [1, 1]} : vector<8x128xf32> to vector<8x16xf32>
    %132 = arith.truncf %131 : vector<8x16xf32> to vector<8x16xbf16>
    %133 = vector.extract_strided_slice %87 {offsets = [0, 32], sizes = [25, 16], strides = [1, 1]} : vector<25x128xf32> to vector<25x16xf32>
    %134 = arith.truncf %133 : vector<25x16xf32> to vector<25x16xbf16>
    %135 = vector.extract_strided_slice %88 {offsets = [0, 32], sizes = [25, 16], strides = [1, 1]} : vector<25x128xf32> to vector<25x16xf32>
    %136 = arith.truncf %135 : vector<25x16xf32> to vector<25x16xbf16>
    %cst_60 = arith.constant dense<0.000000e+00> : vector<8x25xf32>
    %137 = tpu.matmul %132, %134, %cst_60 {dimension_numbers = #tpu.dot_dimension_numbers<[1], [1], [0], [0], [0, 0, 1, 0], [], []>} : vector<8x16xbf16>, vector<25x16xbf16>, vector<8x25xf32> -> vector<8x25xf32>
    %cst_61 = arith.constant 2.500000e-01 : f32
    %138 = vector.broadcast %cst_61 : f32 to vector<8x25xf32>
    %139 = arith.mulf %137, %138 : vector<8x25xf32>
    %cst_62 = arith.constant dense<0xFF800000> : vector<8xf32>
    %140 = vector.multi_reduction <maximumf>, %139, %cst_62 [1] : vector<8x25xf32> to vector<8xf32>
    %141 = vector.shape_cast %140 : vector<8xf32> to vector<8x1xf32>
    %142 = vector.broadcast %141 : vector<8x1xf32> to vector<8x25xf32>
    %143 = arith.subf %139, %142 : vector<8x25xf32>
    %144 = math.exp %143 : vector<8x25xf32>
    %cst_63 = arith.constant dense<0.000000e+00> : vector<8xf32>
    %145 = vector.multi_reduction <add>, %144, %cst_63 [1] : vector<8x25xf32> to vector<8xf32>
    %146 = vector.shape_cast %145 : vector<8xf32> to vector<8x1xf32>
    %147 = tpu.reciprocal %146 {approx = true} : vector<8x1xf32> -> vector<8x1xf32>
    %148 = vector.broadcast %147 : vector<8x1xf32> to vector<8x25xf32>
    %149 = arith.mulf %144, %148 : vector<8x25xf32>
    %150 = arith.truncf %149 : vector<8x25xf32> to vector<8x25xbf16>
    %cst_64 = arith.constant dense<0.000000e+00> : vector<8x16xf32>
    %151 = tpu.matmul %150, %136, %cst_64 {dimension_numbers = #tpu.dot_dimension_numbers<[1], [0], [0], [1], [0, 0, 1, 1], [], []>} : vector<8x25xbf16>, vector<25x16xbf16>, vector<8x16xf32> -> vector<8x16xf32>
    %152 = vector.extract_strided_slice %56 {offsets = [0, 48], sizes = [8, 16], strides = [1, 1]} : vector<8x128xf32> to vector<8x16xf32>
    %153 = arith.truncf %152 : vector<8x16xf32> to vector<8x16xbf16>
    %154 = vector.extract_strided_slice %87 {offsets = [0, 48], sizes = [25, 16], strides = [1, 1]} : vector<25x128xf32> to vector<25x16xf32>
    %155 = arith.truncf %154 : vector<25x16xf32> to vector<25x16xbf16>
    %156 = vector.extract_strided_slice %88 {offsets = [0, 48], sizes = [25, 16], strides = [1, 1]} : vector<25x128xf32> to vector<25x16xf32>
    %157 = arith.truncf %156 : vector<25x16xf32> to vector<25x16xbf16>
    %cst_65 = arith.constant dense<0.000000e+00> : vector<8x25xf32>
    %158 = tpu.matmul %153, %155, %cst_65 {dimension_numbers = #tpu.dot_dimension_numbers<[1], [1], [0], [0], [0, 0, 1, 0], [], []>} : vector<8x16xbf16>, vector<25x16xbf16>, vector<8x25xf32> -> vector<8x25xf32>
    %cst_66 = arith.constant 2.500000e-01 : f32
    %159 = vector.broadcast %cst_66 : f32 to vector<8x25xf32>
    %160 = arith.mulf %158, %159 : vector<8x25xf32>
    %cst_67 = arith.constant dense<0xFF800000> : vector<8xf32>
    %161 = vector.multi_reduction <maximumf>, %160, %cst_67 [1] : vector<8x25xf32> to vector<8xf32>
    %162 = vector.shape_cast %161 : vector<8xf32> to vector<8x1xf32>
    %163 = vector.broadcast %162 : vector<8x1xf32> to vector<8x25xf32>
    %164 = arith.subf %160, %163 : vector<8x25xf32>
    %165 = math.exp %164 : vector<8x25xf32>
    %cst_68 = arith.constant dense<0.000000e+00> : vector<8xf32>
    %166 = vector.multi_reduction <add>, %165, %cst_68 [1] : vector<8x25xf32> to vector<8xf32>
    %167 = vector.shape_cast %166 : vector<8xf32> to vector<8x1xf32>
    %168 = tpu.reciprocal %167 {approx = true} : vector<8x1xf32> -> vector<8x1xf32>
    %169 = vector.broadcast %168 : vector<8x1xf32> to vector<8x25xf32>
    %170 = arith.mulf %165, %169 : vector<8x25xf32>
    %171 = arith.truncf %170 : vector<8x25xf32> to vector<8x25xbf16>
    %cst_69 = arith.constant dense<0.000000e+00> : vector<8x16xf32>
    %172 = tpu.matmul %171, %157, %cst_69 {dimension_numbers = #tpu.dot_dimension_numbers<[1], [0], [0], [1], [0, 0, 1, 1], [], []>} : vector<8x25xbf16>, vector<25x16xbf16>, vector<8x16xf32> -> vector<8x16xf32>
    %173 = vector.extract_strided_slice %56 {offsets = [0, 64], sizes = [8, 16], strides = [1, 1]} : vector<8x128xf32> to vector<8x16xf32>
    %174 = arith.truncf %173 : vector<8x16xf32> to vector<8x16xbf16>
    %175 = vector.extract_strided_slice %87 {offsets = [0, 64], sizes = [25, 16], strides = [1, 1]} : vector<25x128xf32> to vector<25x16xf32>
    %176 = arith.truncf %175 : vector<25x16xf32> to vector<25x16xbf16>
    %177 = vector.extract_strided_slice %88 {offsets = [0, 64], sizes = [25, 16], strides = [1, 1]} : vector<25x128xf32> to vector<25x16xf32>
    %178 = arith.truncf %177 : vector<25x16xf32> to vector<25x16xbf16>
    %cst_70 = arith.constant dense<0.000000e+00> : vector<8x25xf32>
    %179 = tpu.matmul %174, %176, %cst_70 {dimension_numbers = #tpu.dot_dimension_numbers<[1], [1], [0], [0], [0, 0, 1, 0], [], []>} : vector<8x16xbf16>, vector<25x16xbf16>, vector<8x25xf32> -> vector<8x25xf32>
    %cst_71 = arith.constant 2.500000e-01 : f32
    %180 = vector.broadcast %cst_71 : f32 to vector<8x25xf32>
    %181 = arith.mulf %179, %180 : vector<8x25xf32>
    %cst_72 = arith.constant dense<0xFF800000> : vector<8xf32>
    %182 = vector.multi_reduction <maximumf>, %181, %cst_72 [1] : vector<8x25xf32> to vector<8xf32>
    %183 = vector.shape_cast %182 : vector<8xf32> to vector<8x1xf32>
    %184 = vector.broadcast %183 : vector<8x1xf32> to vector<8x25xf32>
    %185 = arith.subf %181, %184 : vector<8x25xf32>
    %186 = math.exp %185 : vector<8x25xf32>
    %cst_73 = arith.constant dense<0.000000e+00> : vector<8xf32>
    %187 = vector.multi_reduction <add>, %186, %cst_73 [1] : vector<8x25xf32> to vector<8xf32>
    %188 = vector.shape_cast %187 : vector<8xf32> to vector<8x1xf32>
    %189 = tpu.reciprocal %188 {approx = true} : vector<8x1xf32> -> vector<8x1xf32>
    %190 = vector.broadcast %189 : vector<8x1xf32> to vector<8x25xf32>
    %191 = arith.mulf %186, %190 : vector<8x25xf32>
    %192 = arith.truncf %191 : vector<8x25xf32> to vector<8x25xbf16>
    %cst_74 = arith.constant dense<0.000000e+00> : vector<8x16xf32>
    %193 = tpu.matmul %192, %178, %cst_74 {dimension_numbers = #tpu.dot_dimension_numbers<[1], [0], [0], [1], [0, 0, 1, 1], [], []>} : vector<8x25xbf16>, vector<25x16xbf16>, vector<8x16xf32> -> vector<8x16xf32>
    %194 = vector.extract_strided_slice %56 {offsets = [0, 80], sizes = [8, 16], strides = [1, 1]} : vector<8x128xf32> to vector<8x16xf32>
    %195 = arith.truncf %194 : vector<8x16xf32> to vector<8x16xbf16>
    %196 = vector.extract_strided_slice %87 {offsets = [0, 80], sizes = [25, 16], strides = [1, 1]} : vector<25x128xf32> to vector<25x16xf32>
    %197 = arith.truncf %196 : vector<25x16xf32> to vector<25x16xbf16>
    %198 = vector.extract_strided_slice %88 {offsets = [0, 80], sizes = [25, 16], strides = [1, 1]} : vector<25x128xf32> to vector<25x16xf32>
    %199 = arith.truncf %198 : vector<25x16xf32> to vector<25x16xbf16>
    %cst_75 = arith.constant dense<0.000000e+00> : vector<8x25xf32>
    %200 = tpu.matmul %195, %197, %cst_75 {dimension_numbers = #tpu.dot_dimension_numbers<[1], [1], [0], [0], [0, 0, 1, 0], [], []>} : vector<8x16xbf16>, vector<25x16xbf16>, vector<8x25xf32> -> vector<8x25xf32>
    %cst_76 = arith.constant 2.500000e-01 : f32
    %201 = vector.broadcast %cst_76 : f32 to vector<8x25xf32>
    %202 = arith.mulf %200, %201 : vector<8x25xf32>
    %cst_77 = arith.constant dense<0xFF800000> : vector<8xf32>
    %203 = vector.multi_reduction <maximumf>, %202, %cst_77 [1] : vector<8x25xf32> to vector<8xf32>
    %204 = vector.shape_cast %203 : vector<8xf32> to vector<8x1xf32>
    %205 = vector.broadcast %204 : vector<8x1xf32> to vector<8x25xf32>
    %206 = arith.subf %202, %205 : vector<8x25xf32>
    %207 = math.exp %206 : vector<8x25xf32>
    %cst_78 = arith.constant dense<0.000000e+00> : vector<8xf32>
    %208 = vector.multi_reduction <add>, %207, %cst_78 [1] : vector<8x25xf32> to vector<8xf32>
    %209 = vector.shape_cast %208 : vector<8xf32> to vector<8x1xf32>
    %210 = tpu.reciprocal %209 {approx = true} : vector<8x1xf32> -> vector<8x1xf32>
    %211 = vector.broadcast %210 : vector<8x1xf32> to vector<8x25xf32>
    %212 = arith.mulf %207, %211 : vector<8x25xf32>
    %213 = arith.truncf %212 : vector<8x25xf32> to vector<8x25xbf16>
    %cst_79 = arith.constant dense<0.000000e+00> : vector<8x16xf32>
    %214 = tpu.matmul %213, %199, %cst_79 {dimension_numbers = #tpu.dot_dimension_numbers<[1], [0], [0], [1], [0, 0, 1, 1], [], []>} : vector<8x25xbf16>, vector<25x16xbf16>, vector<8x16xf32> -> vector<8x16xf32>
    %215 = vector.extract_strided_slice %56 {offsets = [0, 96], sizes = [8, 16], strides = [1, 1]} : vector<8x128xf32> to vector<8x16xf32>
    %216 = arith.truncf %215 : vector<8x16xf32> to vector<8x16xbf16>
    %217 = vector.extract_strided_slice %87 {offsets = [0, 96], sizes = [25, 16], strides = [1, 1]} : vector<25x128xf32> to vector<25x16xf32>
    %218 = arith.truncf %217 : vector<25x16xf32> to vector<25x16xbf16>
    %219 = vector.extract_strided_slice %88 {offsets = [0, 96], sizes = [25, 16], strides = [1, 1]} : vector<25x128xf32> to vector<25x16xf32>
    %220 = arith.truncf %219 : vector<25x16xf32> to vector<25x16xbf16>
    %cst_80 = arith.constant dense<0.000000e+00> : vector<8x25xf32>
    %221 = tpu.matmul %216, %218, %cst_80 {dimension_numbers = #tpu.dot_dimension_numbers<[1], [1], [0], [0], [0, 0, 1, 0], [], []>} : vector<8x16xbf16>, vector<25x16xbf16>, vector<8x25xf32> -> vector<8x25xf32>
    %cst_81 = arith.constant 2.500000e-01 : f32
    %222 = vector.broadcast %cst_81 : f32 to vector<8x25xf32>
    %223 = arith.mulf %221, %222 : vector<8x25xf32>
    %cst_82 = arith.constant dense<0xFF800000> : vector<8xf32>
    %224 = vector.multi_reduction <maximumf>, %223, %cst_82 [1] : vector<8x25xf32> to vector<8xf32>
    %225 = vector.shape_cast %224 : vector<8xf32> to vector<8x1xf32>
    %226 = vector.broadcast %225 : vector<8x1xf32> to vector<8x25xf32>
    %227 = arith.subf %223, %226 : vector<8x25xf32>
    %228 = math.exp %227 : vector<8x25xf32>
    %cst_83 = arith.constant dense<0.000000e+00> : vector<8xf32>
    %229 = vector.multi_reduction <add>, %228, %cst_83 [1] : vector<8x25xf32> to vector<8xf32>
    %230 = vector.shape_cast %229 : vector<8xf32> to vector<8x1xf32>
    %231 = tpu.reciprocal %230 {approx = true} : vector<8x1xf32> -> vector<8x1xf32>
    %232 = vector.broadcast %231 : vector<8x1xf32> to vector<8x25xf32>
    %233 = arith.mulf %228, %232 : vector<8x25xf32>
    %234 = arith.truncf %233 : vector<8x25xf32> to vector<8x25xbf16>
    %cst_84 = arith.constant dense<0.000000e+00> : vector<8x16xf32>
    %235 = tpu.matmul %234, %220, %cst_84 {dimension_numbers = #tpu.dot_dimension_numbers<[1], [0], [0], [1], [0, 0, 1, 1], [], []>} : vector<8x25xbf16>, vector<25x16xbf16>, vector<8x16xf32> -> vector<8x16xf32>
    %236 = vector.extract_strided_slice %56 {offsets = [0, 112], sizes = [8, 16], strides = [1, 1]} : vector<8x128xf32> to vector<8x16xf32>
    %237 = arith.truncf %236 : vector<8x16xf32> to vector<8x16xbf16>
    %238 = vector.extract_strided_slice %87 {offsets = [0, 112], sizes = [25, 16], strides = [1, 1]} : vector<25x128xf32> to vector<25x16xf32>
    %239 = arith.truncf %238 : vector<25x16xf32> to vector<25x16xbf16>
    %240 = vector.extract_strided_slice %88 {offsets = [0, 112], sizes = [25, 16], strides = [1, 1]} : vector<25x128xf32> to vector<25x16xf32>
    %241 = arith.truncf %240 : vector<25x16xf32> to vector<25x16xbf16>
    %cst_85 = arith.constant dense<0.000000e+00> : vector<8x25xf32>
    %242 = tpu.matmul %237, %239, %cst_85 {dimension_numbers = #tpu.dot_dimension_numbers<[1], [1], [0], [0], [0, 0, 1, 0], [], []>} : vector<8x16xbf16>, vector<25x16xbf16>, vector<8x25xf32> -> vector<8x25xf32>
    %cst_86 = arith.constant 2.500000e-01 : f32
    %243 = vector.broadcast %cst_86 : f32 to vector<8x25xf32>
    %244 = arith.mulf %242, %243 : vector<8x25xf32>
    %cst_87 = arith.constant dense<0xFF800000> : vector<8xf32>
    %245 = vector.multi_reduction <maximumf>, %244, %cst_87 [1] : vector<8x25xf32> to vector<8xf32>
    %246 = vector.shape_cast %245 : vector<8xf32> to vector<8x1xf32>
    %247 = vector.broadcast %246 : vector<8x1xf32> to vector<8x25xf32>
    %248 = arith.subf %244, %247 : vector<8x25xf32>
    %249 = math.exp %248 : vector<8x25xf32>
    %cst_88 = arith.constant dense<0.000000e+00> : vector<8xf32>
    %250 = vector.multi_reduction <add>, %249, %cst_88 [1] : vector<8x25xf32> to vector<8xf32>
    %251 = vector.shape_cast %250 : vector<8xf32> to vector<8x1xf32>
    %252 = tpu.reciprocal %251 {approx = true} : vector<8x1xf32> -> vector<8x1xf32>
    %253 = vector.broadcast %252 : vector<8x1xf32> to vector<8x25xf32>
    %254 = arith.mulf %249, %253 : vector<8x25xf32>
    %255 = arith.truncf %254 : vector<8x25xf32> to vector<8x25xbf16>
    %cst_89 = arith.constant dense<0.000000e+00> : vector<8x16xf32>
    %256 = tpu.matmul %255, %241, %cst_89 {dimension_numbers = #tpu.dot_dimension_numbers<[1], [0], [0], [1], [0, 0, 1, 1], [], []>} : vector<8x25xbf16>, vector<25x16xbf16>, vector<8x16xf32> -> vector<8x16xf32>
    %257 = tpu.concatenate %109, %130, %151, %172, %193, %214, %235, %256 in 1 : vector<8x16xf32>, vector<8x16xf32>, vector<8x16xf32>, vector<8x16xf32>, vector<8x16xf32>, vector<8x16xf32>, vector<8x16xf32>, vector<8x16xf32> -> vector<8x128xf32>
    %258 = arith.truncf %257 : vector<8x128xf32> to vector<8x128xbf16>
    %c0_90 = arith.constant 0 : index
    %c0_91 = arith.constant 0 : index
    %259 = vector.load %arg18[%c0_90, %c0_91] : memref<128x128xbf16, #tpu.memory_space<vmem>>, vector<128x128xbf16>
    %cst_92 = arith.constant dense<0.000000e+00> : vector<8x128xf32>
    %260 = tpu.matmul %258, %259, %cst_92 {dimension_numbers = #tpu.dot_dimension_numbers<[1], [0], [0], [1], [0, 0, 1, 1], [], []>} : vector<8x128xbf16>, vector<128x128xbf16>, vector<8x128xf32> -> vector<8x128xf32>
    %c0_93 = arith.constant 0 : index
    %c0_94 = arith.constant 0 : index
    %261 = vector.load %arg19[%c0_93, %c0_94] : memref<1x128xf32, #tpu.memory_space<vmem>>, vector<1x128xf32>
    %262 = vector.broadcast %261 : vector<1x128xf32> to vector<8x128xf32>
    %263 = arith.addf %260, %262 : vector<8x128xf32>
    %264 = arith.addf %26, %263 : vector<8x128xf32>
    %c0_95 = arith.constant 0 : index
    %c0_96 = arith.constant 0 : index
    %265 = vector.load %arg20[%c0_95, %c0_96] : memref<1x128xf32, #tpu.memory_space<vmem>>, vector<1x128xf32>
    %c0_97 = arith.constant 0 : index
    %c0_98 = arith.constant 0 : index
    %266 = vector.load %arg21[%c0_97, %c0_98] : memref<1x128xf32, #tpu.memory_space<vmem>>, vector<1x128xf32>
    %cst_99 = arith.constant dense<0.000000e+00> : vector<8xf32>
    %267 = vector.multi_reduction <add>, %264, %cst_99 [1] : vector<8x128xf32> to vector<8xf32>
    %268 = vector.shape_cast %267 : vector<8xf32> to vector<8x1xf32>
    %cst_100 = arith.constant 1.280000e+02 : f32
    %269 = vector.broadcast %cst_100 : f32 to vector<8x1xf32>
    %270 = arith.divf %268, %269 : vector<8x1xf32>
    %271 = vector.broadcast %270 : vector<8x1xf32> to vector<8x128xf32>
    %272 = arith.subf %264, %271 : vector<8x128xf32>
    %273 = arith.mulf %272, %272 : vector<8x128xf32>
    %cst_101 = arith.constant dense<0.000000e+00> : vector<8xf32>
    %274 = vector.multi_reduction <add>, %273, %cst_101 [1] : vector<8x128xf32> to vector<8xf32>
    %275 = vector.shape_cast %274 : vector<8xf32> to vector<8x1xf32>
    %cst_102 = arith.constant 1.280000e+02 : f32
    %276 = vector.broadcast %cst_102 : f32 to vector<8x1xf32>
    %277 = arith.divf %275, %276 : vector<8x1xf32>
    %278 = vector.broadcast %270 : vector<8x1xf32> to vector<8x128xf32>
    %279 = arith.subf %264, %278 : vector<8x128xf32>
    %cst_103 = arith.constant 9.99999974E-6 : f32
    %280 = vector.broadcast %cst_103 : f32 to vector<8x1xf32>
    %281 = arith.addf %277, %280 : vector<8x1xf32>
    %282 = math.rsqrt %281 : vector<8x1xf32>
    %283 = vector.broadcast %282 : vector<8x1xf32> to vector<8x128xf32>
    %284 = arith.mulf %279, %283 : vector<8x128xf32>
    %285 = vector.broadcast %265 : vector<1x128xf32> to vector<8x128xf32>
    %286 = arith.mulf %284, %285 : vector<8x128xf32>
    %287 = vector.broadcast %266 : vector<1x128xf32> to vector<8x128xf32>
    %288 = arith.addf %286, %287 : vector<8x128xf32>
    %289 = arith.truncf %288 : vector<8x128xf32> to vector<8x128xbf16>
    %c0_104 = arith.constant 0 : index
    %c0_105 = arith.constant 0 : index
    %290 = vector.load %arg22[%c0_104, %c0_105] : memref<128x256xbf16, #tpu.memory_space<vmem>>, vector<128x256xbf16>
    %cst_106 = arith.constant dense<0.000000e+00> : vector<8x256xf32>
    %291 = tpu.matmul %289, %290, %cst_106 {dimension_numbers = #tpu.dot_dimension_numbers<[1], [0], [0], [1], [0, 0, 1, 1], [], []>} : vector<8x128xbf16>, vector<128x256xbf16>, vector<8x256xf32> -> vector<8x256xf32>
    %c0_107 = arith.constant 0 : index
    %c0_108 = arith.constant 0 : index
    %292 = vector.load %arg23[%c0_107, %c0_108] : memref<1x256xf32, #tpu.memory_space<vmem>>, vector<1x256xf32>
    %293 = vector.broadcast %292 : vector<1x256xf32> to vector<8x256xf32>
    %294 = arith.addf %291, %293 : vector<8x256xf32>
    %cst_109 = arith.constant 5.000000e-01 : f32
    %295 = vector.broadcast %cst_109 : f32 to vector<8x256xf32>
    %296 = arith.mulf %295, %294 : vector<8x256xf32>
    %cst_110 = arith.constant 4.471500e-02 : f32
    %297 = vector.broadcast %cst_110 : f32 to vector<8x256xf32>
    %298 = arith.mulf %297, %294 : vector<8x256xf32>
    %299 = arith.mulf %298, %294 : vector<8x256xf32>
    %300 = arith.mulf %299, %294 : vector<8x256xf32>
    %301 = arith.addf %294, %300 : vector<8x256xf32>
    %cst_111 = arith.constant 0.797884583 : f32
    %302 = vector.broadcast %cst_111 : f32 to vector<8x256xf32>
    %303 = arith.mulf %302, %301 : vector<8x256xf32>
    %304 = math.tanh %303 : vector<8x256xf32>
    %cst_112 = arith.constant 1.000000e+00 : f32
    %305 = vector.broadcast %cst_112 : f32 to vector<8x256xf32>
    %306 = arith.addf %305, %304 : vector<8x256xf32>
    %307 = arith.mulf %296, %306 : vector<8x256xf32>
    %308 = arith.truncf %307 : vector<8x256xf32> to vector<8x256xbf16>
    %c0_113 = arith.constant 0 : index
    %c0_114 = arith.constant 0 : index
    %309 = vector.load %arg24[%c0_113, %c0_114] : memref<256x128xbf16, #tpu.memory_space<vmem>>, vector<256x128xbf16>
    %cst_115 = arith.constant dense<0.000000e+00> : vector<8x128xf32>
    %310 = tpu.matmul %308, %309, %cst_115 {dimension_numbers = #tpu.dot_dimension_numbers<[1], [0], [0], [1], [0, 0, 1, 1], [], []>} : vector<8x256xbf16>, vector<256x128xbf16>, vector<8x128xf32> -> vector<8x128xf32>
    %c0_116 = arith.constant 0 : index
    %c0_117 = arith.constant 0 : index
    %311 = vector.load %arg25[%c0_116, %c0_117] : memref<1x128xf32, #tpu.memory_space<vmem>>, vector<1x128xf32>
    %312 = vector.broadcast %311 : vector<1x128xf32> to vector<8x128xf32>
    %313 = arith.addf %310, %312 : vector<8x128xf32>
    %314 = arith.addf %264, %313 : vector<8x128xf32>
    %cst_118 = arith.constant dense<0.000000e+00> : vector<128xf32>
    %315 = vector.multi_reduction <add>, %314, %cst_118 [0] : vector<8x128xf32> to vector<128xf32>
    %316 = vector.shape_cast %315 : vector<128xf32> to vector<1x128xf32>
    %cst_119 = arith.constant 8.000000e+00 : f32
    %317 = vector.broadcast %cst_119 : f32 to vector<1x128xf32>
    %318 = arith.divf %316, %317 : vector<1x128xf32>
    %319 = arith.truncf %318 : vector<1x128xf32> to vector<1x128xbf16>
    %c0_120 = arith.constant 0 : index
    %c0_121 = arith.constant 0 : index
    %320 = vector.load %arg26[%c0_120, %c0_121] : memref<128x128xbf16, #tpu.memory_space<vmem>>, vector<128x128xbf16>
    %cst_122 = arith.constant dense<0.000000e+00> : vector<1x128xf32>
    %321 = tpu.matmul %319, %320, %cst_122 {dimension_numbers = #tpu.dot_dimension_numbers<[1], [0], [0], [1], [0, 0, 1, 1], [], []>} : vector<1x128xbf16>, vector<128x128xbf16>, vector<1x128xf32> -> vector<1x128xf32>
    %c0_123 = arith.constant 0 : index
    %c0_124 = arith.constant 0 : index
    %322 = vector.load %arg27[%c0_123, %c0_124] : memref<1x128xf32, #tpu.memory_space<vmem>>, vector<1x128xf32>
    %323 = arith.addf %321, %322 : vector<1x128xf32>
    %c0_125 = arith.constant 0 : index
    %c0_126 = arith.constant 0 : index
    %c0_127 = arith.constant 0 : index
    %324 = vector.load %arg28[%c0_125, %c0_126, %c0_127] : memref<1x1x128xf32, #tpu.memory_space<vmem>>, vector<1x1x128xf32>
    %325 = vector.shape_cast %324 : vector<1x1x128xf32> to vector<1x128xf32>
    %326 = vector.shape_cast %323 : vector<1x128xf32> to vector<1x1x128xf32>
    tpu.vector_store %arg28[%c0_125, %c0_126, %c0_127], %326 {strides = array<i32>} : memref<1x1x128xf32, #tpu.memory_space<vmem>>, vector<1x1x128xf32>,
    return
  }
  func.func @transform_0(%arg0: i32) -> (i32, i32, i32) {
    %c0_i32 = arith.constant 0 : i32
    %c0_i32_0 = arith.constant 0 : i32
    %c0_i32_1 = arith.constant 0 : i32
    return %arg0, %c0_i32, %c0_i32_0 : i32, i32, i32
  }
  func.func @transform_1(%arg0: i32) -> (i32, i32, i32) {
    %c0_i32 = arith.constant 0 : i32
    %c0_i32_0 = arith.constant 0 : i32
    %c0_i32_1 = arith.constant 0 : i32
    return %arg0, %c0_i32, %c0_i32_0 : i32, i32, i32
  }
  func.func @transform_2(%arg0: i32) -> (i32, i32) {
    %c0_i32 = arith.constant 0 : i32
    %c0_i32_0 = arith.constant 0 : i32
    %c0_i32_1 = arith.constant 0 : i32
    return %c0_i32, %c0_i32_0 : i32, i32
  }
  func.func @transform_3(%arg0: i32) -> (i32, i32) {
    %c0_i32 = arith.constant 0 : i32
    %c0_i32_0 = arith.constant 0 : i32
    %c0_i32_1 = arith.constant 0 : i32
    return %c0_i32, %c0_i32_0 : i32, i32
  }
  func.func @transform_4(%arg0: i32) -> (i32, i32) {
    %c0_i32 = arith.constant 0 : i32
    %c0_i32_0 = arith.constant 0 : i32
    %c0_i32_1 = arith.constant 0 : i32
    return %c0_i32, %c0_i32_0 : i32, i32
  }
  func.func @transform_5(%arg0: i32) -> (i32, i32) {
    %c0_i32 = arith.constant 0 : i32
    %c0_i32_0 = arith.constant 0 : i32
    %c0_i32_1 = arith.constant 0 : i32
    return %c0_i32, %c0_i32_0 : i32, i32
  }
  func.func @transform_6(%arg0: i32) -> (i32, i32) {
    %c0_i32 = arith.constant 0 : i32
    %c0_i32_0 = arith.constant 0 : i32
    %c0_i32_1 = arith.constant 0 : i32
    return %c0_i32, %c0_i32_0 : i32, i32
  }
  func.func @transform_7(%arg0: i32) -> (i32, i32) {
    %c0_i32 = arith.constant 0 : i32
    %c0_i32_0 = arith.constant 0 : i32
    %c0_i32_1 = arith.constant 0 : i32
    return %c0_i32, %c0_i32_0 : i32, i32
  }
  func.func @transform_8(%arg0: i32) -> (i32, i32) {
    %c0_i32 = arith.constant 0 : i32
    %c0_i32_0 = arith.constant 0 : i32
    %c0_i32_1 = arith.constant 0 : i32
    return %c0_i32, %c0_i32_0 : i32, i32
  }
  func.func @transform_9(%arg0: i32) -> (i32, i32) {
    %c0_i32 = arith.constant 0 : i32
    %c0_i32_0 = arith.constant 0 : i32
    %c0_i32_1 = arith.constant 0 : i32
    return %c0_i32, %c0_i32_0 : i32, i32
  }
  func.func @transform_10(%arg0: i32) -> (i32, i32) {
    %c0_i32 = arith.constant 0 : i32
    %c0_i32_0 = arith.constant 0 : i32
    %c0_i32_1 = arith.constant 0 : i32
    return %c0_i32, %c0_i32_0 : i32, i32
  }
  func.func @transform_11(%arg0: i32) -> (i32, i32) {
    %c0_i32 = arith.constant 0 : i32
    %c0_i32_0 = arith.constant 0 : i32
    %c0_i32_1 = arith.constant 0 : i32
    return %c0_i32, %c0_i32_0 : i32, i32
  }
  func.func @transform_12(%arg0: i32) -> (i32, i32) {
    %c0_i32 = arith.constant 0 : i32
    %c0_i32_0 = arith.constant 0 : i32
    %c0_i32_1 = arith.constant 0 : i32
    return %c0_i32, %c0_i32_0 : i32, i32
  }
  func.func @transform_13(%arg0: i32) -> (i32, i32) {
    %c0_i32 = arith.constant 0 : i32
    %c0_i32_0 = arith.constant 0 : i32
    %c0_i32_1 = arith.constant 0 : i32
    return %c0_i32, %c0_i32_0 : i32, i32
  }
  func.func @transform_14(%arg0: i32) -> (i32, i32) {
    %c0_i32 = arith.constant 0 : i32
    %c0_i32_0 = arith.constant 0 : i32
    %c0_i32_1 = arith.constant 0 : i32
    return %c0_i32, %c0_i32_0 : i32, i32
  }
  func.func @transform_15(%arg0: i32) -> (i32, i32) {
    %c0_i32 = arith.constant 0 : i32
    %c0_i32_0 = arith.constant 0 : i32
    %c0_i32_1 = arith.constant 0 : i32
    return %c0_i32, %c0_i32_0 : i32, i32
  }
  func.func @transform_16(%arg0: i32) -> (i32, i32) {
    %c0_i32 = arith.constant 0 : i32
    %c0_i32_0 = arith.constant 0 : i32
    %c0_i32_1 = arith.constant 0 : i32
    return %c0_i32, %c0_i32_0 : i32, i32
  }
  func.func @transform_17(%arg0: i32) -> (i32, i32) {
    %c0_i32 = arith.constant 0 : i32
    %c0_i32_0 = arith.constant 0 : i32
    %c0_i32_1 = arith.constant 0 : i32
    return %c0_i32, %c0_i32_0 : i32, i32
  }
  func.func @transform_18(%arg0: i32) -> (i32, i32) {
    %c0_i32 = arith.constant 0 : i32
    %c0_i32_0 = arith.constant 0 : i32
    %c0_i32_1 = arith.constant 0 : i32
    return %c0_i32, %c0_i32_0 : i32, i32
  }
  func.func @transform_19(%arg0: i32) -> (i32, i32) {
    %c0_i32 = arith.constant 0 : i32
    %c0_i32_0 = arith.constant 0 : i32
    %c0_i32_1 = arith.constant 0 : i32
    return %c0_i32, %c0_i32_0 : i32, i32
  }
  func.func @transform_20(%arg0: i32) -> (i32, i32) {
    %c0_i32 = arith.constant 0 : i32
    %c0_i32_0 = arith.constant 0 : i32
    %c0_i32_1 = arith.constant 0 : i32
    return %c0_i32, %c0_i32_0 : i32, i32
  }
  func.func @transform_21(%arg0: i32) -> (i32, i32) {
    %c0_i32 = arith.constant 0 : i32
    %c0_i32_0 = arith.constant 0 : i32
    %c0_i32_1 = arith.constant 0 : i32
    return %c0_i32, %c0_i32_0 : i32, i32
  }
  func.func @transform_22(%arg0: i32) -> (i32, i32) {
    %c0_i32 = arith.constant 0 : i32
    %c0_i32_0 = arith.constant 0 : i32
    %c0_i32_1 = arith.constant 0 : i32
    return %c0_i32, %c0_i32_0 : i32, i32
  }
  func.func @transform_23(%arg0: i32) -> (i32, i32) {
    %c0_i32 = arith.constant 0 : i32
    %c0_i32_0 = arith.constant 0 : i32
    %c0_i32_1 = arith.constant 0 : i32
    return %c0_i32, %c0_i32_0 : i32, i32
  }
  func.func @transform_24(%arg0: i32) -> (i32, i32) {
    %c0_i32 = arith.constant 0 : i32
    %c0_i32_0 = arith.constant 0 : i32
    %c0_i32_1 = arith.constant 0 : i32
    return %c0_i32, %c0_i32_0 : i32, i32
  }
  func.func @transform_25(%arg0: i32) -> (i32, i32) {
    %c0_i32 = arith.constant 0 : i32
    %c0_i32_0 = arith.constant 0 : i32
    %c0_i32_1 = arith.constant 0 : i32
    return %c0_i32, %c0_i32_0 : i32, i32
  }
  func.func @transform_26(%arg0: i32) -> (i32, i32) {
    %c0_i32 = arith.constant 0 : i32
    %c0_i32_0 = arith.constant 0 : i32
    %c0_i32_1 = arith.constant 0 : i32
    return %c0_i32, %c0_i32_0 : i32, i32
  }
  func.func @transform_27(%arg0: i32) -> (i32, i32, i32) {
    %c0_i32 = arith.constant 0 : i32
    %c0_i32_0 = arith.constant 0 : i32
    %c0_i32_1 = arith.constant 0 : i32
    return %arg0, %c0_i32, %c0_i32_0 : i32, i32, i32
  }
}

</mosaic_0001>

<llo_original>
// kernel: mmt_forward.2
$region0: #{mmt_forward.2}
  #allocation0 [shape = 'u32[]', space=smem, size = 0x4, offset = 0x4, fixed_abs, tag = 'smem constant byte address 0x4 - core index']
  #allocation1 [shape = 'u32[144,128]{1,0:T(1,128)}', space=vmem, size = 0x12000, scoped, tag = 'internal scratch']
  %s0 = inlined_call_operand.vmem [shape: bf16[3,16,768], index: 0, kind: input, shape index: {}]
  %s1 = inlined_call_operand.hbm [shape: bf16[3,768,256], index: 1, kind: input, shape index: {}]
  %s2 = inlined_call_operand.hbm [shape: f32[3,1,256], index: 2, kind: input, shape index: {}]
  %s3 = inlined_call_operand.hbm [shape: bf16[3,256,128], index: 3, kind: input, shape index: {}]
  %s4 = inlined_call_operand.hbm [shape: f32[3,1,128], index: 4, kind: input, shape index: {}]
  %s5 = inlined_call_operand.hbm [shape: bf16[3,128,128], index: 5, kind: input, shape index: {}]
  %s6 = inlined_call_operand.hbm [shape: f32[3,1,128], index: 6, kind: input, shape index: {}]
  %s7 = inlined_call_operand.hbm [shape: bf16[1,256,128], index: 7, kind: input, shape index: {}]
  %s8 = inlined_call_operand.hbm [shape: f32[1,1,128], index: 8, kind: input, shape index: {}]
  %s9 = inlined_call_operand.hbm [shape: bf16[1,128,128], index: 9, kind: input, shape index: {}]
  %s10 = inlined_call_operand.hbm [shape: f32[1,1,128], index: 10, kind: input, shape index: {}]
  %s11 = inlined_call_operand.hbm [shape: bf16[128,128], index: 11, kind: input, shape index: {}]
  %s12 = inlined_call_operand.hbm [shape: f32[1,128], index: 12, kind: input, shape index: {}]
  %s13 = inlined_call_operand.vmem [shape: bf16[2,24,128], index: 13, kind: output, shape index: {0}]
  %s14 = inlined_call_operand.vmem [shape: bf16[2,8,384], index: 14, kind: output, shape index: {1}]
  %s15 = inlined_call_operand.vmem [shape: f32[3,2,128], index: 15, kind: output, shape index: {2}]
  %s16 = inlined_call_operand.vmem [shape: f32[3,2,128], index: 16, kind: output, shape index: {3}]
  %17 = xla_tuple %s13, %s14, %s15, %s16
  %s18 = sld [smem:[#allocation0]]
  $region231: #{mmt_forward.2} parent=0
    _
  %s20 = ssub.s32 1, %s18
  %s21 = scalar_select 0, %s20, %s18
  $region1: #{mmt_forward.2} parent=0
    #allocation2 [shape = 'u8[786432]{0}', space=vmem, size = 0xc0000, scoped, tag = 'input window, operand 1']
    #allocation3 [shape = 's32[2]{0}', space=sflag, size = 0x8, scoped, tag = 'scoped memory for mmt_forward.2']
    #allocation4 [shape = 'u8[2048]{0}', space=vmem, size = 0x800, scoped, tag = 'input window, operand 2']
    #allocation5 [shape = 's32[2]{0}', space=sflag, size = 0x8, scoped, tag = 'scoped memory for mmt_forward.2']
    #allocation6 [shape = 'u8[131072]{0}', space=vmem, size = 0x20000, scoped, tag = 'input window, operand 3']
    #allocation7 [shape = 'u8[1024]{0}', space=vmem, size = 0x400, scoped, tag = 'input window, operand 4']
    #allocation8 [shape = 's32[2]{0}', space=sflag, size = 0x8, scoped, tag = 'scoped memory for mmt_forward.2']
    #allocation9 [shape = 'u8[65536]{0}', space=vmem, size = 0x10000, scoped, tag = 'input window, operand 5']
    #allocation10 [shape = 'u8[1024]{0}', space=vmem, size = 0x400, scoped, tag = 'input window, operand 6']
    #allocation11 [shape = 's32[2]{0}', space=sflag, size = 0x8, scoped, tag = 'scoped memory for mmt_forward.2']
    #allocation12 [shape = 'u8[65536]{0}', space=vmem, size = 0x10000, scoped, tag = 'input window, operand 7, single buffered']
    #allocation13 [shape = 'u8[512]{0}', space=vmem, size = 0x400, scoped, tag = 'input window, operand 8, single buffered']
    #allocation14 [shape = 's32[1]{0}', space=sflag, size = 0x4, scoped, tag = 'scoped memory for mmt_forward.2']
    #allocation15 [shape = 'u8[32768]{0}', space=vmem, size = 0x8000, scoped, tag = 'input window, operand 9, single buffered']
    #allocation16 [shape = 'u8[512]{0}', space=vmem, size = 0x400, scoped, tag = 'input window, operand 10, single buffered']
    #allocation17 [shape = 's32[1]{0}', space=sflag, size = 0x4, scoped, tag = 'scoped memory for mmt_forward.2']
    #allocation18 [shape = 'u8[32768]{0}', space=vmem, size = 0x8000, scoped, tag = 'input window, operand 11, single buffered']
    #allocation19 [shape = 'u8[512]{0}', space=vmem, size = 0x400, scoped, tag = 'input window, operand 12, single buffered']
    #allocation20 [shape = 's32[1]{0}', space=sflag, size = 0x4, scoped, tag = 'scoped memory for mmt_forward.2']
    #allocation21 [shape = 'u8[8192]{0}', space=vmem, size = 0x2000, scoped, tag = 'output window, operand 0']
    #allocation22 [shape = 'u8[8192]{0}', space=vmem, size = 0x2000, scoped, tag = 'output window, operand 1']
    %22 = vsyncpa [#allocation3], 0
    %s23 = scalar_lea.sflag [#allocation3], 1
    %24 = vsyncpa %s23, 0
    %25 = vsyncpa [#allocation5], 0
    %s26 = scalar_lea.sflag [#allocation5], 1
    %27 = vsyncpa %s26, 0
    %28 = vsyncpa [#allocation8], 0
    %s29 = scalar_lea.sflag [#allocation8], 1
    %30 = vsyncpa %s29, 0
    %31 = vsyncpa [#allocation11], 0
    %s32 = scalar_lea.sflag [#allocation11], 1
    %33 = vsyncpa %s32, 0
    %34 = vsyncpa [#allocation14], 0
    %35 = vsyncpa [#allocation17], 0
    %36 = vsyncpa [#allocation20], 0
    loop: start=0, step=1, limit=5
    $region2: #{mmt_forward.2} parent=1 // loop_pre_header
      _
    $region3: #{mmt_forward.2} parent=1 // loop_header
      %s38 = sphi 0, %s42
      %p39 = scmp.ge.s32.totalorder %s38, 5
      %s48 = sphi 0, %s50
      %s51 = sphi 0, %s48
      %s52 = sphi 0, %s51
      %s68 = sphi 0, %s52
      %s74 = sphi 0, %s76
      %s77 = sphi 0, %s74
      %s78 = sphi 0, %s77
      %s94 = sphi 0, %s78
      %s100 = sphi 0, %s102
      %s103 = sphi 0, %s100
      %s104 = sphi 0, %s103
      %s120 = sphi 0, %s104
      %s126 = sphi 0, %s128
      %s129 = sphi 0, %s126
      %s130 = sphi 0, %s129
      %s146 = sphi 0, %s130
      %s152 = sphi 0, %s154
      %s155 = sphi 0, %s152
      %s156 = sphi 0, %s155
      %s172 = sphi 0, %s156
      %s178 = sphi 0, %s180
      %s181 = sphi 0, %s178
      %s182 = sphi 0, %s181
      %s198 = sphi 0, %s182
      %s204 = sphi 0, %s206
      %s207 = sphi 0, %s204
      %s208 = sphi 0, %s207
      %s224 = sphi 0, %s208
      %s228 = sphi 0, %s228
      %s230 = sphi 0, %s228
      %s231 = sphi 0, %s230
      %s245 = sphi 0, %s231
      %s249 = sphi 0, %s249
      %s251 = sphi 0, %s249
      %s252 = sphi 0, %s251
      %s266 = sphi 0, %s252
      %s270 = sphi 0, %s270
      %s272 = sphi 0, %s270
      %s273 = sphi 0, %s272
      %s287 = sphi 0, %s273
      %s291 = sphi 0, %s291
      %s293 = sphi 0, %s291
      %s294 = sphi 0, %s293
      %s308 = sphi 0, %s294
      %s312 = sphi 0, %s312
      %s314 = sphi 0, %s312
      %s315 = sphi 0, %s314
      %s329 = sphi 0, %s315
      %s333 = sphi 0, %s333
      %s335 = sphi 0, %s333
      %s336 = sphi 0, %s335
      %s350 = sphi 0, %s336
      %s356 = sphi 0, %s358
      %s359 = sphi 0, %s356
      %s360 = sphi 0, %s359
      %s376 = sphi 0, %s360
      %s382 = sphi 0, %s384
      %s385 = sphi 0, %s382
      %s386 = sphi 0, %s385
      %s402 = sphi 0, %s386
      %s408 = sphi 0, %s410
      %s411 = sphi 0, %s408
      %s412 = sphi 0, %s411
      %s428 = sphi 0, %s412
      %s434 = sphi 0, %s436
      %s437 = sphi 0, %s434
      %s438 = sphi 0, %s437
      %s454 = sphi 0, %s438
    $region4: #{mmt_forward.2} parent=1 // loop_header_branch
      %41 = sbr.rel (%p39) target = $region8
    $region5: #{mmt_forward.2} parent=1 // loop_body
      %s43 = ssub.s32 %s38, 1
      %s44 = ssub.s32 %s38, 2
      %s45 = sadd.s32 %s38, 1
      %s46 = ssub.s32 %s38, %s45
      %p47 = scmp.eq.s32.totalorder %s46, 0
      %s49 = sadd.s32 %s48, 1
      %s50 = scalar_select %p47, %s48, %s49
      %p53 = pneg %p47
      %p54 = scmp.eq.s32.totalorder %s38, 2
      %p55 = por %p53, %p54
      %p56 = scmp.ne.s32.totalorder %s48, %s51
      %p57 = scmp.eq.s32.totalorder %s38, 0
      %p58 = por %p56, %p57
      %p59 = scmp.ne.s32.totalorder %s48, %s51
      %p60 = scmp.eq.s32.totalorder %s43, 2
      %p61 = por %p59, %p60
      %p62 = scmp.ne.s32.totalorder %s51, %s52
      %p63 = scmp.eq.s32.totalorder %s43, 0
      %p64 = por %p62, %p63
      %p65 = scmp.ne.s32.totalorder %s51, %s52
      %p66 = scmp.eq.s32.totalorder %s44, 2
      %p67 = por %p65, %p66
      %p69 = scmp.ne.s32.totalorder %s52, %s68
      %p70 = scmp.eq.s32.totalorder %s44, 0
      %p71 = por %p69, %p70
      %s72 = ssub.s32 %s38, %s45
      %p73 = scmp.eq.s32.totalorder %s72, 0
      %s75 = sadd.s32 %s74, 1
      %s76 = scalar_select %p73, %s74, %s75
      %p79 = pneg %p73
      %p80 = scmp.eq.s32.totalorder %s38, 2
      %p81 = por %p79, %p80
      %p82 = scmp.ne.s32.totalorder %s74, %s77
      %p83 = scmp.eq.s32.totalorder %s38, 0
      %p84 = por %p82, %p83
      %p85 = scmp.ne.s32.totalorder %s74, %s77
      %p86 = scmp.eq.s32.totalorder %s43, 2
      %p87 = por %p85, %p86
      %p88 = scmp.ne.s32.totalorder %s77, %s78
      %p89 = scmp.eq.s32.totalorder %s43, 0
      %p90 = por %p88, %p89
      %p91 = scmp.ne.s32.totalorder %s77, %s78
      %p92 = scmp.eq.s32.totalorder %s44, 2
      %p93 = por %p91, %p92
      %p95 = scmp.ne.s32.totalorder %s78, %s94
      %p96 = scmp.eq.s32.totalorder %s44, 0
      %p97 = por %p95, %p96
      %s98 = ssub.s32 %s38, %s45
      %p99 = scmp.eq.s32.totalorder %s98, 0
      %s101 = sadd.s32 %s100, 1
      %s102 = scalar_select %p99, %s100, %s101
      %p105 = pneg %p99
      %p106 = scmp.eq.s32.totalorder %s38, 2
      %p107 = por %p105, %p106
      %p108 = scmp.ne.s32.totalorder %s100, %s103
      %p109 = scmp.eq.s32.totalorder %s38, 0
      %p110 = por %p108, %p109
      %p111 = scmp.ne.s32.totalorder %s100, %s103
      %p112 = scmp.eq.s32.totalorder %s43, 2
      %p113 = por %p111, %p112
      %p114 = scmp.ne.s32.totalorder %s103, %s104
      %p115 = scmp.eq.s32.totalorder %s43, 0
      %p116 = por %p114, %p115
      %p117 = scmp.ne.s32.totalorder %s103, %s104
      %p118 = scmp.eq.s32.totalorder %s44, 2
      %p119 = por %p117, %p118
      %p121 = scmp.ne.s32.totalorder %s104, %s120
      %p122 = scmp.eq.s32.totalorder %s44, 0
      %p123 = por %p121, %p122
      %s124 = ssub.s32 %s38, %s45
      %p125 = scmp.eq.s32.totalorder %s124, 0
      %s127 = sadd.s32 %s126, 1
      %s128 = scalar_select %p125, %s126, %s127
      %p131 = pneg %p125
      %p132 = scmp.eq.s32.totalorder %s38, 2
      %p133 = por %p131, %p132
      %p134 = scmp.ne.s32.totalorder %s126, %s129
      %p135 = scmp.eq.s32.totalorder %s38, 0
      %p136 = por %p134, %p135
      %p137 = scmp.ne.s32.totalorder %s126, %s129
      %p138 = scmp.eq.s32.totalorder %s43, 2
      %p139 = por %p137, %p138
      %p140 = scmp.ne.s32.totalorder %s129, %s130
      %p141 = scmp.eq.s32.totalorder %s43, 0
      %p142 = por %p140, %p141
      %p143 = scmp.ne.s32.totalorder %s129, %s130
      %p144 = scmp.eq.s32.totalorder %s44, 2
      %p145 = por %p143, %p144
      %p147 = scmp.ne.s32.totalorder %s130, %s146
      %p148 = scmp.eq.s32.totalorder %s44, 0
      %p149 = por %p147, %p148
      %s150 = ssub.s32 %s38, %s45
      %p151 = scmp.eq.s32.totalorder %s150, 0
      %s153 = sadd.s32 %s152, 1
      %s154 = scalar_select %p151, %s152, %s153
      %p157 = pneg %p151
      %p158 = scmp.eq.s32.totalorder %s38, 2
      %p159 = por %p157, %p158
      %p160 = scmp.ne.s32.totalorder %s152, %s155
      %p161 = scmp.eq.s32.totalorder %s38, 0
      %p162 = por %p160, %p161
      %p163 = scmp.ne.s32.totalorder %s152, %s155
      %p164 = scmp.eq.s32.totalorder %s43, 2
      %p165 = por %p163, %p164
      %p166 = scmp.ne.s32.totalorder %s155, %s156
      %p167 = scmp.eq.s32.totalorder %s43, 0
      %p168 = por %p166, %p167
      %p169 = scmp.ne.s32.totalorder %s155, %s156
      %p170 = scmp.eq.s32.totalorder %s44, 2
      %p171 = por %p169, %p170
      %p173 = scmp.ne.s32.totalorder %s156, %s172
      %p174 = scmp.eq.s32.totalorder %s44, 0
      %p175 = por %p173, %p174
      %s176 = ssub.s32 %s38, %s45
      %p177 = scmp.eq.s32.totalorder %s176, 0
      %s179 = sadd.s32 %s178, 1
      %s180 = scalar_select %p177, %s178, %s179
      %p183 = pneg %p177
      %p184 = scmp.eq.s32.totalorder %s38, 2
      %p185 = por %p183, %p184
      %p186 = scmp.ne.s32.totalorder %s178, %s181
      %p187 = scmp.eq.s32.totalorder %s38, 0
      %p188 = por %p186, %p187
      %p189 = scmp.ne.s32.totalorder %s178, %s181
      %p190 = scmp.eq.s32.totalorder %s43, 2
      %p191 = por %p189, %p190
      %p192 = scmp.ne.s32.totalorder %s181, %s182
      %p193 = scmp.eq.s32.totalorder %s43, 0
      %p194 = por %p192, %p193
      %p195 = scmp.ne.s32.totalorder %s181, %s182
      %p196 = scmp.eq.s32.totalorder %s44, 2
      %p197 = por %p195, %p196
      %p199 = scmp.ne.s32.totalorder %s182, %s198
      %p200 = scmp.eq.s32.totalorder %s44, 0
      %p201 = por %p199, %p200
      %s202 = ssub.s32 %s38, %s45
      %p203 = scmp.eq.s32.totalorder %s202, 0
      %s205 = sadd.s32 %s204, 1
      %s206 = scalar_select %p203, %s204, %s205
      %p209 = pneg %p203
      %p210 = scmp.eq.s32.totalorder %s38, 2
      %p211 = por %p209, %p210
      %p212 = scmp.ne.s32.totalorder %s204, %s207
      %p213 = scmp.eq.s32.totalorder %s38, 0
      %p214 = por %p212, %p213
      %p215 = scmp.ne.s32.totalorder %s204, %s207
      %p216 = scmp.eq.s32.totalorder %s43, 2
      %p217 = por %p215, %p216
      %p218 = scmp.ne.s32.totalorder %s207, %s208
      %p219 = scmp.eq.s32.totalorder %s43, 0
      %p220 = por %p218, %p219
      %p221 = scmp.ne.s32.totalorder %s207, %s208
      %p222 = scmp.eq.s32.totalorder %s44, 2
      %p223 = por %p221, %p222
      %p225 = scmp.ne.s32.totalorder %s208, %s224
      %p226 = scmp.eq.s32.totalorder %s44, 0
      %p227 = por %p225, %p226
      %s229 = sadd.s32 %s228, 1
      %p232 = scmp.eq.s32.totalorder %s38, 2
      %p233 = scmp.ne.s32.totalorder %s228, %s230
      %p234 = scmp.eq.s32.totalorder %s38, 0
      %p235 = por %p233, %p234
      %p236 = scmp.ne.s32.totalorder %s228, %s230
      %p237 = scmp.eq.s32.totalorder %s43, 2
      %p238 = por %p236, %p237
      %p239 = scmp.ne.s32.totalorder %s230, %s231
      %p240 = scmp.eq.s32.totalorder %s43, 0
      %p241 = por %p239, %p240
      %p242 = scmp.ne.s32.totalorder %s230, %s231
      %p243 = scmp.eq.s32.totalorder %s44, 2
      %p244 = por %p242, %p243
      %p246 = scmp.ne.s32.totalorder %s231, %s245
      %p247 = scmp.eq.s32.totalorder %s44, 0
      %p248 = por %p246, %p247
      %s250 = sadd.s32 %s249, 1
      %p253 = scmp.eq.s32.totalorder %s38, 2
      %p254 = scmp.ne.s32.totalorder %s249, %s251
      %p255 = scmp.eq.s32.totalorder %s38, 0
      %p256 = por %p254, %p255
      %p257 = scmp.ne.s32.totalorder %s249, %s251
      %p258 = scmp.eq.s32.totalorder %s43, 2
      %p259 = por %p257, %p258
      %p260 = scmp.ne.s32.totalorder %s251, %s252
      %p261 = scmp.eq.s32.totalorder %s43, 0
      %p262 = por %p260, %p261
      %p263 = scmp.ne.s32.totalorder %s251, %s252
      %p264 = scmp.eq.s32.totalorder %s44, 2
      %p265 = por %p263, %p264
      %p267 = scmp.ne.s32.totalorder %s252, %s266
      %p268 = scmp.eq.s32.totalorder %s44, 0
      %p269 = por %p267, %p268
      %s271 = sadd.s32 %s270, 1
      %p274 = scmp.eq.s32.totalorder %s38, 2
      %p275 = scmp.ne.s32.totalorder %s270, %s272
      %p276 = scmp.eq.s32.totalorder %s38, 0
      %p277 = por %p275, %p276
      %p278 = scmp.ne.s32.totalorder %s270, %s272
      %p279 = scmp.eq.s32.totalorder %s43, 2
      %p280 = por %p278, %p279
      %p281 = scmp.ne.s32.totalorder %s272, %s273
      %p282 = scmp.eq.s32.totalorder %s43, 0
      %p283 = por %p281, %p282
      %p284 = scmp.ne.s32.totalorder %s272, %s273
      %p285 = scmp.eq.s32.totalorder %s44, 2
      %p286 = por %p284, %p285
      %p288 = scmp.ne.s32.totalorder %s273, %s287
      %p289 = scmp.eq.s32.totalorder %s44, 0
      %p290 = por %p288, %p289
      %s292 = sadd.s32 %s291, 1
      %p295 = scmp.eq.s32.totalorder %s38, 2
      %p296 = scmp.ne.s32.totalorder %s291, %s293
      %p297 = scmp.eq.s32.totalorder %s38, 0
      %p298 = por %p296, %p297
      %p299 = scmp.ne.s32.totalorder %s291, %s293
      %p300 = scmp.eq.s32.totalorder %s43, 2
      %p301 = por %p299, %p300
      %p302 = scmp.ne.s32.totalorder %s293, %s294
      %p303 = scmp.eq.s32.totalorder %s43, 0
      %p304 = por %p302, %p303
      %p305 = scmp.ne.s32.totalorder %s293, %s294
      %p306 = scmp.eq.s32.totalorder %s44, 2
      %p307 = por %p305, %p306
      %p309 = scmp.ne.s32.totalorder %s294, %s308
      %p310 = scmp.eq.s32.totalorder %s44, 0
      %p311 = por %p309, %p310
      %s313 = sadd.s32 %s312, 1
      %p316 = scmp.eq.s32.totalorder %s38, 2
      %p317 = scmp.ne.s32.totalorder %s312, %s314
      %p318 = scmp.eq.s32.totalorder %s38, 0
      %p319 = por %p317, %p318
      %p320 = scmp.ne.s32.totalorder %s312, %s314
      %p321 = scmp.eq.s32.totalorder %s43, 2
      %p322 = por %p320, %p321
      %p323 = scmp.ne.s32.totalorder %s314, %s315
      %p324 = scmp.eq.s32.totalorder %s43, 0
      %p325 = por %p323, %p324
      %p326 = scmp.ne.s32.totalorder %s314, %s315
      %p327 = scmp.eq.s32.totalorder %s44, 2
      %p328 = por %p326, %p327
      %p330 = scmp.ne.s32.totalorder %s315, %s329
      %p331 = scmp.eq.s32.totalorder %s44, 0
      %p332 = por %p330, %p331
      %s334 = sadd.s32 %s333, 1
      %p337 = scmp.eq.s32.totalorder %s38, 2
      %p338 = scmp.ne.s32.totalorder %s333, %s335
      %p339 = scmp.eq.s32.totalorder %s38, 0
      %p340 = por %p338, %p339
      %p341 = scmp.ne.s32.totalorder %s333, %s335
      %p342 = scmp.eq.s32.totalorder %s43, 2
      %p343 = por %p341, %p342
      %p344 = scmp.ne.s32.totalorder %s335, %s336
      %p345 = scmp.eq.s32.totalorder %s43, 0
      %p346 = por %p344, %p345
      %p347 = scmp.ne.s32.totalorder %s335, %s336
      %p348 = scmp.eq.s32.totalorder %s44, 2
      %p349 = por %p347, %p348
      %p351 = scmp.ne.s32.totalorder %s336, %s350
      %p352 = scmp.eq.s32.totalorder %s44, 0
      %p353 = por %p351, %p352
      %s354 = ssub.s32 %s38, %s45
      %p355 = scmp.eq.s32.totalorder %s354, 0
      %s357 = sadd.s32 %s356, 1
      %s358 = scalar_select %p355, %s356, %s357
      %p361 = pneg %p355
      %p362 = scmp.eq.s32.totalorder %s38, 2
      %p363 = por %p361, %p362
      %p364 = scmp.ne.s32.totalorder %s356, %s359
      %p365 = scmp.eq.s32.totalorder %s38, 0
      %p366 = por %p364, %p365
      %p367 = scmp.ne.s32.totalorder %s356, %s359
      %p368 = scmp.eq.s32.totalorder %s43, 2
      %p369 = por %p367, %p368
      %p370 = scmp.ne.s32.totalorder %s359, %s360
      %p371 = scmp.eq.s32.totalorder %s43, 0
      %p372 = por %p370, %p371
      %p373 = scmp.ne.s32.totalorder %s359, %s360
      %p374 = scmp.eq.s32.totalorder %s44, 2
      %p375 = por %p373, %p374
      %p377 = scmp.ne.s32.totalorder %s360, %s376
      %p378 = scmp.eq.s32.totalorder %s44, 0
      %p379 = por %p377, %p378
      %s380 = ssub.s32 %s38, %s45
      %p381 = scmp.eq.s32.totalorder %s380, 0
      %s383 = sadd.s32 %s382, 1
      %s384 = scalar_select %p381, %s382, %s383
      %p387 = pneg %p381
      %p388 = scmp.eq.s32.totalorder %s38, 2
      %p389 = por %p387, %p388
      %p390 = scmp.ne.s32.totalorder %s382, %s385
      %p391 = scmp.eq.s32.totalorder %s38, 0
      %p392 = por %p390, %p391
      %p393 = scmp.ne.s32.totalorder %s382, %s385
      %p394 = scmp.eq.s32.totalorder %s43, 2
      %p395 = por %p393, %p394
      %p396 = scmp.ne.s32.totalorder %s385, %s386
      %p397 = scmp.eq.s32.totalorder %s43, 0
      %p398 = por %p396, %p397
      %p399 = scmp.ne.s32.totalorder %s385, %s386
      %p400 = scmp.eq.s32.totalorder %s44, 2
      %p401 = por %p399, %p400
      %p403 = scmp.ne.s32.totalorder %s386, %s402
      %p404 = scmp.eq.s32.totalorder %s44, 0
      %p405 = por %p403, %p404
      %s406 = ssub.s32 %s38, %s45
      %p407 = scmp.eq.s32.totalorder %s406, 0
      %s409 = sadd.s32 %s408, 1
      %s410 = scalar_select %p407, %s408, %s409
      %p413 = pneg %p407
      %p414 = scmp.eq.s32.totalorder %s38, 2
      %p415 = por %p413, %p414
      %p416 = scmp.ne.s32.totalorder %s408, %s411
      %p417 = scmp.eq.s32.totalorder %s38, 0
      %p418 = por %p416, %p417
      %p419 = scmp.ne.s32.totalorder %s408, %s411
      %p420 = scmp.eq.s32.totalorder %s43, 2
      %p421 = por %p419, %p420
      %p422 = scmp.ne.s32.totalorder %s411, %s412
      %p423 = scmp.eq.s32.totalorder %s43, 0
      %p424 = por %p422, %p423
      %p425 = scmp.ne.s32.totalorder %s411, %s412
      %p426 = scmp.eq.s32.totalorder %s44, 2
      %p427 = por %p425, %p426
      %p429 = scmp.ne.s32.totalorder %s412, %s428
      %p430 = scmp.eq.s32.totalorder %s44, 0
      %p431 = por %p429, %p430
      %s432 = ssub.s32 %s38, %s45
      %p433 = scmp.eq.s32.totalorder %s432, 0
      %s435 = sadd.s32 %s434, 1
      %s436 = scalar_select %p433, %s434, %s435
      %p439 = pneg %p433
      %p440 = scmp.eq.s32.totalorder %s38, 2
      %p441 = por %p439, %p440
      %p442 = scmp.ne.s32.totalorder %s434, %s437
      %p443 = scmp.eq.s32.totalorder %s38, 0
      %p444 = por %p442, %p443
      %p445 = scmp.ne.s32.totalorder %s434, %s437
      %p446 = scmp.eq.s32.totalorder %s43, 2
      %p447 = por %p445, %p446
      %p448 = scmp.ne.s32.totalorder %s437, %s438
      %p449 = scmp.eq.s32.totalorder %s43, 0
      %p450 = por %p448, %p449
      %p451 = scmp.ne.s32.totalorder %s437, %s438
      %p452 = scmp.eq.s32.totalorder %s44, 2
      %p453 = por %p451, %p452
      %p455 = scmp.ne.s32.totalorder %s438, %s454
      %p456 = scmp.eq.s32.totalorder %s44, 0
      %p457 = por %p455, %p456
      %p458 = scmp.le.s32.totalorder 1, %s38
      %p459 = scmp.lt.s32.totalorder %s38, 4
      %p460 = pnand %p458, %p459
      %p461 = pneg %p460
      // Predicated region
      $region9: #{mmt_forward.2} parent=5 // pred_check
        _
      $region10: #{mmt_forward.2} parent=5 // pred_check_branch
        %463 = sbr.rel (%p460) target = $region12
      $region11: #{mmt_forward.2} parent=5 // pred_region
        %s464 = ssub.s32 %s38, 1
        // Predicated region
        $region13: #{mmt_forward.2} parent=11 // pred_check
          %p465 = pneg %p241
        $region14: #{mmt_forward.2} parent=11 // pred_check_branch
          %467 = sbr.rel (%p465) target = $region16
        $region15: #{mmt_forward.2} parent=11 // pred_region
          %s469 = ssub.s32 2048, 2048
          %470 = vsyncadd [#allocation11], %s469
          %s471 = sshll.u32 [#allocation12], 4
          %s472 = int_to_ptr.vmem [resolvable:$true] %s471
          %477 = dma.hbm_to_vmem [thread:$0]  %s7, 2048, %s472, [#allocation11], 64, 64, 4
        $region16: #{mmt_forward.2} parent=11 // pred_fallthru
          _
        // Predicated region
        $region17: #{mmt_forward.2} parent=11 // pred_check
          %p478 = pneg %p262
        $region18: #{mmt_forward.2} parent=11 // pred_check_branch
          %480 = sbr.rel (%p478) target = $region20
        $region19: #{mmt_forward.2} parent=11 // pred_region
          %s482 = ssub.s32 16, 16
          %483 = vsyncadd [#allocation14], %s482
          %s485 = sshll.u32 [#allocation13], 4
          %s486 = int_to_ptr.vmem [resolvable:$true] %s485
          %488 = dma.hbm_to_vmem [thread:$0]  %s8, 16, %s486, [#allocation14]
        $region20: #{mmt_forward.2} parent=11 // pred_fallthru
          _
        // Predicated region
        $region21: #{mmt_forward.2} parent=11 // pred_check
          %p489 = pneg %p283
        $region22: #{mmt_forward.2} parent=11 // pred_check_branch
          %491 = sbr.rel (%p489) target = $region24
        $region23: #{mmt_forward.2} parent=11 // pred_region
          %s493 = ssub.s32 1024, 1024
          %494 = vsyncadd [#allocation14], %s493
          %s495 = sshll.u32 [#allocation15], 4
          %s496 = int_to_ptr.vmem [resolvable:$true] %s495
          %501 = dma.hbm_to_vmem [thread:$0]  %s9, 1024, %s496, [#allocation14], 64, 64, 4
        $region24: #{mmt_forward.2} parent=11 // pred_fallthru
          _
        // Predicated region
        $region25: #{mmt_forward.2} parent=11 // pred_check
          %p502 = pneg %p304
        $region26: #{mmt_forward.2} parent=11 // pred_check_branch
          %504 = sbr.rel (%p502) target = $region28
        $region27: #{mmt_forward.2} parent=11 // pred_region
          %s506 = ssub.s32 16, 16
          %507 = vsyncadd [#allocation17], %s506
          %s509 = sshll.u32 [#allocation16], 4
          %s510 = int_to_ptr.vmem [resolvable:$true] %s509
          %512 = dma.hbm_to_vmem [thread:$0]  %s10, 16, %s510, [#allocation17]
        $region28: #{mmt_forward.2} parent=11 // pred_fallthru
          _
        // Predicated region
        $region29: #{mmt_forward.2} parent=11 // pred_check
          %p513 = pneg %p325
        $region30: #{mmt_forward.2} parent=11 // pred_check_branch
          %515 = sbr.rel (%p513) target = $region32
        $region31: #{mmt_forward.2} parent=11 // pred_region
          %s517 = ssub.s32 1024, 1024
          %518 = vsyncadd [#allocation17], %s517
          %s519 = sshll.u32 [#allocation18], 4
          %s520 = int_to_ptr.vmem [resolvable:$true] %s519
          %525 = dma.hbm_to_vmem [thread:$0]  %s11, 1024, %s520, [#allocation17], 64, 64, 4
        $region32: #{mmt_forward.2} parent=11 // pred_fallthru
          _
        // Predicated region
        $region33: #{mmt_forward.2} parent=11 // pred_check
          %p526 = pneg %p346
        $region34: #{mmt_forward.2} parent=11 // pred_check_branch
          %528 = sbr.rel (%p526) target = $region36
        $region35: #{mmt_forward.2} parent=11 // pred_region
          %s530 = ssub.s32 16, 16
          %531 = vsyncadd [#allocation20], %s530
          %s533 = sshll.u32 [#allocation19], 4
          %s534 = int_to_ptr.vmem [resolvable:$true] %s533
          %536 = dma.hbm_to_vmem [thread:$0]  %s12, 16, %s534, [#allocation20]
        $region36: #{mmt_forward.2} parent=11 // pred_fallthru
          _
      $region12: #{mmt_forward.2} parent=5 // pred_fallthru
        _
      %p537 = scmp.lt.s32.totalorder %s38, 3
      // Predicated region
      $region37: #{mmt_forward.2} parent=5 // pred_check
        %p538 = pneg %p537
      $region38: #{mmt_forward.2} parent=5 // pred_check_branch
        %540 = sbr.rel (%p538) target = $region40
      $region39: #{mmt_forward.2} parent=5 // pred_region
        // Predicated region
        $region41: #{mmt_forward.2} parent=39 // pred_check
          %p541 = pneg %p58
        $region42: #{mmt_forward.2} parent=39 // pred_check_branch
          %543 = sbr.rel (%p541) target = $region44
        $region43: #{mmt_forward.2} parent=39 // pred_region
          %p544 = scmp.lt.s32.totalorder %s38, 2
          %s545 = scalar_select %p544, %s38, 2
          %s546 = smul.addr %s545, 12
          %s547 = smul.addr %s546, 4
          %s548 = scalar_lea.vmem %s0, %s547
        $region44: #{mmt_forward.2} parent=39 // pred_fallthru
          _
        // Predicated region
        $region45: #{mmt_forward.2} parent=39 // pred_check
          %p549 = pneg %p84
        $region46: #{mmt_forward.2} parent=39 // pred_check_branch
          %551 = sbr.rel (%p549) target = $region48
        $region47: #{mmt_forward.2} parent=39 // pred_region
          %s552 = sand.u32 %s74, 1
          %s553 = scalar_lea.sflag [#allocation3], %s552
          %s554 = sand.u32 %s74, 1
          %s555 = smul.addr %s554, 768
          %s556 = scalar_lea.vmem [#allocation2], %s555
          %s558 = ssub.s32 12288, 12288
          %559 = vsyncadd %s553, %s558
          %s560 = smul.addr %s38, 192
          %s561 = smul.addr %s560, 64
          %s562 = scalar_lea.hbm %s1, %s561
          %s563 = sshll.u32 %s556, 4
          %s564 = int_to_ptr.vmem [resolvable:$true] %s563
          %569 = dma.hbm_to_vmem [thread:$0]  %s562, 12288, %s564, %s553, 128, 128, 8
        $region48: #{mmt_forward.2} parent=39 // pred_fallthru
          _
        // Predicated region
        $region49: #{mmt_forward.2} parent=39 // pred_check
          %p570 = pneg %p110
        $region50: #{mmt_forward.2} parent=39 // pred_check_branch
          %572 = sbr.rel (%p570) target = $region52
        $region51: #{mmt_forward.2} parent=39 // pred_region
          %s573 = sand.u32 %s38, 1
          %s574 = scalar_lea.sflag [#allocation5], %s573
          %s575 = sand.u32 %s100, 1
          %s576 = smul.addr %s575, 2
          %s577 = scalar_lea.vmem [#allocation4], %s576
          %s579 = ssub.s32 32, 32
          %580 = vsyncadd %s574, %s579
          %s581 = smul.addr %s38, 2
          %s582 = smul.addr %s581, 16
          %s583 = scalar_lea.hbm %s2, %s582
          %s585 = sshll.u32 %s577, 4
          %s586 = int_to_ptr.vmem [resolvable:$true] %s585
          %588 = dma.hbm_to_vmem [thread:$0]  %s583, 32, %s586, %s574
        $region52: #{mmt_forward.2} parent=39 // pred_fallthru
          _
        // Predicated region
        $region53: #{mmt_forward.2} parent=39 // pred_check
          %p589 = pneg %p136
        $region54: #{mmt_forward.2} parent=39 // pred_check_branch
          %591 = sbr.rel (%p589) target = $region56
        $region55: #{mmt_forward.2} parent=39 // pred_region
          %s592 = sand.u32 %s38, 1
          %s593 = scalar_lea.sflag [#allocation5], %s592
          %s594 = sand.u32 %s126, 1
          %s595 = smul.addr %s594, 128
          %s596 = scalar_lea.vmem [#allocation6], %s595
          %s598 = ssub.s32 2048, 2048
          %599 = vsyncadd %s593, %s598
          %s600 = smul.addr %s38, 32
          %s601 = smul.addr %s600, 64
          %s602 = scalar_lea.hbm %s3, %s601
          %s603 = sshll.u32 %s596, 4
          %s604 = int_to_ptr.vmem [resolvable:$true] %s603
          %609 = dma.hbm_to_vmem [thread:$0]  %s602, 2048, %s604, %s593, 64, 64, 4
        $region56: #{mmt_forward.2} parent=39 // pred_fallthru
          _
        // Predicated region
        $region57: #{mmt_forward.2} parent=39 // pred_check
          %p610 = pneg %p162
        $region58: #{mmt_forward.2} parent=39 // pred_check_branch
          %612 = sbr.rel (%p610) target = $region60
        $region59: #{mmt_forward.2} parent=39 // pred_region
          %s613 = sand.u32 %s38, 1
          %s614 = scalar_lea.sflag [#allocation8], %s613
          %s615 = sand.u32 %s152, 1
          %s616 = scalar_lea.vmem [#allocation7], %s615
          %s618 = ssub.s32 16, 16
          %619 = vsyncadd %s614, %s618
          %s620 = smul.addr %s38, 16
          %s621 = scalar_lea.hbm %s4, %s620
          %s623 = sshll.u32 %s616, 4
          %s624 = int_to_ptr.vmem [resolvable:$true] %s623
          %626 = dma.hbm_to_vmem [thread:$0]  %s621, 16, %s624, %s614
        $region60: #{mmt_forward.2} parent=39 // pred_fallthru
          _
        // Predicated region
        $region61: #{mmt_forward.2} parent=39 // pred_check
          %p627 = pneg %p188
        $region62: #{mmt_forward.2} parent=39 // pred_check_branch
          %629 = sbr.rel (%p627) target = $region64
        $region63: #{mmt_forward.2} parent=39 // pred_region
          %s630 = sand.u32 %s38, 1
          %s631 = scalar_lea.sflag [#allocation8], %s630
          %s632 = sand.u32 %s178, 1
          %s633 = smul.addr %s632, 64
          %s634 = scalar_lea.vmem [#allocation9], %s633
          %s636 = ssub.s32 1024, 1024
          %637 = vsyncadd %s631, %s636
          %s638 = smul.addr %s38, 16
          %s639 = smul.addr %s638, 64
          %s640 = scalar_lea.hbm %s5, %s639
          %s641 = sshll.u32 %s634, 4
          %s642 = int_to_ptr.vmem [resolvable:$true] %s641
          %647 = dma.hbm_to_vmem [thread:$0]  %s640, 1024, %s642, %s631, 64, 64, 4
        $region64: #{mmt_forward.2} parent=39 // pred_fallthru
          _
        // Predicated region
        $region65: #{mmt_forward.2} parent=39 // pred_check
          %p648 = pneg %p214
        $region66: #{mmt_forward.2} parent=39 // pred_check_branch
          %650 = sbr.rel (%p648) target = $region68
        $region67: #{mmt_forward.2} parent=39 // pred_region
          %s651 = sand.u32 %s38, 1
          %s652 = scalar_lea.sflag [#allocation11], %s651
          %s653 = sand.u32 %s204, 1
          %s654 = scalar_lea.vmem [#allocation10], %s653
          %s656 = ssub.s32 16, 16
          %657 = vsyncadd %s652, %s656
          %s658 = smul.addr %s38, 16
          %s659 = scalar_lea.hbm %s6, %s658
          %s661 = sshll.u32 %s654, 4
          %s662 = int_to_ptr.vmem [resolvable:$true] %s661
          %664 = dma.hbm_to_vmem [thread:$0]  %s659, 16, %s662, %s652
        $region68: #{mmt_forward.2} parent=39 // pred_fallthru
          _
      $region40: #{mmt_forward.2} parent=5 // pred_fallthru
        _
      %p665 = scmp.le.s32.totalorder 1, %s38
      %p666 = scmp.lt.s32.totalorder %s38, 4
      %p667 = pnand %p665, %p666
      %p668 = pneg %p667
      // Predicated region
      $region69: #{mmt_forward.2} parent=5 // pred_check
        _
      $region70: #{mmt_forward.2} parent=5 // pred_check_branch
        %670 = sbr.rel (%p667) target = $region72
      $region71: #{mmt_forward.2} parent=5 // pred_region
        %s671 = ssub.s32 %s38, 1
        %s672 = sand.u32 %s77, 1
        %s673 = scalar_lea.sflag [#allocation3], %s672
        %s674 = sand.u32 %s77, 1
        %s675 = smul.addr %s674, 768
        %s676 = scalar_lea.vmem [#allocation2], %s675
        // Predicated region
        $region73: #{mmt_forward.2} parent=71 // pred_check
          %p677 = pneg %p90
        $region74: #{mmt_forward.2} parent=71 // pred_check_branch
          %679 = sbr.rel (%p677) target = $region76
        $region75: #{mmt_forward.2} parent=71 // pred_region
          %680 = dma.done %s673, 12288
        $region76: #{mmt_forward.2} parent=71 // pred_fallthru
          _
        %s681 = sand.u32 %s43, 1
        %s682 = scalar_lea.sflag [#allocation5], %s681
        %s683 = sand.u32 %s103, 1
        %s684 = smul.addr %s683, 2
        %s685 = scalar_lea.vmem [#allocation4], %s684
        // Predicated region
        $region77: #{mmt_forward.2} parent=71 // pred_check
          %p686 = pneg %p116
        $region78: #{mmt_forward.2} parent=71 // pred_check_branch
          %688 = sbr.rel (%p686) target = $region80
        $region79: #{mmt_forward.2} parent=71 // pred_region
          %689 = dma.done %s682, 32
        $region80: #{mmt_forward.2} parent=71 // pred_fallthru
          _
        %s690 = sand.u32 %s43, 1
        %s691 = scalar_lea.sflag [#allocation5], %s690
        %s692 = sand.u32 %s129, 1
        %s693 = smul.addr %s692, 128
        %s694 = scalar_lea.vmem [#allocation6], %s693
        // Predicated region
        $region81: #{mmt_forward.2} parent=71 // pred_check
          %p695 = pneg %p142
        $region82: #{mmt_forward.2} parent=71 // pred_check_branch
          %697 = sbr.rel (%p695) target = $region84
        $region83: #{mmt_forward.2} parent=71 // pred_region
          %698 = dma.done %s691, 2048
        $region84: #{mmt_forward.2} parent=71 // pred_fallthru
          _
        %s699 = sand.u32 %s43, 1
        %s700 = scalar_lea.sflag [#allocation8], %s699
        %s701 = sand.u32 %s155, 1
        %s702 = scalar_lea.vmem [#allocation7], %s701
        // Predicated region
        $region85: #{mmt_forward.2} parent=71 // pred_check
          %p703 = pneg %p168
        $region86: #{mmt_forward.2} parent=71 // pred_check_branch
          %705 = sbr.rel (%p703) target = $region88
        $region87: #{mmt_forward.2} parent=71 // pred_region
          %706 = dma.done %s700, 16
        $region88: #{mmt_forward.2} parent=71 // pred_fallthru
          _
        %s707 = sand.u32 %s43, 1
        %s708 = scalar_lea.sflag [#allocation8], %s707
        %s709 = sand.u32 %s181, 1
        %s710 = smul.addr %s709, 64
        %s711 = scalar_lea.vmem [#allocation9], %s710
        // Predicated region
        $region89: #{mmt_forward.2} parent=71 // pred_check
          %p712 = pneg %p194
        $region90: #{mmt_forward.2} parent=71 // pred_check_branch
          %714 = sbr.rel (%p712) target = $region92
        $region91: #{mmt_forward.2} parent=71 // pred_region
          %715 = dma.done %s708, 1024
        $region92: #{mmt_forward.2} parent=71 // pred_fallthru
          _
        %s716 = sand.u32 %s43, 1
        %s717 = scalar_lea.sflag [#allocation11], %s716
        %s718 = sand.u32 %s207, 1
        %s719 = scalar_lea.vmem [#allocation10], %s718
        // Predicated region
        $region93: #{mmt_forward.2} parent=71 // pred_check
          %p720 = pneg %p220
        $region94: #{mmt_forward.2} parent=71 // pred_check_branch
          %722 = sbr.rel (%p720) target = $region96
        $region95: #{mmt_forward.2} parent=71 // pred_region
          %723 = dma.done %s717, 16
        $region96: #{mmt_forward.2} parent=71 // pred_fallthru
          _
        // Predicated region
        $region97: #{mmt_forward.2} parent=71 // pred_check
          %p724 = pneg %p241
        $region98: #{mmt_forward.2} parent=71 // pred_check_branch
          %726 = sbr.rel (%p724) target = $region100
        $region99: #{mmt_forward.2} parent=71 // pred_region
          %727 = dma.done [#allocation11], 2048
        $region100: #{mmt_forward.2} parent=71 // pred_fallthru
          _
        // Predicated region
        $region101: #{mmt_forward.2} parent=71 // pred_check
          %p728 = pneg %p262
        $region102: #{mmt_forward.2} parent=71 // pred_check_branch
          %730 = sbr.rel (%p728) target = $region104
        $region103: #{mmt_forward.2} parent=71 // pred_region
          %731 = dma.done [#allocation14], 16
        $region104: #{mmt_forward.2} parent=71 // pred_fallthru
          _
        // Predicated region
        $region105: #{mmt_forward.2} parent=71 // pred_check
          %p732 = pneg %p283
        $region106: #{mmt_forward.2} parent=71 // pred_check_branch
          %734 = sbr.rel (%p732) target = $region108
        $region107: #{mmt_forward.2} parent=71 // pred_region
          %735 = dma.done [#allocation14], 1024
        $region108: #{mmt_forward.2} parent=71 // pred_fallthru
          _
        // Predicated region
        $region109: #{mmt_forward.2} parent=71 // pred_check
          %p736 = pneg %p304
        $region110: #{mmt_forward.2} parent=71 // pred_check_branch
          %738 = sbr.rel (%p736) target = $region112
        $region111: #{mmt_forward.2} parent=71 // pred_region
          %739 = dma.done [#allocation17], 16
        $region112: #{mmt_forward.2} parent=71 // pred_fallthru
          _
        // Predicated region
        $region113: #{mmt_forward.2} parent=71 // pred_check
          %p740 = pneg %p325
        $region114: #{mmt_forward.2} parent=71 // pred_check_branch
          %742 = sbr.rel (%p740) target = $region116
        $region115: #{mmt_forward.2} parent=71 // pred_region
          %743 = dma.done [#allocation17], 1024
        $region116: #{mmt_forward.2} parent=71 // pred_fallthru
          _
        // Predicated region
        $region117: #{mmt_forward.2} parent=71 // pred_check
          %p744 = pneg %p346
        $region118: #{mmt_forward.2} parent=71 // pred_check_branch
          %746 = sbr.rel (%p744) target = $region120
        $region119: #{mmt_forward.2} parent=71 // pred_region
          %747 = dma.done [#allocation20], 16
        $region120: #{mmt_forward.2} parent=71 // pred_fallthru
          _
        %p748 = scmp.lt.s32.totalorder %s43, 2
        %s749 = scalar_select %p748, %s43, 2
        %s750 = smul.addr %s749, 12
        %s751 = smul.addr %s750, 4
        %s752 = scalar_lea.vmem %s0, %s751
        %p753 = pneg %p64
        %p754 = pneg %p61
        %s755 = sand.u32 %s77, 1
        %s756 = scalar_lea.sflag [#allocation3], %s755
        %s757 = sand.u32 %s77, 1
        %s758 = smul.addr %s757, 768
        %s759 = scalar_lea.vmem [#allocation2], %s758
        %p760 = pneg %p90
        %p761 = pneg %p87
        %s762 = sand.u32 %s43, 1
        %s763 = scalar_lea.sflag [#allocation5], %s762
        %s764 = sand.u32 %s103, 1
        %s765 = smul.addr %s764, 2
        %s766 = scalar_lea.vmem [#allocation4], %s765
        %p767 = pneg %p116
        %p768 = pneg %p113
        %s769 = sand.u32 %s43, 1
        %s770 = scalar_lea.sflag [#allocation5], %s769
        %s771 = sand.u32 %s129, 1
        %s772 = smul.addr %s771, 128
        %s773 = scalar_lea.vmem [#allocation6], %s772
        %p774 = pneg %p142
        %p775 = pneg %p139
        %s776 = sand.u32 %s43, 1
        %s777 = scalar_lea.sflag [#allocation8], %s776
        %s778 = sand.u32 %s155, 1
        %s779 = scalar_lea.vmem [#allocation7], %s778
        %p780 = pneg %p168
        %p781 = pneg %p165
        %s782 = sand.u32 %s43, 1
        %s783 = scalar_lea.sflag [#allocation8], %s782
        %s784 = sand.u32 %s181, 1
        %s785 = smul.addr %s784, 64
        %s786 = scalar_lea.vmem [#allocation9], %s785
        %p787 = pneg %p194
        %p788 = pneg %p191
        %s789 = sand.u32 %s43, 1
        %s790 = scalar_lea.sflag [#allocation11], %s789
        %s791 = sand.u32 %s207, 1
        %s792 = scalar_lea.vmem [#allocation10], %s791
        %p793 = pneg %p220
        %p794 = pneg %p217
        %p795 = pneg %p241
        %p796 = pneg %p238
        %p797 = pneg %p262
        %p798 = pneg %p259
        %p799 = pneg %p283
        %p800 = pneg %p280
        %p801 = pneg %p304
        %p802 = pneg %p301
        %p803 = pneg %p325
        %p804 = pneg %p322
        %p805 = pneg %p346
        %p806 = pneg %p343
        %p807 = pneg %p372
        %p808 = pneg %p369
        %s809 = sand.u32 %s359, 1
        %s810 = sand.u32 %s359, 1
        %s811 = smul.addr %s810, 8
        %s812 = scalar_lea.vmem [#allocation21], %s811
        %p813 = pneg %p398
        %p814 = pneg %p395
        %s815 = sand.u32 %s385, 1
        %s816 = sand.u32 %s385, 1
        %s817 = smul.addr %s816, 8
        %s818 = scalar_lea.vmem [#allocation22], %s817
        %p819 = pneg %p424
        %p820 = pneg %p421
        %p821 = scmp.lt.s32.totalorder %s43, 2
        %s822 = scalar_select %p821, %s43, 2
        %s823 = smul.addr %s822, 2
        %s824 = scalar_lea.vmem %s15, %s823
        %p825 = pneg %p450
        %p826 = pneg %p447
        %p827 = scmp.lt.s32.totalorder %s43, 2
        %s828 = scalar_select %p827, %s43, 2
        %s829 = smul.addr %s828, 2
        %s830 = scalar_lea.vmem %s16, %s829
        %p831 = scmp.lt.s32.totalorder %s43, 2
        %s832 = scalar_select %p831, %s43, 2
        %s833 = smul.addr %s832, 12
        %s834 = smul.addr %s833, 4
        %s835 = scalar_lea.vmem %s0, %s834
        %p836 = scmp.lt.s32.totalorder %s43, 2
        %s837 = scalar_select %p836, %s43, 2
        %s838 = smul.addr %s837, 2
        %s839 = scalar_lea.vmem %s15, %s838
        %p840 = scmp.lt.s32.totalorder %s43, 2
        %s841 = scalar_select %p840, %s43, 2
        %s842 = smul.addr %s841, 2
        %s843 = scalar_lea.vmem %s16, %s842
        %v845 = vld [vmem:[%s835] sm:$0xff]
        %v846 = vld [vmem:[%s835 + $0x8] sm:$0xff]
        %v847 = vld [vmem:[%s835 + $0x10] sm:$0xff]
        %v848 = vld [vmem:[%s835 + $0x18] sm:$0xff]
        %v849 = vld [vmem:[%s835 + $0x20] sm:$0xff]
        %v850 = vld [vmem:[%s835 + $0x28] sm:$0xff]
        %v851 = vld [vmem:[%s676] sm:$0xff]
        %v852 = vld [vmem:[%s676 + $0x8] sm:$0xff]
        %v853 = vld [vmem:[%s676 + $0x10] sm:$0xff]
        %v854 = vld [vmem:[%s676 + $0x18] sm:$0xff]
        %v855 = vld [vmem:[%s676 + $0x20] sm:$0xff]
        %v856 = vld [vmem:[%s676 + $0x28] sm:$0xff]
        %v857 = vld [vmem:[%s676 + $0x30] sm:$0xff]
        %v858 = vld [vmem:[%s676 + $0x38] sm:$0xff]
        %v859 = vld [vmem:[%s676 + $0x40] sm:$0xff]
        %v860 = vld [vmem:[%s676 + $0x48] sm:$0xff]
        %v861 = vld [vmem:[%s676 + $0x50] sm:$0xff]
        %v862 = vld [vmem:[%s676 + $0x58] sm:$0xff]
        %v863 = vld [vmem:[%s676 + $0x60] sm:$0xff]
        %v864 = vld [vmem:[%s676 + $0x68] sm:$0xff]
        %v865 = vld [vmem:[%s676 + $0x70] sm:$0xff]
        %v866 = vld [vmem:[%s676 + $0x78] sm:$0xff]
        %v867 = vld [vmem:[%s676 + $0x80] sm:$0xff]
        %v868 = vld [vmem:[%s676 + $0x88] sm:$0xff]
        %v869 = vld [vmem:[%s676 + $0x90] sm:$0xff]
        %v870 = vld [vmem:[%s676 + $0x98] sm:$0xff]
        %v871 = vld [vmem:[%s676 + $0xa0] sm:$0xff]
        %v872 = vld [vmem:[%s676 + $0xa8] sm:$0xff]
        %v873 = vld [vmem:[%s676 + $0xb0] sm:$0xff]
        %v874 = vld [vmem:[%s676 + $0xb8] sm:$0xff]
        %v875 = vld [vmem:[%s676 + $0xc0] sm:$0xff]
        %v876 = vld [vmem:[%s676 + $0xc8] sm:$0xff]
        %v877 = vld [vmem:[%s676 + $0xd0] sm:$0xff]
        %v878 = vld [vmem:[%s676 + $0xd8] sm:$0xff]
        %v879 = vld [vmem:[%s676 + $0xe0] sm:$0xff]
        %v880 = vld [vmem:[%s676 + $0xe8] sm:$0xff]
        %v881 = vld [vmem:[%s676 + $0xf0] sm:$0xff]
        %v882 = vld [vmem:[%s676 + $0xf8] sm:$0xff]
        %v883 = vld [vmem:[%s676 + $0x100] sm:$0xff]
        %v884 = vld [vmem:[%s676 + $0x108] sm:$0xff]
        %v885 = vld [vmem:[%s676 + $0x110] sm:$0xff]
        %v886 = vld [vmem:[%s676 + $0x118] sm:$0xff]
        %v887 = vld [vmem:[%s676 + $0x120] sm:$0xff]
        %v888 = vld [vmem:[%s676 + $0x128] sm:$0xff]
        %v889 = vld [vmem:[%s676 + $0x130] sm:$0xff]
        %v890 = vld [vmem:[%s676 + $0x138] sm:$0xff]
        %v891 = vld [vmem:[%s676 + $0x140] sm:$0xff]
        %v892 = vld [vmem:[%s676 + $0x148] sm:$0xff]
        %v893 = vld [vmem:[%s676 + $0x150] sm:$0xff]
        %v894 = vld [vmem:[%s676 + $0x158] sm:$0xff]
        %v895 = vld [vmem:[%s676 + $0x160] sm:$0xff]
        %v896 = vld [vmem:[%s676 + $0x168] sm:$0xff]
        %v897 = vld [vmem:[%s676 + $0x170] sm:$0xff]
        %v898 = vld [vmem:[%s676 + $0x178] sm:$0xff]
        %v899 = vld [vmem:[%s676 + $0x180] sm:$0xff]
        %v900 = vld [vmem:[%s676 + $0x188] sm:$0xff]
        %v901 = vld [vmem:[%s676 + $0x190] sm:$0xff]
        %v902 = vld [vmem:[%s676 + $0x198] sm:$0xff]
        %v903 = vld [vmem:[%s676 + $0x1a0] sm:$0xff]
        %v904 = vld [vmem:[%s676 + $0x1a8] sm:$0xff]
        %v905 = vld [vmem:[%s676 + $0x1b0] sm:$0xff]
        %v906 = vld [vmem:[%s676 + $0x1b8] sm:$0xff]
        %v907 = vld [vmem:[%s676 + $0x1c0] sm:$0xff]
        %v908 = vld [vmem:[%s676 + $0x1c8] sm:$0xff]
        %v909 = vld [vmem:[%s676 + $0x1d0] sm:$0xff]
        %v910 = vld [vmem:[%s676 + $0x1d8] sm:$0xff]
        %v911 = vld [vmem:[%s676 + $0x1e0] sm:$0xff]
        %v912 = vld [vmem:[%s676 + $0x1e8] sm:$0xff]
        %v913 = vld [vmem:[%s676 + $0x1f0] sm:$0xff]
        %v914 = vld [vmem:[%s676 + $0x1f8] sm:$0xff]
        %v915 = vld [vmem:[%s676 + $0x200] sm:$0xff]
        %v916 = vld [vmem:[%s676 + $0x208] sm:$0xff]
        %v917 = vld [vmem:[%s676 + $0x210] sm:$0xff]
        %v918 = vld [vmem:[%s676 + $0x218] sm:$0xff]
        %v919 = vld [vmem:[%s676 + $0x220] sm:$0xff]
        %v920 = vld [vmem:[%s676 + $0x228] sm:$0xff]
        %v921 = vld [vmem:[%s676 + $0x230] sm:$0xff]
        %v922 = vld [vmem:[%s676 + $0x238] sm:$0xff]
        %v923 = vld [vmem:[%s676 + $0x240] sm:$0xff]
        %v924 = vld [vmem:[%s676 + $0x248] sm:$0xff]
        %v925 = vld [vmem:[%s676 + $0x250] sm:$0xff]
        %v926 = vld [vmem:[%s676 + $0x258] sm:$0xff]
        %v927 = vld [vmem:[%s676 + $0x260] sm:$0xff]
        %v928 = vld [vmem:[%s676 + $0x268] sm:$0xff]
        %v929 = vld [vmem:[%s676 + $0x270] sm:$0xff]
        %v930 = vld [vmem:[%s676 + $0x278] sm:$0xff]
        %v931 = vld [vmem:[%s676 + $0x280] sm:$0xff]
        %v932 = vld [vmem:[%s676 + $0x288] sm:$0xff]
        %v933 = vld [vmem:[%s676 + $0x290] sm:$0xff]
        %v934 = vld [vmem:[%s676 + $0x298] sm:$0xff]
        %v935 = vld [vmem:[%s676 + $0x2a0] sm:$0xff]
        %v936 = vld [vmem:[%s676 + $0x2a8] sm:$0xff]
        %v937 = vld [vmem:[%s676 + $0x2b0] sm:$0xff]
        %v938 = vld [vmem:[%s676 + $0x2b8] sm:$0xff]
        %v939 = vld [vmem:[%s676 + $0x2c0] sm:$0xff]
        %v940 = vld [vmem:[%s676 + $0x2c8] sm:$0xff]
        %v941 = vld [vmem:[%s676 + $0x2d0] sm:$0xff]
        %v942 = vld [vmem:[%s676 + $0x2d8] sm:$0xff]
        %v943 = vld [vmem:[%s676 + $0x2e0] sm:$0xff]
        %v944 = vld [vmem:[%s676 + $0x2e8] sm:$0xff]
        %v945 = vld [vmem:[%s676 + $0x2f0] sm:$0xff]
        %v946 = vld [vmem:[%s676 + $0x2f8] sm:$0xff]
        %v947 = vld [vmem:[%s685] sm:$0x3]
        %v949 = vlaneseq
        %v950 = vshrl.u32 %v949, 7
        %v951 = vsub.s32 0, %v950
        %v952 = vrot.slane %v947, %v951
        %v953 = vlaneseq
        %v954 = vshrl.u32 %v953, 7
        %v955 = vsub.s32 1, %v954
        %v956 = vrot.slane %v947, %v955
        %v965 = vunpack.c.l.b16 %v845
        %v966 = vunpack.c.h.b16 %v845
        %v967 = vunpack.c.l.b16 %v846
        %v968 = vunpack.c.h.b16 %v846
        %v969 = vunpack.c.l.b16 %v847
        %v970 = vunpack.c.h.b16 %v847
        %v971 = vunpack.c.l.b16 %v848
        %v972 = vunpack.c.h.b16 %v848
        %v973 = vunpack.c.l.b16 %v849
        %v974 = vunpack.c.h.b16 %v849
        %v975 = vunpack.c.l.b16 %v850
        %v976 = vunpack.c.h.b16 %v850
        %v977 = vpack.c.b16 %v971, %v965
        %v978 = vpack.c.b16 %v972, %v966
        %v979 = vpack.c.b16 %v973, %v967
        %v980 = vpack.c.b16 %v974, %v968
        %v981 = vpack.c.b16 %v975, %v969
        %v982 = vpack.c.b16 %v976, %v970
        %v1085 = vunpack.c.l.b16 %v851
        %v1086 = vunpack.c.h.b16 %v851
        %v1087 = vunpack.c.l.b16 %v852
        %v1088 = vunpack.c.h.b16 %v852
        %v1089 = vunpack.c.l.b16 %v853
        %v1090 = vunpack.c.h.b16 %v853
        %v1091 = vunpack.c.l.b16 %v854
        %v1092 = vunpack.c.h.b16 %v854
        %v1093 = vunpack.c.l.b16 %v855
        %v1094 = vunpack.c.h.b16 %v855
        %v1095 = vunpack.c.l.b16 %v856
        %v1096 = vunpack.c.h.b16 %v856
        %v1097 = vunpack.c.l.b16 %v857
        %v1098 = vunpack.c.h.b16 %v857
        %v1099 = vunpack.c.l.b16 %v858
        %v1100 = vunpack.c.h.b16 %v858
        %v1101 = vunpack.c.l.b16 %v859
        %v1102 = vunpack.c.h.b16 %v859
        %v1103 = vunpack.c.l.b16 %v860
        %v1104 = vunpack.c.h.b16 %v860
        %v1105 = vunpack.c.l.b16 %v861
        %v1106 = vunpack.c.h.b16 %v861
        %v1107 = vunpack.c.l.b16 %v862
        %v1108 = vunpack.c.h.b16 %v862
        %v1109 = vunpack.c.l.b16 %v863
        %v1110 = vunpack.c.h.b16 %v863
        %v1111 = vunpack.c.l.b16 %v864
        %v1112 = vunpack.c.h.b16 %v864
        %v1113 = vunpack.c.l.b16 %v865
        %v1114 = vunpack.c.h.b16 %v865
        %v1115 = vunpack.c.l.b16 %v866
        %v1116 = vunpack.c.h.b16 %v866
        %v1117 = vunpack.c.l.b16 %v867
        %v1118 = vunpack.c.h.b16 %v867
        %v1119 = vunpack.c.l.b16 %v868
        %v1120 = vunpack.c.h.b16 %v868
        %v1121 = vunpack.c.l.b16 %v869
        %v1122 = vunpack.c.h.b16 %v869
        %v1123 = vunpack.c.l.b16 %v870
        %v1124 = vunpack.c.h.b16 %v870
        %v1125 = vunpack.c.l.b16 %v871
        %v1126 = vunpack.c.h.b16 %v871
        %v1127 = vunpack.c.l.b16 %v872
        %v1128 = vunpack.c.h.b16 %v872
        %v1129 = vunpack.c.l.b16 %v873
        %v1130 = vunpack.c.h.b16 %v873
        %v1131 = vunpack.c.l.b16 %v874
        %v1132 = vunpack.c.h.b16 %v874
        %v1133 = vunpack.c.l.b16 %v875
        %v1134 = vunpack.c.h.b16 %v875
        %v1135 = vunpack.c.l.b16 %v876
        %v1136 = vunpack.c.h.b16 %v876
        %v1137 = vunpack.c.l.b16 %v877
        %v1138 = vunpack.c.h.b16 %v877
        %v1139 = vunpack.c.l.b16 %v878
        %v1140 = vunpack.c.h.b16 %v878
        %v1141 = vunpack.c.l.b16 %v879
        %v1142 = vunpack.c.h.b16 %v879
        %v1143 = vunpack.c.l.b16 %v880
        %v1144 = vunpack.c.h.b16 %v880
        %v1145 = vunpack.c.l.b16 %v881
        %v1146 = vunpack.c.h.b16 %v881
        %v1147 = vunpack.c.l.b16 %v882
        %v1148 = vunpack.c.h.b16 %v882
        %v1149 = vunpack.c.l.b16 %v883
        %v1150 = vunpack.c.h.b16 %v883
        %v1151 = vunpack.c.l.b16 %v884
        %v1152 = vunpack.c.h.b16 %v884
        %v1153 = vunpack.c.l.b16 %v885
        %v1154 = vunpack.c.h.b16 %v885
        %v1155 = vunpack.c.l.b16 %v886
        %v1156 = vunpack.c.h.b16 %v886
        %v1157 = vunpack.c.l.b16 %v887
        %v1158 = vunpack.c.h.b16 %v887
        %v1159 = vunpack.c.l.b16 %v888
        %v1160 = vunpack.c.h.b16 %v888
        %v1161 = vunpack.c.l.b16 %v889
        %v1162 = vunpack.c.h.b16 %v889
        %v1163 = vunpack.c.l.b16 %v890
        %v1164 = vunpack.c.h.b16 %v890
        %v1165 = vunpack.c.l.b16 %v891
        %v1166 = vunpack.c.h.b16 %v891
        %v1167 = vunpack.c.l.b16 %v892
        %v1168 = vunpack.c.h.b16 %v892
        %v1169 = vunpack.c.l.b16 %v893
        %v1170 = vunpack.c.h.b16 %v893
        %v1171 = vunpack.c.l.b16 %v894
        %v1172 = vunpack.c.h.b16 %v894
        %v1173 = vunpack.c.l.b16 %v895
        %v1174 = vunpack.c.h.b16 %v895
        %v1175 = vunpack.c.l.b16 %v896
        %v1176 = vunpack.c.h.b16 %v896
        %v1177 = vunpack.c.l.b16 %v897
        %v1178 = vunpack.c.h.b16 %v897
        %v1179 = vunpack.c.l.b16 %v898
        %v1180 = vunpack.c.h.b16 %v898
        %v1181 = vunpack.c.l.b16 %v899
        %v1182 = vunpack.c.h.b16 %v899
        %v1183 = vunpack.c.l.b16 %v900
        %v1184 = vunpack.c.h.b16 %v900
        %v1185 = vunpack.c.l.b16 %v901
        %v1186 = vunpack.c.h.b16 %v901
        %v1187 = vunpack.c.l.b16 %v902
        %v1188 = vunpack.c.h.b16 %v902
        %v1189 = vunpack.c.l.b16 %v903
        %v1190 = vunpack.c.h.b16 %v903
        %v1191 = vunpack.c.l.b16 %v904
        %v1192 = vunpack.c.h.b16 %v904
        %v1193 = vunpack.c.l.b16 %v905
        %v1194 = vunpack.c.h.b16 %v905
        %v1195 = vunpack.c.l.b16 %v906
        %v1196 = vunpack.c.h.b16 %v906
        %v1197 = vunpack.c.l.b16 %v907
        %v1198 = vunpack.c.h.b16 %v907
        %v1199 = vunpack.c.l.b16 %v908
        %v1200 = vunpack.c.h.b16 %v908
        %v1201 = vunpack.c.l.b16 %v909
        %v1202 = vunpack.c.h.b16 %v909
        %v1203 = vunpack.c.l.b16 %v910
        %v1204 = vunpack.c.h.b16 %v910
        %v1205 = vunpack.c.l.b16 %v911
        %v1206 = vunpack.c.h.b16 %v911
        %v1207 = vunpack.c.l.b16 %v912
        %v1208 = vunpack.c.h.b16 %v912
        %v1209 = vunpack.c.l.b16 %v913
        %v1210 = vunpack.c.h.b16 %v913
        %v1211 = vunpack.c.l.b16 %v914
        %v1212 = vunpack.c.h.b16 %v914
        %v1213 = vunpack.c.l.b16 %v915
        %v1214 = vunpack.c.h.b16 %v915
        %v1215 = vunpack.c.l.b16 %v916
        %v1216 = vunpack.c.h.b16 %v916
        %v1217 = vunpack.c.l.b16 %v917
        %v1218 = vunpack.c.h.b16 %v917
        %v1219 = vunpack.c.l.b16 %v918
        %v1220 = vunpack.c.h.b16 %v918
        %v1221 = vunpack.c.l.b16 %v919
        %v1222 = vunpack.c.h.b16 %v919
        %v1223 = vunpack.c.l.b16 %v920
        %v1224 = vunpack.c.h.b16 %v920
        %v1225 = vunpack.c.l.b16 %v921
        %v1226 = vunpack.c.h.b16 %v921
        %v1227 = vunpack.c.l.b16 %v922
        %v1228 = vunpack.c.h.b16 %v922
        %v1229 = vunpack.c.l.b16 %v923
        %v1230 = vunpack.c.h.b16 %v923
        %v1231 = vunpack.c.l.b16 %v924
        %v1232 = vunpack.c.h.b16 %v924
        %v1233 = vunpack.c.l.b16 %v925
        %v1234 = vunpack.c.h.b16 %v925
        %v1235 = vunpack.c.l.b16 %v926
        %v1236 = vunpack.c.h.b16 %v926
        %v1237 = vunpack.c.l.b16 %v927
        %v1238 = vunpack.c.h.b16 %v927
        %v1239 = vunpack.c.l.b16 %v928
        %v1240 = vunpack.c.h.b16 %v928
        %v1241 = vunpack.c.l.b16 %v929
        %v1242 = vunpack.c.h.b16 %v929
        %v1243 = vunpack.c.l.b16 %v930
        %v1244 = vunpack.c.h.b16 %v930
        %v1245 = vunpack.c.l.b16 %v931
        %v1246 = vunpack.c.h.b16 %v931
        %v1247 = vunpack.c.l.b16 %v932
        %v1248 = vunpack.c.h.b16 %v932
        %v1249 = vunpack.c.l.b16 %v933
        %v1250 = vunpack.c.h.b16 %v933
        %v1251 = vunpack.c.l.b16 %v934
        %v1252 = vunpack.c.h.b16 %v934
        %v1253 = vunpack.c.l.b16 %v935
        %v1254 = vunpack.c.h.b16 %v935
        %v1255 = vunpack.c.l.b16 %v936
        %v1256 = vunpack.c.h.b16 %v936
        %v1257 = vunpack.c.l.b16 %v937
        %v1258 = vunpack.c.h.b16 %v937
        %v1259 = vunpack.c.l.b16 %v938
        %v1260 = vunpack.c.h.b16 %v938
        %v1261 = vunpack.c.l.b16 %v939
        %v1262 = vunpack.c.h.b16 %v939
        %v1263 = vunpack.c.l.b16 %v940
        %v1264 = vunpack.c.h.b16 %v940
        %v1265 = vunpack.c.l.b16 %v941
        %v1266 = vunpack.c.h.b16 %v941
        %v1267 = vunpack.c.l.b16 %v942
        %v1268 = vunpack.c.h.b16 %v942
        %v1269 = vunpack.c.l.b16 %v943
        %v1270 = vunpack.c.h.b16 %v943
        %v1271 = vunpack.c.l.b16 %v944
        %v1272 = vunpack.c.h.b16 %v944
        %v1273 = vunpack.c.l.b16 %v945
        %v1274 = vunpack.c.h.b16 %v945
        %v1275 = vunpack.c.l.b16 %v946
        %v1276 = vunpack.c.h.b16 %v946
        %v1277 = vpack.c.b16 %v1087, %v1085
        %v1278 = vpack.c.b16 %v1088, %v1086
        %v1279 = vpack.c.b16 %v1091, %v1089
        %v1280 = vpack.c.b16 %v1092, %v1090
        %v1281 = vpack.c.b16 %v1095, %v1093
        %v1282 = vpack.c.b16 %v1096, %v1094
        %v1283 = vpack.c.b16 %v1099, %v1097
        %v1284 = vpack.c.b16 %v1100, %v1098
        %v1285 = vpack.c.b16 %v1103, %v1101
        %v1286 = vpack.c.b16 %v1104, %v1102
        %v1287 = vpack.c.b16 %v1107, %v1105
        %v1288 = vpack.c.b16 %v1108, %v1106
        %v1289 = vpack.c.b16 %v1111, %v1109
        %v1290 = vpack.c.b16 %v1112, %v1110
        %v1291 = vpack.c.b16 %v1115, %v1113
        %v1292 = vpack.c.b16 %v1116, %v1114
        %v1293 = vpack.c.b16 %v1119, %v1117
        %v1294 = vpack.c.b16 %v1120, %v1118
        %v1295 = vpack.c.b16 %v1123, %v1121
        %v1296 = vpack.c.b16 %v1124, %v1122
        %v1297 = vpack.c.b16 %v1127, %v1125
        %v1298 = vpack.c.b16 %v1128, %v1126
        %v1299 = vpack.c.b16 %v1131, %v1129
        %v1300 = vpack.c.b16 %v1132, %v1130
        %v1301 = vpack.c.b16 %v1135, %v1133
        %v1302 = vpack.c.b16 %v1136, %v1134
        %v1303 = vpack.c.b16 %v1139, %v1137
        %v1304 = vpack.c.b16 %v1140, %v1138
        %v1305 = vpack.c.b16 %v1143, %v1141
        %v1306 = vpack.c.b16 %v1144, %v1142
        %v1307 = vpack.c.b16 %v1147, %v1145
        %v1308 = vpack.c.b16 %v1148, %v1146
        %v1309 = vpack.c.b16 %v1151, %v1149
        %v1310 = vpack.c.b16 %v1152, %v1150
        %v1311 = vpack.c.b16 %v1155, %v1153
        %v1312 = vpack.c.b16 %v1156, %v1154
        %v1313 = vpack.c.b16 %v1159, %v1157
        %v1314 = vpack.c.b16 %v1160, %v1158
        %v1315 = vpack.c.b16 %v1163, %v1161
        %v1316 = vpack.c.b16 %v1164, %v1162
        %v1317 = vpack.c.b16 %v1167, %v1165
        %v1318 = vpack.c.b16 %v1168, %v1166
        %v1319 = vpack.c.b16 %v1171, %v1169
        %v1320 = vpack.c.b16 %v1172, %v1170
        %v1321 = vpack.c.b16 %v1175, %v1173
        %v1322 = vpack.c.b16 %v1176, %v1174
        %v1323 = vpack.c.b16 %v1179, %v1177
        %v1324 = vpack.c.b16 %v1180, %v1178
        %v1325 = vpack.c.b16 %v1183, %v1181
        %v1326 = vpack.c.b16 %v1184, %v1182
        %v1327 = vpack.c.b16 %v1187, %v1185
        %v1328 = vpack.c.b16 %v1188, %v1186
        %v1329 = vpack.c.b16 %v1191, %v1189
        %v1330 = vpack.c.b16 %v1192, %v1190
        %v1331 = vpack.c.b16 %v1195, %v1193
        %v1332 = vpack.c.b16 %v1196, %v1194
        %v1333 = vpack.c.b16 %v1199, %v1197
        %v1334 = vpack.c.b16 %v1200, %v1198
        %v1335 = vpack.c.b16 %v1203, %v1201
        %v1336 = vpack.c.b16 %v1204, %v1202
        %v1337 = vpack.c.b16 %v1207, %v1205
        %v1338 = vpack.c.b16 %v1208, %v1206
        %v1339 = vpack.c.b16 %v1211, %v1209
        %v1340 = vpack.c.b16 %v1212, %v1210
        %v1341 = vpack.c.b16 %v1215, %v1213
        %v1342 = vpack.c.b16 %v1216, %v1214
        %v1343 = vpack.c.b16 %v1219, %v1217
        %v1344 = vpack.c.b16 %v1220, %v1218
        %v1345 = vpack.c.b16 %v1223, %v1221
        %v1346 = vpack.c.b16 %v1224, %v1222
        %v1347 = vpack.c.b16 %v1227, %v1225
        %v1348 = vpack.c.b16 %v1228, %v1226
        %v1349 = vpack.c.b16 %v1231, %v1229
        %v1350 = vpack.c.b16 %v1232, %v1230
        %v1351 = vpack.c.b16 %v1235, %v1233
        %v1352 = vpack.c.b16 %v1236, %v1234
        %v1353 = vpack.c.b16 %v1239, %v1237
        %v1354 = vpack.c.b16 %v1240, %v1238
        %v1355 = vpack.c.b16 %v1243, %v1241
        %v1356 = vpack.c.b16 %v1244, %v1242
        %v1357 = vpack.c.b16 %v1247, %v1245
        %v1358 = vpack.c.b16 %v1248, %v1246
        %v1359 = vpack.c.b16 %v1251, %v1249
        %v1360 = vpack.c.b16 %v1252, %v1250
        %v1361 = vpack.c.b16 %v1255, %v1253
        %v1362 = vpack.c.b16 %v1256, %v1254
        %v1363 = vpack.c.b16 %v1259, %v1257
        %v1364 = vpack.c.b16 %v1260, %v1258
        %v1365 = vpack.c.b16 %v1263, %v1261
        %v1366 = vpack.c.b16 %v1264, %v1262
        %v1367 = vpack.c.b16 %v1267, %v1265
        %v1368 = vpack.c.b16 %v1268, %v1266
        %v1369 = vpack.c.b16 %v1271, %v1269
        %v1370 = vpack.c.b16 %v1272, %v1270
        %v1371 = vpack.c.b16 %v1275, %v1273
        %v1372 = vpack.c.b16 %v1276, %v1274
        %1469 = vmatprep.subr.bf16.mxu0 %v1292
        %1470 = vmatpush1.bf16.msra.mxu0 %v1291
        %1471 = vmatprep.subr.bf16.mxu0 %v1290
        %1472 = vmatpush1.bf16.msra.mxu0 %v1289
        %1473 = vmatprep.subr.bf16.mxu0 %v1288
        %1474 = vmatpush1.bf16.msra.mxu0 %v1287
        %1475 = vmatprep.subr.bf16.mxu0 %v1286
        %1476 = vmatpush1.bf16.msra.mxu0 %v1285
        %1477 = vmatprep.subr.bf16.mxu0 %v1284
        %1478 = vmatpush1.bf16.msra.mxu0 %v1283
        %1479 = vmatprep.subr.bf16.mxu0 %v1282
        %1480 = vmatpush1.bf16.msra.mxu0 %v1281
        %1481 = vmatprep.subr.bf16.mxu0 %v1280
        %1482 = vmatpush1.bf16.msra.mxu0 %v1279
        %1483 = vmatprep.subr.bf16.mxu0 %v1278
        %1484 = vmatpush1.bf16.msra.mxu0 %v1277
        %1485 = vmatprep.subr.bf16.mxu0 %v1308
        %1486 = vmatpush2.bf16.msra.mxu0 %v1307
        %1487 = vmatprep.subr.bf16.mxu0 %v1306
        %1488 = vmatpush2.bf16.msra.mxu0 %v1305
        %1489 = vmatprep.subr.bf16.mxu0 %v1304
        %1490 = vmatpush2.bf16.msra.mxu0 %v1303
        %1491 = vmatprep.subr.bf16.mxu0 %v1302
        %1492 = vmatpush2.bf16.msra.mxu0 %v1301
        %1493 = vmatprep.subr.bf16.mxu0 %v1300
        %1494 = vmatpush2.bf16.msra.mxu0 %v1299
        %1495 = vmatprep.subr.bf16.mxu0 %v1298
        %1496 = vmatpush2.bf16.msra.mxu0 %v1297
        %1497 = vmatprep.subr.bf16.mxu0 %v1296
        %1498 = vmatpush2.bf16.msra.mxu0 %v1295
        %1499 = vmatprep.subr.bf16.mxu0 %v1294
        %1500 = vmatpush2.bf16.msra.mxu0 %v1293
        %1501 = vmatprep.mubr.bf16.mxu0 %v978
        %1502 = vmatmul.mubr.bf16.gmra.mxu0 %v977
        %v1503 = vpop.f32.mrf.mxu0
        %v1504 = vadd.f32 %v952, %v1503
        %v1505 = vpop.f32.mrf.mxu0
        %v1506 = vadd.f32 %v956, %v1505
        %v1507 = vpop.f32.mrf.mxu0
        %v1508 = vadd.f32 %v952, %v1507
        %v1509 = vpop.f32.mrf.mxu0
        %v1510 = vadd.f32 %v956, %v1509
        %1511 = vdwg.mxu0
        %1512 = vmatprep.subr.bf16.mxu0 %v1324
        %1513 = vmatpush1.bf16.msra.mxu0 %v1323
        %1514 = vmatprep.subr.bf16.mxu0 %v1322
        %1515 = vmatpush1.bf16.msra.mxu0 %v1321
        %1516 = vmatprep.subr.bf16.mxu0 %v1320
        %1517 = vmatpush1.bf16.msra.mxu0 %v1319
        %1518 = vmatprep.subr.bf16.mxu0 %v1318
        %1519 = vmatpush1.bf16.msra.mxu0 %v1317
        %1520 = vmatprep.subr.bf16.mxu0 %v1316
        %1521 = vmatpush1.bf16.msra.mxu0 %v1315
        %1522 = vmatprep.subr.bf16.mxu0 %v1314
        %1523 = vmatpush1.bf16.msra.mxu0 %v1313
        %1524 = vmatprep.subr.bf16.mxu0 %v1312
        %1525 = vmatpush1.bf16.msra.mxu0 %v1311
        %1526 = vmatprep.subr.bf16.mxu0 %v1310
        %1527 = vmatpush1.bf16.msra.mxu0 %v1309
        %1528 = vmatprep.subr.bf16.mxu0 %v1340
        %1529 = vmatpush2.bf16.msra.mxu0 %v1339
        %1530 = vmatprep.subr.bf16.mxu0 %v1338
        %1531 = vmatpush2.bf16.msra.mxu0 %v1337
        %1532 = vmatprep.subr.bf16.mxu0 %v1336
        %1533 = vmatpush2.bf16.msra.mxu0 %v1335
        %1534 = vmatprep.subr.bf16.mxu0 %v1334
        %1535 = vmatpush2.bf16.msra.mxu0 %v1333
        %1536 = vmatprep.subr.bf16.mxu0 %v1332
        %1537 = vmatpush2.bf16.msra.mxu0 %v1331
        %1538 = vmatprep.subr.bf16.mxu0 %v1330
        %1539 = vmatpush2.bf16.msra.mxu0 %v1329
        %1540 = vmatprep.subr.bf16.mxu0 %v1328
        %1541 = vmatpush2.bf16.msra.mxu0 %v1327
        %1542 = vmatprep.subr.bf16.mxu0 %v1326
        %1543 = vmatpush2.bf16.msra.mxu0 %v1325
        %1544 = vmatprep.mubr.bf16.mxu0 %v980
        %1545 = vmatmul.mubr.bf16.gmra.mxu0 %v979
        %v1546 = vpop.f32.mrf.mxu0
        %v1547 = vadd.f32 %v1504, %v1546
        %v1548 = vpop.f32.mrf.mxu0
        %v1549 = vadd.f32 %v1506, %v1548
        %v1550 = vpop.f32.mrf.mxu0
        %v1551 = vadd.f32 %v1508, %v1550
        %v1552 = vpop.f32.mrf.mxu0
        %v1553 = vadd.f32 %v1510, %v1552
        %1554 = vdwg.mxu0
        %1555 = vmatprep.subr.bf16.mxu0 %v1356
        %1556 = vmatpush1.bf16.msra.mxu0 %v1355
        %1557 = vmatprep.subr.bf16.mxu0 %v1354
        %1558 = vmatpush1.bf16.msra.mxu0 %v1353
        %1559 = vmatprep.subr.bf16.mxu0 %v1352
        %1560 = vmatpush1.bf16.msra.mxu0 %v1351
        %1561 = vmatprep.subr.bf16.mxu0 %v1350
        %1562 = vmatpush1.bf16.msra.mxu0 %v1349
        %1563 = vmatprep.subr.bf16.mxu0 %v1348
        %1564 = vmatpush1.bf16.msra.mxu0 %v1347
        %1565 = vmatprep.subr.bf16.mxu0 %v1346
        %1566 = vmatpush1.bf16.msra.mxu0 %v1345
        %1567 = vmatprep.subr.bf16.mxu0 %v1344
        %1568 = vmatpush1.bf16.msra.mxu0 %v1343
        %1569 = vmatprep.subr.bf16.mxu0 %v1342
        %1570 = vmatpush1.bf16.msra.mxu0 %v1341
        %1571 = vmatprep.subr.bf16.mxu0 %v1372
        %1572 = vmatpush2.bf16.msra.mxu0 %v1371
        %1573 = vmatprep.subr.bf16.mxu0 %v1370
        %1574 = vmatpush2.bf16.msra.mxu0 %v1369
        %1575 = vmatprep.subr.bf16.mxu0 %v1368
        %1576 = vmatpush2.bf16.msra.mxu0 %v1367
        %1577 = vmatprep.subr.bf16.mxu0 %v1366
        %1578 = vmatpush2.bf16.msra.mxu0 %v1365
        %1579 = vmatprep.subr.bf16.mxu0 %v1364
        %1580 = vmatpush2.bf16.msra.mxu0 %v1363
        %1581 = vmatprep.subr.bf16.mxu0 %v1362
        %1582 = vmatpush2.bf16.msra.mxu0 %v1361
        %1583 = vmatprep.subr.bf16.mxu0 %v1360
        %1584 = vmatpush2.bf16.msra.mxu0 %v1359
        %1585 = vmatprep.subr.bf16.mxu0 %v1358
        %1586 = vmatpush2.bf16.msra.mxu0 %v1357
        %1587 = vmatprep.mubr.bf16.mxu0 %v982
        %1588 = vmatmul.mubr.bf16.gmra.mxu0 %v981
        %v1589 = vpop.f32.mrf.mxu0
        %v1590 = vadd.f32 %v1547, %v1589
        %v1591 = vpop.f32.mrf.mxu0
        %v1592 = vadd.f32 %v1549, %v1591
        %v1593 = vpop.f32.mrf.mxu0
        %v1594 = vadd.f32 %v1551, %v1593
        %v1595 = vpop.f32.mrf.mxu0
        %v1596 = vadd.f32 %v1553, %v1595
        %1597 = vdwg.mxu0
        %v1598 = vpack.c.bf16 %v1594, %v1590
        %v1599 = vpack.c.bf16 %v1596, %v1592
        %v1600 = vld [vmem:[%s694] sm:$0xf]
        %v1601 = vld [vmem:[%s694 + $0x4] sm:$0xf]
        %v1602 = vld [vmem:[%s694 + $0x8] sm:$0xf]
        %v1603 = vld [vmem:[%s694 + $0xc] sm:$0xf]
        %v1604 = vld [vmem:[%s694 + $0x10] sm:$0xf]
        %v1605 = vld [vmem:[%s694 + $0x14] sm:$0xf]
        %v1606 = vld [vmem:[%s694 + $0x18] sm:$0xf]
        %v1607 = vld [vmem:[%s694 + $0x1c] sm:$0xf]
        %v1608 = vld [vmem:[%s694 + $0x20] sm:$0xf]
        %v1609 = vld [vmem:[%s694 + $0x24] sm:$0xf]
        %v1610 = vld [vmem:[%s694 + $0x28] sm:$0xf]
        %v1611 = vld [vmem:[%s694 + $0x2c] sm:$0xf]
        %v1612 = vld [vmem:[%s694 + $0x30] sm:$0xf]
        %v1613 = vld [vmem:[%s694 + $0x34] sm:$0xf]
        %v1614 = vld [vmem:[%s694 + $0x38] sm:$0xf]
        %v1615 = vld [vmem:[%s694 + $0x3c] sm:$0xf]
        %v1616 = vld [vmem:[%s694 + $0x40] sm:$0xf]
        %v1617 = vld [vmem:[%s694 + $0x44] sm:$0xf]
        %v1618 = vld [vmem:[%s694 + $0x48] sm:$0xf]
        %v1619 = vld [vmem:[%s694 + $0x4c] sm:$0xf]
        %v1620 = vld [vmem:[%s694 + $0x50] sm:$0xf]
        %v1621 = vld [vmem:[%s694 + $0x54] sm:$0xf]
        %v1622 = vld [vmem:[%s694 + $0x58] sm:$0xf]
        %v1623 = vld [vmem:[%s694 + $0x5c] sm:$0xf]
        %v1624 = vld [vmem:[%s694 + $0x60] sm:$0xf]
        %v1625 = vld [vmem:[%s694 + $0x64] sm:$0xf]
        %v1626 = vld [vmem:[%s694 + $0x68] sm:$0xf]
        %v1627 = vld [vmem:[%s694 + $0x6c] sm:$0xf]
        %v1628 = vld [vmem:[%s694 + $0x70] sm:$0xf]
        %v1629 = vld [vmem:[%s694 + $0x74] sm:$0xf]
        %v1630 = vld [vmem:[%s694 + $0x78] sm:$0xf]
        %v1631 = vld [vmem:[%s694 + $0x7c] sm:$0xf]
        %v1632 = vld [vmem:[%s702] sm:$0x1]
        %v1633 = vld [vmem:[%s711] sm:$0xf]
        %v1634 = vld [vmem:[%s711 + $0x4] sm:$0xf]
        %v1635 = vld [vmem:[%s711 + $0x8] sm:$0xf]
        %v1636 = vld [vmem:[%s711 + $0xc] sm:$0xf]
        %v1637 = vld [vmem:[%s711 + $0x10] sm:$0xf]
        %v1638 = vld [vmem:[%s711 + $0x14] sm:$0xf]
        %v1639 = vld [vmem:[%s711 + $0x18] sm:$0xf]
        %v1640 = vld [vmem:[%s711 + $0x1c] sm:$0xf]
        %v1641 = vld [vmem:[%s711 + $0x20] sm:$0xf]
        %v1642 = vld [vmem:[%s711 + $0x24] sm:$0xf]
        %v1643 = vld [vmem:[%s711 + $0x28] sm:$0xf]
        %v1644 = vld [vmem:[%s711 + $0x2c] sm:$0xf]
        %v1645 = vld [vmem:[%s711 + $0x30] sm:$0xf]
        %v1646 = vld [vmem:[%s711 + $0x34] sm:$0xf]
        %v1647 = vld [vmem:[%s711 + $0x38] sm:$0xf]
        %v1648 = vld [vmem:[%s711 + $0x3c] sm:$0xf]
        %v1649 = vld [vmem:[%s719] sm:$0x1]
        %v1651 = vlaneseq
        %v1652 = vshrl.u32 %v1651, 7
        %v1653 = vsub.s32 0, %v1652
        %v1654 = vrot.slane %v1632, %v1653
        %v1688 = vunpack.c.l.b16 %v1600
        %v1689 = vunpack.c.l.b16 %v1601
        %v1690 = vunpack.c.l.b16 %v1602
        %v1691 = vunpack.c.l.b16 %v1603
        %v1692 = vunpack.c.l.b16 %v1604
        %v1693 = vunpack.c.l.b16 %v1605
        %v1694 = vunpack.c.l.b16 %v1606
        %v1695 = vunpack.c.l.b16 %v1607
        %v1696 = vunpack.c.l.b16 %v1608
        %v1697 = vunpack.c.l.b16 %v1609
        %v1698 = vunpack.c.l.b16 %v1610
        %v1699 = vunpack.c.l.b16 %v1611
        %v1700 = vunpack.c.l.b16 %v1612
        %v1701 = vunpack.c.l.b16 %v1613
        %v1702 = vunpack.c.l.b16 %v1614
        %v1703 = vunpack.c.l.b16 %v1615
        %v1704 = vunpack.c.l.b16 %v1616
        %v1705 = vunpack.c.l.b16 %v1617
        %v1706 = vunpack.c.l.b16 %v1618
        %v1707 = vunpack.c.l.b16 %v1619
        %v1708 = vunpack.c.l.b16 %v1620
        %v1709 = vunpack.c.l.b16 %v1621
        %v1710 = vunpack.c.l.b16 %v1622
        %v1711 = vunpack.c.l.b16 %v1623
        %v1712 = vunpack.c.l.b16 %v1624
        %v1713 = vunpack.c.l.b16 %v1625
        %v1714 = vunpack.c.l.b16 %v1626
        %v1715 = vunpack.c.l.b16 %v1627
        %v1716 = vunpack.c.l.b16 %v1628
        %v1717 = vunpack.c.l.b16 %v1629
        %v1718 = vunpack.c.l.b16 %v1630
        %v1719 = vunpack.c.l.b16 %v1631
        %v1720 = vpack.c.b16 %v1689, %v1688
        %v1721 = vpack.c.b16 %v1691, %v1690
        %v1722 = vpack.c.b16 %v1693, %v1692
        %v1723 = vpack.c.b16 %v1695, %v1694
        %v1724 = vpack.c.b16 %v1697, %v1696
        %v1725 = vpack.c.b16 %v1699, %v1698
        %v1726 = vpack.c.b16 %v1701, %v1700
        %v1727 = vpack.c.b16 %v1703, %v1702
        %v1728 = vpack.c.b16 %v1705, %v1704
        %v1729 = vpack.c.b16 %v1707, %v1706
        %v1730 = vpack.c.b16 %v1709, %v1708
        %v1731 = vpack.c.b16 %v1711, %v1710
        %v1732 = vpack.c.b16 %v1713, %v1712
        %v1733 = vpack.c.b16 %v1715, %v1714
        %v1734 = vpack.c.b16 %v1717, %v1716
        %v1735 = vpack.c.b16 %v1719, %v1718
        %1752 = vmatprep.subr.bf16.mxu0 0
        %1753 = vmatpush1.bf16.msra.mxu0 %v1727
        %1754 = vmatprep.subr.bf16.mxu0 0
        %1755 = vmatpush1.bf16.msra.mxu0 %v1726
        %1756 = vmatprep.subr.bf16.mxu0 0
        %1757 = vmatpush1.bf16.msra.mxu0 %v1725
        %1758 = vmatprep.subr.bf16.mxu0 0
        %1759 = vmatpush1.bf16.msra.mxu0 %v1724
        %1760 = vmatprep.subr.bf16.mxu0 0
        %1761 = vmatpush1.bf16.msra.mxu0 %v1723
        %1762 = vmatprep.subr.bf16.mxu0 0
        %1763 = vmatpush1.bf16.msra.mxu0 %v1722
        %1764 = vmatprep.subr.bf16.mxu0 0
        %1765 = vmatpush1.bf16.msra.mxu0 %v1721
        %1766 = vmatprep.subr.bf16.mxu0 0
        %1767 = vmatpush1.bf16.msra.mxu0 %v1720
        %1768 = vmatprep.subr.bf16.mxu0 0
        %1769 = vmatpush2.bf16.msra.mxu0 %v1735
        %1770 = vmatprep.subr.bf16.mxu0 0
        %1771 = vmatpush2.bf16.msra.mxu0 %v1734
        %1772 = vmatprep.subr.bf16.mxu0 0
        %1773 = vmatpush2.bf16.msra.mxu0 %v1733
        %1774 = vmatprep.subr.bf16.mxu0 0
        %1775 = vmatpush2.bf16.msra.mxu0 %v1732
        %1776 = vmatprep.subr.bf16.mxu0 0
        %1777 = vmatpush2.bf16.msra.mxu0 %v1731
        %1778 = vmatprep.subr.bf16.mxu0 0
        %1779 = vmatpush2.bf16.msra.mxu0 %v1730
        %1780 = vmatprep.subr.bf16.mxu0 0
        %1781 = vmatpush2.bf16.msra.mxu0 %v1729
        %1782 = vmatprep.subr.bf16.mxu0 0
        %1783 = vmatpush2.bf16.msra.mxu0 %v1728
        %1784 = vmatprep.mubr.bf16.mxu0 %v1599
        %1785 = vmatmul.mubr.bf16.gmra.mxu0 %v1598
        %v1786 = vpop.f32.mrf.mxu0
        %v1787 = vadd.f32 %v1654, %v1786
        %v1788 = vpop.f32.mrf.mxu0
        %v1789 = vpop.f32.mrf.mxu0
        %v1790 = vadd.f32 %v1654, %v1789
        %v1791 = vpop.f32.mrf.mxu0
        %1792 = vdwg.mxu0
        %vm1793 = vcmp.gt.f32.partialorder %v1787, 0.0
        %vm1794 = vcmp.gt.f32.partialorder %v1790, 0.0
        %v1795 = vmul.f32 %v1787, 0.1
        %v1796 = vmul.f32 %v1790, 0.1
        %v1797 = vsel %vm1793, %v1787, %v1795
        %v1798 = vsel %vm1794, %v1790, %v1796
        %v1799 = vpack.c.bf16 %v1798, %v1797
        %v1801 = vlaneseq
        %v1802 = vshrl.u32 %v1801, 7
        %v1803 = vsub.s32 0, %v1802
        %v1804 = vrot.slane %v1649, %v1803
        %v1822 = vunpack.c.l.b16 %v1633
        %v1823 = vunpack.c.l.b16 %v1634
        %v1824 = vunpack.c.l.b16 %v1635
        %v1825 = vunpack.c.l.b16 %v1636
        %v1826 = vunpack.c.l.b16 %v1637
        %v1827 = vunpack.c.l.b16 %v1638
        %v1828 = vunpack.c.l.b16 %v1639
        %v1829 = vunpack.c.l.b16 %v1640
        %v1830 = vunpack.c.l.b16 %v1641
        %v1831 = vunpack.c.l.b16 %v1642
        %v1832 = vunpack.c.l.b16 %v1643
        %v1833 = vunpack.c.l.b16 %v1644
        %v1834 = vunpack.c.l.b16 %v1645
        %v1835 = vunpack.c.l.b16 %v1646
        %v1836 = vunpack.c.l.b16 %v1647
        %v1837 = vunpack.c.l.b16 %v1648
        %v1838 = vpack.c.b16 %v1823, %v1822
        %v1839 = vpack.c.b16 %v1825, %v1824
        %v1840 = vpack.c.b16 %v1827, %v1826
        %v1841 = vpack.c.b16 %v1829, %v1828
        %v1842 = vpack.c.b16 %v1831, %v1830
        %v1843 = vpack.c.b16 %v1833, %v1832
        %v1844 = vpack.c.b16 %v1835, %v1834
        %v1845 = vpack.c.b16 %v1837, %v1836
        %1854 = vmatprep.subr.bf16.mxu0 0
        %1855 = vmatpush1.bf16.msra.mxu0 %v1845
        %1856 = vmatprep.subr.bf16.mxu0 0
        %1857 = vmatpush1.bf16.msra.mxu0 %v1844
        %1858 = vmatprep.subr.bf16.mxu0 0
        %1859 = vmatpush1.bf16.msra.mxu0 %v1843
        %1860 = vmatprep.subr.bf16.mxu0 0
        %1861 = vmatpush1.bf16.msra.mxu0 %v1842
        %1862 = vmatprep.subr.bf16.mxu0 0
        %1863 = vmatpush1.bf16.msra.mxu0 %v1841
        %1864 = vmatprep.subr.bf16.mxu0 0
        %1865 = vmatpush1.bf16.msra.mxu0 %v1840
        %1866 = vmatprep.subr.bf16.mxu0 0
        %1867 = vmatpush1.bf16.msra.mxu0 %v1839
        %1868 = vmatprep.subr.bf16.mxu0 0
        %1869 = vmatpush1.bf16.msra.mxu0 %v1838
        %1870 = vmatprep.subr.bf16.mxu0 0
        %1871 = vmatpush2.bf16.msra.mxu0 0
        %1872 = vmatprep.subr.bf16.mxu0 0
        %1873 = vmatpush2.bf16.msra.mxu0 0
        %1874 = vmatprep.subr.bf16.mxu0 0
        %1875 = vmatpush2.bf16.msra.mxu0 0
        %1876 = vmatprep.subr.bf16.mxu0 0
        %1877 = vmatpush2.bf16.msra.mxu0 0
        %1878 = vmatprep.subr.bf16.mxu0 0
        %1879 = vmatpush2.bf16.msra.mxu0 0
        %1880 = vmatprep.subr.bf16.mxu0 0
        %1881 = vmatpush2.bf16.msra.mxu0 0
        %1882 = vmatprep.subr.bf16.mxu0 0
        %1883 = vmatpush2.bf16.msra.mxu0 0
        %1884 = vmatprep.subr.bf16.mxu0 0
        %1885 = vmatpush2.bf16.msra.mxu0 0
        %1886 = vmatprep.mubr.bf16.mxu0 0
        %1887 = vmatmul.mubr.bf16.gmra.mxu0 %v1799
        %v1888 = vpop.f32.mrf.mxu0
        %v1889 = vadd.f32 %v1804, %v1888
        %v1890 = vpop.f32.mrf.mxu0
        %v1891 = vpop.f32.mrf.mxu0
        %v1892 = vadd.f32 %v1804, %v1891
        %v1893 = vpop.f32.mrf.mxu0
        %1894 = vdwg.mxu0
        %v1895 = vld [vmem:[#allocation12] sm:$0xf]
        %v1896 = vld [vmem:[#allocation12 + $0x4] sm:$0xf]
        %v1897 = vld [vmem:[#allocation12 + $0x8] sm:$0xf]
        %v1898 = vld [vmem:[#allocation12 + $0xc] sm:$0xf]
        %v1899 = vld [vmem:[#allocation12 + $0x10] sm:$0xf]
        %v1900 = vld [vmem:[#allocation12 + $0x14] sm:$0xf]
        %v1901 = vld [vmem:[#allocation12 + $0x18] sm:$0xf]
        %v1902 = vld [vmem:[#allocation12 + $0x1c] sm:$0xf]
        %v1903 = vld [vmem:[#allocation12 + $0x20] sm:$0xf]
        %v1904 = vld [vmem:[#allocation12 + $0x24] sm:$0xf]
        %v1905 = vld [vmem:[#allocation12 + $0x28] sm:$0xf]
        %v1906 = vld [vmem:[#allocation12 + $0x2c] sm:$0xf]
        %v1907 = vld [vmem:[#allocation12 + $0x30] sm:$0xf]
        %v1908 = vld [vmem:[#allocation12 + $0x34] sm:$0xf]
        %v1909 = vld [vmem:[#allocation12 + $0x38] sm:$0xf]
        %v1910 = vld [vmem:[#allocation12 + $0x3c] sm:$0xf]
        %v1911 = vld [vmem:[#allocation12 + $0x40] sm:$0xf]
        %v1912 = vld [vmem:[#allocation12 + $0x44] sm:$0xf]
        %v1913 = vld [vmem:[#allocation12 + $0x48] sm:$0xf]
        %v1914 = vld [vmem:[#allocation12 + $0x4c] sm:$0xf]
        %v1915 = vld [vmem:[#allocation12 + $0x50] sm:$0xf]
        %v1916 = vld [vmem:[#allocation12 + $0x54] sm:$0xf]
        %v1917 = vld [vmem:[#allocation12 + $0x58] sm:$0xf]
        %v1918 = vld [vmem:[#allocation12 + $0x5c] sm:$0xf]
        %v1919 = vld [vmem:[#allocation12 + $0x60] sm:$0xf]
        %v1920 = vld [vmem:[#allocation12 + $0x64] sm:$0xf]
        %v1921 = vld [vmem:[#allocation12 + $0x68] sm:$0xf]
        %v1922 = vld [vmem:[#allocation12 + $0x6c] sm:$0xf]
        %v1923 = vld [vmem:[#allocation12 + $0x70] sm:$0xf]
        %v1924 = vld [vmem:[#allocation12 + $0x74] sm:$0xf]
        %v1925 = vld [vmem:[#allocation12 + $0x78] sm:$0xf]
        %v1926 = vld [vmem:[#allocation12 + $0x7c] sm:$0xf]
        %v1927 = vld [vmem:[#allocation13] sm:$0x1]
        %v1928 = vld [vmem:[#allocation15] sm:$0xf]
        %v1929 = vld [vmem:[#allocation15 + $0x4] sm:$0xf]
        %v1930 = vld [vmem:[#allocation15 + $0x8] sm:$0xf]
        %v1931 = vld [vmem:[#allocation15 + $0xc] sm:$0xf]
        %v1932 = vld [vmem:[#allocation15 + $0x10] sm:$0xf]
        %v1933 = vld [vmem:[#allocation15 + $0x14] sm:$0xf]
        %v1934 = vld [vmem:[#allocation15 + $0x18] sm:$0xf]
        %v1935 = vld [vmem:[#allocation15 + $0x1c] sm:$0xf]
        %v1936 = vld [vmem:[#allocation15 + $0x20] sm:$0xf]
        %v1937 = vld [vmem:[#allocation15 + $0x24] sm:$0xf]
        %v1938 = vld [vmem:[#allocation15 + $0x28] sm:$0xf]
        %v1939 = vld [vmem:[#allocation15 + $0x2c] sm:$0xf]
        %v1940 = vld [vmem:[#allocation15 + $0x30] sm:$0xf]
        %v1941 = vld [vmem:[#allocation15 + $0x34] sm:$0xf]
        %v1942 = vld [vmem:[#allocation15 + $0x38] sm:$0xf]
        %v1943 = vld [vmem:[#allocation15 + $0x3c] sm:$0xf]
        %v1944 = vld [vmem:[#allocation16] sm:$0x1]
        %v1946 = vlaneseq
        %v1947 = vshrl.u32 %v1946, 7
        %v1948 = vsub.s32 0, %v1947
        %v1949 = vrot.slane %v1927, %v1948
        %v1983 = vunpack.c.l.b16 %v1895
        %v1984 = vunpack.c.l.b16 %v1896
        %v1985 = vunpack.c.l.b16 %v1897
        %v1986 = vunpack.c.l.b16 %v1898
        %v1987 = vunpack.c.l.b16 %v1899
        %v1988 = vunpack.c.l.b16 %v1900
        %v1989 = vunpack.c.l.b16 %v1901
        %v1990 = vunpack.c.l.b16 %v1902
        %v1991 = vunpack.c.l.b16 %v1903
        %v1992 = vunpack.c.l.b16 %v1904
        %v1993 = vunpack.c.l.b16 %v1905
        %v1994 = vunpack.c.l.b16 %v1906
        %v1995 = vunpack.c.l.b16 %v1907
        %v1996 = vunpack.c.l.b16 %v1908
        %v1997 = vunpack.c.l.b16 %v1909
        %v1998 = vunpack.c.l.b16 %v1910
        %v1999 = vunpack.c.l.b16 %v1911
        %v2000 = vunpack.c.l.b16 %v1912
        %v2001 = vunpack.c.l.b16 %v1913
        %v2002 = vunpack.c.l.b16 %v1914
        %v2003 = vunpack.c.l.b16 %v1915
        %v2004 = vunpack.c.l.b16 %v1916
        %v2005 = vunpack.c.l.b16 %v1917
        %v2006 = vunpack.c.l.b16 %v1918
        %v2007 = vunpack.c.l.b16 %v1919
        %v2008 = vunpack.c.l.b16 %v1920
        %v2009 = vunpack.c.l.b16 %v1921
        %v2010 = vunpack.c.l.b16 %v1922
        %v2011 = vunpack.c.l.b16 %v1923
        %v2012 = vunpack.c.l.b16 %v1924
        %v2013 = vunpack.c.l.b16 %v1925
        %v2014 = vunpack.c.l.b16 %v1926
        %v2015 = vpack.c.b16 %v1984, %v1983
        %v2016 = vpack.c.b16 %v1986, %v1985
        %v2017 = vpack.c.b16 %v1988, %v1987
        %v2018 = vpack.c.b16 %v1990, %v1989
        %v2019 = vpack.c.b16 %v1992, %v1991
        %v2020 = vpack.c.b16 %v1994, %v1993
        %v2021 = vpack.c.b16 %v1996, %v1995
        %v2022 = vpack.c.b16 %v1998, %v1997
        %v2023 = vpack.c.b16 %v2000, %v1999
        %v2024 = vpack.c.b16 %v2002, %v2001
        %v2025 = vpack.c.b16 %v2004, %v2003
        %v2026 = vpack.c.b16 %v2006, %v2005
        %v2027 = vpack.c.b16 %v2008, %v2007
        %v2028 = vpack.c.b16 %v2010, %v2009
        %v2029 = vpack.c.b16 %v2012, %v2011
        %v2030 = vpack.c.b16 %v2014, %v2013
        %2047 = vmatprep.subr.bf16.mxu0 0
        %2048 = vmatpush1.bf16.msra.mxu0 %v2022
        %2049 = vmatprep.subr.bf16.mxu0 0
        %2050 = vmatpush1.bf16.msra.mxu0 %v2021
        %2051 = vmatprep.subr.bf16.mxu0 0
        %2052 = vmatpush1.bf16.msra.mxu0 %v2020
        %2053 = vmatprep.subr.bf16.mxu0 0
        %2054 = vmatpush1.bf16.msra.mxu0 %v2019
        %2055 = vmatprep.subr.bf16.mxu0 0
        %2056 = vmatpush1.bf16.msra.mxu0 %v2018
        %2057 = vmatprep.subr.bf16.mxu0 0
        %2058 = vmatpush1.bf16.msra.mxu0 %v2017
        %2059 = vmatprep.subr.bf16.mxu0 0
        %2060 = vmatpush1.bf16.msra.mxu0 %v2016
        %2061 = vmatprep.subr.bf16.mxu0 0
        %2062 = vmatpush1.bf16.msra.mxu0 %v2015
        %2063 = vmatprep.subr.bf16.mxu0 0
        %2064 = vmatpush2.bf16.msra.mxu0 %v2030
        %2065 = vmatprep.subr.bf16.mxu0 0
        %2066 = vmatpush2.bf16.msra.mxu0 %v2029
        %2067 = vmatprep.subr.bf16.mxu0 0
        %2068 = vmatpush2.bf16.msra.mxu0 %v2028
        %2069 = vmatprep.subr.bf16.mxu0 0
        %2070 = vmatpush2.bf16.msra.mxu0 %v2027
        %2071 = vmatprep.subr.bf16.mxu0 0
        %2072 = vmatpush2.bf16.msra.mxu0 %v2026
        %2073 = vmatprep.subr.bf16.mxu0 0
        %2074 = vmatpush2.bf16.msra.mxu0 %v2025
        %2075 = vmatprep.subr.bf16.mxu0 0
        %2076 = vmatpush2.bf16.msra.mxu0 %v2024
        %2077 = vmatprep.subr.bf16.mxu0 0
        %2078 = vmatpush2.bf16.msra.mxu0 %v2023
        %2079 = vmatprep.mubr.bf16.mxu0 %v1599
        %2080 = vmatmul.mubr.bf16.gmra.mxu0 %v1598
        %v2081 = vpop.f32.mrf.mxu0
        %v2082 = vadd.f32 %v1949, %v2081
        %v2083 = vpop.f32.mrf.mxu0
        %v2084 = vpop.f32.mrf.mxu0
        %v2085 = vadd.f32 %v1949, %v2084
        %v2086 = vpop.f32.mrf.mxu0
        %2087 = vdwg.mxu0
        %vm2088 = vcmp.gt.f32.partialorder %v2082, 0.0
        %vm2089 = vcmp.gt.f32.partialorder %v2085, 0.0
        %v2090 = vmul.f32 %v2082, 0.1
        %v2091 = vmul.f32 %v2085, 0.1
        %v2092 = vsel %vm2088, %v2082, %v2090
        %v2093 = vsel %vm2089, %v2085, %v2091
        %v2094 = vpack.c.bf16 %v2093, %v2092
        %v2096 = vlaneseq
        %v2097 = vshrl.u32 %v2096, 7
        %v2098 = vsub.s32 0, %v2097
        %v2099 = vrot.slane %v1944, %v2098
        %v2117 = vunpack.c.l.b16 %v1928
        %v2118 = vunpack.c.l.b16 %v1929
        %v2119 = vunpack.c.l.b16 %v1930
        %v2120 = vunpack.c.l.b16 %v1931
        %v2121 = vunpack.c.l.b16 %v1932
        %v2122 = vunpack.c.l.b16 %v1933
        %v2123 = vunpack.c.l.b16 %v1934
        %v2124 = vunpack.c.l.b16 %v1935
        %v2125 = vunpack.c.l.b16 %v1936
        %v2126 = vunpack.c.l.b16 %v1937
        %v2127 = vunpack.c.l.b16 %v1938
        %v2128 = vunpack.c.l.b16 %v1939
        %v2129 = vunpack.c.l.b16 %v1940
        %v2130 = vunpack.c.l.b16 %v1941
        %v2131 = vunpack.c.l.b16 %v1942
        %v2132 = vunpack.c.l.b16 %v1943
        %v2133 = vpack.c.b16 %v2118, %v2117
        %v2134 = vpack.c.b16 %v2120, %v2119
        %v2135 = vpack.c.b16 %v2122, %v2121
        %v2136 = vpack.c.b16 %v2124, %v2123
        %v2137 = vpack.c.b16 %v2126, %v2125
        %v2138 = vpack.c.b16 %v2128, %v2127
        %v2139 = vpack.c.b16 %v2130, %v2129
        %v2140 = vpack.c.b16 %v2132, %v2131
        %2149 = vmatprep.subr.bf16.mxu0 0
        %2150 = vmatpush1.bf16.msra.mxu0 %v2140
        %2151 = vmatprep.subr.bf16.mxu0 0
        %2152 = vmatpush1.bf16.msra.mxu0 %v2139
        %2153 = vmatprep.subr.bf16.mxu0 0
        %2154 = vmatpush1.bf16.msra.mxu0 %v2138
        %2155 = vmatprep.subr.bf16.mxu0 0
        %2156 = vmatpush1.bf16.msra.mxu0 %v2137
        %2157 = vmatprep.subr.bf16.mxu0 0
        %2158 = vmatpush1.bf16.msra.mxu0 %v2136
        %2159 = vmatprep.subr.bf16.mxu0 0
        %2160 = vmatpush1.bf16.msra.mxu0 %v2135
        %2161 = vmatprep.subr.bf16.mxu0 0
        %2162 = vmatpush1.bf16.msra.mxu0 %v2134
        %2163 = vmatprep.subr.bf16.mxu0 0
        %2164 = vmatpush1.bf16.msra.mxu0 %v2133
        %2165 = vmatprep.subr.bf16.mxu0 0
        %2166 = vmatpush2.bf16.msra.mxu0 0
        %2167 = vmatprep.subr.bf16.mxu0 0
        %2168 = vmatpush2.bf16.msra.mxu0 0
        %2169 = vmatprep.subr.bf16.mxu0 0
        %2170 = vmatpush2.bf16.msra.mxu0 0
        %2171 = vmatprep.subr.bf16.mxu0 0
        %2172 = vmatpush2.bf16.msra.mxu0 0
        %2173 = vmatprep.subr.bf16.mxu0 0
        %2174 = vmatpush2.bf16.msra.mxu0 0
        %2175 = vmatprep.subr.bf16.mxu0 0
        %2176 = vmatpush2.bf16.msra.mxu0 0
        %2177 = vmatprep.subr.bf16.mxu0 0
        %2178 = vmatpush2.bf16.msra.mxu0 0
        %2179 = vmatprep.subr.bf16.mxu0 0
        %2180 = vmatpush2.bf16.msra.mxu0 0
        %2181 = vmatprep.mubr.bf16.mxu0 0
        %2182 = vmatmul.mubr.bf16.gmra.mxu0 %v2094
        %v2183 = vpop.f32.mrf.mxu0
        %v2184 = vadd.f32 %v2099, %v2183
        %v2185 = vpop.f32.mrf.mxu0
        %v2186 = vpop.f32.mrf.mxu0
        %v2187 = vadd.f32 %v2099, %v2186
        %v2188 = vpop.f32.mrf.mxu0
        %2189 = vdwg.mxu0
        %v2190 = vpack.c.bf16 %v1889, %v1889
        %v2191 = vpack.c.bf16 %v1892, %v1892
        %2192 = vst [vmem:[%s812] sm:$0xf] %v2190
        %2193 = vst [vmem:[%s812 + $0x4] sm:$0xf] %v2191
        %v2194 = vpack.c.bf16 %v2184, %v2184
        %v2195 = vpack.c.bf16 %v2187, %v2187
        %2196 = vst [vmem:[%s818] sm:$0xf] %v2194
        %2197 = vst [vmem:[%s818 + $0x4] sm:$0xf] %v2195
        %v2198 = vld [vmem:[#allocation18] sm:$0xf]
        %v2199 = vld [vmem:[#allocation18 + $0x4] sm:$0xf]
        %v2200 = vld [vmem:[#allocation18 + $0x8] sm:$0xf]
        %v2201 = vld [vmem:[#allocation18 + $0xc] sm:$0xf]
        %v2202 = vld [vmem:[#allocation18 + $0x10] sm:$0xf]
        %v2203 = vld [vmem:[#allocation18 + $0x14] sm:$0xf]
        %v2204 = vld [vmem:[#allocation18 + $0x18] sm:$0xf]
        %v2205 = vld [vmem:[#allocation18 + $0x1c] sm:$0xf]
        %v2206 = vld [vmem:[#allocation18 + $0x20] sm:$0xf]
        %v2207 = vld [vmem:[#allocation18 + $0x24] sm:$0xf]
        %v2208 = vld [vmem:[#allocation18 + $0x28] sm:$0xf]
        %v2209 = vld [vmem:[#allocation18 + $0x2c] sm:$0xf]
        %v2210 = vld [vmem:[#allocation18 + $0x30] sm:$0xf]
        %v2211 = vld [vmem:[#allocation18 + $0x34] sm:$0xf]
        %v2212 = vld [vmem:[#allocation18 + $0x38] sm:$0xf]
        %v2213 = vld [vmem:[#allocation18 + $0x3c] sm:$0xf]
        %v2214 = vld [vmem:[#allocation19] sm:$0x1]
        %v2215 = vrot.slane %v2184, 4
        %v2216 = vadd.f32 %v2184, %v2215
        %v2217 = vrot.slane %v2216, 2
        %v2218 = vadd.f32 %v2216, %v2217
        %v2219 = vrot.slane %v2218, 1
        %v2220 = vadd.f32 %v2218, %v2219
        %v2221 = vrot.slane %v2187, 4
        %v2222 = vadd.f32 %v2187, %v2221
        %v2223 = vrot.slane %v2222, 2
        %v2224 = vadd.f32 %v2222, %v2223
        %v2225 = vrot.slane %v2224, 1
        %v2226 = vadd.f32 %v2224, %v2225
        %v2227 = vrcp.pop 8.0
        %v2228 = vmul.f32 %v2220, %v2227
        %v2229 = vmul.f32 %v2226, %v2227
        %v2230 = vpack.c.bf16 %v2228, %v2228
        %v2231 = vpack.c.bf16 %v2229, %v2229
        %v2232 = vrot.slane %v1889, 4
        %v2233 = vadd.f32 %v1889, %v2232
        %v2234 = vrot.slane %v2233, 2
        %v2235 = vadd.f32 %v2233, %v2234
        %v2236 = vrot.slane %v2235, 1
        %v2237 = vadd.f32 %v2235, %v2236
        %v2238 = vrot.slane %v1892, 4
        %v2239 = vadd.f32 %v1892, %v2238
        %v2240 = vrot.slane %v2239, 2
        %v2241 = vadd.f32 %v2239, %v2240
        %v2242 = vrot.slane %v2241, 1
        %v2243 = vadd.f32 %v2241, %v2242
        %v2244 = vmul.f32 %v2237, %v2227
        %v2245 = vmul.f32 %v2243, %v2227
        %v2246 = vpack.c.bf16 %v2244, %v2244
        %v2247 = vpack.c.bf16 %v2245, %v2245
        %v2249 = vlaneseq
        %v2250 = vshrl.u32 %v2249, 7
        %v2251 = vsub.s32 0, %v2250
        %v2252 = vrot.slane %v2214, %v2251
        %v2256 = vunpack.c.l.b16 %v2230
        %v2257 = vunpack.c.l.b16 %v2231
        %vm2258 = vcmask 1041409
        %v2259 = vsel %vm2258, %v2257, %v2256
        %v2260 = vpack.c.b16 %v2259, %v2259
        %v2278 = vunpack.c.l.b16 %v2198
        %v2279 = vunpack.c.l.b16 %v2199
        %v2280 = vunpack.c.l.b16 %v2200
        %v2281 = vunpack.c.l.b16 %v2201
        %v2282 = vunpack.c.l.b16 %v2202
        %v2283 = vunpack.c.l.b16 %v2203
        %v2284 = vunpack.c.l.b16 %v2204
        %v2285 = vunpack.c.l.b16 %v2205
        %v2286 = vunpack.c.l.b16 %v2206
        %v2287 = vunpack.c.l.b16 %v2207
        %v2288 = vunpack.c.l.b16 %v2208
        %v2289 = vunpack.c.l.b16 %v2209
        %v2290 = vunpack.c.l.b16 %v2210
        %v2291 = vunpack.c.l.b16 %v2211
        %v2292 = vunpack.c.l.b16 %v2212
        %v2293 = vunpack.c.l.b16 %v2213
        %v2294 = vpack.c.b16 %v2279, %v2278
        %v2295 = vpack.c.b16 %v2281, %v2280
        %v2296 = vpack.c.b16 %v2283, %v2282
        %v2297 = vpack.c.b16 %v2285, %v2284
        %v2298 = vpack.c.b16 %v2287, %v2286
        %v2299 = vpack.c.b16 %v2289, %v2288
        %v2300 = vpack.c.b16 %v2291, %v2290
        %v2301 = vpack.c.b16 %v2293, %v2292
        %2310 = vmatprep.subr.bf16.mxu0 0
        %2311 = vmatpush1.bf16.msra.mxu0 %v2301
        %2312 = vmatprep.subr.bf16.mxu0 0
        %2313 = vmatpush1.bf16.msra.mxu0 %v2300
        %2314 = vmatprep.subr.bf16.mxu0 0
        %2315 = vmatpush1.bf16.msra.mxu0 %v2299
        %2316 = vmatprep.subr.bf16.mxu0 0
        %2317 = vmatpush1.bf16.msra.mxu0 %v2298
        %2318 = vmatprep.subr.bf16.mxu0 0
        %2319 = vmatpush1.bf16.msra.mxu0 %v2297
        %2320 = vmatprep.subr.bf16.mxu0 0
        %2321 = vmatpush1.bf16.msra.mxu0 %v2296
        %2322 = vmatprep.subr.bf16.mxu0 0
        %2323 = vmatpush1.bf16.msra.mxu0 %v2295
        %2324 = vmatprep.subr.bf16.mxu0 0
        %2325 = vmatpush1.bf16.msra.mxu0 %v2294
        %2326 = vmatprep.subr.bf16.mxu0 0
        %2327 = vmatpush2.bf16.msra.mxu0 0
        %2328 = vmatprep.subr.bf16.mxu0 0
        %2329 = vmatpush2.bf16.msra.mxu0 0
        %2330 = vmatprep.subr.bf16.mxu0 0
        %2331 = vmatpush2.bf16.msra.mxu0 0
        %2332 = vmatprep.subr.bf16.mxu0 0
        %2333 = vmatpush2.bf16.msra.mxu0 0
        %2334 = vmatprep.subr.bf16.mxu0 0
        %2335 = vmatpush2.bf16.msra.mxu0 0
        %2336 = vmatprep.subr.bf16.mxu0 0
        %2337 = vmatpush2.bf16.msra.mxu0 0
        %2338 = vmatprep.subr.bf16.mxu0 0
        %2339 = vmatpush2.bf16.msra.mxu0 0
        %2340 = vmatprep.subr.bf16.mxu0 0
        %2341 = vmatpush2.bf16.msra.mxu0 0
        %2342 = vmatprep.mubr.bf16.mxu0 0
        %2343 = vmatmul.mubr.bf16.gmra.mxu0 %v2260
        %v2344 = vpop.f32.mrf.mxu0
        %v2345 = vadd.f32 %v2252, %v2344
        %v2346 = vpop.f32.mrf.mxu0
        %v2347 = vpop.f32.mrf.mxu0
        %v2348 = vpop.f32.mrf.mxu0
        %2349 = vdwg.mxu0
        %2350 = vst [vmem:[%s839] sm:$0x3] %v2345
        %v2353 = vunpack.c.l.b16 %v2246
        %v2354 = vunpack.c.l.b16 %v2247
        %v2355 = vsel %vm2258, %v2354, %v2353
        %v2356 = vpack.c.b16 %v2355, %v2355
        %2358 = vmatprep.subr.bf16.mxu0 0
        %2359 = vmatpush1.bf16.msra.mxu0 %v2301
        %2360 = vmatprep.subr.bf16.mxu0 0
        %2361 = vmatpush1.bf16.msra.mxu0 %v2300
        %2362 = vmatprep.subr.bf16.mxu0 0
        %2363 = vmatpush1.bf16.msra.mxu0 %v2299
        %2364 = vmatprep.subr.bf16.mxu0 0
        %2365 = vmatpush1.bf16.msra.mxu0 %v2298
        %2366 = vmatprep.subr.bf16.mxu0 0
        %2367 = vmatpush1.bf16.msra.mxu0 %v2297
        %2368 = vmatprep.subr.bf16.mxu0 0
        %2369 = vmatpush1.bf16.msra.mxu0 %v2296
        %2370 = vmatprep.subr.bf16.mxu0 0
        %2371 = vmatpush1.bf16.msra.mxu0 %v2295
        %2372 = vmatprep.subr.bf16.mxu0 0
        %2373 = vmatpush1.bf16.msra.mxu0 %v2294
        %2374 = vmatprep.subr.bf16.mxu0 0
        %2375 = vmatpush2.bf16.msra.mxu0 0
        %2376 = vmatprep.subr.bf16.mxu0 0
        %2377 = vmatpush2.bf16.msra.mxu0 0
        %2378 = vmatprep.subr.bf16.mxu0 0
        %2379 = vmatpush2.bf16.msra.mxu0 0
        %2380 = vmatprep.subr.bf16.mxu0 0
        %2381 = vmatpush2.bf16.msra.mxu0 0
        %2382 = vmatprep.subr.bf16.mxu0 0
        %2383 = vmatpush2.bf16.msra.mxu0 0
        %2384 = vmatprep.subr.bf16.mxu0 0
        %2385 = vmatpush2.bf16.msra.mxu0 0
        %2386 = vmatprep.subr.bf16.mxu0 0
        %2387 = vmatpush2.bf16.msra.mxu0 0
        %2388 = vmatprep.subr.bf16.mxu0 0
        %2389 = vmatpush2.bf16.msra.mxu0 0
        %2390 = vmatprep.mubr.bf16.mxu0 0
        %2391 = vmatmul.mubr.bf16.gmra.mxu0 %v2356
        %v2392 = vpop.f32.mrf.mxu0
        %v2393 = vadd.f32 %v2252, %v2392
        %v2394 = vpop.f32.mrf.mxu0
        %v2395 = vpop.f32.mrf.mxu0
        %v2396 = vpop.f32.mrf.mxu0
        %2397 = vdwg.mxu0
        %2398 = vst [vmem:[%s843] sm:$0x3] %v2393
        %s2399 = sand.u32 %s359, 1
        %s2400 = sand.u32 %s359, 1
        %s2401 = smul.addr %s2400, 8
        %s2402 = scalar_lea.vmem [#allocation21], %s2401
        %s2403 = sand.u32 %s385, 1
        %s2404 = sand.u32 %s385, 1
        %s2405 = smul.addr %s2404, 8
        %s2406 = scalar_lea.vmem [#allocation22], %s2405
        %p2407 = scmp.lt.s32.totalorder %s43, 2
        %s2408 = scalar_select %p2407, %s43, 2
        %s2409 = smul.addr %s2408, 2
        %s2410 = scalar_lea.vmem %s15, %s2409
        %p2411 = scmp.lt.s32.totalorder %s43, 2
        %s2412 = scalar_select %p2411, %s43, 2
        %s2413 = smul.addr %s2412, 2
        %s2414 = scalar_lea.vmem %s16, %s2413
        // Predicated region
        $region121: #{mmt_forward.2} parent=71 // pred_check
          %p2415 = pneg %p369
        $region122: #{mmt_forward.2} parent=71 // pred_check_branch
          %2417 = sbr.rel (%p2415) target = $region124
        $region123: #{mmt_forward.2} parent=71 // pred_region
          %s2418 = smul.addr %s43, 4
          %s2419 = scalar_lea.vmem %s13, %s2418
          // Predicated region
          $region125: #{mmt_forward.2} parent=123 // pred_check
            _
          $region126: #{mmt_forward.2} parent=123 // pred_check_branch
            %2421 = sbr.rel (0) target = $region128
          $region127: #{mmt_forward.2} parent=123 // pred_region
            // Predicated region
            $region129: #{mmt_forward.2} parent=127 // pred_check
              _
            $region130: #{mmt_forward.2} parent=127 // pred_check_branch
              %2423 = sbr.rel target = $region132
            $region131: #{mmt_forward.2} parent=127 // pred_region
              // Predicated region
              $region144: #{mmt_forward.2} parent=131 // pred_check
                _
              $region145: #{mmt_forward.2} parent=131 // pred_check_branch
                %2441 = sbr.rel (0) target = $region147
              $region146: #{mmt_forward.2} parent=131 // pred_region
                loop: start=0, step=1, limit=1
                $region148: #{mmt_forward.2} parent=146 // loop_pre_header
                  _
                $region149: #{mmt_forward.2} parent=146 // loop_header
                  %s2443 = sphi 0, %s2447
                  %p2444 = scmp.ge.s32.totalorder %s2443, 1
                  %s2448 = sphi %s2402, %s2402
                  %s2449 = sphi %s2419, %s2419
                $region150: #{mmt_forward.2} parent=146 // loop_header_branch
                  %2446 = sbr.rel (%p2444) target = $region154
                $region151: #{mmt_forward.2} parent=146 // loop_body
                  _
                $region152: #{mmt_forward.2} parent=146 // loop_footer
                  %s2447 = sadd.s32 1, %s2443
                $region153: #{mmt_forward.2} parent=146 // loop_footer_branch
                  %2442 = sbr.rel target = $region149
                $region154: #{mmt_forward.2} parent=146 // loop_exit
                  _
                %s2451 = ssub.s32 16, 1
                loop: start=0, step=1, limit=1
                $region155: #{mmt_forward.2} parent=146 // loop_pre_header
                  _
                $region156: #{mmt_forward.2} parent=146 // loop_header
                  %s2453 = sphi 0, %s2457
                  %p2454 = scmp.ge.s32.totalorder %s2453, 1
                  %s2458 = sphi %s2402, %s2402
                  %s2459 = sphi %s2419, %s2419
                $region157: #{mmt_forward.2} parent=146 // loop_header_branch
                  %2456 = sbr.rel (%p2454) target = $region161
                $region158: #{mmt_forward.2} parent=146 // loop_body
                  %v2460 = vld [vmem:[%s2458] sm:%s2451]
                  %2461 = vst [vmem:[%s2459] sm:%s2451] %v2460
                  %v2462 = vld [vmem:[%s2458 + $0x4] sm:%s2451]
                  %2463 = vst [vmem:[%s2459 + $0xc] sm:%s2451] %v2462
                $region159: #{mmt_forward.2} parent=146 // loop_footer
                  %s2457 = sadd.s32 1, %s2453
                $region160: #{mmt_forward.2} parent=146 // loop_footer_branch
                  %2452 = sbr.rel target = $region156
                $region161: #{mmt_forward.2} parent=146 // loop_exit
                  _
              $region147: #{mmt_forward.2} parent=131 // pred_fallthru
                _
            $region132: #{mmt_forward.2} parent=127 // pred_fallthru
              _
            // Predicated region
            $region133: #{mmt_forward.2} parent=127 // pred_check
              _
            $region134: #{mmt_forward.2} parent=127 // pred_check_branch
              %2425 = sbr.rel (0) target = $region136
            $region135: #{mmt_forward.2} parent=127 // pred_region
              %s2427 = ssub.s32 16, 1
              loop: start=0, step=1, limit=1
              $region137: #{mmt_forward.2} parent=135 // loop_pre_header
                _
              $region138: #{mmt_forward.2} parent=135 // loop_header
                %s2429 = sphi 0, %s2433
                %p2430 = scmp.ge.s32.totalorder %s2429, 1
                %s2434 = sphi %s2402, %s2402
                %s2435 = sphi %s2419, %s2419
              $region139: #{mmt_forward.2} parent=135 // loop_header_branch
                %2432 = sbr.rel (%p2430) target = $region143
              $region140: #{mmt_forward.2} parent=135 // loop_body
                %v2436 = vld [vmem:[%s2434] sm:%s2427]
                %2437 = vst [vmem:[%s2435] sm:%s2427] %v2436
                %v2438 = vld [vmem:[%s2434 + $0x4] sm:%s2427]
                %2439 = vst [vmem:[%s2435 + $0xc] sm:%s2427] %v2438
              $region141: #{mmt_forward.2} parent=135 // loop_footer
                %s2433 = sadd.s32 1, %s2429
              $region142: #{mmt_forward.2} parent=135 // loop_footer_branch
                %2428 = sbr.rel target = $region138
              $region143: #{mmt_forward.2} parent=135 // loop_exit
                _
            $region136: #{mmt_forward.2} parent=127 // pred_fallthru
              _
          $region128: #{mmt_forward.2} parent=123 // pred_fallthru
            _
          %2464 = vnop
        $region124: #{mmt_forward.2} parent=71 // pred_fallthru
          _
        // Predicated region
        $region162: #{mmt_forward.2} parent=71 // pred_check
          %p2465 = pneg %p395
        $region163: #{mmt_forward.2} parent=71 // pred_check_branch
          %2467 = sbr.rel (%p2465) target = $region165
        $region164: #{mmt_forward.2} parent=71 // pred_region
          %s2468 = smul.addr %s43, 4
          %s2469 = scalar_lea.vmem %s14, %s2468
          // Predicated region
          $region166: #{mmt_forward.2} parent=164 // pred_check
            _
          $region167: #{mmt_forward.2} parent=164 // pred_check_branch
            %2471 = sbr.rel (0) target = $region169
          $region168: #{mmt_forward.2} parent=164 // pred_region
            // Predicated region
            $region170: #{mmt_forward.2} parent=168 // pred_check
              _
            $region171: #{mmt_forward.2} parent=168 // pred_check_branch
              %2473 = sbr.rel target = $region173
            $region172: #{mmt_forward.2} parent=168 // pred_region
              // Predicated region
              $region185: #{mmt_forward.2} parent=172 // pred_check
                _
              $region186: #{mmt_forward.2} parent=172 // pred_check_branch
                %2491 = sbr.rel (0) target = $region188
              $region187: #{mmt_forward.2} parent=172 // pred_region
                loop: start=0, step=1, limit=1
                $region189: #{mmt_forward.2} parent=187 // loop_pre_header
                  _
                $region190: #{mmt_forward.2} parent=187 // loop_header
                  %s2493 = sphi 0, %s2497
                  %p2494 = scmp.ge.s32.totalorder %s2493, 1
                  %s2498 = sphi %s2406, %s2406
                  %s2499 = sphi %s2469, %s2469
                $region191: #{mmt_forward.2} parent=187 // loop_header_branch
                  %2496 = sbr.rel (%p2494) target = $region195
                $region192: #{mmt_forward.2} parent=187 // loop_body
                  _
                $region193: #{mmt_forward.2} parent=187 // loop_footer
                  %s2497 = sadd.s32 1, %s2493
                $region194: #{mmt_forward.2} parent=187 // loop_footer_branch
                  %2492 = sbr.rel target = $region190
                $region195: #{mmt_forward.2} parent=187 // loop_exit
                  _
                %s2501 = ssub.s32 16, 1
                loop: start=0, step=1, limit=1
                $region196: #{mmt_forward.2} parent=187 // loop_pre_header
                  _
                $region197: #{mmt_forward.2} parent=187 // loop_header
                  %s2503 = sphi 0, %s2507
                  %p2504 = scmp.ge.s32.totalorder %s2503, 1
                  %s2508 = sphi %s2406, %s2406
                  %s2509 = sphi %s2469, %s2469
                $region198: #{mmt_forward.2} parent=187 // loop_header_branch
                  %2506 = sbr.rel (%p2504) target = $region202
                $region199: #{mmt_forward.2} parent=187 // loop_body
                  %v2510 = vld [vmem:[%s2508] sm:%s2501]
                  %2511 = vst [vmem:[%s2509] sm:%s2501] %v2510
                  %v2512 = vld [vmem:[%s2508 + $0x4] sm:%s2501]
                  %2513 = vst [vmem:[%s2509 + $0xc] sm:%s2501] %v2512
                $region200: #{mmt_forward.2} parent=187 // loop_footer
                  %s2507 = sadd.s32 1, %s2503
                $region201: #{mmt_forward.2} parent=187 // loop_footer_branch
                  %2502 = sbr.rel target = $region197
                $region202: #{mmt_forward.2} parent=187 // loop_exit
                  _
              $region188: #{mmt_forward.2} parent=172 // pred_fallthru
                _
            $region173: #{mmt_forward.2} parent=168 // pred_fallthru
              _
            // Predicated region
            $region174: #{mmt_forward.2} parent=168 // pred_check
              _
            $region175: #{mmt_forward.2} parent=168 // pred_check_branch
              %2475 = sbr.rel (0) target = $region177
            $region176: #{mmt_forward.2} parent=168 // pred_region
              %s2477 = ssub.s32 16, 1
              loop: start=0, step=1, limit=1
              $region178: #{mmt_forward.2} parent=176 // loop_pre_header
                _
              $region179: #{mmt_forward.2} parent=176 // loop_header
                %s2479 = sphi 0, %s2483
                %p2480 = scmp.ge.s32.totalorder %s2479, 1
                %s2484 = sphi %s2406, %s2406
                %s2485 = sphi %s2469, %s2469
              $region180: #{mmt_forward.2} parent=176 // loop_header_branch
                %2482 = sbr.rel (%p2480) target = $region184
              $region181: #{mmt_forward.2} parent=176 // loop_body
                %v2486 = vld [vmem:[%s2484] sm:%s2477]
                %2487 = vst [vmem:[%s2485] sm:%s2477] %v2486
                %v2488 = vld [vmem:[%s2484 + $0x4] sm:%s2477]
                %2489 = vst [vmem:[%s2485 + $0xc] sm:%s2477] %v2488
              $region182: #{mmt_forward.2} parent=176 // loop_footer
                %s2483 = sadd.s32 1, %s2479
              $region183: #{mmt_forward.2} parent=176 // loop_footer_branch
                %2478 = sbr.rel target = $region179
              $region184: #{mmt_forward.2} parent=176 // loop_exit
                _
            $region177: #{mmt_forward.2} parent=168 // pred_fallthru
              _
          $region169: #{mmt_forward.2} parent=164 // pred_fallthru
            _
          %2514 = vnop
        $region165: #{mmt_forward.2} parent=71 // pred_fallthru
          _
        // Predicated region
        $region203: #{mmt_forward.2} parent=71 // pred_check
          %p2515 = pneg %p421
        $region204: #{mmt_forward.2} parent=71 // pred_check_branch
          %2517 = sbr.rel (%p2515) target = $region206
        $region205: #{mmt_forward.2} parent=71 // pred_region
          _
        $region206: #{mmt_forward.2} parent=71 // pred_fallthru
          _
        // Predicated region
        $region207: #{mmt_forward.2} parent=71 // pred_check
          %p2518 = pneg %p447
        $region208: #{mmt_forward.2} parent=71 // pred_check_branch
          %2520 = sbr.rel (%p2518) target = $region210
        $region209: #{mmt_forward.2} parent=71 // pred_region
          _
        $region210: #{mmt_forward.2} parent=71 // pred_fallthru
          _
      $region72: #{mmt_forward.2} parent=5 // pred_fallthru
        _
      %p2521 = scmp.le.s32.totalorder 2, %s38
      // Predicated region
      $region211: #{mmt_forward.2} parent=5 // pred_check
        %p2522 = pneg %p2521
      $region212: #{mmt_forward.2} parent=5 // pred_check_branch
        %2524 = sbr.rel (%p2522) target = $region214
      $region213: #{mmt_forward.2} parent=5 // pred_region
        %s2525 = ssub.s32 %s38, 2
        // Predicated region
        $region215: #{mmt_forward.2} parent=213 // pred_check
          %p2526 = pneg %p375
        $region216: #{mmt_forward.2} parent=213 // pred_check_branch
          %2528 = sbr.rel (%p2526) target = $region218
        $region217: #{mmt_forward.2} parent=213 // pred_region
          %s2529 = sand.u32 %s360, 1
          %s2530 = sand.u32 %s360, 1
          %s2531 = smul.addr %s2530, 8
          %s2532 = scalar_lea.vmem [#allocation21], %s2531
        $region218: #{mmt_forward.2} parent=213 // pred_fallthru
          _
        // Predicated region
        $region219: #{mmt_forward.2} parent=213 // pred_check
          %p2533 = pneg %p401
        $region220: #{mmt_forward.2} parent=213 // pred_check_branch
          %2535 = sbr.rel (%p2533) target = $region222
        $region221: #{mmt_forward.2} parent=213 // pred_region
          %s2536 = sand.u32 %s386, 1
          %s2537 = sand.u32 %s386, 1
          %s2538 = smul.addr %s2537, 8
          %s2539 = scalar_lea.vmem [#allocation22], %s2538
        $region222: #{mmt_forward.2} parent=213 // pred_fallthru
          _
        // Predicated region
        $region223: #{mmt_forward.2} parent=213 // pred_check
          %p2540 = pneg %p427
        $region224: #{mmt_forward.2} parent=213 // pred_check_branch
          %2542 = sbr.rel (%p2540) target = $region226
        $region225: #{mmt_forward.2} parent=213 // pred_region
          %p2543 = scmp.lt.s32.totalorder %s44, 2
          %s2544 = scalar_select %p2543, %s44, 2
          %s2545 = smul.addr %s2544, 2
          %s2546 = scalar_lea.vmem %s15, %s2545
        $region226: #{mmt_forward.2} parent=213 // pred_fallthru
          _
        // Predicated region
        $region227: #{mmt_forward.2} parent=213 // pred_check
          %p2547 = pneg %p453
        $region228: #{mmt_forward.2} parent=213 // pred_check_branch
          %2549 = sbr.rel (%p2547) target = $region230
        $region229: #{mmt_forward.2} parent=213 // pred_region
          %p2550 = scmp.lt.s32.totalorder %s44, 2
          %s2551 = scalar_select %p2550, %s44, 2
          %s2552 = smul.addr %s2551, 2
          %s2553 = scalar_lea.vmem %s16, %s2552
        $region230: #{mmt_forward.2} parent=213 // pred_fallthru
          _
      $region214: #{mmt_forward.2} parent=5 // pred_fallthru
        _
    $region6: #{mmt_forward.2} parent=1 // loop_footer
      %s42 = sadd.s32 1, %s38
    $region7: #{mmt_forward.2} parent=1 // loop_footer_branch
      %37 = sbr.rel target = $region3
    $region8: #{mmt_forward.2} parent=1 // loop_exit
      _
    %2554 = vsyncpa [#allocation3], 1
    %s2555 = scalar_lea.sflag [#allocation3], 1
    %2556 = vsyncpa %s2555, 1
    %2557 = vsyncpa [#allocation5], 1
    %s2558 = scalar_lea.sflag [#allocation5], 1
    %2559 = vsyncpa %s2558, 1
    %2560 = vsyncpa [#allocation8], 1
    %s2561 = scalar_lea.sflag [#allocation8], 1
    %2562 = vsyncpa %s2561, 1
    %2563 = vsyncpa [#allocation11], 1
    %s2564 = scalar_lea.sflag [#allocation11], 1
    %2565 = vsyncpa %s2564, 1
    %2566 = vsyncpa [#allocation14], 1
    %2567 = vsyncpa [#allocation17], 1
    %2568 = vsyncpa [#allocation20], 1

// kernel: mmt_forward.3
$region0: #{mmt_forward.3}
  #allocation0 [shape = 'u32[]', space=smem, size = 0x4, offset = 0x4, fixed_abs, tag = 'smem constant byte address 0x4 - core index']
  #allocation1 [shape = 'u32[144,128]{1,0:T(1,128)}', space=vmem, size = 0x12000, scoped, tag = 'internal scratch']
  %s0 = inlined_call_operand.vmem [shape: bf16[2,8,384], index: 0, kind: input, shape index: {}]
  %s1 = inlined_call_operand.vmem [shape: bf16[2,24,128], index: 1, kind: input, shape index: {}]
  %s2 = inlined_call_operand.vmem [shape: bf16[384,128], index: 2, kind: input, shape index: {}]
  %s3 = inlined_call_operand.vmem [shape: f32[1,128], index: 3, kind: input, shape index: {}]
  %s4 = inlined_call_operand.vmem [shape: bf16[128,128], index: 4, kind: input, shape index: {}]
  %s5 = inlined_call_operand.vmem [shape: f32[1,128], index: 5, kind: input, shape index: {}]
  %s6 = inlined_call_operand.vmem [shape: f32[1,128], index: 6, kind: input, shape index: {}]
  %s7 = inlined_call_operand.vmem [shape: f32[24,128], index: 7, kind: input, shape index: {}]
  %s8 = inlined_call_operand.vmem [shape: f32[8,128], index: 8, kind: input, shape index: {}]
  %s9 = inlined_call_operand.vmem [shape: f32[1,128], index: 9, kind: input, shape index: {}]
  %s10 = inlined_call_operand.vmem [shape: f32[1,128], index: 10, kind: input, shape index: {}]
  %s11 = inlined_call_operand.vmem [shape: bf16[128,128], index: 11, kind: input, shape index: {}]
  %s12 = inlined_call_operand.vmem [shape: f32[1,128], index: 12, kind: input, shape index: {}]
  %s13 = inlined_call_operand.vmem [shape: f32[1,128], index: 13, kind: input, shape index: {}]
  %s14 = inlined_call_operand.vmem [shape: f32[1,128], index: 14, kind: input, shape index: {}]
  %s15 = inlined_call_operand.vmem [shape: bf16[128,256], index: 15, kind: input, shape index: {}]
  %s16 = inlined_call_operand.vmem [shape: f32[1,256], index: 16, kind: input, shape index: {}]
  %s17 = inlined_call_operand.vmem [shape: bf16[128,128], index: 17, kind: input, shape index: {}]
  %s18 = inlined_call_operand.vmem [shape: f32[1,128], index: 18, kind: input, shape index: {}]
  %s19 = inlined_call_operand.vmem [shape: f32[1,128], index: 19, kind: input, shape index: {}]
  %s20 = inlined_call_operand.vmem [shape: f32[1,128], index: 20, kind: input, shape index: {}]
  %s21 = inlined_call_operand.vmem [shape: bf16[128,256], index: 21, kind: input, shape index: {}]
  %s22 = inlined_call_operand.vmem [shape: f32[1,256], index: 22, kind: input, shape index: {}]
  %s23 = inlined_call_operand.vmem [shape: bf16[256,128], index: 23, kind: input, shape index: {}]
  %s24 = inlined_call_operand.vmem [shape: f32[1,128], index: 24, kind: input, shape index: {}]
  %s25 = inlined_call_operand.vmem [shape: bf16[128,128], index: 25, kind: input, shape index: {}]
  %s26 = inlined_call_operand.vmem [shape: f32[1,128], index: 26, kind: input, shape index: {}]
  %s27 = inlined_call_operand.hbm [shape: f32[2,1,128], index: 27, kind: output, shape index: {}]
  %s28 = sld [smem:[#allocation0]]
  $region141: #{mmt_forward.3} parent=0
    _
  %s30 = ssub.s32 1, %s28
  %s31 = scalar_select 0, %s30, %s28
  $region1: #{mmt_forward.3} parent=0
    #allocation2 [shape = 'u8[1024]{0}', space=vmem, size = 0x400, scoped, tag = 'output window, operand 0']
    #allocation3 [shape = 's32[2]{0}', space=sflag, size = 0x8, scoped, tag = 'scoped memory for mmt_forward.3']
    %32 = vsyncpa [#allocation3], 0
    %s33 = scalar_lea.sflag [#allocation3], 1
    %34 = vsyncpa %s33, 0
    loop: start=0, step=1, limit=4
    $region2: #{mmt_forward.3} parent=1 // loop_pre_header
      _
    $region3: #{mmt_forward.3} parent=1 // loop_header
      %s36 = sphi 0, %s40
      %p37 = scmp.ge.s32.totalorder %s36, 4
      %s46 = sphi 0, %s48
      %s49 = sphi 0, %s46
      %s50 = sphi 0, %s49
      %s66 = sphi 0, %s50
      %s72 = sphi 0, %s74
      %s75 = sphi 0, %s72
      %s76 = sphi 0, %s75
      %s92 = sphi 0, %s76
      %s96 = sphi 0, %s96
      %s98 = sphi 0, %s96
      %s99 = sphi 0, %s98
      %s113 = sphi 0, %s99
      %s117 = sphi 0, %s117
      %s119 = sphi 0, %s117
      %s120 = sphi 0, %s119
      %s134 = sphi 0, %s120
      %s138 = sphi 0, %s138
      %s140 = sphi 0, %s138
      %s141 = sphi 0, %s140
      %s155 = sphi 0, %s141
      %s159 = sphi 0, %s159
      %s161 = sphi 0, %s159
      %s162 = sphi 0, %s161
      %s176 = sphi 0, %s162
      %s180 = sphi 0, %s180
      %s182 = sphi 0, %s180
      %s183 = sphi 0, %s182
      %s197 = sphi 0, %s183
      %s201 = sphi 0, %s201
      %s203 = sphi 0, %s201
      %s204 = sphi 0, %s203
      %s218 = sphi 0, %s204
      %s222 = sphi 0, %s222
      %s224 = sphi 0, %s222
      %s225 = sphi 0, %s224
      %s239 = sphi 0, %s225
      %s243 = sphi 0, %s243
      %s245 = sphi 0, %s243
      %s246 = sphi 0, %s245
      %s260 = sphi 0, %s246
      %s264 = sphi 0, %s264
      %s266 = sphi 0, %s264
      %s267 = sphi 0, %s266
      %s281 = sphi 0, %s267
      %s285 = sphi 0, %s285
      %s287 = sphi 0, %s285
      %s288 = sphi 0, %s287
      %s302 = sphi 0, %s288
      %s306 = sphi 0, %s306
      %s308 = sphi 0, %s306
      %s309 = sphi 0, %s308
      %s323 = sphi 0, %s309
      %s327 = sphi 0, %s327
      %s329 = sphi 0, %s327
      %s330 = sphi 0, %s329
      %s344 = sphi 0, %s330
      %s348 = sphi 0, %s348
      %s350 = sphi 0, %s348
      %s351 = sphi 0, %s350
      %s365 = sphi 0, %s351
      %s369 = sphi 0, %s369
      %s371 = sphi 0, %s369
      %s372 = sphi 0, %s371
      %s386 = sphi 0, %s372
      %s390 = sphi 0, %s390
      %s392 = sphi 0, %s390
      %s393 = sphi 0, %s392
      %s407 = sphi 0, %s393
      %s411 = sphi 0, %s411
      %s413 = sphi 0, %s411
      %s414 = sphi 0, %s413
      %s428 = sphi 0, %s414
      %s432 = sphi 0, %s432
      %s434 = sphi 0, %s432
      %s435 = sphi 0, %s434
      %s449 = sphi 0, %s435
      %s453 = sphi 0, %s453
      %s455 = sphi 0, %s453
      %s456 = sphi 0, %s455
      %s470 = sphi 0, %s456
      %s474 = sphi 0, %s474
      %s476 = sphi 0, %s474
      %s477 = sphi 0, %s476
      %s491 = sphi 0, %s477
      %s495 = sphi 0, %s495
      %s497 = sphi 0, %s495
      %s498 = sphi 0, %s497
      %s512 = sphi 0, %s498
      %s516 = sphi 0, %s516
      %s518 = sphi 0, %s516
      %s519 = sphi 0, %s518
      %s533 = sphi 0, %s519
      %s537 = sphi 0, %s537
      %s539 = sphi 0, %s537
      %s540 = sphi 0, %s539
      %s554 = sphi 0, %s540
      %s558 = sphi 0, %s558
      %s560 = sphi 0, %s558
      %s561 = sphi 0, %s560
      %s575 = sphi 0, %s561
      %s579 = sphi 0, %s579
      %s581 = sphi 0, %s579
      %s582 = sphi 0, %s581
      %s596 = sphi 0, %s582
      %s600 = sphi 0, %s600
      %s602 = sphi 0, %s600
      %s603 = sphi 0, %s602
      %s617 = sphi 0, %s603
      %s623 = sphi 0, %s625
      %s626 = sphi 0, %s623
      %s627 = sphi 0, %s626
      %s643 = sphi 0, %s627
    $region4: #{mmt_forward.3} parent=1 // loop_header_branch
      %39 = sbr.rel (%p37) target = $region8
    $region5: #{mmt_forward.3} parent=1 // loop_body
      %s41 = ssub.s32 %s36, 1
      %s42 = ssub.s32 %s36, 2
      %s43 = sadd.s32 %s36, 1
      %s44 = ssub.s32 %s36, %s43
      %p45 = scmp.eq.s32.totalorder %s44, 0
      %s47 = sadd.s32 %s46, 1
      %s48 = scalar_select %p45, %s46, %s47
      %p51 = pneg %p45
      %p52 = scmp.eq.s32.totalorder %s36, 1
      %p53 = por %p51, %p52
      %p54 = scmp.ne.s32.totalorder %s46, %s49
      %p55 = scmp.eq.s32.totalorder %s36, 0
      %p56 = por %p54, %p55
      %p57 = scmp.ne.s32.totalorder %s46, %s49
      %p58 = scmp.eq.s32.totalorder %s41, 1
      %p59 = por %p57, %p58
      %p60 = scmp.ne.s32.totalorder %s49, %s50
      %p61 = scmp.eq.s32.totalorder %s41, 0
      %p62 = por %p60, %p61
      %p63 = scmp.ne.s32.totalorder %s49, %s50
      %p64 = scmp.eq.s32.totalorder %s42, 1
      %p65 = por %p63, %p64
      %p67 = scmp.ne.s32.totalorder %s50, %s66
      %p68 = scmp.eq.s32.totalorder %s42, 0
      %p69 = por %p67, %p68
      %s70 = ssub.s32 %s36, %s43
      %p71 = scmp.eq.s32.totalorder %s70, 0
      %s73 = sadd.s32 %s72, 1
      %s74 = scalar_select %p71, %s72, %s73
      %p77 = pneg %p71
      %p78 = scmp.eq.s32.totalorder %s36, 1
      %p79 = por %p77, %p78
      %p80 = scmp.ne.s32.totalorder %s72, %s75
      %p81 = scmp.eq.s32.totalorder %s36, 0
      %p82 = por %p80, %p81
      %p83 = scmp.ne.s32.totalorder %s72, %s75
      %p84 = scmp.eq.s32.totalorder %s41, 1
      %p85 = por %p83, %p84
      %p86 = scmp.ne.s32.totalorder %s75, %s76
      %p87 = scmp.eq.s32.totalorder %s41, 0
      %p88 = por %p86, %p87
      %p89 = scmp.ne.s32.totalorder %s75, %s76
      %p90 = scmp.eq.s32.totalorder %s42, 1
      %p91 = por %p89, %p90
      %p93 = scmp.ne.s32.totalorder %s76, %s92
      %p94 = scmp.eq.s32.totalorder %s42, 0
      %p95 = por %p93, %p94
      %s97 = sadd.s32 %s96, 1
      %p100 = scmp.eq.s32.totalorder %s36, 1
      %p101 = scmp.ne.s32.totalorder %s96, %s98
      %p102 = scmp.eq.s32.totalorder %s36, 0
      %p103 = por %p101, %p102
      %p104 = scmp.ne.s32.totalorder %s96, %s98
      %p105 = scmp.eq.s32.totalorder %s41, 1
      %p106 = por %p104, %p105
      %p107 = scmp.ne.s32.totalorder %s98, %s99
      %p108 = scmp.eq.s32.totalorder %s41, 0
      %p109 = por %p107, %p108
      %p110 = scmp.ne.s32.totalorder %s98, %s99
      %p111 = scmp.eq.s32.totalorder %s42, 1
      %p112 = por %p110, %p111
      %p114 = scmp.ne.s32.totalorder %s99, %s113
      %p115 = scmp.eq.s32.totalorder %s42, 0
      %p116 = por %p114, %p115
      %s118 = sadd.s32 %s117, 1
      %p121 = scmp.eq.s32.totalorder %s36, 1
      %p122 = scmp.ne.s32.totalorder %s117, %s119
      %p123 = scmp.eq.s32.totalorder %s36, 0
      %p124 = por %p122, %p123
      %p125 = scmp.ne.s32.totalorder %s117, %s119
      %p126 = scmp.eq.s32.totalorder %s41, 1
      %p127 = por %p125, %p126
      %p128 = scmp.ne.s32.totalorder %s119, %s120
      %p129 = scmp.eq.s32.totalorder %s41, 0
      %p130 = por %p128, %p129
      %p131 = scmp.ne.s32.totalorder %s119, %s120
      %p132 = scmp.eq.s32.totalorder %s42, 1
      %p133 = por %p131, %p132
      %p135 = scmp.ne.s32.totalorder %s120, %s134
      %p136 = scmp.eq.s32.totalorder %s42, 0
      %p137 = por %p135, %p136
      %s139 = sadd.s32 %s138, 1
      %p142 = scmp.eq.s32.totalorder %s36, 1
      %p143 = scmp.ne.s32.totalorder %s138, %s140
      %p144 = scmp.eq.s32.totalorder %s36, 0
      %p145 = por %p143, %p144
      %p146 = scmp.ne.s32.totalorder %s138, %s140
      %p147 = scmp.eq.s32.totalorder %s41, 1
      %p148 = por %p146, %p147
      %p149 = scmp.ne.s32.totalorder %s140, %s141
      %p150 = scmp.eq.s32.totalorder %s41, 0
      %p151 = por %p149, %p150
      %p152 = scmp.ne.s32.totalorder %s140, %s141
      %p153 = scmp.eq.s32.totalorder %s42, 1
      %p154 = por %p152, %p153
      %p156 = scmp.ne.s32.totalorder %s141, %s155
      %p157 = scmp.eq.s32.totalorder %s42, 0
      %p158 = por %p156, %p157
      %s160 = sadd.s32 %s159, 1
      %p163 = scmp.eq.s32.totalorder %s36, 1
      %p164 = scmp.ne.s32.totalorder %s159, %s161
      %p165 = scmp.eq.s32.totalorder %s36, 0
      %p166 = por %p164, %p165
      %p167 = scmp.ne.s32.totalorder %s159, %s161
      %p168 = scmp.eq.s32.totalorder %s41, 1
      %p169 = por %p167, %p168
      %p170 = scmp.ne.s32.totalorder %s161, %s162
      %p171 = scmp.eq.s32.totalorder %s41, 0
      %p172 = por %p170, %p171
      %p173 = scmp.ne.s32.totalorder %s161, %s162
      %p174 = scmp.eq.s32.totalorder %s42, 1
      %p175 = por %p173, %p174
      %p177 = scmp.ne.s32.totalorder %s162, %s176
      %p178 = scmp.eq.s32.totalorder %s42, 0
      %p179 = por %p177, %p178
      %s181 = sadd.s32 %s180, 1
      %p184 = scmp.eq.s32.totalorder %s36, 1
      %p185 = scmp.ne.s32.totalorder %s180, %s182
      %p186 = scmp.eq.s32.totalorder %s36, 0
      %p187 = por %p185, %p186
      %p188 = scmp.ne.s32.totalorder %s180, %s182
      %p189 = scmp.eq.s32.totalorder %s41, 1
      %p190 = por %p188, %p189
      %p191 = scmp.ne.s32.totalorder %s182, %s183
      %p192 = scmp.eq.s32.totalorder %s41, 0
      %p193 = por %p191, %p192
      %p194 = scmp.ne.s32.totalorder %s182, %s183
      %p195 = scmp.eq.s32.totalorder %s42, 1
      %p196 = por %p194, %p195
      %p198 = scmp.ne.s32.totalorder %s183, %s197
      %p199 = scmp.eq.s32.totalorder %s42, 0
      %p200 = por %p198, %p199
      %s202 = sadd.s32 %s201, 1
      %p205 = scmp.eq.s32.totalorder %s36, 1
      %p206 = scmp.ne.s32.totalorder %s201, %s203
      %p207 = scmp.eq.s32.totalorder %s36, 0
      %p208 = por %p206, %p207
      %p209 = scmp.ne.s32.totalorder %s201, %s203
      %p210 = scmp.eq.s32.totalorder %s41, 1
      %p211 = por %p209, %p210
      %p212 = scmp.ne.s32.totalorder %s203, %s204
      %p213 = scmp.eq.s32.totalorder %s41, 0
      %p214 = por %p212, %p213
      %p215 = scmp.ne.s32.totalorder %s203, %s204
      %p216 = scmp.eq.s32.totalorder %s42, 1
      %p217 = por %p215, %p216
      %p219 = scmp.ne.s32.totalorder %s204, %s218
      %p220 = scmp.eq.s32.totalorder %s42, 0
      %p221 = por %p219, %p220
      %s223 = sadd.s32 %s222, 1
      %p226 = scmp.eq.s32.totalorder %s36, 1
      %p227 = scmp.ne.s32.totalorder %s222, %s224
      %p228 = scmp.eq.s32.totalorder %s36, 0
      %p229 = por %p227, %p228
      %p230 = scmp.ne.s32.totalorder %s222, %s224
      %p231 = scmp.eq.s32.totalorder %s41, 1
      %p232 = por %p230, %p231
      %p233 = scmp.ne.s32.totalorder %s224, %s225
      %p234 = scmp.eq.s32.totalorder %s41, 0
      %p235 = por %p233, %p234
      %p236 = scmp.ne.s32.totalorder %s224, %s225
      %p237 = scmp.eq.s32.totalorder %s42, 1
      %p238 = por %p236, %p237
      %p240 = scmp.ne.s32.totalorder %s225, %s239
      %p241 = scmp.eq.s32.totalorder %s42, 0
      %p242 = por %p240, %p241
      %s244 = sadd.s32 %s243, 1
      %p247 = scmp.eq.s32.totalorder %s36, 1
      %p248 = scmp.ne.s32.totalorder %s243, %s245
      %p249 = scmp.eq.s32.totalorder %s36, 0
      %p250 = por %p248, %p249
      %p251 = scmp.ne.s32.totalorder %s243, %s245
      %p252 = scmp.eq.s32.totalorder %s41, 1
      %p253 = por %p251, %p252
      %p254 = scmp.ne.s32.totalorder %s245, %s246
      %p255 = scmp.eq.s32.totalorder %s41, 0
      %p256 = por %p254, %p255
      %p257 = scmp.ne.s32.totalorder %s245, %s246
      %p258 = scmp.eq.s32.totalorder %s42, 1
      %p259 = por %p257, %p258
      %p261 = scmp.ne.s32.totalorder %s246, %s260
      %p262 = scmp.eq.s32.totalorder %s42, 0
      %p263 = por %p261, %p262
      %s265 = sadd.s32 %s264, 1
      %p268 = scmp.eq.s32.totalorder %s36, 1
      %p269 = scmp.ne.s32.totalorder %s264, %s266
      %p270 = scmp.eq.s32.totalorder %s36, 0
      %p271 = por %p269, %p270
      %p272 = scmp.ne.s32.totalorder %s264, %s266
      %p273 = scmp.eq.s32.totalorder %s41, 1
      %p274 = por %p272, %p273
      %p275 = scmp.ne.s32.totalorder %s266, %s267
      %p276 = scmp.eq.s32.totalorder %s41, 0
      %p277 = por %p275, %p276
      %p278 = scmp.ne.s32.totalorder %s266, %s267
      %p279 = scmp.eq.s32.totalorder %s42, 1
      %p280 = por %p278, %p279
      %p282 = scmp.ne.s32.totalorder %s267, %s281
      %p283 = scmp.eq.s32.totalorder %s42, 0
      %p284 = por %p282, %p283
      %s286 = sadd.s32 %s285, 1
      %p289 = scmp.eq.s32.totalorder %s36, 1
      %p290 = scmp.ne.s32.totalorder %s285, %s287
      %p291 = scmp.eq.s32.totalorder %s36, 0
      %p292 = por %p290, %p291
      %p293 = scmp.ne.s32.totalorder %s285, %s287
      %p294 = scmp.eq.s32.totalorder %s41, 1
      %p295 = por %p293, %p294
      %p296 = scmp.ne.s32.totalorder %s287, %s288
      %p297 = scmp.eq.s32.totalorder %s41, 0
      %p298 = por %p296, %p297
      %p299 = scmp.ne.s32.totalorder %s287, %s288
      %p300 = scmp.eq.s32.totalorder %s42, 1
      %p301 = por %p299, %p300
      %p303 = scmp.ne.s32.totalorder %s288, %s302
      %p304 = scmp.eq.s32.totalorder %s42, 0
      %p305 = por %p303, %p304
      %s307 = sadd.s32 %s306, 1
      %p310 = scmp.eq.s32.totalorder %s36, 1
      %p311 = scmp.ne.s32.totalorder %s306, %s308
      %p312 = scmp.eq.s32.totalorder %s36, 0
      %p313 = por %p311, %p312
      %p314 = scmp.ne.s32.totalorder %s306, %s308
      %p315 = scmp.eq.s32.totalorder %s41, 1
      %p316 = por %p314, %p315
      %p317 = scmp.ne.s32.totalorder %s308, %s309
      %p318 = scmp.eq.s32.totalorder %s41, 0
      %p319 = por %p317, %p318
      %p320 = scmp.ne.s32.totalorder %s308, %s309
      %p321 = scmp.eq.s32.totalorder %s42, 1
      %p322 = por %p320, %p321
      %p324 = scmp.ne.s32.totalorder %s309, %s323
      %p325 = scmp.eq.s32.totalorder %s42, 0
      %p326 = por %p324, %p325
      %s328 = sadd.s32 %s327, 1
      %p331 = scmp.eq.s32.totalorder %s36, 1
      %p332 = scmp.ne.s32.totalorder %s327, %s329
      %p333 = scmp.eq.s32.totalorder %s36, 0
      %p334 = por %p332, %p333
      %p335 = scmp.ne.s32.totalorder %s327, %s329
      %p336 = scmp.eq.s32.totalorder %s41, 1
      %p337 = por %p335, %p336
      %p338 = scmp.ne.s32.totalorder %s329, %s330
      %p339 = scmp.eq.s32.totalorder %s41, 0
      %p340 = por %p338, %p339
      %p341 = scmp.ne.s32.totalorder %s329, %s330
      %p342 = scmp.eq.s32.totalorder %s42, 1
      %p343 = por %p341, %p342
      %p345 = scmp.ne.s32.totalorder %s330, %s344
      %p346 = scmp.eq.s32.totalorder %s42, 0
      %p347 = por %p345, %p346
      %s349 = sadd.s32 %s348, 1
      %p352 = scmp.eq.s32.totalorder %s36, 1
      %p353 = scmp.ne.s32.totalorder %s348, %s350
      %p354 = scmp.eq.s32.totalorder %s36, 0
      %p355 = por %p353, %p354
      %p356 = scmp.ne.s32.totalorder %s348, %s350
      %p357 = scmp.eq.s32.totalorder %s41, 1
      %p358 = por %p356, %p357
      %p359 = scmp.ne.s32.totalorder %s350, %s351
      %p360 = scmp.eq.s32.totalorder %s41, 0
      %p361 = por %p359, %p360
      %p362 = scmp.ne.s32.totalorder %s350, %s351
      %p363 = scmp.eq.s32.totalorder %s42, 1
      %p364 = por %p362, %p363
      %p366 = scmp.ne.s32.totalorder %s351, %s365
      %p367 = scmp.eq.s32.totalorder %s42, 0
      %p368 = por %p366, %p367
      %s370 = sadd.s32 %s369, 1
      %p373 = scmp.eq.s32.totalorder %s36, 1
      %p374 = scmp.ne.s32.totalorder %s369, %s371
      %p375 = scmp.eq.s32.totalorder %s36, 0
      %p376 = por %p374, %p375
      %p377 = scmp.ne.s32.totalorder %s369, %s371
      %p378 = scmp.eq.s32.totalorder %s41, 1
      %p379 = por %p377, %p378
      %p380 = scmp.ne.s32.totalorder %s371, %s372
      %p381 = scmp.eq.s32.totalorder %s41, 0
      %p382 = por %p380, %p381
      %p383 = scmp.ne.s32.totalorder %s371, %s372
      %p384 = scmp.eq.s32.totalorder %s42, 1
      %p385 = por %p383, %p384
      %p387 = scmp.ne.s32.totalorder %s372, %s386
      %p388 = scmp.eq.s32.totalorder %s42, 0
      %p389 = por %p387, %p388
      %s391 = sadd.s32 %s390, 1
      %p394 = scmp.eq.s32.totalorder %s36, 1
      %p395 = scmp.ne.s32.totalorder %s390, %s392
      %p396 = scmp.eq.s32.totalorder %s36, 0
      %p397 = por %p395, %p396
      %p398 = scmp.ne.s32.totalorder %s390, %s392
      %p399 = scmp.eq.s32.totalorder %s41, 1
      %p400 = por %p398, %p399
      %p401 = scmp.ne.s32.totalorder %s392, %s393
      %p402 = scmp.eq.s32.totalorder %s41, 0
      %p403 = por %p401, %p402
      %p404 = scmp.ne.s32.totalorder %s392, %s393
      %p405 = scmp.eq.s32.totalorder %s42, 1
      %p406 = por %p404, %p405
      %p408 = scmp.ne.s32.totalorder %s393, %s407
      %p409 = scmp.eq.s32.totalorder %s42, 0
      %p410 = por %p408, %p409
      %s412 = sadd.s32 %s411, 1
      %p415 = scmp.eq.s32.totalorder %s36, 1
      %p416 = scmp.ne.s32.totalorder %s411, %s413
      %p417 = scmp.eq.s32.totalorder %s36, 0
      %p418 = por %p416, %p417
      %p419 = scmp.ne.s32.totalorder %s411, %s413
      %p420 = scmp.eq.s32.totalorder %s41, 1
      %p421 = por %p419, %p420
      %p422 = scmp.ne.s32.totalorder %s413, %s414
      %p423 = scmp.eq.s32.totalorder %s41, 0
      %p424 = por %p422, %p423
      %p425 = scmp.ne.s32.totalorder %s413, %s414
      %p426 = scmp.eq.s32.totalorder %s42, 1
      %p427 = por %p425, %p426
      %p429 = scmp.ne.s32.totalorder %s414, %s428
      %p430 = scmp.eq.s32.totalorder %s42, 0
      %p431 = por %p429, %p430
      %s433 = sadd.s32 %s432, 1
      %p436 = scmp.eq.s32.totalorder %s36, 1
      %p437 = scmp.ne.s32.totalorder %s432, %s434
      %p438 = scmp.eq.s32.totalorder %s36, 0
      %p439 = por %p437, %p438
      %p440 = scmp.ne.s32.totalorder %s432, %s434
      %p441 = scmp.eq.s32.totalorder %s41, 1
      %p442 = por %p440, %p441
      %p443 = scmp.ne.s32.totalorder %s434, %s435
      %p444 = scmp.eq.s32.totalorder %s41, 0
      %p445 = por %p443, %p444
      %p446 = scmp.ne.s32.totalorder %s434, %s435
      %p447 = scmp.eq.s32.totalorder %s42, 1
      %p448 = por %p446, %p447
      %p450 = scmp.ne.s32.totalorder %s435, %s449
      %p451 = scmp.eq.s32.totalorder %s42, 0
      %p452 = por %p450, %p451
      %s454 = sadd.s32 %s453, 1
      %p457 = scmp.eq.s32.totalorder %s36, 1
      %p458 = scmp.ne.s32.totalorder %s453, %s455
      %p459 = scmp.eq.s32.totalorder %s36, 0
      %p460 = por %p458, %p459
      %p461 = scmp.ne.s32.totalorder %s453, %s455
      %p462 = scmp.eq.s32.totalorder %s41, 1
      %p463 = por %p461, %p462
      %p464 = scmp.ne.s32.totalorder %s455, %s456
      %p465 = scmp.eq.s32.totalorder %s41, 0
      %p466 = por %p464, %p465
      %p467 = scmp.ne.s32.totalorder %s455, %s456
      %p468 = scmp.eq.s32.totalorder %s42, 1
      %p469 = por %p467, %p468
      %p471 = scmp.ne.s32.totalorder %s456, %s470
      %p472 = scmp.eq.s32.totalorder %s42, 0
      %p473 = por %p471, %p472
      %s475 = sadd.s32 %s474, 1
      %p478 = scmp.eq.s32.totalorder %s36, 1
      %p479 = scmp.ne.s32.totalorder %s474, %s476
      %p480 = scmp.eq.s32.totalorder %s36, 0
      %p481 = por %p479, %p480
      %p482 = scmp.ne.s32.totalorder %s474, %s476
      %p483 = scmp.eq.s32.totalorder %s41, 1
      %p484 = por %p482, %p483
      %p485 = scmp.ne.s32.totalorder %s476, %s477
      %p486 = scmp.eq.s32.totalorder %s41, 0
      %p487 = por %p485, %p486
      %p488 = scmp.ne.s32.totalorder %s476, %s477
      %p489 = scmp.eq.s32.totalorder %s42, 1
      %p490 = por %p488, %p489
      %p492 = scmp.ne.s32.totalorder %s477, %s491
      %p493 = scmp.eq.s32.totalorder %s42, 0
      %p494 = por %p492, %p493
      %s496 = sadd.s32 %s495, 1
      %p499 = scmp.eq.s32.totalorder %s36, 1
      %p500 = scmp.ne.s32.totalorder %s495, %s497
      %p501 = scmp.eq.s32.totalorder %s36, 0
      %p502 = por %p500, %p501
      %p503 = scmp.ne.s32.totalorder %s495, %s497
      %p504 = scmp.eq.s32.totalorder %s41, 1
      %p505 = por %p503, %p504
      %p506 = scmp.ne.s32.totalorder %s497, %s498
      %p507 = scmp.eq.s32.totalorder %s41, 0
      %p508 = por %p506, %p507
      %p509 = scmp.ne.s32.totalorder %s497, %s498
      %p510 = scmp.eq.s32.totalorder %s42, 1
      %p511 = por %p509, %p510
      %p513 = scmp.ne.s32.totalorder %s498, %s512
      %p514 = scmp.eq.s32.totalorder %s42, 0
      %p515 = por %p513, %p514
      %s517 = sadd.s32 %s516, 1
      %p520 = scmp.eq.s32.totalorder %s36, 1
      %p521 = scmp.ne.s32.totalorder %s516, %s518
      %p522 = scmp.eq.s32.totalorder %s36, 0
      %p523 = por %p521, %p522
      %p524 = scmp.ne.s32.totalorder %s516, %s518
      %p525 = scmp.eq.s32.totalorder %s41, 1
      %p526 = por %p524, %p525
      %p527 = scmp.ne.s32.totalorder %s518, %s519
      %p528 = scmp.eq.s32.totalorder %s41, 0
      %p529 = por %p527, %p528
      %p530 = scmp.ne.s32.totalorder %s518, %s519
      %p531 = scmp.eq.s32.totalorder %s42, 1
      %p532 = por %p530, %p531
      %p534 = scmp.ne.s32.totalorder %s519, %s533
      %p535 = scmp.eq.s32.totalorder %s42, 0
      %p536 = por %p534, %p535
      %s538 = sadd.s32 %s537, 1
      %p541 = scmp.eq.s32.totalorder %s36, 1
      %p542 = scmp.ne.s32.totalorder %s537, %s539
      %p543 = scmp.eq.s32.totalorder %s36, 0
      %p544 = por %p542, %p543
      %p545 = scmp.ne.s32.totalorder %s537, %s539
      %p546 = scmp.eq.s32.totalorder %s41, 1
      %p547 = por %p545, %p546
      %p548 = scmp.ne.s32.totalorder %s539, %s540
      %p549 = scmp.eq.s32.totalorder %s41, 0
      %p550 = por %p548, %p549
      %p551 = scmp.ne.s32.totalorder %s539, %s540
      %p552 = scmp.eq.s32.totalorder %s42, 1
      %p553 = por %p551, %p552
      %p555 = scmp.ne.s32.totalorder %s540, %s554
      %p556 = scmp.eq.s32.totalorder %s42, 0
      %p557 = por %p555, %p556
      %s559 = sadd.s32 %s558, 1
      %p562 = scmp.eq.s32.totalorder %s36, 1
      %p563 = scmp.ne.s32.totalorder %s558, %s560
      %p564 = scmp.eq.s32.totalorder %s36, 0
      %p565 = por %p563, %p564
      %p566 = scmp.ne.s32.totalorder %s558, %s560
      %p567 = scmp.eq.s32.totalorder %s41, 1
      %p568 = por %p566, %p567
      %p569 = scmp.ne.s32.totalorder %s560, %s561
      %p570 = scmp.eq.s32.totalorder %s41, 0
      %p571 = por %p569, %p570
      %p572 = scmp.ne.s32.totalorder %s560, %s561
      %p573 = scmp.eq.s32.totalorder %s42, 1
      %p574 = por %p572, %p573
      %p576 = scmp.ne.s32.totalorder %s561, %s575
      %p577 = scmp.eq.s32.totalorder %s42, 0
      %p578 = por %p576, %p577
      %s580 = sadd.s32 %s579, 1
      %p583 = scmp.eq.s32.totalorder %s36, 1
      %p584 = scmp.ne.s32.totalorder %s579, %s581
      %p585 = scmp.eq.s32.totalorder %s36, 0
      %p586 = por %p584, %p585
      %p587 = scmp.ne.s32.totalorder %s579, %s581
      %p588 = scmp.eq.s32.totalorder %s41, 1
      %p589 = por %p587, %p588
      %p590 = scmp.ne.s32.totalorder %s581, %s582
      %p591 = scmp.eq.s32.totalorder %s41, 0
      %p592 = por %p590, %p591
      %p593 = scmp.ne.s32.totalorder %s581, %s582
      %p594 = scmp.eq.s32.totalorder %s42, 1
      %p595 = por %p593, %p594
      %p597 = scmp.ne.s32.totalorder %s582, %s596
      %p598 = scmp.eq.s32.totalorder %s42, 0
      %p599 = por %p597, %p598
      %s601 = sadd.s32 %s600, 1
      %p604 = scmp.eq.s32.totalorder %s36, 1
      %p605 = scmp.ne.s32.totalorder %s600, %s602
      %p606 = scmp.eq.s32.totalorder %s36, 0
      %p607 = por %p605, %p606
      %p608 = scmp.ne.s32.totalorder %s600, %s602
      %p609 = scmp.eq.s32.totalorder %s41, 1
      %p610 = por %p608, %p609
      %p611 = scmp.ne.s32.totalorder %s602, %s603
      %p612 = scmp.eq.s32.totalorder %s41, 0
      %p613 = por %p611, %p612
      %p614 = scmp.ne.s32.totalorder %s602, %s603
      %p615 = scmp.eq.s32.totalorder %s42, 1
      %p616 = por %p614, %p615
      %p618 = scmp.ne.s32.totalorder %s603, %s617
      %p619 = scmp.eq.s32.totalorder %s42, 0
      %p620 = por %p618, %p619
      %s621 = ssub.s32 %s36, %s43
      %p622 = scmp.eq.s32.totalorder %s621, 0
      %s624 = sadd.s32 %s623, 1
      %s625 = scalar_select %p622, %s623, %s624
      %p628 = pneg %p622
      %p629 = scmp.eq.s32.totalorder %s36, 1
      %p630 = por %p628, %p629
      %p631 = scmp.ne.s32.totalorder %s623, %s626
      %p632 = scmp.eq.s32.totalorder %s36, 0
      %p633 = por %p631, %p632
      %p634 = scmp.ne.s32.totalorder %s623, %s626
      %p635 = scmp.eq.s32.totalorder %s41, 1
      %p636 = por %p634, %p635
      %p637 = scmp.ne.s32.totalorder %s626, %s627
      %p638 = scmp.eq.s32.totalorder %s41, 0
      %p639 = por %p637, %p638
      %p640 = scmp.ne.s32.totalorder %s626, %s627
      %p641 = scmp.eq.s32.totalorder %s42, 1
      %p642 = por %p640, %p641
      %p644 = scmp.ne.s32.totalorder %s627, %s643
      %p645 = scmp.eq.s32.totalorder %s42, 0
      %p646 = por %p644, %p645
      %p647 = scmp.le.s32.totalorder 1, %s36
      %p648 = scmp.lt.s32.totalorder %s36, 3
      %p649 = pnand %p647, %p648
      %p650 = pneg %p649
      // Predicated region
      $region9: #{mmt_forward.3} parent=5 // pred_check
        _
      $region10: #{mmt_forward.3} parent=5 // pred_check_branch
        %652 = sbr.rel (%p649) target = $region12
      $region11: #{mmt_forward.3} parent=5 // pred_region
        %s653 = ssub.s32 %s36, 1
        // Predicated region
        $region13: #{mmt_forward.3} parent=11 // pred_check
          %p654 = pneg %p109
        $region14: #{mmt_forward.3} parent=11 // pred_check_branch
          %656 = sbr.rel (%p654) target = $region16
        $region15: #{mmt_forward.3} parent=11 // pred_region
          _
        $region16: #{mmt_forward.3} parent=11 // pred_fallthru
          _
        // Predicated region
        $region17: #{mmt_forward.3} parent=11 // pred_check
          %p657 = pneg %p130
        $region18: #{mmt_forward.3} parent=11 // pred_check_branch
          %659 = sbr.rel (%p657) target = $region20
        $region19: #{mmt_forward.3} parent=11 // pred_region
          _
        $region20: #{mmt_forward.3} parent=11 // pred_fallthru
          _
        // Predicated region
        $region21: #{mmt_forward.3} parent=11 // pred_check
          %p660 = pneg %p151
        $region22: #{mmt_forward.3} parent=11 // pred_check_branch
          %662 = sbr.rel (%p660) target = $region24
        $region23: #{mmt_forward.3} parent=11 // pred_region
          _
        $region24: #{mmt_forward.3} parent=11 // pred_fallthru
          _
        // Predicated region
        $region25: #{mmt_forward.3} parent=11 // pred_check
          %p663 = pneg %p172
        $region26: #{mmt_forward.3} parent=11 // pred_check_branch
          %665 = sbr.rel (%p663) target = $region28
        $region27: #{mmt_forward.3} parent=11 // pred_region
          _
        $region28: #{mmt_forward.3} parent=11 // pred_fallthru
          _
        // Predicated region
        $region29: #{mmt_forward.3} parent=11 // pred_check
          %p666 = pneg %p193
        $region30: #{mmt_forward.3} parent=11 // pred_check_branch
          %668 = sbr.rel (%p666) target = $region32
        $region31: #{mmt_forward.3} parent=11 // pred_region
          _
        $region32: #{mmt_forward.3} parent=11 // pred_fallthru
          _
        // Predicated region
        $region33: #{mmt_forward.3} parent=11 // pred_check
          %p669 = pneg %p214
        $region34: #{mmt_forward.3} parent=11 // pred_check_branch
          %671 = sbr.rel (%p669) target = $region36
        $region35: #{mmt_forward.3} parent=11 // pred_region
          _
        $region36: #{mmt_forward.3} parent=11 // pred_fallthru
          _
        // Predicated region
        $region37: #{mmt_forward.3} parent=11 // pred_check
          %p672 = pneg %p235
        $region38: #{mmt_forward.3} parent=11 // pred_check_branch
          %674 = sbr.rel (%p672) target = $region40
        $region39: #{mmt_forward.3} parent=11 // pred_region
          _
        $region40: #{mmt_forward.3} parent=11 // pred_fallthru
          _
        // Predicated region
        $region41: #{mmt_forward.3} parent=11 // pred_check
          %p675 = pneg %p256
        $region42: #{mmt_forward.3} parent=11 // pred_check_branch
          %677 = sbr.rel (%p675) target = $region44
        $region43: #{mmt_forward.3} parent=11 // pred_region
          _
        $region44: #{mmt_forward.3} parent=11 // pred_fallthru
          _
        // Predicated region
        $region45: #{mmt_forward.3} parent=11 // pred_check
          %p678 = pneg %p277
        $region46: #{mmt_forward.3} parent=11 // pred_check_branch
          %680 = sbr.rel (%p678) target = $region48
        $region47: #{mmt_forward.3} parent=11 // pred_region
          _
        $region48: #{mmt_forward.3} parent=11 // pred_fallthru
          _
        // Predicated region
        $region49: #{mmt_forward.3} parent=11 // pred_check
          %p681 = pneg %p298
        $region50: #{mmt_forward.3} parent=11 // pred_check_branch
          %683 = sbr.rel (%p681) target = $region52
        $region51: #{mmt_forward.3} parent=11 // pred_region
          _
        $region52: #{mmt_forward.3} parent=11 // pred_fallthru
          _
        // Predicated region
        $region53: #{mmt_forward.3} parent=11 // pred_check
          %p684 = pneg %p319
        $region54: #{mmt_forward.3} parent=11 // pred_check_branch
          %686 = sbr.rel (%p684) target = $region56
        $region55: #{mmt_forward.3} parent=11 // pred_region
          _
        $region56: #{mmt_forward.3} parent=11 // pred_fallthru
          _
        // Predicated region
        $region57: #{mmt_forward.3} parent=11 // pred_check
          %p687 = pneg %p340
        $region58: #{mmt_forward.3} parent=11 // pred_check_branch
          %689 = sbr.rel (%p687) target = $region60
        $region59: #{mmt_forward.3} parent=11 // pred_region
          _
        $region60: #{mmt_forward.3} parent=11 // pred_fallthru
          _
        // Predicated region
        $region61: #{mmt_forward.3} parent=11 // pred_check
          %p690 = pneg %p361
        $region62: #{mmt_forward.3} parent=11 // pred_check_branch
          %692 = sbr.rel (%p690) target = $region64
        $region63: #{mmt_forward.3} parent=11 // pred_region
          _
        $region64: #{mmt_forward.3} parent=11 // pred_fallthru
          _
        // Predicated region
        $region65: #{mmt_forward.3} parent=11 // pred_check
          %p693 = pneg %p382
        $region66: #{mmt_forward.3} parent=11 // pred_check_branch
          %695 = sbr.rel (%p693) target = $region68
        $region67: #{mmt_forward.3} parent=11 // pred_region
          _
        $region68: #{mmt_forward.3} parent=11 // pred_fallthru
          _
        // Predicated region
        $region69: #{mmt_forward.3} parent=11 // pred_check
          %p696 = pneg %p403
        $region70: #{mmt_forward.3} parent=11 // pred_check_branch
          %698 = sbr.rel (%p696) target = $region72
        $region71: #{mmt_forward.3} parent=11 // pred_region
          _
        $region72: #{mmt_forward.3} parent=11 // pred_fallthru
          _
        // Predicated region
        $region73: #{mmt_forward.3} parent=11 // pred_check
          %p699 = pneg %p424
        $region74: #{mmt_forward.3} parent=11 // pred_check_branch
          %701 = sbr.rel (%p699) target = $region76
        $region75: #{mmt_forward.3} parent=11 // pred_region
          _
        $region76: #{mmt_forward.3} parent=11 // pred_fallthru
          _
        // Predicated region
        $region77: #{mmt_forward.3} parent=11 // pred_check
          %p702 = pneg %p445
        $region78: #{mmt_forward.3} parent=11 // pred_check_branch
          %704 = sbr.rel (%p702) target = $region80
        $region79: #{mmt_forward.3} parent=11 // pred_region
          _
        $region80: #{mmt_forward.3} parent=11 // pred_fallthru
          _
        // Predicated region
        $region81: #{mmt_forward.3} parent=11 // pred_check
          %p705 = pneg %p466
        $region82: #{mmt_forward.3} parent=11 // pred_check_branch
          %707 = sbr.rel (%p705) target = $region84
        $region83: #{mmt_forward.3} parent=11 // pred_region
          _
        $region84: #{mmt_forward.3} parent=11 // pred_fallthru
          _
        // Predicated region
        $region85: #{mmt_forward.3} parent=11 // pred_check
          %p708 = pneg %p487
        $region86: #{mmt_forward.3} parent=11 // pred_check_branch
          %710 = sbr.rel (%p708) target = $region88
        $region87: #{mmt_forward.3} parent=11 // pred_region
          _
        $region88: #{mmt_forward.3} parent=11 // pred_fallthru
          _
        // Predicated region
        $region89: #{mmt_forward.3} parent=11 // pred_check
          %p711 = pneg %p508
        $region90: #{mmt_forward.3} parent=11 // pred_check_branch
          %713 = sbr.rel (%p711) target = $region92
        $region91: #{mmt_forward.3} parent=11 // pred_region
          _
        $region92: #{mmt_forward.3} parent=11 // pred_fallthru
          _
        // Predicated region
        $region93: #{mmt_forward.3} parent=11 // pred_check
          %p714 = pneg %p529
        $region94: #{mmt_forward.3} parent=11 // pred_check_branch
          %716 = sbr.rel (%p714) target = $region96
        $region95: #{mmt_forward.3} parent=11 // pred_region
          _
        $region96: #{mmt_forward.3} parent=11 // pred_fallthru
          _
        // Predicated region
        $region97: #{mmt_forward.3} parent=11 // pred_check
          %p717 = pneg %p550
        $region98: #{mmt_forward.3} parent=11 // pred_check_branch
          %719 = sbr.rel (%p717) target = $region100
        $region99: #{mmt_forward.3} parent=11 // pred_region
          _
        $region100: #{mmt_forward.3} parent=11 // pred_fallthru
          _
        // Predicated region
        $region101: #{mmt_forward.3} parent=11 // pred_check
          %p720 = pneg %p571
        $region102: #{mmt_forward.3} parent=11 // pred_check_branch
          %722 = sbr.rel (%p720) target = $region104
        $region103: #{mmt_forward.3} parent=11 // pred_region
          _
        $region104: #{mmt_forward.3} parent=11 // pred_fallthru
          _
        // Predicated region
        $region105: #{mmt_forward.3} parent=11 // pred_check
          %p723 = pneg %p592
        $region106: #{mmt_forward.3} parent=11 // pred_check_branch
          %725 = sbr.rel (%p723) target = $region108
        $region107: #{mmt_forward.3} parent=11 // pred_region
          _
        $region108: #{mmt_forward.3} parent=11 // pred_fallthru
          _
        // Predicated region
        $region109: #{mmt_forward.3} parent=11 // pred_check
          %p726 = pneg %p613
        $region110: #{mmt_forward.3} parent=11 // pred_check_branch
          %728 = sbr.rel (%p726) target = $region112
        $region111: #{mmt_forward.3} parent=11 // pred_region
          _
        $region112: #{mmt_forward.3} parent=11 // pred_fallthru
          _
      $region12: #{mmt_forward.3} parent=5 // pred_fallthru
        _
      %p729 = scmp.lt.s32.totalorder %s36, 2
      // Predicated region
      $region113: #{mmt_forward.3} parent=5 // pred_check
        %p730 = pneg %p729
      $region114: #{mmt_forward.3} parent=5 // pred_check_branch
        %732 = sbr.rel (%p730) target = $region116
      $region115: #{mmt_forward.3} parent=5 // pred_region
        // Predicated region
        $region117: #{mmt_forward.3} parent=115 // pred_check
          %p733 = pneg %p56
        $region118: #{mmt_forward.3} parent=115 // pred_check_branch
          %735 = sbr.rel (%p733) target = $region120
        $region119: #{mmt_forward.3} parent=115 // pred_region
          %p736 = scmp.lt.s32.totalorder %s36, 1
          %s737 = scalar_select %p736, %s36, 1
          %s738 = smul.addr %s737, 3
          %s739 = smul.addr %s738, 4
          %s740 = scalar_lea.vmem %s0, %s739
        $region120: #{mmt_forward.3} parent=115 // pred_fallthru
          _
        // Predicated region
        $region121: #{mmt_forward.3} parent=115 // pred_check
          %p741 = pneg %p82
        $region122: #{mmt_forward.3} parent=115 // pred_check_branch
          %743 = sbr.rel (%p741) target = $region124
        $region123: #{mmt_forward.3} parent=115 // pred_region
          %p744 = scmp.lt.s32.totalorder %s36, 1
          %s745 = scalar_select %p744, %s36, 1
          %s746 = smul.addr %s745, 3
          %s747 = smul.addr %s746, 4
          %s748 = scalar_lea.vmem %s1, %s747
        $region124: #{mmt_forward.3} parent=115 // pred_fallthru
          _
      $region116: #{mmt_forward.3} parent=5 // pred_fallthru
        _
      %p749 = scmp.le.s32.totalorder 1, %s36
      %p750 = scmp.lt.s32.totalorder %s36, 3
      %p751 = pnand %p749, %p750
      %p752 = pneg %p751
      // Predicated region
      $region125: #{mmt_forward.3} parent=5 // pred_check
        _
      $region126: #{mmt_forward.3} parent=5 // pred_check_branch
        %754 = sbr.rel (%p751) target = $region128
      $region127: #{mmt_forward.3} parent=5 // pred_region
        %s755 = ssub.s32 %s36, 1
        %p756 = scmp.lt.s32.totalorder %s41, 1
        %s757 = scalar_select %p756, %s41, 1
        %s758 = smul.addr %s757, 3
        %s759 = smul.addr %s758, 4
        %s760 = scalar_lea.vmem %s0, %s759
        %p761 = pneg %p62
        %p762 = pneg %p59
        %p763 = scmp.lt.s32.totalorder %s41, 1
        %s764 = scalar_select %p763, %s41, 1
        %s765 = smul.addr %s764, 3
        %s766 = smul.addr %s765, 4
        %s767 = scalar_lea.vmem %s1, %s766
        %p768 = pneg %p88
        %p769 = pneg %p85
        %p770 = pneg %p109
        %p771 = pneg %p106
        %p772 = pneg %p130
        %p773 = pneg %p127
        %p774 = pneg %p151
        %p775 = pneg %p148
        %p776 = pneg %p172
        %p777 = pneg %p169
        %p778 = pneg %p193
        %p779 = pneg %p190
        %p780 = pneg %p214
        %p781 = pneg %p211
        %p782 = pneg %p235
        %p783 = pneg %p232
        %p784 = pneg %p256
        %p785 = pneg %p253
        %p786 = pneg %p277
        %p787 = pneg %p274
        %p788 = pneg %p298
        %p789 = pneg %p295
        %p790 = pneg %p319
        %p791 = pneg %p316
        %p792 = pneg %p340
        %p793 = pneg %p337
        %p794 = pneg %p361
        %p795 = pneg %p358
        %p796 = pneg %p382
        %p797 = pneg %p379
        %p798 = pneg %p403
        %p799 = pneg %p400
        %p800 = pneg %p424
        %p801 = pneg %p421
        %p802 = pneg %p445
        %p803 = pneg %p442
        %p804 = pneg %p466
        %p805 = pneg %p463
        %p806 = pneg %p487
        %p807 = pneg %p484
        %p808 = pneg %p508
        %p809 = pneg %p505
        %p810 = pneg %p529
        %p811 = pneg %p526
        %p812 = pneg %p550
        %p813 = pneg %p547
        %p814 = pneg %p571
        %p815 = pneg %p568
        %p816 = pneg %p592
        %p817 = pneg %p589
        %p818 = pneg %p613
        %p819 = pneg %p610
        %p820 = pneg %p639
        %p821 = pneg %p636
        %s822 = sand.u32 %s626, 1
        %s823 = scalar_lea.sflag [#allocation3], %s822
        %s824 = sand.u32 %s626, 1
        %s825 = scalar_lea.vmem [#allocation2], %s824
        %p826 = scmp.lt.s32.totalorder %s41, 1
        %s827 = scalar_select %p826, %s41, 1
        %s828 = smul.addr %s827, 3
        %s829 = smul.addr %s828, 4
        %s830 = scalar_lea.vmem %s0, %s829
        %p831 = scmp.lt.s32.totalorder %s41, 1
        %s832 = scalar_select %p831, %s41, 1
        %s833 = smul.addr %s832, 3
        %s834 = smul.addr %s833, 4
        %s835 = scalar_lea.vmem %s1, %s834
        %v837 = vld [vmem:[%s830] sm:$0xff]
        %v838 = vld [vmem:[%s830 + $0x8] sm:$0xf]
        %v839 = vld [vmem:[%s2] sm:$0xf]
        %v840 = vld [vmem:[%s2 + $0x4] sm:$0xf]
        %v841 = vld [vmem:[%s2 + $0x8] sm:$0xf]
        %v842 = vld [vmem:[%s2 + $0xc] sm:$0xf]
        %v843 = vld [vmem:[%s2 + $0x10] sm:$0xf]
        %v844 = vld [vmem:[%s2 + $0x14] sm:$0xf]
        %v845 = vld [vmem:[%s2 + $0x18] sm:$0xf]
        %v846 = vld [vmem:[%s2 + $0x1c] sm:$0xf]
        %v847 = vld [vmem:[%s2 + $0x20] sm:$0xf]
        %v848 = vld [vmem:[%s2 + $0x24] sm:$0xf]
        %v849 = vld [vmem:[%s2 + $0x28] sm:$0xf]
        %v850 = vld [vmem:[%s2 + $0x2c] sm:$0xf]
        %v851 = vld [vmem:[%s2 + $0x30] sm:$0xf]
        %v852 = vld [vmem:[%s2 + $0x34] sm:$0xf]
        %v853 = vld [vmem:[%s2 + $0x38] sm:$0xf]
        %v854 = vld [vmem:[%s2 + $0x3c] sm:$0xf]
        %v855 = vld [vmem:[%s2 + $0x40] sm:$0xf]
        %v856 = vld [vmem:[%s2 + $0x44] sm:$0xf]
        %v857 = vld [vmem:[%s2 + $0x48] sm:$0xf]
        %v858 = vld [vmem:[%s2 + $0x4c] sm:$0xf]
        %v859 = vld [vmem:[%s2 + $0x50] sm:$0xf]
        %v860 = vld [vmem:[%s2 + $0x54] sm:$0xf]
        %v861 = vld [vmem:[%s2 + $0x58] sm:$0xf]
        %v862 = vld [vmem:[%s2 + $0x5c] sm:$0xf]
        %v863 = vld [vmem:[%s2 + $0x60] sm:$0xf]
        %v864 = vld [vmem:[%s2 + $0x64] sm:$0xf]
        %v865 = vld [vmem:[%s2 + $0x68] sm:$0xf]
        %v866 = vld [vmem:[%s2 + $0x6c] sm:$0xf]
        %v867 = vld [vmem:[%s2 + $0x70] sm:$0xf]
        %v868 = vld [vmem:[%s2 + $0x74] sm:$0xf]
        %v869 = vld [vmem:[%s2 + $0x78] sm:$0xf]
        %v870 = vld [vmem:[%s2 + $0x7c] sm:$0xf]
        %v871 = vld [vmem:[%s2 + $0x80] sm:$0xf]
        %v872 = vld [vmem:[%s2 + $0x84] sm:$0xf]
        %v873 = vld [vmem:[%s2 + $0x88] sm:$0xf]
        %v874 = vld [vmem:[%s2 + $0x8c] sm:$0xf]
        %v875 = vld [vmem:[%s2 + $0x90] sm:$0xf]
        %v876 = vld [vmem:[%s2 + $0x94] sm:$0xf]
        %v877 = vld [vmem:[%s2 + $0x98] sm:$0xf]
        %v878 = vld [vmem:[%s2 + $0x9c] sm:$0xf]
        %v879 = vld [vmem:[%s2 + $0xa0] sm:$0xf]
        %v880 = vld [vmem:[%s2 + $0xa4] sm:$0xf]
        %v881 = vld [vmem:[%s2 + $0xa8] sm:$0xf]
        %v882 = vld [vmem:[%s2 + $0xac] sm:$0xf]
        %v883 = vld [vmem:[%s2 + $0xb0] sm:$0xf]
        %v884 = vld [vmem:[%s2 + $0xb4] sm:$0xf]
        %v885 = vld [vmem:[%s2 + $0xb8] sm:$0xf]
        %v886 = vld [vmem:[%s2 + $0xbc] sm:$0xf]
        %v887 = vld [vmem:[%s3] sm:$0x1]
        %v889 = vlaneseq
        %v890 = vshrl.u32 %v889, 7
        %v891 = vsub.s32 0, %v890
        %v892 = vrot.slane %v887, %v891
        %v896 = vunpack.c.l.b16 %v837
        %v897 = vunpack.c.h.b16 %v837
        %v898 = vunpack.c.l.b16 %v838
        %v899 = vpack.c.b16 %v896, %v896
        %v900 = vpack.c.b16 %v897, %v897
        %v901 = vpack.c.b16 %v898, %v898
        %v953 = vunpack.c.l.b16 %v839
        %v954 = vunpack.c.l.b16 %v840
        %v955 = vunpack.c.l.b16 %v841
        %v956 = vunpack.c.l.b16 %v842
        %v957 = vunpack.c.l.b16 %v843
        %v958 = vunpack.c.l.b16 %v844
        %v959 = vunpack.c.l.b16 %v845
        %v960 = vunpack.c.l.b16 %v846
        %v961 = vunpack.c.l.b16 %v847
        %v962 = vunpack.c.l.b16 %v848
        %v963 = vunpack.c.l.b16 %v849
        %v964 = vunpack.c.l.b16 %v850
        %v965 = vunpack.c.l.b16 %v851
        %v966 = vunpack.c.l.b16 %v852
        %v967 = vunpack.c.l.b16 %v853
        %v968 = vunpack.c.l.b16 %v854
        %v969 = vunpack.c.l.b16 %v855
        %v970 = vunpack.c.l.b16 %v856
        %v971 = vunpack.c.l.b16 %v857
        %v972 = vunpack.c.l.b16 %v858
        %v973 = vunpack.c.l.b16 %v859
        %v974 = vunpack.c.l.b16 %v860
        %v975 = vunpack.c.l.b16 %v861
        %v976 = vunpack.c.l.b16 %v862
        %v977 = vunpack.c.l.b16 %v863
        %v978 = vunpack.c.l.b16 %v864
        %v979 = vunpack.c.l.b16 %v865
        %v980 = vunpack.c.l.b16 %v866
        %v981 = vunpack.c.l.b16 %v867
        %v982 = vunpack.c.l.b16 %v868
        %v983 = vunpack.c.l.b16 %v869
        %v984 = vunpack.c.l.b16 %v870
        %v985 = vunpack.c.l.b16 %v871
        %v986 = vunpack.c.l.b16 %v872
        %v987 = vunpack.c.l.b16 %v873
        %v988 = vunpack.c.l.b16 %v874
        %v989 = vunpack.c.l.b16 %v875
        %v990 = vunpack.c.l.b16 %v876
        %v991 = vunpack.c.l.b16 %v877
        %v992 = vunpack.c.l.b16 %v878
        %v993 = vunpack.c.l.b16 %v879
        %v994 = vunpack.c.l.b16 %v880
        %v995 = vunpack.c.l.b16 %v881
        %v996 = vunpack.c.l.b16 %v882
        %v997 = vunpack.c.l.b16 %v883
        %v998 = vunpack.c.l.b16 %v884
        %v999 = vunpack.c.l.b16 %v885
        %v1000 = vunpack.c.l.b16 %v886
        %v1001 = vpack.c.b16 %v954, %v953
        %v1002 = vpack.c.b16 %v956, %v955
        %v1003 = vpack.c.b16 %v958, %v957
        %v1004 = vpack.c.b16 %v960, %v959
        %v1005 = vpack.c.b16 %v962, %v961
        %v1006 = vpack.c.b16 %v964, %v963
        %v1007 = vpack.c.b16 %v966, %v965
        %v1008 = vpack.c.b16 %v968, %v967
        %v1009 = vpack.c.b16 %v970, %v969
        %v1010 = vpack.c.b16 %v972, %v971
        %v1011 = vpack.c.b16 %v974, %v973
        %v1012 = vpack.c.b16 %v976, %v975
        %v1013 = vpack.c.b16 %v978, %v977
        %v1014 = vpack.c.b16 %v980, %v979
        %v1015 = vpack.c.b16 %v982, %v981
        %v1016 = vpack.c.b16 %v984, %v983
        %v1017 = vpack.c.b16 %v986, %v985
        %v1018 = vpack.c.b16 %v988, %v987
        %v1019 = vpack.c.b16 %v990, %v989
        %v1020 = vpack.c.b16 %v992, %v991
        %v1021 = vpack.c.b16 %v994, %v993
        %v1022 = vpack.c.b16 %v996, %v995
        %v1023 = vpack.c.b16 %v998, %v997
        %v1024 = vpack.c.b16 %v1000, %v999
        %1049 = vmatprep.subr.bf16.mxu0 0
        %1050 = vmatpush1.bf16.msra.mxu0 %v1008
        %1051 = vmatprep.subr.bf16.mxu0 0
        %1052 = vmatpush1.bf16.msra.mxu0 %v1007
        %1053 = vmatprep.subr.bf16.mxu0 0
        %1054 = vmatpush1.bf16.msra.mxu0 %v1006
        %1055 = vmatprep.subr.bf16.mxu0 0
        %1056 = vmatpush1.bf16.msra.mxu0 %v1005
        %1057 = vmatprep.subr.bf16.mxu0 0
        %1058 = vmatpush1.bf16.msra.mxu0 %v1004
        %1059 = vmatprep.subr.bf16.mxu0 0
        %1060 = vmatpush1.bf16.msra.mxu0 %v1003
        %1061 = vmatprep.subr.bf16.mxu0 0
        %1062 = vmatpush1.bf16.msra.mxu0 %v1002
        %1063 = vmatprep.subr.bf16.mxu0 0
        %1064 = vmatpush1.bf16.msra.mxu0 %v1001
        %1065 = vmatprep.subr.bf16.mxu0 0
        %1066 = vmatpush2.bf16.msra.mxu0 %v1016
        %1067 = vmatprep.subr.bf16.mxu0 0
        %1068 = vmatpush2.bf16.msra.mxu0 %v1015
        %1069 = vmatprep.subr.bf16.mxu0 0
        %1070 = vmatpush2.bf16.msra.mxu0 %v1014
        %1071 = vmatprep.subr.bf16.mxu0 0
        %1072 = vmatpush2.bf16.msra.mxu0 %v1013
        %1073 = vmatprep.subr.bf16.mxu0 0
        %1074 = vmatpush2.bf16.msra.mxu0 %v1012
        %1075 = vmatprep.subr.bf16.mxu0 0
        %1076 = vmatpush2.bf16.msra.mxu0 %v1011
        %1077 = vmatprep.subr.bf16.mxu0 0
        %1078 = vmatpush2.bf16.msra.mxu0 %v1010
        %1079 = vmatprep.subr.bf16.mxu0 0
        %1080 = vmatpush2.bf16.msra.mxu0 %v1009
        %1081 = vmatprep.mubr.bf16.mxu0 %v900
        %1082 = vmatmul.mubr.bf16.gmra.mxu0 %v899
        %v1083 = vpop.f32.mrf.mxu0
        %v1084 = vadd.f32 %v892, %v1083
        %v1085 = vpop.f32.mrf.mxu0
        %v1086 = vpop.f32.mrf.mxu0
        %v1087 = vpop.f32.mrf.mxu0
        %1088 = vdwg.mxu0
        %1089 = vmatprep.subr.bf16.mxu0 0
        %1090 = vmatpush1.bf16.msra.mxu0 %v1024
        %1091 = vmatprep.subr.bf16.mxu0 0
        %1092 = vmatpush1.bf16.msra.mxu0 %v1023
        %1093 = vmatprep.subr.bf16.mxu0 0
        %1094 = vmatpush1.bf16.msra.mxu0 %v1022
        %1095 = vmatprep.subr.bf16.mxu0 0
        %1096 = vmatpush1.bf16.msra.mxu0 %v1021
        %1097 = vmatprep.subr.bf16.mxu0 0
        %1098 = vmatpush1.bf16.msra.mxu0 %v1020
        %1099 = vmatprep.subr.bf16.mxu0 0
        %1100 = vmatpush1.bf16.msra.mxu0 %v1019
        %1101 = vmatprep.subr.bf16.mxu0 0
        %1102 = vmatpush1.bf16.msra.mxu0 %v1018
        %1103 = vmatprep.subr.bf16.mxu0 0
        %1104 = vmatpush1.bf16.msra.mxu0 %v1017
        %1105 = vmatprep.subr.bf16.mxu0 0
        %1106 = vmatpush2.bf16.msra.mxu0 0
        %1107 = vmatprep.subr.bf16.mxu0 0
        %1108 = vmatpush2.bf16.msra.mxu0 0
        %1109 = vmatprep.subr.bf16.mxu0 0
        %1110 = vmatpush2.bf16.msra.mxu0 0
        %1111 = vmatprep.subr.bf16.mxu0 0
        %1112 = vmatpush2.bf16.msra.mxu0 0
        %1113 = vmatprep.subr.bf16.mxu0 0
        %1114 = vmatpush2.bf16.msra.mxu0 0
        %1115 = vmatprep.subr.bf16.mxu0 0
        %1116 = vmatpush2.bf16.msra.mxu0 0
        %1117 = vmatprep.subr.bf16.mxu0 0
        %1118 = vmatpush2.bf16.msra.mxu0 0
        %1119 = vmatprep.subr.bf16.mxu0 0
        %1120 = vmatpush2.bf16.msra.mxu0 0
        %1121 = vmatprep.mubr.bf16.mxu0 0
        %1122 = vmatmul.mubr.bf16.gmra.mxu0 %v901
        %v1123 = vpop.f32.mrf.mxu0
        %v1124 = vadd.f32 %v1084, %v1123
        %v1125 = vpop.f32.mrf.mxu0
        %v1126 = vpop.f32.mrf.mxu0
        %v1127 = vpop.f32.mrf.mxu0
        %1128 = vdwg.mxu0
        %vm1129 = vcmp.gt.f32.partialorder %v1124, 0.0
        %v1130 = vmul.f32 %v1124, 0.1
        %v1131 = vsel %vm1129, %v1124, %v1130
        %v1132 = vpack.c.bf16 %v1131, %v1131
        %v1133 = vld [vmem:[%s4] sm:$0xf]
        %v1134 = vld [vmem:[%s4 + $0x4] sm:$0xf]
        %v1135 = vld [vmem:[%s4 + $0x8] sm:$0xf]
        %v1136 = vld [vmem:[%s4 + $0xc] sm:$0xf]
        %v1137 = vld [vmem:[%s4 + $0x10] sm:$0xf]
        %v1138 = vld [vmem:[%s4 + $0x14] sm:$0xf]
        %v1139 = vld [vmem:[%s4 + $0x18] sm:$0xf]
        %v1140 = vld [vmem:[%s4 + $0x1c] sm:$0xf]
        %v1141 = vld [vmem:[%s4 + $0x20] sm:$0xf]
        %v1142 = vld [vmem:[%s4 + $0x24] sm:$0xf]
        %v1143 = vld [vmem:[%s4 + $0x28] sm:$0xf]
        %v1144 = vld [vmem:[%s4 + $0x2c] sm:$0xf]
        %v1145 = vld [vmem:[%s4 + $0x30] sm:$0xf]
        %v1146 = vld [vmem:[%s4 + $0x34] sm:$0xf]
        %v1147 = vld [vmem:[%s4 + $0x38] sm:$0xf]
        %v1148 = vld [vmem:[%s4 + $0x3c] sm:$0xf]
        %v1149 = vld [vmem:[%s5] sm:$0x1]
        %v1151 = vlaneseq
        %v1152 = vshrl.u32 %v1151, 7
        %v1153 = vsub.s32 0, %v1152
        %v1154 = vrot.slane %v1149, %v1153
        %v1172 = vunpack.c.l.b16 %v1133
        %v1173 = vunpack.c.l.b16 %v1134
        %v1174 = vunpack.c.l.b16 %v1135
        %v1175 = vunpack.c.l.b16 %v1136
        %v1176 = vunpack.c.l.b16 %v1137
        %v1177 = vunpack.c.l.b16 %v1138
        %v1178 = vunpack.c.l.b16 %v1139
        %v1179 = vunpack.c.l.b16 %v1140
        %v1180 = vunpack.c.l.b16 %v1141
        %v1181 = vunpack.c.l.b16 %v1142
        %v1182 = vunpack.c.l.b16 %v1143
        %v1183 = vunpack.c.l.b16 %v1144
        %v1184 = vunpack.c.l.b16 %v1145
        %v1185 = vunpack.c.l.b16 %v1146
        %v1186 = vunpack.c.l.b16 %v1147
        %v1187 = vunpack.c.l.b16 %v1148
        %v1188 = vpack.c.b16 %v1173, %v1172
        %v1189 = vpack.c.b16 %v1175, %v1174
        %v1190 = vpack.c.b16 %v1177, %v1176
        %v1191 = vpack.c.b16 %v1179, %v1178
        %v1192 = vpack.c.b16 %v1181, %v1180
        %v1193 = vpack.c.b16 %v1183, %v1182
        %v1194 = vpack.c.b16 %v1185, %v1184
        %v1195 = vpack.c.b16 %v1187, %v1186
        %1204 = vmatprep.subr.bf16.mxu0 0
        %1205 = vmatpush1.bf16.msra.mxu0 %v1195
        %1206 = vmatprep.subr.bf16.mxu0 0
        %1207 = vmatpush1.bf16.msra.mxu0 %v1194
        %1208 = vmatprep.subr.bf16.mxu0 0
        %1209 = vmatpush1.bf16.msra.mxu0 %v1193
        %1210 = vmatprep.subr.bf16.mxu0 0
        %1211 = vmatpush1.bf16.msra.mxu0 %v1192
        %1212 = vmatprep.subr.bf16.mxu0 0
        %1213 = vmatpush1.bf16.msra.mxu0 %v1191
        %1214 = vmatprep.subr.bf16.mxu0 0
        %1215 = vmatpush1.bf16.msra.mxu0 %v1190
        %1216 = vmatprep.subr.bf16.mxu0 0
        %1217 = vmatpush1.bf16.msra.mxu0 %v1189
        %1218 = vmatprep.subr.bf16.mxu0 0
        %1219 = vmatpush1.bf16.msra.mxu0 %v1188
        %1220 = vmatprep.subr.bf16.mxu0 0
        %1221 = vmatpush2.bf16.msra.mxu0 0
        %1222 = vmatprep.subr.bf16.mxu0 0
        %1223 = vmatpush2.bf16.msra.mxu0 0
        %1224 = vmatprep.subr.bf16.mxu0 0
        %1225 = vmatpush2.bf16.msra.mxu0 0
        %1226 = vmatprep.subr.bf16.mxu0 0
        %1227 = vmatpush2.bf16.msra.mxu0 0
        %1228 = vmatprep.subr.bf16.mxu0 0
        %1229 = vmatpush2.bf16.msra.mxu0 0
        %1230 = vmatprep.subr.bf16.mxu0 0
        %1231 = vmatpush2.bf16.msra.mxu0 0
        %1232 = vmatprep.subr.bf16.mxu0 0
        %1233 = vmatpush2.bf16.msra.mxu0 0
        %1234 = vmatprep.subr.bf16.mxu0 0
        %1235 = vmatpush2.bf16.msra.mxu0 0
        %1236 = vmatprep.mubr.bf16.mxu0 0
        %1237 = vmatmul.mubr.bf16.gmra.mxu0 %v1132
        %v1238 = vpop.f32.mrf.mxu0
        %v1239 = vadd.f32 %v1154, %v1238
        %v1240 = vpop.f32.mrf.mxu0
        %v1241 = vpop.f32.mrf.mxu0
        %v1242 = vpop.f32.mrf.mxu0
        %1243 = vdwg.mxu0
        %v1244 = vld [vmem:[%s835] sm:$0xf]
        %v1245 = vld [vmem:[%s835 + $0x4] sm:$0xf]
        %v1246 = vld [vmem:[%s835 + $0x8] sm:$0xf]
        %v1247 = vunpack.c.l.bf16 %v1244
        %v1248 = vunpack.c.l.bf16 %v1245
        %v1249 = vunpack.c.l.bf16 %v1246
        %v1250 = vld [vmem:[%s7] sm:$0xff]
        %v1251 = vld [vmem:[%s7 + $0x8] sm:$0xff]
        %v1252 = vld [vmem:[%s7 + $0x10] sm:$0xff]
        %v1253 = vadd.f32 %v1247, %v1250
        %v1254 = vadd.f32 %v1248, %v1251
        %v1255 = vadd.f32 %v1249, %v1252
        %v1256 = vld [vmem:[%s6] sm:$0x1]
        %v1257 = vld [vmem:[%s8] sm:$0xff]
        %v1258 = vadd.f32 %v1239, %v1257
        %v1259 = vld [vmem:[%s9] sm:$0x1]
        %v1260 = vld [vmem:[%s10] sm:$0x1]
        %1261 = vadd.xlane.f32.xlu0 %v1258
        %v1262 = vpop.xlane.xlu0 %1261
        %v1263 = vrcp.pop 128.0
        %v1264 = vmul.f32 %v1262, %v1263
        %v1265 = vsub.f32 %v1258, %v1264
        %v1266 = vmul.f32 %v1265, %v1265
        %1267 = vadd.xlane.f32.xlu0 %v1266
        %v1268 = vpop.xlane.xlu0 %1267
        %v1269 = vmul.f32 %v1268, %v1263
        %v1270 = vadd.f32 %v1269, 1e-05
        %v1271 = vrsqrt.pop %v1270
        %v1272 = vmul.f32 %v1265, %v1271
        %v1274 = vlaneseq
        %v1275 = vshrl.u32 %v1274, 7
        %v1276 = vsub.s32 0, %v1275
        %v1277 = vrot.slane %v1259, %v1276
        %v1279 = vmul.f32 %v1272, %v1277
        %v1281 = vlaneseq
        %v1282 = vshrl.u32 %v1281, 7
        %v1283 = vsub.s32 0, %v1282
        %v1284 = vrot.slane %v1260, %v1283
        %v1286 = vadd.f32 %v1279, %v1284
        %v1287 = vpack.c.bf16 %v1286, %v1286
        %v1288 = vld [vmem:[%s11] sm:$0xf]
        %v1289 = vld [vmem:[%s11 + $0x4] sm:$0xf]
        %v1290 = vld [vmem:[%s11 + $0x8] sm:$0xf]
        %v1291 = vld [vmem:[%s11 + $0xc] sm:$0xf]
        %v1292 = vld [vmem:[%s11 + $0x10] sm:$0xf]
        %v1293 = vld [vmem:[%s11 + $0x14] sm:$0xf]
        %v1294 = vld [vmem:[%s11 + $0x18] sm:$0xf]
        %v1295 = vld [vmem:[%s11 + $0x1c] sm:$0xf]
        %v1296 = vld [vmem:[%s11 + $0x20] sm:$0xf]
        %v1297 = vld [vmem:[%s11 + $0x24] sm:$0xf]
        %v1298 = vld [vmem:[%s11 + $0x28] sm:$0xf]
        %v1299 = vld [vmem:[%s11 + $0x2c] sm:$0xf]
        %v1300 = vld [vmem:[%s11 + $0x30] sm:$0xf]
        %v1301 = vld [vmem:[%s11 + $0x34] sm:$0xf]
        %v1302 = vld [vmem:[%s11 + $0x38] sm:$0xf]
        %v1303 = vld [vmem:[%s11 + $0x3c] sm:$0xf]
        %v1304 = vld [vmem:[%s12] sm:$0x1]
        %v1306 = vlaneseq
        %v1307 = vshrl.u32 %v1306, 7
        %v1308 = vsub.s32 0, %v1307
        %v1309 = vrot.slane %v1304, %v1308
        %v1327 = vunpack.c.l.b16 %v1288
        %v1328 = vunpack.c.l.b16 %v1289
        %v1329 = vunpack.c.l.b16 %v1290
        %v1330 = vunpack.c.l.b16 %v1291
        %v1331 = vunpack.c.l.b16 %v1292
        %v1332 = vunpack.c.l.b16 %v1293
        %v1333 = vunpack.c.l.b16 %v1294
        %v1334 = vunpack.c.l.b16 %v1295
        %v1335 = vunpack.c.l.b16 %v1296
        %v1336 = vunpack.c.l.b16 %v1297
        %v1337 = vunpack.c.l.b16 %v1298
        %v1338 = vunpack.c.l.b16 %v1299
        %v1339 = vunpack.c.l.b16 %v1300
        %v1340 = vunpack.c.l.b16 %v1301
        %v1341 = vunpack.c.l.b16 %v1302
        %v1342 = vunpack.c.l.b16 %v1303
        %v1343 = vpack.c.b16 %v1328, %v1327
        %v1344 = vpack.c.b16 %v1330, %v1329
        %v1345 = vpack.c.b16 %v1332, %v1331
        %v1346 = vpack.c.b16 %v1334, %v1333
        %v1347 = vpack.c.b16 %v1336, %v1335
        %v1348 = vpack.c.b16 %v1338, %v1337
        %v1349 = vpack.c.b16 %v1340, %v1339
        %v1350 = vpack.c.b16 %v1342, %v1341
        %1359 = vmatprep.subr.bf16.mxu0 0
        %1360 = vmatpush1.bf16.msra.mxu0 %v1350
        %1361 = vmatprep.subr.bf16.mxu0 0
        %1362 = vmatpush1.bf16.msra.mxu0 %v1349
        %1363 = vmatprep.subr.bf16.mxu0 0
        %1364 = vmatpush1.bf16.msra.mxu0 %v1348
        %1365 = vmatprep.subr.bf16.mxu0 0
        %1366 = vmatpush1.bf16.msra.mxu0 %v1347
        %1367 = vmatprep.subr.bf16.mxu0 0
        %1368 = vmatpush1.bf16.msra.mxu0 %v1346
        %1369 = vmatprep.subr.bf16.mxu0 0
        %1370 = vmatpush1.bf16.msra.mxu0 %v1345
        %1371 = vmatprep.subr.bf16.mxu0 0
        %1372 = vmatpush1.bf16.msra.mxu0 %v1344
        %1373 = vmatprep.subr.bf16.mxu0 0
        %1374 = vmatpush1.bf16.msra.mxu0 %v1343
        %1375 = vmatprep.subr.bf16.mxu0 0
        %1376 = vmatpush2.bf16.msra.mxu0 0
        %1377 = vmatprep.subr.bf16.mxu0 0
        %1378 = vmatpush2.bf16.msra.mxu0 0
        %1379 = vmatprep.subr.bf16.mxu0 0
        %1380 = vmatpush2.bf16.msra.mxu0 0
        %1381 = vmatprep.subr.bf16.mxu0 0
        %1382 = vmatpush2.bf16.msra.mxu0 0
        %1383 = vmatprep.subr.bf16.mxu0 0
        %1384 = vmatpush2.bf16.msra.mxu0 0
        %1385 = vmatprep.subr.bf16.mxu0 0
        %1386 = vmatpush2.bf16.msra.mxu0 0
        %1387 = vmatprep.subr.bf16.mxu0 0
        %1388 = vmatpush2.bf16.msra.mxu0 0
        %1389 = vmatprep.subr.bf16.mxu0 0
        %1390 = vmatpush2.bf16.msra.mxu0 0
        %1391 = vmatprep.mubr.bf16.mxu0 0
        %1392 = vmatmul.mubr.bf16.gmra.mxu0 %v1287
        %v1393 = vpop.f32.mrf.mxu0
        %v1394 = vadd.f32 %v1309, %v1393
        %v1395 = vpop.f32.mrf.mxu0
        %v1396 = vpop.f32.mrf.mxu0
        %v1397 = vpop.f32.mrf.mxu0
        %1398 = vdwg.mxu0
        %v1399 = vld [vmem:[%s13] sm:$0x1]
        %v1400 = vld [vmem:[%s14] sm:$0x1]
        %1401 = vadd.xlane.f32.xlu0 %v1253
        %v1402 = vpop.xlane.xlu0 %1401
        %1403 = vadd.xlane.f32.xlu0 %v1254
        %v1404 = vpop.xlane.xlu0 %1403
        %1405 = vadd.xlane.f32.xlu0 %v1255
        %v1406 = vpop.xlane.xlu0 %1405
        %vm1407 = vcmask 1040384
        %v1408 = vsel %vm1407, %v1256, 0.0
        %1409 = vadd.xlane.f32.xlu0 %v1408
        %v1410 = vpop.xlane.xlu0 %1409
        %v1411 = vmul.f32 %v1402, %v1263
        %v1412 = vmul.f32 %v1404, %v1263
        %v1413 = vmul.f32 %v1406, %v1263
        %v1414 = vmul.f32 %v1410, %v1263
        %v1415 = vsub.f32 %v1253, %v1411
        %v1416 = vsub.f32 %v1254, %v1412
        %v1417 = vsub.f32 %v1255, %v1413
        %v1418 = vsub.f32 %v1256, %v1414
        %v1419 = vmul.f32 %v1415, %v1415
        %v1420 = vmul.f32 %v1416, %v1416
        %v1421 = vmul.f32 %v1417, %v1417
        %v1422 = vmul.f32 %v1418, %v1418
        %1423 = vadd.xlane.f32.xlu0 %v1419
        %v1424 = vpop.xlane.xlu0 %1423
        %1425 = vadd.xlane.f32.xlu0 %v1420
        %v1426 = vpop.xlane.xlu0 %1425
        %1427 = vadd.xlane.f32.xlu0 %v1421
        %v1428 = vpop.xlane.xlu0 %1427
        %v1429 = vsel %vm1407, %v1422, 0.0
        %1430 = vadd.xlane.f32.xlu0 %v1429
        %v1431 = vpop.xlane.xlu0 %1430
        %v1432 = vmul.f32 %v1424, %v1263
        %v1433 = vmul.f32 %v1426, %v1263
        %v1434 = vmul.f32 %v1428, %v1263
        %v1435 = vmul.f32 %v1431, %v1263
        %v1436 = vadd.f32 %v1432, 1e-05
        %v1437 = vadd.f32 %v1433, 1e-05
        %v1438 = vadd.f32 %v1434, 1e-05
        %v1439 = vadd.f32 %v1435, 1e-05
        %v1440 = vrsqrt.pop %v1436
        %v1441 = vrsqrt.pop %v1437
        %v1442 = vrsqrt.pop %v1438
        %v1443 = vrsqrt.pop %v1439
        %v1444 = vmul.f32 %v1415, %v1440
        %v1445 = vmul.f32 %v1416, %v1441
        %v1446 = vmul.f32 %v1417, %v1442
        %v1447 = vmul.f32 %v1418, %v1443
        %v1449 = vlaneseq
        %v1450 = vshrl.u32 %v1449, 7
        %v1451 = vsub.s32 0, %v1450
        %v1452 = vrot.slane %v1399, %v1451
        %v1454 = vmul.f32 %v1444, %v1452
        %v1455 = vmul.f32 %v1445, %v1452
        %v1456 = vmul.f32 %v1446, %v1452
        %v1457 = vmul.f32 %v1447, %v1452
        %v1459 = vlaneseq
        %v1460 = vshrl.u32 %v1459, 7
        %v1461 = vsub.s32 0, %v1460
        %v1462 = vrot.slane %v1400, %v1461
        %v1464 = vadd.f32 %v1454, %v1462
        %v1465 = vadd.f32 %v1455, %v1462
        %v1466 = vadd.f32 %v1456, %v1462
        %v1467 = vadd.f32 %v1457, %v1462
        %v1468 = vpack.c.bf16 %v1465, %v1464
        %v1469 = vpack.c.bf16 %v1467, %v1466
        %v1470 = vld [vmem:[%s15] sm:$0xff]
        %v1471 = vld [vmem:[%s15 + $0x8] sm:$0xff]
        %v1472 = vld [vmem:[%s15 + $0x10] sm:$0xff]
        %v1473 = vld [vmem:[%s15 + $0x18] sm:$0xff]
        %v1474 = vld [vmem:[%s15 + $0x20] sm:$0xff]
        %v1475 = vld [vmem:[%s15 + $0x28] sm:$0xff]
        %v1476 = vld [vmem:[%s15 + $0x30] sm:$0xff]
        %v1477 = vld [vmem:[%s15 + $0x38] sm:$0xff]
        %v1478 = vld [vmem:[%s15 + $0x40] sm:$0xff]
        %v1479 = vld [vmem:[%s15 + $0x48] sm:$0xff]
        %v1480 = vld [vmem:[%s15 + $0x50] sm:$0xff]
        %v1481 = vld [vmem:[%s15 + $0x58] sm:$0xff]
        %v1482 = vld [vmem:[%s15 + $0x60] sm:$0xff]
        %v1483 = vld [vmem:[%s15 + $0x68] sm:$0xff]
        %v1484 = vld [vmem:[%s15 + $0x70] sm:$0xff]
        %v1485 = vld [vmem:[%s15 + $0x78] sm:$0xff]
        %v1486 = vld [vmem:[%s16] sm:$0x3]
        %v1488 = vlaneseq
        %v1489 = vshrl.u32 %v1488, 7
        %v1490 = vsub.s32 0, %v1489
        %v1491 = vrot.slane %v1486, %v1490
        %v1492 = vlaneseq
        %v1493 = vshrl.u32 %v1492, 7
        %v1494 = vsub.s32 1, %v1493
        %v1495 = vrot.slane %v1486, %v1494
        %v1514 = vunpack.c.l.b16 %v1470
        %v1515 = vunpack.c.h.b16 %v1470
        %v1516 = vunpack.c.l.b16 %v1471
        %v1517 = vunpack.c.h.b16 %v1471
        %v1518 = vunpack.c.l.b16 %v1472
        %v1519 = vunpack.c.h.b16 %v1472
        %v1520 = vunpack.c.l.b16 %v1473
        %v1521 = vunpack.c.h.b16 %v1473
        %v1522 = vunpack.c.l.b16 %v1474
        %v1523 = vunpack.c.h.b16 %v1474
        %v1524 = vunpack.c.l.b16 %v1475
        %v1525 = vunpack.c.h.b16 %v1475
        %v1526 = vunpack.c.l.b16 %v1476
        %v1527 = vunpack.c.h.b16 %v1476
        %v1528 = vunpack.c.l.b16 %v1477
        %v1529 = vunpack.c.h.b16 %v1477
        %v1530 = vunpack.c.l.b16 %v1478
        %v1531 = vunpack.c.h.b16 %v1478
        %v1532 = vunpack.c.l.b16 %v1479
        %v1533 = vunpack.c.h.b16 %v1479
        %v1534 = vunpack.c.l.b16 %v1480
        %v1535 = vunpack.c.h.b16 %v1480
        %v1536 = vunpack.c.l.b16 %v1481
        %v1537 = vunpack.c.h.b16 %v1481
        %v1538 = vunpack.c.l.b16 %v1482
        %v1539 = vunpack.c.h.b16 %v1482
        %v1540 = vunpack.c.l.b16 %v1483
        %v1541 = vunpack.c.h.b16 %v1483
        %v1542 = vunpack.c.l.b16 %v1484
        %v1543 = vunpack.c.h.b16 %v1484
        %v1544 = vunpack.c.l.b16 %v1485
        %v1545 = vunpack.c.h.b16 %v1485
        %v1546 = vpack.c.b16 %v1516, %v1514
        %v1547 = vpack.c.b16 %v1517, %v1515
        %v1548 = vpack.c.b16 %v1520, %v1518
        %v1549 = vpack.c.b16 %v1521, %v1519
        %v1550 = vpack.c.b16 %v1524, %v1522
        %v1551 = vpack.c.b16 %v1525, %v1523
        %v1552 = vpack.c.b16 %v1528, %v1526
        %v1553 = vpack.c.b16 %v1529, %v1527
        %v1554 = vpack.c.b16 %v1532, %v1530
        %v1555 = vpack.c.b16 %v1533, %v1531
        %v1556 = vpack.c.b16 %v1536, %v1534
        %v1557 = vpack.c.b16 %v1537, %v1535
        %v1558 = vpack.c.b16 %v1540, %v1538
        %v1559 = vpack.c.b16 %v1541, %v1539
        %v1560 = vpack.c.b16 %v1544, %v1542
        %v1561 = vpack.c.b16 %v1545, %v1543
        %1578 = vmatprep.subr.bf16.mxu0 %v1561
        %1579 = vmatpush1.bf16.msra.mxu0 %v1560
        %1580 = vmatprep.subr.bf16.mxu0 %v1559
        %1581 = vmatpush1.bf16.msra.mxu0 %v1558
        %1582 = vmatprep.subr.bf16.mxu0 %v1557
        %1583 = vmatpush1.bf16.msra.mxu0 %v1556
        %1584 = vmatprep.subr.bf16.mxu0 %v1555
        %1585 = vmatpush1.bf16.msra.mxu0 %v1554
        %1586 = vmatprep.subr.bf16.mxu0 %v1553
        %1587 = vmatpush1.bf16.msra.mxu0 %v1552
        %1588 = vmatprep.subr.bf16.mxu0 %v1551
        %1589 = vmatpush1.bf16.msra.mxu0 %v1550
        %1590 = vmatprep.subr.bf16.mxu0 %v1549
        %1591 = vmatpush1.bf16.msra.mxu0 %v1548
        %1592 = vmatprep.subr.bf16.mxu0 %v1547
        %1593 = vmatpush1.bf16.msra.mxu0 %v1546
        %1594 = vmatprep.subr.bf16.mxu0 0
        %1595 = vmatpush2.bf16.msra.mxu0 0
        %1596 = vmatprep.subr.bf16.mxu0 0
        %1597 = vmatpush2.bf16.msra.mxu0 0
        %1598 = vmatprep.subr.bf16.mxu0 0
        %1599 = vmatpush2.bf16.msra.mxu0 0
        %1600 = vmatprep.subr.bf16.mxu0 0
        %1601 = vmatpush2.bf16.msra.mxu0 0
        %1602 = vmatprep.subr.bf16.mxu0 0
        %1603 = vmatpush2.bf16.msra.mxu0 0
        %1604 = vmatprep.subr.bf16.mxu0 0
        %1605 = vmatpush2.bf16.msra.mxu0 0
        %1606 = vmatprep.subr.bf16.mxu0 0
        %1607 = vmatpush2.bf16.msra.mxu0 0
        %1608 = vmatprep.subr.bf16.mxu0 0
        %1609 = vmatpush2.bf16.msra.mxu0 0
        %1610 = vmatprep.mubr.bf16.mxu0 0
        %1611 = vmatmul.mubr.bf16.gmra.mxu0 %v1468
        %v1612 = vpop.f32.mrf.mxu0
        %v1613 = vadd.f32 %v1491, %v1612
        %v1614 = vpop.f32.mrf.mxu0
        %v1615 = vadd.f32 %v1495, %v1614
        %v1616 = vpop.f32.mrf.mxu0
        %v1617 = vadd.f32 %v1491, %v1616
        %v1618 = vpop.f32.mrf.mxu0
        %v1619 = vadd.f32 %v1495, %v1618
        %1620 = vmatprep.mubr.bf16.mxu0 0
        %1621 = vmatmul.mubr.bf16.gmra.mxu0 %v1469
        %v1622 = vpop.f32.mrf.mxu0
        %v1623 = vadd.f32 %v1491, %v1622
        %v1624 = vpop.f32.mrf.mxu0
        %v1625 = vadd.f32 %v1495, %v1624
        %v1626 = vpop.f32.mrf.mxu0
        %v1627 = vadd.f32 %v1491, %v1626
        %v1628 = vpop.f32.mrf.mxu0
        %v1629 = vadd.f32 %v1495, %v1628
        %1630 = vdwg.mxu0
        %v1631 = vpack.c.bf16 %v1394, %v1394
        %v1632 = vpack.c.bf16 %v1617, %v1613
        %v1633 = vpack.c.bf16 %v1627, %v1623
        %v1634 = vpack.c.bf16 %v1619, %v1615
        %v1635 = vpack.c.bf16 %v1629, %v1625
        %vm1636 = vcmask 130048
        %v1638 = vsel %vm1636, %v1631, 0
        %v1641 = vsel %vm1636, %v1632, 0
        %v1644 = vsel %vm1636, %v1633, 0
        %1646 = vmatprep.subr.bf16.mxu0 0
        %1647 = vmatpush1.bf16.xpose.msra.mxu0 0
        %1648 = vmatprep.subr.bf16.mxu0 0
        %1649 = vmatpush1.bf16.xpose.msra.mxu0 0
        %1650 = vmatprep.subr.bf16.mxu0 0
        %1651 = vmatpush1.bf16.xpose.msra.mxu0 0
        %1652 = vmatprep.subr.bf16.mxu0 0
        %1653 = vmatpush1.bf16.xpose.msra.mxu0 0
        %1654 = vmatprep.subr.bf16.mxu0 0
        %1655 = vmatpush1.bf16.xpose.msra.mxu0 0
        %1656 = vmatprep.subr.bf16.mxu0 0
        %1657 = vmatpush1.bf16.xpose.msra.mxu0 0
        %1658 = vmatprep.subr.bf16.mxu0 0
        %1659 = vmatpush1.bf16.xpose.msra.mxu0 %v1644
        %1660 = vmatprep.subr.bf16.mxu0 0
        %1661 = vmatpush1.bf16.xpose.msra.mxu0 %v1641
        %1662 = vmatprep.subr.bf16.mxu0 0
        %1663 = vmatpush2.bf16.xpose.msra.mxu0 0
        %1664 = vmatprep.subr.bf16.mxu0 0
        %1665 = vmatpush2.bf16.xpose.msra.mxu0 0
        %1666 = vmatprep.subr.bf16.mxu0 0
        %1667 = vmatpush2.bf16.xpose.msra.mxu0 0
        %1668 = vmatprep.subr.bf16.mxu0 0
        %1669 = vmatpush2.bf16.xpose.msra.mxu0 0
        %1670 = vmatprep.subr.bf16.mxu0 0
        %1671 = vmatpush2.bf16.xpose.msra.mxu0 0
        %1672 = vmatprep.subr.bf16.mxu0 0
        %1673 = vmatpush2.bf16.xpose.msra.mxu0 0
        %1674 = vmatprep.subr.bf16.mxu0 0
        %1675 = vmatpush2.bf16.xpose.msra.mxu0 0
        %1676 = vmatprep.subr.bf16.mxu0 0
        %1677 = vmatpush2.bf16.xpose.msra.mxu0 0
        %1678 = vmatprep.mubr.bf16.mxu0 0
        %1679 = vmatmul.mubr.bf16.gmra.mxu0 %v1638
        %v1680 = vpop.f32.mrf.mxu0
        %v1681 = vadd.f32 0.0, %v1680
        %v1682 = vpop.f32.mrf.mxu0
        %v1683 = vpop.f32.mrf.mxu0
        %v1684 = vpop.f32.mrf.mxu0
        %1685 = vdwg.mxu0
        %v1686 = vmul.f32 %v1681, 0.25
        %vm1687 = vcmask 203776
        %v1688 = vsel %vm1687, %v1686, -inf
        %1689 = vmax.xlane.f32.xlu0 %v1688
        %v1690 = vpop.xlane.xlu0 %1689
        %v1691 = vsub.f32 %v1686, %v1690
        %v1692 = vmul.f32 %v1691, 1.442695
        %v1693 = vpow.pop %v1692
        %v1694 = vsel %vm1687, %v1693, 0.0
        %1695 = vadd.xlane.f32.xlu0 %v1694
        %v1696 = vpop.xlane.xlu0 %1695
        %v1697 = vrcp.pop %v1696
        %v1698 = vmul.f32 %v1693, %v1697
        %v1699 = vpack.c.bf16 %v1698, %v1698
        %v1701 = vsel %vm1687, %v1699, 0
        %vm1703 = vcmask 1043456
        %vm1704 = vcmask 1044480
        %v1705 = vsel %vm1703, 4294967295, 65535
        %v1706 = vsel %vm1704, %v1705, 0
        %v1708 = vand.u32 %v1635, %v1706
        %1710 = vmatprep.subr.bf16.mxu0 0
        %1711 = vmatpush1.bf16.msra.mxu0 0
        %1712 = vmatprep.subr.bf16.mxu0 0
        %1713 = vmatpush1.bf16.msra.mxu0 0
        %1714 = vmatprep.subr.bf16.mxu0 0
        %1715 = vmatpush1.bf16.msra.mxu0 0
        %1716 = vmatprep.subr.bf16.mxu0 0
        %1717 = vmatpush1.bf16.msra.mxu0 0
        %1718 = vmatprep.subr.bf16.mxu0 0
        %1719 = vmatpush1.bf16.msra.mxu0 0
        %1720 = vmatprep.subr.bf16.mxu0 0
        %1721 = vmatpush1.bf16.msra.mxu0 0
        %1722 = vmatprep.subr.bf16.mxu0 0
        %1723 = vmatpush1.bf16.msra.mxu0 %v1708
        %1724 = vmatprep.subr.bf16.mxu0 0
        %1725 = vmatpush1.bf16.msra.mxu0 %v1634
        %1726 = vmatprep.subr.bf16.mxu0 0
        %1727 = vmatpush2.bf16.msra.mxu0 0
        %1728 = vmatprep.subr.bf16.mxu0 0
        %1729 = vmatpush2.bf16.msra.mxu0 0
        %1730 = vmatprep.subr.bf16.mxu0 0
        %1731 = vmatpush2.bf16.msra.mxu0 0
        %1732 = vmatprep.subr.bf16.mxu0 0
        %1733 = vmatpush2.bf16.msra.mxu0 0
        %1734 = vmatprep.subr.bf16.mxu0 0
        %1735 = vmatpush2.bf16.msra.mxu0 0
        %1736 = vmatprep.subr.bf16.mxu0 0
        %1737 = vmatpush2.bf16.msra.mxu0 0
        %1738 = vmatprep.subr.bf16.mxu0 0
        %1739 = vmatpush2.bf16.msra.mxu0 0
        %1740 = vmatprep.subr.bf16.mxu0 0
        %1741 = vmatpush2.bf16.msra.mxu0 0
        %1742 = vmatprep.mubr.bf16.mxu0 0
        %1743 = vmatmul.mubr.bf16.gmra.mxu0 %v1701
        %v1744 = vpop.f32.mrf.mxu0
        %v1745 = vadd.f32 0.0, %v1744
        %v1746 = vpop.f32.mrf.mxu0
        %v1747 = vpop.f32.mrf.mxu0
        %v1748 = vpop.f32.mrf.mxu0
        %1749 = vdwg.mxu0
        %1751 = vrot.lane.b32.xlu0 %v1631, 112
        %v1752 = vpop.permute.xlu0 %1751
        %1755 = vrot.lane.b32.xlu0 %v1632, 112
        %v1756 = vpop.permute.xlu0 %1755
        %1757 = vrot.lane.b32.xlu0 %v1633, 112
        %v1758 = vpop.permute.xlu0 %1757
        %v1760 = vsel %vm1636, %v1752, 0
        %v1763 = vsel %vm1636, %v1756, 0
        %v1766 = vsel %vm1636, %v1758, 0
        %1768 = vmatprep.subr.bf16.mxu0 0
        %1769 = vmatpush1.bf16.xpose.msra.mxu0 0
        %1770 = vmatprep.subr.bf16.mxu0 0
        %1771 = vmatpush1.bf16.xpose.msra.mxu0 0
        %1772 = vmatprep.subr.bf16.mxu0 0
        %1773 = vmatpush1.bf16.xpose.msra.mxu0 0
        %1774 = vmatprep.subr.bf16.mxu0 0
        %1775 = vmatpush1.bf16.xpose.msra.mxu0 0
        %1776 = vmatprep.subr.bf16.mxu0 0
        %1777 = vmatpush1.bf16.xpose.msra.mxu0 0
        %1778 = vmatprep.subr.bf16.mxu0 0
        %1779 = vmatpush1.bf16.xpose.msra.mxu0 0
        %1780 = vmatprep.subr.bf16.mxu0 0
        %1781 = vmatpush1.bf16.xpose.msra.mxu0 %v1766
        %1782 = vmatprep.subr.bf16.mxu0 0
        %1783 = vmatpush1.bf16.xpose.msra.mxu0 %v1763
        %1784 = vmatprep.subr.bf16.mxu0 0
        %1785 = vmatpush2.bf16.xpose.msra.mxu0 0
        %1786 = vmatprep.subr.bf16.mxu0 0
        %1787 = vmatpush2.bf16.xpose.msra.mxu0 0
        %1788 = vmatprep.subr.bf16.mxu0 0
        %1789 = vmatpush2.bf16.xpose.msra.mxu0 0
        %1790 = vmatprep.subr.bf16.mxu0 0
        %1791 = vmatpush2.bf16.xpose.msra.mxu0 0
        %1792 = vmatprep.subr.bf16.mxu0 0
        %1793 = vmatpush2.bf16.xpose.msra.mxu0 0
        %1794 = vmatprep.subr.bf16.mxu0 0
        %1795 = vmatpush2.bf16.xpose.msra.mxu0 0
        %1796 = vmatprep.subr.bf16.mxu0 0
        %1797 = vmatpush2.bf16.xpose.msra.mxu0 0
        %1798 = vmatprep.subr.bf16.mxu0 0
        %1799 = vmatpush2.bf16.xpose.msra.mxu0 0
        %1800 = vmatprep.mubr.bf16.mxu0 0
        %1801 = vmatmul.mubr.bf16.gmra.mxu0 %v1760
        %v1802 = vpop.f32.mrf.mxu0
        %v1803 = vadd.f32 0.0, %v1802
        %v1804 = vpop.f32.mrf.mxu0
        %v1805 = vpop.f32.mrf.mxu0
        %v1806 = vpop.f32.mrf.mxu0
        %1807 = vdwg.mxu0
        %v1808 = vmul.f32 %v1803, 0.25
        %v1809 = vsel %vm1687, %v1808, -inf
        %1810 = vmax.xlane.f32.xlu0 %v1809
        %v1811 = vpop.xlane.xlu0 %1810
        %v1812 = vsub.f32 %v1808, %v1811
        %v1813 = vmul.f32 %v1812, 1.442695
        %v1814 = vpow.pop %v1813
        %v1815 = vsel %vm1687, %v1814, 0.0
        %1816 = vadd.xlane.f32.xlu0 %v1815
        %v1817 = vpop.xlane.xlu0 %1816
        %v1818 = vrcp.pop %v1817
        %v1819 = vmul.f32 %v1814, %v1818
        %v1820 = vpack.c.bf16 %v1819, %v1819
        %1823 = vrot.lane.b32.xlu0 %v1634, 112
        %v1824 = vpop.permute.xlu0 %1823
        %1825 = vrot.lane.b32.xlu0 %v1635, 112
        %v1826 = vpop.permute.xlu0 %1825
        %v1829 = vsel %vm1687, %v1820, 0
        %v1832 = vand.u32 %v1826, %v1706
        %1834 = vmatprep.subr.bf16.mxu0 0
        %1835 = vmatpush1.bf16.msra.mxu0 0
        %1836 = vmatprep.subr.bf16.mxu0 0
        %1837 = vmatpush1.bf16.msra.mxu0 0
        %1838 = vmatprep.subr.bf16.mxu0 0
        %1839 = vmatpush1.bf16.msra.mxu0 0
        %1840 = vmatprep.subr.bf16.mxu0 0
        %1841 = vmatpush1.bf16.msra.mxu0 0
        %1842 = vmatprep.subr.bf16.mxu0 0
        %1843 = vmatpush1.bf16.msra.mxu0 0
        %1844 = vmatprep.subr.bf16.mxu0 0
        %1845 = vmatpush1.bf16.msra.mxu0 0
        %1846 = vmatprep.subr.bf16.mxu0 0
        %1847 = vmatpush1.bf16.msra.mxu0 %v1832
        %1848 = vmatprep.subr.bf16.mxu0 0
        %1849 = vmatpush1.bf16.msra.mxu0 %v1824
        %1850 = vmatprep.subr.bf16.mxu0 0
        %1851 = vmatpush2.bf16.msra.mxu0 0
        %1852 = vmatprep.subr.bf16.mxu0 0
        %1853 = vmatpush2.bf16.msra.mxu0 0
        %1854 = vmatprep.subr.bf16.mxu0 0
        %1855 = vmatpush2.bf16.msra.mxu0 0
        %1856 = vmatprep.subr.bf16.mxu0 0
        %1857 = vmatpush2.bf16.msra.mxu0 0
        %1858 = vmatprep.subr.bf16.mxu0 0
        %1859 = vmatpush2.bf16.msra.mxu0 0
        %1860 = vmatprep.subr.bf16.mxu0 0
        %1861 = vmatpush2.bf16.msra.mxu0 0
        %1862 = vmatprep.subr.bf16.mxu0 0
        %1863 = vmatpush2.bf16.msra.mxu0 0
        %1864 = vmatprep.subr.bf16.mxu0 0
        %1865 = vmatpush2.bf16.msra.mxu0 0
        %1866 = vmatprep.mubr.bf16.mxu0 0
        %1867 = vmatmul.mubr.bf16.gmra.mxu0 %v1829
        %v1868 = vpop.f32.mrf.mxu0
        %v1869 = vadd.f32 0.0, %v1868
        %v1870 = vpop.f32.mrf.mxu0
        %v1871 = vpop.f32.mrf.mxu0
        %v1872 = vpop.f32.mrf.mxu0
        %1873 = vdwg.mxu0
        %1874 = vrot.lane.b32.xlu0 %v1631, 96
        %v1875 = vpop.permute.xlu0 %1874
        %1876 = vrot.lane.b32.xlu0 %v1632, 96
        %v1877 = vpop.permute.xlu0 %1876
        %1878 = vrot.lane.b32.xlu0 %v1633, 96
        %v1879 = vpop.permute.xlu0 %1878
        %v1881 = vsel %vm1636, %v1875, 0
        %v1884 = vsel %vm1636, %v1877, 0
        %v1887 = vsel %vm1636, %v1879, 0
        %1889 = vmatprep.subr.bf16.mxu0 0
        %1890 = vmatpush1.bf16.xpose.msra.mxu0 0
        %1891 = vmatprep.subr.bf16.mxu0 0
        %1892 = vmatpush1.bf16.xpose.msra.mxu0 0
        %1893 = vmatprep.subr.bf16.mxu0 0
        %1894 = vmatpush1.bf16.xpose.msra.mxu0 0
        %1895 = vmatprep.subr.bf16.mxu0 0
        %1896 = vmatpush1.bf16.xpose.msra.mxu0 0
        %1897 = vmatprep.subr.bf16.mxu0 0
        %1898 = vmatpush1.bf16.xpose.msra.mxu0 0
        %1899 = vmatprep.subr.bf16.mxu0 0
        %1900 = vmatpush1.bf16.xpose.msra.mxu0 0
        %1901 = vmatprep.subr.bf16.mxu0 0
        %1902 = vmatpush1.bf16.xpose.msra.mxu0 %v1887
        %1903 = vmatprep.subr.bf16.mxu0 0
        %1904 = vmatpush1.bf16.xpose.msra.mxu0 %v1884
        %1905 = vmatprep.subr.bf16.mxu0 0
        %1906 = vmatpush2.bf16.xpose.msra.mxu0 0
        %1907 = vmatprep.subr.bf16.mxu0 0
        %1908 = vmatpush2.bf16.xpose.msra.mxu0 0
        %1909 = vmatprep.subr.bf16.mxu0 0
        %1910 = vmatpush2.bf16.xpose.msra.mxu0 0
        %1911 = vmatprep.subr.bf16.mxu0 0
        %1912 = vmatpush2.bf16.xpose.msra.mxu0 0
        %1913 = vmatprep.subr.bf16.mxu0 0
        %1914 = vmatpush2.bf16.xpose.msra.mxu0 0
        %1915 = vmatprep.subr.bf16.mxu0 0
        %1916 = vmatpush2.bf16.xpose.msra.mxu0 0
        %1917 = vmatprep.subr.bf16.mxu0 0
        %1918 = vmatpush2.bf16.xpose.msra.mxu0 0
        %1919 = vmatprep.subr.bf16.mxu0 0
        %1920 = vmatpush2.bf16.xpose.msra.mxu0 0
        %1921 = vmatprep.mubr.bf16.mxu0 0
        %1922 = vmatmul.mubr.bf16.gmra.mxu0 %v1881
        %v1923 = vpop.f32.mrf.mxu0
        %v1924 = vadd.f32 0.0, %v1923
        %v1925 = vpop.f32.mrf.mxu0
        %v1926 = vpop.f32.mrf.mxu0
        %v1927 = vpop.f32.mrf.mxu0
        %1928 = vdwg.mxu0
        %v1929 = vmul.f32 %v1924, 0.25
        %v1930 = vsel %vm1687, %v1929, -inf
        %1931 = vmax.xlane.f32.xlu0 %v1930
        %v1932 = vpop.xlane.xlu0 %1931
        %v1933 = vsub.f32 %v1929, %v1932
        %v1934 = vmul.f32 %v1933, 1.442695
        %v1935 = vpow.pop %v1934
        %v1936 = vsel %vm1687, %v1935, 0.0
        %1937 = vadd.xlane.f32.xlu0 %v1936
        %v1938 = vpop.xlane.xlu0 %1937
        %v1939 = vrcp.pop %v1938
        %v1940 = vmul.f32 %v1935, %v1939
        %v1941 = vpack.c.bf16 %v1940, %v1940
        %1942 = vrot.lane.b32.xlu0 %v1634, 96
        %v1943 = vpop.permute.xlu0 %1942
        %1944 = vrot.lane.b32.xlu0 %v1635, 96
        %v1945 = vpop.permute.xlu0 %1944
        %v1948 = vsel %vm1687, %v1941, 0
        %v1951 = vand.u32 %v1945, %v1706
        %1953 = vmatprep.subr.bf16.mxu0 0
        %1954 = vmatpush1.bf16.msra.mxu0 0
        %1955 = vmatprep.subr.bf16.mxu0 0
        %1956 = vmatpush1.bf16.msra.mxu0 0
        %1957 = vmatprep.subr.bf16.mxu0 0
        %1958 = vmatpush1.bf16.msra.mxu0 0
        %1959 = vmatprep.subr.bf16.mxu0 0
        %1960 = vmatpush1.bf16.msra.mxu0 0
        %1961 = vmatprep.subr.bf16.mxu0 0
        %1962 = vmatpush1.bf16.msra.mxu0 0
        %1963 = vmatprep.subr.bf16.mxu0 0
        %1964 = vmatpush1.bf16.msra.mxu0 0
        %1965 = vmatprep.subr.bf16.mxu0 0
        %1966 = vmatpush1.bf16.msra.mxu0 %v1951
        %1967 = vmatprep.subr.bf16.mxu0 0
        %1968 = vmatpush1.bf16.msra.mxu0 %v1943
        %1969 = vmatprep.subr.bf16.mxu0 0
        %1970 = vmatpush2.bf16.msra.mxu0 0
        %1971 = vmatprep.subr.bf16.mxu0 0
        %1972 = vmatpush2.bf16.msra.mxu0 0
        %1973 = vmatprep.subr.bf16.mxu0 0
        %1974 = vmatpush2.bf16.msra.mxu0 0
        %1975 = vmatprep.subr.bf16.mxu0 0
        %1976 = vmatpush2.bf16.msra.mxu0 0
        %1977 = vmatprep.subr.bf16.mxu0 0
        %1978 = vmatpush2.bf16.msra.mxu0 0
        %1979 = vmatprep.subr.bf16.mxu0 0
        %1980 = vmatpush2.bf16.msra.mxu0 0
        %1981 = vmatprep.subr.bf16.mxu0 0
        %1982 = vmatpush2.bf16.msra.mxu0 0
        %1983 = vmatprep.subr.bf16.mxu0 0
        %1984 = vmatpush2.bf16.msra.mxu0 0
        %1985 = vmatprep.mubr.bf16.mxu0 0
        %1986 = vmatmul.mubr.bf16.gmra.mxu0 %v1948
        %v1987 = vpop.f32.mrf.mxu0
        %v1988 = vadd.f32 0.0, %v1987
        %v1989 = vpop.f32.mrf.mxu0
        %v1990 = vpop.f32.mrf.mxu0
        %v1991 = vpop.f32.mrf.mxu0
        %1992 = vdwg.mxu0
        %1993 = vrot.lane.b32.xlu0 %v1631, 80
        %v1994 = vpop.permute.xlu0 %1993
        %1995 = vrot.lane.b32.xlu0 %v1632, 80
        %v1996 = vpop.permute.xlu0 %1995
        %1997 = vrot.lane.b32.xlu0 %v1633, 80
        %v1998 = vpop.permute.xlu0 %1997
        %v2000 = vsel %vm1636, %v1994, 0
        %v2003 = vsel %vm1636, %v1996, 0
        %v2006 = vsel %vm1636, %v1998, 0
        %2008 = vmatprep.subr.bf16.mxu0 0
        %2009 = vmatpush1.bf16.xpose.msra.mxu0 0
        %2010 = vmatprep.subr.bf16.mxu0 0
        %2011 = vmatpush1.bf16.xpose.msra.mxu0 0
        %2012 = vmatprep.subr.bf16.mxu0 0
        %2013 = vmatpush1.bf16.xpose.msra.mxu0 0
        %2014 = vmatprep.subr.bf16.mxu0 0
        %2015 = vmatpush1.bf16.xpose.msra.mxu0 0
        %2016 = vmatprep.subr.bf16.mxu0 0
        %2017 = vmatpush1.bf16.xpose.msra.mxu0 0
        %2018 = vmatprep.subr.bf16.mxu0 0
        %2019 = vmatpush1.bf16.xpose.msra.mxu0 0
        %2020 = vmatprep.subr.bf16.mxu0 0
        %2021 = vmatpush1.bf16.xpose.msra.mxu0 %v2006
        %2022 = vmatprep.subr.bf16.mxu0 0
        %2023 = vmatpush1.bf16.xpose.msra.mxu0 %v2003
        %2024 = vmatprep.subr.bf16.mxu0 0
        %2025 = vmatpush2.bf16.xpose.msra.mxu0 0
        %2026 = vmatprep.subr.bf16.mxu0 0
        %2027 = vmatpush2.bf16.xpose.msra.mxu0 0
        %2028 = vmatprep.subr.bf16.mxu0 0
        %2029 = vmatpush2.bf16.xpose.msra.mxu0 0
        %2030 = vmatprep.subr.bf16.mxu0 0
        %2031 = vmatpush2.bf16.xpose.msra.mxu0 0
        %2032 = vmatprep.subr.bf16.mxu0 0
        %2033 = vmatpush2.bf16.xpose.msra.mxu0 0
        %2034 = vmatprep.subr.bf16.mxu0 0
        %2035 = vmatpush2.bf16.xpose.msra.mxu0 0
        %2036 = vmatprep.subr.bf16.mxu0 0
        %2037 = vmatpush2.bf16.xpose.msra.mxu0 0
        %2038 = vmatprep.subr.bf16.mxu0 0
        %2039 = vmatpush2.bf16.xpose.msra.mxu0 0
        %2040 = vmatprep.mubr.bf16.mxu0 0
        %2041 = vmatmul.mubr.bf16.gmra.mxu0 %v2000
        %v2042 = vpop.f32.mrf.mxu0
        %v2043 = vadd.f32 0.0, %v2042
        %v2044 = vpop.f32.mrf.mxu0
        %v2045 = vpop.f32.mrf.mxu0
        %v2046 = vpop.f32.mrf.mxu0
        %2047 = vdwg.mxu0
        %v2048 = vmul.f32 %v2043, 0.25
        %v2049 = vsel %vm1687, %v2048, -inf
        %2050 = vmax.xlane.f32.xlu0 %v2049
        %v2051 = vpop.xlane.xlu0 %2050
        %v2052 = vsub.f32 %v2048, %v2051
        %v2053 = vmul.f32 %v2052, 1.442695
        %v2054 = vpow.pop %v2053
        %v2055 = vsel %vm1687, %v2054, 0.0
        %2056 = vadd.xlane.f32.xlu0 %v2055
        %v2057 = vpop.xlane.xlu0 %2056
        %v2058 = vrcp.pop %v2057
        %v2059 = vmul.f32 %v2054, %v2058
        %v2060 = vpack.c.bf16 %v2059, %v2059
        %2061 = vrot.lane.b32.xlu0 %v1634, 80
        %v2062 = vpop.permute.xlu0 %2061
        %2063 = vrot.lane.b32.xlu0 %v1635, 80
        %v2064 = vpop.permute.xlu0 %2063
        %v2067 = vsel %vm1687, %v2060, 0
        %v2070 = vand.u32 %v2064, %v1706
        %2072 = vmatprep.subr.bf16.mxu0 0
        %2073 = vmatpush1.bf16.msra.mxu0 0
        %2074 = vmatprep.subr.bf16.mxu0 0
        %2075 = vmatpush1.bf16.msra.mxu0 0
        %2076 = vmatprep.subr.bf16.mxu0 0
        %2077 = vmatpush1.bf16.msra.mxu0 0
        %2078 = vmatprep.subr.bf16.mxu0 0
        %2079 = vmatpush1.bf16.msra.mxu0 0
        %2080 = vmatprep.subr.bf16.mxu0 0
        %2081 = vmatpush1.bf16.msra.mxu0 0
        %2082 = vmatprep.subr.bf16.mxu0 0
        %2083 = vmatpush1.bf16.msra.mxu0 0
        %2084 = vmatprep.subr.bf16.mxu0 0
        %2085 = vmatpush1.bf16.msra.mxu0 %v2070
        %2086 = vmatprep.subr.bf16.mxu0 0
        %2087 = vmatpush1.bf16.msra.mxu0 %v2062
        %2088 = vmatprep.subr.bf16.mxu0 0
        %2089 = vmatpush2.bf16.msra.mxu0 0
        %2090 = vmatprep.subr.bf16.mxu0 0
        %2091 = vmatpush2.bf16.msra.mxu0 0
        %2092 = vmatprep.subr.bf16.mxu0 0
        %2093 = vmatpush2.bf16.msra.mxu0 0
        %2094 = vmatprep.subr.bf16.mxu0 0
        %2095 = vmatpush2.bf16.msra.mxu0 0
        %2096 = vmatprep.subr.bf16.mxu0 0
        %2097 = vmatpush2.bf16.msra.mxu0 0
        %2098 = vmatprep.subr.bf16.mxu0 0
        %2099 = vmatpush2.bf16.msra.mxu0 0
        %2100 = vmatprep.subr.bf16.mxu0 0
        %2101 = vmatpush2.bf16.msra.mxu0 0
        %2102 = vmatprep.subr.bf16.mxu0 0
        %2103 = vmatpush2.bf16.msra.mxu0 0
        %2104 = vmatprep.mubr.bf16.mxu0 0
        %2105 = vmatmul.mubr.bf16.gmra.mxu0 %v2067
        %v2106 = vpop.f32.mrf.mxu0
        %v2107 = vadd.f32 0.0, %v2106
        %v2108 = vpop.f32.mrf.mxu0
        %v2109 = vpop.f32.mrf.mxu0
        %v2110 = vpop.f32.mrf.mxu0
        %2111 = vdwg.mxu0
        %2112 = vrot.lane.b32.xlu0 %v1631, 64
        %v2113 = vpop.permute.xlu0 %2112
        %2114 = vrot.lane.b32.xlu0 %v1632, 64
        %v2115 = vpop.permute.xlu0 %2114
        %2116 = vrot.lane.b32.xlu0 %v1633, 64
        %v2117 = vpop.permute.xlu0 %2116
        %v2119 = vsel %vm1636, %v2113, 0
        %v2122 = vsel %vm1636, %v2115, 0
        %v2125 = vsel %vm1636, %v2117, 0
        %2127 = vmatprep.subr.bf16.mxu0 0
        %2128 = vmatpush1.bf16.xpose.msra.mxu0 0
        %2129 = vmatprep.subr.bf16.mxu0 0
        %2130 = vmatpush1.bf16.xpose.msra.mxu0 0
        %2131 = vmatprep.subr.bf16.mxu0 0
        %2132 = vmatpush1.bf16.xpose.msra.mxu0 0
        %2133 = vmatprep.subr.bf16.mxu0 0
        %2134 = vmatpush1.bf16.xpose.msra.mxu0 0
        %2135 = vmatprep.subr.bf16.mxu0 0
        %2136 = vmatpush1.bf16.xpose.msra.mxu0 0
        %2137 = vmatprep.subr.bf16.mxu0 0
        %2138 = vmatpush1.bf16.xpose.msra.mxu0 0
        %2139 = vmatprep.subr.bf16.mxu0 0
        %2140 = vmatpush1.bf16.xpose.msra.mxu0 %v2125
        %2141 = vmatprep.subr.bf16.mxu0 0
        %2142 = vmatpush1.bf16.xpose.msra.mxu0 %v2122
        %2143 = vmatprep.subr.bf16.mxu0 0
        %2144 = vmatpush2.bf16.xpose.msra.mxu0 0
        %2145 = vmatprep.subr.bf16.mxu0 0
        %2146 = vmatpush2.bf16.xpose.msra.mxu0 0
        %2147 = vmatprep.subr.bf16.mxu0 0
        %2148 = vmatpush2.bf16.xpose.msra.mxu0 0
        %2149 = vmatprep.subr.bf16.mxu0 0
        %2150 = vmatpush2.bf16.xpose.msra.mxu0 0
        %2151 = vmatprep.subr.bf16.mxu0 0
        %2152 = vmatpush2.bf16.xpose.msra.mxu0 0
        %2153 = vmatprep.subr.bf16.mxu0 0
        %2154 = vmatpush2.bf16.xpose.msra.mxu0 0
        %2155 = vmatprep.subr.bf16.mxu0 0
        %2156 = vmatpush2.bf16.xpose.msra.mxu0 0
        %2157 = vmatprep.subr.bf16.mxu0 0
        %2158 = vmatpush2.bf16.xpose.msra.mxu0 0
        %2159 = vmatprep.mubr.bf16.mxu0 0
        %2160 = vmatmul.mubr.bf16.gmra.mxu0 %v2119
        %v2161 = vpop.f32.mrf.mxu0
        %v2162 = vadd.f32 0.0, %v2161
        %v2163 = vpop.f32.mrf.mxu0
        %v2164 = vpop.f32.mrf.mxu0
        %v2165 = vpop.f32.mrf.mxu0
        %2166 = vdwg.mxu0
        %v2167 = vmul.f32 %v2162, 0.25
        %v2168 = vsel %vm1687, %v2167, -inf
        %2169 = vmax.xlane.f32.xlu0 %v2168
        %v2170 = vpop.xlane.xlu0 %2169
        %v2171 = vsub.f32 %v2167, %v2170
        %v2172 = vmul.f32 %v2171, 1.442695
        %v2173 = vpow.pop %v2172
        %v2174 = vsel %vm1687, %v2173, 0.0
        %2175 = vadd.xlane.f32.xlu0 %v2174
        %v2176 = vpop.xlane.xlu0 %2175
        %v2177 = vrcp.pop %v2176
        %v2178 = vmul.f32 %v2173, %v2177
        %v2179 = vpack.c.bf16 %v2178, %v2178
        %2180 = vrot.lane.b32.xlu0 %v1634, 64
        %v2181 = vpop.permute.xlu0 %2180
        %2182 = vrot.lane.b32.xlu0 %v1635, 64
        %v2183 = vpop.permute.xlu0 %2182
        %v2186 = vsel %vm1687, %v2179, 0
        %v2189 = vand.u32 %v2183, %v1706
        %2191 = vmatprep.subr.bf16.mxu0 0
        %2192 = vmatpush1.bf16.msra.mxu0 0
        %2193 = vmatprep.subr.bf16.mxu0 0
        %2194 = vmatpush1.bf16.msra.mxu0 0
        %2195 = vmatprep.subr.bf16.mxu0 0
        %2196 = vmatpush1.bf16.msra.mxu0 0
        %2197 = vmatprep.subr.bf16.mxu0 0
        %2198 = vmatpush1.bf16.msra.mxu0 0
        %2199 = vmatprep.subr.bf16.mxu0 0
        %2200 = vmatpush1.bf16.msra.mxu0 0
        %2201 = vmatprep.subr.bf16.mxu0 0
        %2202 = vmatpush1.bf16.msra.mxu0 0
        %2203 = vmatprep.subr.bf16.mxu0 0
        %2204 = vmatpush1.bf16.msra.mxu0 %v2189
        %2205 = vmatprep.subr.bf16.mxu0 0
        %2206 = vmatpush1.bf16.msra.mxu0 %v2181
        %2207 = vmatprep.subr.bf16.mxu0 0
        %2208 = vmatpush2.bf16.msra.mxu0 0
        %2209 = vmatprep.subr.bf16.mxu0 0
        %2210 = vmatpush2.bf16.msra.mxu0 0
        %2211 = vmatprep.subr.bf16.mxu0 0
        %2212 = vmatpush2.bf16.msra.mxu0 0
        %2213 = vmatprep.subr.bf16.mxu0 0
        %2214 = vmatpush2.bf16.msra.mxu0 0
        %2215 = vmatprep.subr.bf16.mxu0 0
        %2216 = vmatpush2.bf16.msra.mxu0 0
        %2217 = vmatprep.subr.bf16.mxu0 0
        %2218 = vmatpush2.bf16.msra.mxu0 0
        %2219 = vmatprep.subr.bf16.mxu0 0
        %2220 = vmatpush2.bf16.msra.mxu0 0
        %2221 = vmatprep.subr.bf16.mxu0 0
        %2222 = vmatpush2.bf16.msra.mxu0 0
        %2223 = vmatprep.mubr.bf16.mxu0 0
        %2224 = vmatmul.mubr.bf16.gmra.mxu0 %v2186
        %v2225 = vpop.f32.mrf.mxu0
        %v2226 = vadd.f32 0.0, %v2225
        %v2227 = vpop.f32.mrf.mxu0
        %v2228 = vpop.f32.mrf.mxu0
        %v2229 = vpop.f32.mrf.mxu0
        %2230 = vdwg.mxu0
        %2231 = vrot.lane.b32.xlu0 %v1631, 48
        %v2232 = vpop.permute.xlu0 %2231
        %2233 = vrot.lane.b32.xlu0 %v1632, 48
        %v2234 = vpop.permute.xlu0 %2233
        %2235 = vrot.lane.b32.xlu0 %v1633, 48
        %v2236 = vpop.permute.xlu0 %2235
        %v2238 = vsel %vm1636, %v2232, 0
        %v2241 = vsel %vm1636, %v2234, 0
        %v2244 = vsel %vm1636, %v2236, 0
        %2246 = vmatprep.subr.bf16.mxu0 0
        %2247 = vmatpush1.bf16.xpose.msra.mxu0 0
        %2248 = vmatprep.subr.bf16.mxu0 0
        %2249 = vmatpush1.bf16.xpose.msra.mxu0 0
        %2250 = vmatprep.subr.bf16.mxu0 0
        %2251 = vmatpush1.bf16.xpose.msra.mxu0 0
        %2252 = vmatprep.subr.bf16.mxu0 0
        %2253 = vmatpush1.bf16.xpose.msra.mxu0 0
        %2254 = vmatprep.subr.bf16.mxu0 0
        %2255 = vmatpush1.bf16.xpose.msra.mxu0 0
        %2256 = vmatprep.subr.bf16.mxu0 0
        %2257 = vmatpush1.bf16.xpose.msra.mxu0 0
        %2258 = vmatprep.subr.bf16.mxu0 0
        %2259 = vmatpush1.bf16.xpose.msra.mxu0 %v2244
        %2260 = vmatprep.subr.bf16.mxu0 0
        %2261 = vmatpush1.bf16.xpose.msra.mxu0 %v2241
        %2262 = vmatprep.subr.bf16.mxu0 0
        %2263 = vmatpush2.bf16.xpose.msra.mxu0 0
        %2264 = vmatprep.subr.bf16.mxu0 0
        %2265 = vmatpush2.bf16.xpose.msra.mxu0 0
        %2266 = vmatprep.subr.bf16.mxu0 0
        %2267 = vmatpush2.bf16.xpose.msra.mxu0 0
        %2268 = vmatprep.subr.bf16.mxu0 0
        %2269 = vmatpush2.bf16.xpose.msra.mxu0 0
        %2270 = vmatprep.subr.bf16.mxu0 0
        %2271 = vmatpush2.bf16.xpose.msra.mxu0 0
        %2272 = vmatprep.subr.bf16.mxu0 0
        %2273 = vmatpush2.bf16.xpose.msra.mxu0 0
        %2274 = vmatprep.subr.bf16.mxu0 0
        %2275 = vmatpush2.bf16.xpose.msra.mxu0 0
        %2276 = vmatprep.subr.bf16.mxu0 0
        %2277 = vmatpush2.bf16.xpose.msra.mxu0 0
        %2278 = vmatprep.mubr.bf16.mxu0 0
        %2279 = vmatmul.mubr.bf16.gmra.mxu0 %v2238
        %v2280 = vpop.f32.mrf.mxu0
        %v2281 = vadd.f32 0.0, %v2280
        %v2282 = vpop.f32.mrf.mxu0
        %v2283 = vpop.f32.mrf.mxu0
        %v2284 = vpop.f32.mrf.mxu0
        %2285 = vdwg.mxu0
        %v2286 = vmul.f32 %v2281, 0.25
        %v2287 = vsel %vm1687, %v2286, -inf
        %2288 = vmax.xlane.f32.xlu0 %v2287
        %v2289 = vpop.xlane.xlu0 %2288
        %v2290 = vsub.f32 %v2286, %v2289
        %v2291 = vmul.f32 %v2290, 1.442695
        %v2292 = vpow.pop %v2291
        %v2293 = vsel %vm1687, %v2292, 0.0
        %2294 = vadd.xlane.f32.xlu0 %v2293
        %v2295 = vpop.xlane.xlu0 %2294
        %v2296 = vrcp.pop %v2295
        %v2297 = vmul.f32 %v2292, %v2296
        %v2298 = vpack.c.bf16 %v2297, %v2297
        %2299 = vrot.lane.b32.xlu0 %v1634, 48
        %v2300 = vpop.permute.xlu0 %2299
        %2301 = vrot.lane.b32.xlu0 %v1635, 48
        %v2302 = vpop.permute.xlu0 %2301
        %v2305 = vsel %vm1687, %v2298, 0
        %v2308 = vand.u32 %v2302, %v1706
        %2310 = vmatprep.subr.bf16.mxu0 0
        %2311 = vmatpush1.bf16.msra.mxu0 0
        %2312 = vmatprep.subr.bf16.mxu0 0
        %2313 = vmatpush1.bf16.msra.mxu0 0
        %2314 = vmatprep.subr.bf16.mxu0 0
        %2315 = vmatpush1.bf16.msra.mxu0 0
        %2316 = vmatprep.subr.bf16.mxu0 0
        %2317 = vmatpush1.bf16.msra.mxu0 0
        %2318 = vmatprep.subr.bf16.mxu0 0
        %2319 = vmatpush1.bf16.msra.mxu0 0
        %2320 = vmatprep.subr.bf16.mxu0 0
        %2321 = vmatpush1.bf16.msra.mxu0 0
        %2322 = vmatprep.subr.bf16.mxu0 0
        %2323 = vmatpush1.bf16.msra.mxu0 %v2308
        %2324 = vmatprep.subr.bf16.mxu0 0
        %2325 = vmatpush1.bf16.msra.mxu0 %v2300
        %2326 = vmatprep.subr.bf16.mxu0 0
        %2327 = vmatpush2.bf16.msra.mxu0 0
        %2328 = vmatprep.subr.bf16.mxu0 0
        %2329 = vmatpush2.bf16.msra.mxu0 0
        %2330 = vmatprep.subr.bf16.mxu0 0
        %2331 = vmatpush2.bf16.msra.mxu0 0
        %2332 = vmatprep.subr.bf16.mxu0 0
        %2333 = vmatpush2.bf16.msra.mxu0 0
        %2334 = vmatprep.subr.bf16.mxu0 0
        %2335 = vmatpush2.bf16.msra.mxu0 0
        %2336 = vmatprep.subr.bf16.mxu0 0
        %2337 = vmatpush2.bf16.msra.mxu0 0
        %2338 = vmatprep.subr.bf16.mxu0 0
        %2339 = vmatpush2.bf16.msra.mxu0 0
        %2340 = vmatprep.subr.bf16.mxu0 0
        %2341 = vmatpush2.bf16.msra.mxu0 0
        %2342 = vmatprep.mubr.bf16.mxu0 0
        %2343 = vmatmul.mubr.bf16.gmra.mxu0 %v2305
        %v2344 = vpop.f32.mrf.mxu0
        %v2345 = vadd.f32 0.0, %v2344
        %v2346 = vpop.f32.mrf.mxu0
        %v2347 = vpop.f32.mrf.mxu0
        %v2348 = vpop.f32.mrf.mxu0
        %2349 = vdwg.mxu0
        %2350 = vrot.lane.b32.xlu0 %v1631, 32
        %v2351 = vpop.permute.xlu0 %2350
        %2352 = vrot.lane.b32.xlu0 %v1632, 32
        %v2353 = vpop.permute.xlu0 %2352
        %2354 = vrot.lane.b32.xlu0 %v1633, 32
        %v2355 = vpop.permute.xlu0 %2354
        %v2357 = vsel %vm1636, %v2351, 0
        %v2360 = vsel %vm1636, %v2353, 0
        %v2363 = vsel %vm1636, %v2355, 0
        %2365 = vmatprep.subr.bf16.mxu0 0
        %2366 = vmatpush1.bf16.xpose.msra.mxu0 0
        %2367 = vmatprep.subr.bf16.mxu0 0
        %2368 = vmatpush1.bf16.xpose.msra.mxu0 0
        %2369 = vmatprep.subr.bf16.mxu0 0
        %2370 = vmatpush1.bf16.xpose.msra.mxu0 0
        %2371 = vmatprep.subr.bf16.mxu0 0
        %2372 = vmatpush1.bf16.xpose.msra.mxu0 0
        %2373 = vmatprep.subr.bf16.mxu0 0
        %2374 = vmatpush1.bf16.xpose.msra.mxu0 0
        %2375 = vmatprep.subr.bf16.mxu0 0
        %2376 = vmatpush1.bf16.xpose.msra.mxu0 0
        %2377 = vmatprep.subr.bf16.mxu0 0
        %2378 = vmatpush1.bf16.xpose.msra.mxu0 %v2363
        %2379 = vmatprep.subr.bf16.mxu0 0
        %2380 = vmatpush1.bf16.xpose.msra.mxu0 %v2360
        %2381 = vmatprep.subr.bf16.mxu0 0
        %2382 = vmatpush2.bf16.xpose.msra.mxu0 0
        %2383 = vmatprep.subr.bf16.mxu0 0
        %2384 = vmatpush2.bf16.xpose.msra.mxu0 0
        %2385 = vmatprep.subr.bf16.mxu0 0
        %2386 = vmatpush2.bf16.xpose.msra.mxu0 0
        %2387 = vmatprep.subr.bf16.mxu0 0
        %2388 = vmatpush2.bf16.xpose.msra.mxu0 0
        %2389 = vmatprep.subr.bf16.mxu0 0
        %2390 = vmatpush2.bf16.xpose.msra.mxu0 0
        %2391 = vmatprep.subr.bf16.mxu0 0
        %2392 = vmatpush2.bf16.xpose.msra.mxu0 0
        %2393 = vmatprep.subr.bf16.mxu0 0
        %2394 = vmatpush2.bf16.xpose.msra.mxu0 0
        %2395 = vmatprep.subr.bf16.mxu0 0
        %2396 = vmatpush2.bf16.xpose.msra.mxu0 0
        %2397 = vmatprep.mubr.bf16.mxu0 0
        %2398 = vmatmul.mubr.bf16.gmra.mxu0 %v2357
        %v2399 = vpop.f32.mrf.mxu0
        %v2400 = vadd.f32 0.0, %v2399
        %v2401 = vpop.f32.mrf.mxu0
        %v2402 = vpop.f32.mrf.mxu0
        %v2403 = vpop.f32.mrf.mxu0
        %2404 = vdwg.mxu0
        %v2405 = vmul.f32 %v2400, 0.25
        %v2406 = vsel %vm1687, %v2405, -inf
        %2407 = vmax.xlane.f32.xlu0 %v2406
        %v2408 = vpop.xlane.xlu0 %2407
        %v2409 = vsub.f32 %v2405, %v2408
        %v2410 = vmul.f32 %v2409, 1.442695
        %v2411 = vpow.pop %v2410
        %v2412 = vsel %vm1687, %v2411, 0.0
        %2413 = vadd.xlane.f32.xlu0 %v2412
        %v2414 = vpop.xlane.xlu0 %2413
        %v2415 = vrcp.pop %v2414
        %v2416 = vmul.f32 %v2411, %v2415
        %v2417 = vpack.c.bf16 %v2416, %v2416
        %2418 = vrot.lane.b32.xlu0 %v1634, 32
        %v2419 = vpop.permute.xlu0 %2418
        %2420 = vrot.lane.b32.xlu0 %v1635, 32
        %v2421 = vpop.permute.xlu0 %2420
        %v2424 = vsel %vm1687, %v2417, 0
        %v2427 = vand.u32 %v2421, %v1706
        %2429 = vmatprep.subr.bf16.mxu0 0
        %2430 = vmatpush1.bf16.msra.mxu0 0
        %2431 = vmatprep.subr.bf16.mxu0 0
        %2432 = vmatpush1.bf16.msra.mxu0 0
        %2433 = vmatprep.subr.bf16.mxu0 0
        %2434 = vmatpush1.bf16.msra.mxu0 0
        %2435 = vmatprep.subr.bf16.mxu0 0
        %2436 = vmatpush1.bf16.msra.mxu0 0
        %2437 = vmatprep.subr.bf16.mxu0 0
        %2438 = vmatpush1.bf16.msra.mxu0 0
        %2439 = vmatprep.subr.bf16.mxu0 0
        %2440 = vmatpush1.bf16.msra.mxu0 0
        %2441 = vmatprep.subr.bf16.mxu0 0
        %2442 = vmatpush1.bf16.msra.mxu0 %v2427
        %2443 = vmatprep.subr.bf16.mxu0 0
        %2444 = vmatpush1.bf16.msra.mxu0 %v2419
        %2445 = vmatprep.subr.bf16.mxu0 0
        %2446 = vmatpush2.bf16.msra.mxu0 0
        %2447 = vmatprep.subr.bf16.mxu0 0
        %2448 = vmatpush2.bf16.msra.mxu0 0
        %2449 = vmatprep.subr.bf16.mxu0 0
        %2450 = vmatpush2.bf16.msra.mxu0 0
        %2451 = vmatprep.subr.bf16.mxu0 0
        %2452 = vmatpush2.bf16.msra.mxu0 0
        %2453 = vmatprep.subr.bf16.mxu0 0
        %2454 = vmatpush2.bf16.msra.mxu0 0
        %2455 = vmatprep.subr.bf16.mxu0 0
        %2456 = vmatpush2.bf16.msra.mxu0 0
        %2457 = vmatprep.subr.bf16.mxu0 0
        %2458 = vmatpush2.bf16.msra.mxu0 0
        %2459 = vmatprep.subr.bf16.mxu0 0
        %2460 = vmatpush2.bf16.msra.mxu0 0
        %2461 = vmatprep.mubr.bf16.mxu0 0
        %2462 = vmatmul.mubr.bf16.gmra.mxu0 %v2424
        %v2463 = vpop.f32.mrf.mxu0
        %v2464 = vadd.f32 0.0, %v2463
        %v2465 = vpop.f32.mrf.mxu0
        %v2466 = vpop.f32.mrf.mxu0
        %v2467 = vpop.f32.mrf.mxu0
        %2468 = vdwg.mxu0
        %2469 = vrot.lane.b32.xlu0 %v1631, 16
        %v2470 = vpop.permute.xlu0 %2469
        %2471 = vrot.lane.b32.xlu0 %v1632, 16
        %v2472 = vpop.permute.xlu0 %2471
        %2473 = vrot.lane.b32.xlu0 %v1633, 16
        %v2474 = vpop.permute.xlu0 %2473
        %v2476 = vsel %vm1636, %v2470, 0
        %v2479 = vsel %vm1636, %v2472, 0
        %v2482 = vsel %vm1636, %v2474, 0
        %2484 = vmatprep.subr.bf16.mxu0 0
        %2485 = vmatpush1.bf16.xpose.msra.mxu0 0
        %2486 = vmatprep.subr.bf16.mxu0 0
        %2487 = vmatpush1.bf16.xpose.msra.mxu0 0
        %2488 = vmatprep.subr.bf16.mxu0 0
        %2489 = vmatpush1.bf16.xpose.msra.mxu0 0
        %2490 = vmatprep.subr.bf16.mxu0 0
        %2491 = vmatpush1.bf16.xpose.msra.mxu0 0
        %2492 = vmatprep.subr.bf16.mxu0 0
        %2493 = vmatpush1.bf16.xpose.msra.mxu0 0
        %2494 = vmatprep.subr.bf16.mxu0 0
        %2495 = vmatpush1.bf16.xpose.msra.mxu0 0
        %2496 = vmatprep.subr.bf16.mxu0 0
        %2497 = vmatpush1.bf16.xpose.msra.mxu0 %v2482
        %2498 = vmatprep.subr.bf16.mxu0 0
        %2499 = vmatpush1.bf16.xpose.msra.mxu0 %v2479
        %2500 = vmatprep.subr.bf16.mxu0 0
        %2501 = vmatpush2.bf16.xpose.msra.mxu0 0
        %2502 = vmatprep.subr.bf16.mxu0 0
        %2503 = vmatpush2.bf16.xpose.msra.mxu0 0
        %2504 = vmatprep.subr.bf16.mxu0 0
        %2505 = vmatpush2.bf16.xpose.msra.mxu0 0
        %2506 = vmatprep.subr.bf16.mxu0 0
        %2507 = vmatpush2.bf16.xpose.msra.mxu0 0
        %2508 = vmatprep.subr.bf16.mxu0 0
        %2509 = vmatpush2.bf16.xpose.msra.mxu0 0
        %2510 = vmatprep.subr.bf16.mxu0 0
        %2511 = vmatpush2.bf16.xpose.msra.mxu0 0
        %2512 = vmatprep.subr.bf16.mxu0 0
        %2513 = vmatpush2.bf16.xpose.msra.mxu0 0
        %2514 = vmatprep.subr.bf16.mxu0 0
        %2515 = vmatpush2.bf16.xpose.msra.mxu0 0
        %2516 = vmatprep.mubr.bf16.mxu0 0
        %2517 = vmatmul.mubr.bf16.gmra.mxu0 %v2476
        %v2518 = vpop.f32.mrf.mxu0
        %v2519 = vadd.f32 0.0, %v2518
        %v2520 = vpop.f32.mrf.mxu0
        %v2521 = vpop.f32.mrf.mxu0
        %v2522 = vpop.f32.mrf.mxu0
        %2523 = vdwg.mxu0
        %v2524 = vmul.f32 %v2519, 0.25
        %v2525 = vsel %vm1687, %v2524, -inf
        %2526 = vmax.xlane.f32.xlu0 %v2525
        %v2527 = vpop.xlane.xlu0 %2526
        %v2528 = vsub.f32 %v2524, %v2527
        %v2529 = vmul.f32 %v2528, 1.442695
        %v2530 = vpow.pop %v2529
        %v2531 = vsel %vm1687, %v2530, 0.0
        %2532 = vadd.xlane.f32.xlu0 %v2531
        %v2533 = vpop.xlane.xlu0 %2532
        %v2534 = vrcp.pop %v2533
        %v2535 = vmul.f32 %v2530, %v2534
        %v2536 = vpack.c.bf16 %v2535, %v2535
        %2537 = vrot.lane.b32.xlu0 %v1634, 16
        %v2538 = vpop.permute.xlu0 %2537
        %2539 = vrot.lane.b32.xlu0 %v1635, 16
        %v2540 = vpop.permute.xlu0 %2539
        %v2543 = vsel %vm1687, %v2536, 0
        %v2546 = vand.u32 %v2540, %v1706
        %2548 = vmatprep.subr.bf16.mxu0 0
        %2549 = vmatpush1.bf16.msra.mxu0 0
        %2550 = vmatprep.subr.bf16.mxu0 0
        %2551 = vmatpush1.bf16.msra.mxu0 0
        %2552 = vmatprep.subr.bf16.mxu0 0
        %2553 = vmatpush1.bf16.msra.mxu0 0
        %2554 = vmatprep.subr.bf16.mxu0 0
        %2555 = vmatpush1.bf16.msra.mxu0 0
        %2556 = vmatprep.subr.bf16.mxu0 0
        %2557 = vmatpush1.bf16.msra.mxu0 0
        %2558 = vmatprep.subr.bf16.mxu0 0
        %2559 = vmatpush1.bf16.msra.mxu0 0
        %2560 = vmatprep.subr.bf16.mxu0 0
        %2561 = vmatpush1.bf16.msra.mxu0 %v2546
        %2562 = vmatprep.subr.bf16.mxu0 0
        %2563 = vmatpush1.bf16.msra.mxu0 %v2538
        %2564 = vmatprep.subr.bf16.mxu0 0
        %2565 = vmatpush2.bf16.msra.mxu0 0
        %2566 = vmatprep.subr.bf16.mxu0 0
        %2567 = vmatpush2.bf16.msra.mxu0 0
        %2568 = vmatprep.subr.bf16.mxu0 0
        %2569 = vmatpush2.bf16.msra.mxu0 0
        %2570 = vmatprep.subr.bf16.mxu0 0
        %2571 = vmatpush2.bf16.msra.mxu0 0
        %2572 = vmatprep.subr.bf16.mxu0 0
        %2573 = vmatpush2.bf16.msra.mxu0 0
        %2574 = vmatprep.subr.bf16.mxu0 0
        %2575 = vmatpush2.bf16.msra.mxu0 0
        %2576 = vmatprep.subr.bf16.mxu0 0
        %2577 = vmatpush2.bf16.msra.mxu0 0
        %2578 = vmatprep.subr.bf16.mxu0 0
        %2579 = vmatpush2.bf16.msra.mxu0 0
        %2580 = vmatprep.mubr.bf16.mxu0 0
        %2581 = vmatmul.mubr.bf16.gmra.mxu0 %v2543
        %v2582 = vpop.f32.mrf.mxu0
        %v2583 = vadd.f32 0.0, %v2582
        %v2584 = vpop.f32.mrf.mxu0
        %v2585 = vpop.f32.mrf.mxu0
        %v2586 = vpop.f32.mrf.mxu0
        %2587 = vdwg.mxu0
        %2589 = vrot.lane.b32.xlu0 %v1869, 16
        %v2590 = vpop.permute.xlu0 %2589
        %2593 = vrot.lane.b32.xlu0 %v1988, 32
        %v2594 = vpop.permute.xlu0 %2593
        %2597 = vrot.lane.b32.xlu0 %v2107, 48
        %v2598 = vpop.permute.xlu0 %2597
        %2601 = vrot.lane.b32.xlu0 %v2226, 64
        %v2602 = vpop.permute.xlu0 %2601
        %2605 = vrot.lane.b32.xlu0 %v2345, 80
        %v2606 = vpop.permute.xlu0 %2605
        %2609 = vrot.lane.b32.xlu0 %v2464, 96
        %v2610 = vpop.permute.xlu0 %2609
        %2613 = vrot.lane.b32.xlu0 %v2583, 112
        %v2614 = vpop.permute.xlu0 %2613
        %v2616 = vsel %vm1636, %v1745, %v2590
        %vm2617 = vcmask 261120
        %v2618 = vsel %vm2617, %v2616, %v2594
        %vm2619 = vcmask 392192
        %v2620 = vsel %vm2619, %v2618, %v2598
        %vm2621 = vcmask 523264
        %v2622 = vsel %vm2621, %v2620, %v2602
        %vm2623 = vcmask 654336
        %v2624 = vsel %vm2623, %v2622, %v2606
        %vm2625 = vcmask 785408
        %v2626 = vsel %vm2625, %v2624, %v2610
        %vm2627 = vcmask 916480
        %v2628 = vsel %vm2627, %v2626, %v2614
        %v2629 = vpack.c.bf16 %v2628, %v2628
        %v2630 = vld [vmem:[%s17] sm:$0xf]
        %v2631 = vld [vmem:[%s17 + $0x4] sm:$0xf]
        %v2632 = vld [vmem:[%s17 + $0x8] sm:$0xf]
        %v2633 = vld [vmem:[%s17 + $0xc] sm:$0xf]
        %v2634 = vld [vmem:[%s17 + $0x10] sm:$0xf]
        %v2635 = vld [vmem:[%s17 + $0x14] sm:$0xf]
        %v2636 = vld [vmem:[%s17 + $0x18] sm:$0xf]
        %v2637 = vld [vmem:[%s17 + $0x1c] sm:$0xf]
        %v2638 = vld [vmem:[%s17 + $0x20] sm:$0xf]
        %v2639 = vld [vmem:[%s17 + $0x24] sm:$0xf]
        %v2640 = vld [vmem:[%s17 + $0x28] sm:$0xf]
        %v2641 = vld [vmem:[%s17 + $0x2c] sm:$0xf]
        %v2642 = vld [vmem:[%s17 + $0x30] sm:$0xf]
        %v2643 = vld [vmem:[%s17 + $0x34] sm:$0xf]
        %v2644 = vld [vmem:[%s17 + $0x38] sm:$0xf]
        %v2645 = vld [vmem:[%s17 + $0x3c] sm:$0xf]
        %v2646 = vld [vmem:[%s18] sm:$0x1]
        %v2648 = vlaneseq
        %v2649 = vshrl.u32 %v2648, 7
        %v2650 = vsub.s32 0, %v2649
        %v2651 = vrot.slane %v2646, %v2650
        %v2669 = vunpack.c.l.b16 %v2630
        %v2670 = vunpack.c.l.b16 %v2631
        %v2671 = vunpack.c.l.b16 %v2632
        %v2672 = vunpack.c.l.b16 %v2633
        %v2673 = vunpack.c.l.b16 %v2634
        %v2674 = vunpack.c.l.b16 %v2635
        %v2675 = vunpack.c.l.b16 %v2636
        %v2676 = vunpack.c.l.b16 %v2637
        %v2677 = vunpack.c.l.b16 %v2638
        %v2678 = vunpack.c.l.b16 %v2639
        %v2679 = vunpack.c.l.b16 %v2640
        %v2680 = vunpack.c.l.b16 %v2641
        %v2681 = vunpack.c.l.b16 %v2642
        %v2682 = vunpack.c.l.b16 %v2643
        %v2683 = vunpack.c.l.b16 %v2644
        %v2684 = vunpack.c.l.b16 %v2645
        %v2685 = vpack.c.b16 %v2670, %v2669
        %v2686 = vpack.c.b16 %v2672, %v2671
        %v2687 = vpack.c.b16 %v2674, %v2673
        %v2688 = vpack.c.b16 %v2676, %v2675
        %v2689 = vpack.c.b16 %v2678, %v2677
        %v2690 = vpack.c.b16 %v2680, %v2679
        %v2691 = vpack.c.b16 %v2682, %v2681
        %v2692 = vpack.c.b16 %v2684, %v2683
        %2701 = vmatprep.subr.bf16.mxu0 0
        %2702 = vmatpush1.bf16.msra.mxu0 %v2692
        %2703 = vmatprep.subr.bf16.mxu0 0
        %2704 = vmatpush1.bf16.msra.mxu0 %v2691
        %2705 = vmatprep.subr.bf16.mxu0 0
        %2706 = vmatpush1.bf16.msra.mxu0 %v2690
        %2707 = vmatprep.subr.bf16.mxu0 0
        %2708 = vmatpush1.bf16.msra.mxu0 %v2689
        %2709 = vmatprep.subr.bf16.mxu0 0
        %2710 = vmatpush1.bf16.msra.mxu0 %v2688
        %2711 = vmatprep.subr.bf16.mxu0 0
        %2712 = vmatpush1.bf16.msra.mxu0 %v2687
        %2713 = vmatprep.subr.bf16.mxu0 0
        %2714 = vmatpush1.bf16.msra.mxu0 %v2686
        %2715 = vmatprep.subr.bf16.mxu0 0
        %2716 = vmatpush1.bf16.msra.mxu0 %v2685
        %2717 = vmatprep.subr.bf16.mxu0 0
        %2718 = vmatpush2.bf16.msra.mxu0 0
        %2719 = vmatprep.subr.bf16.mxu0 0
        %2720 = vmatpush2.bf16.msra.mxu0 0
        %2721 = vmatprep.subr.bf16.mxu0 0
        %2722 = vmatpush2.bf16.msra.mxu0 0
        %2723 = vmatprep.subr.bf16.mxu0 0
        %2724 = vmatpush2.bf16.msra.mxu0 0
        %2725 = vmatprep.subr.bf16.mxu0 0
        %2726 = vmatpush2.bf16.msra.mxu0 0
        %2727 = vmatprep.subr.bf16.mxu0 0
        %2728 = vmatpush2.bf16.msra.mxu0 0
        %2729 = vmatprep.subr.bf16.mxu0 0
        %2730 = vmatpush2.bf16.msra.mxu0 0
        %2731 = vmatprep.subr.bf16.mxu0 0
        %2732 = vmatpush2.bf16.msra.mxu0 0
        %2733 = vmatprep.mubr.bf16.mxu0 0
        %2734 = vmatmul.mubr.bf16.gmra.mxu0 %v2629
        %v2735 = vpop.f32.mrf.mxu0
        %v2736 = vadd.f32 %v2651, %v2735
        %v2737 = vpop.f32.mrf.mxu0
        %v2738 = vpop.f32.mrf.mxu0
        %v2739 = vpop.f32.mrf.mxu0
        %2740 = vdwg.mxu0
        %v2741 = vadd.f32 %v1258, %v2736
        %v2742 = vld [vmem:[%s19] sm:$0x1]
        %v2743 = vld [vmem:[%s20] sm:$0x1]
        %2744 = vadd.xlane.f32.xlu0 %v2741
        %v2745 = vpop.xlane.xlu0 %2744
        %v2746 = vmul.f32 %v2745, %v1263
        %v2747 = vsub.f32 %v2741, %v2746
        %v2748 = vmul.f32 %v2747, %v2747
        %2749 = vadd.xlane.f32.xlu0 %v2748
        %v2750 = vpop.xlane.xlu0 %2749
        %v2751 = vmul.f32 %v2750, %v1263
        %v2752 = vadd.f32 %v2751, 1e-05
        %v2753 = vrsqrt.pop %v2752
        %v2754 = vmul.f32 %v2747, %v2753
        %v2756 = vlaneseq
        %v2757 = vshrl.u32 %v2756, 7
        %v2758 = vsub.s32 0, %v2757
        %v2759 = vrot.slane %v2742, %v2758
        %v2761 = vmul.f32 %v2754, %v2759
        %v2763 = vlaneseq
        %v2764 = vshrl.u32 %v2763, 7
        %v2765 = vsub.s32 0, %v2764
        %v2766 = vrot.slane %v2743, %v2765
        %v2768 = vadd.f32 %v2761, %v2766
        %v2769 = vpack.c.bf16 %v2768, %v2768
        %v2770 = vld [vmem:[%s21] sm:$0xff]
        %v2771 = vld [vmem:[%s21 + $0x8] sm:$0xff]
        %v2772 = vld [vmem:[%s21 + $0x10] sm:$0xff]
        %v2773 = vld [vmem:[%s21 + $0x18] sm:$0xff]
        %v2774 = vld [vmem:[%s21 + $0x20] sm:$0xff]
        %v2775 = vld [vmem:[%s21 + $0x28] sm:$0xff]
        %v2776 = vld [vmem:[%s21 + $0x30] sm:$0xff]
        %v2777 = vld [vmem:[%s21 + $0x38] sm:$0xff]
        %v2778 = vld [vmem:[%s21 + $0x40] sm:$0xff]
        %v2779 = vld [vmem:[%s21 + $0x48] sm:$0xff]
        %v2780 = vld [vmem:[%s21 + $0x50] sm:$0xff]
        %v2781 = vld [vmem:[%s21 + $0x58] sm:$0xff]
        %v2782 = vld [vmem:[%s21 + $0x60] sm:$0xff]
        %v2783 = vld [vmem:[%s21 + $0x68] sm:$0xff]
        %v2784 = vld [vmem:[%s21 + $0x70] sm:$0xff]
        %v2785 = vld [vmem:[%s21 + $0x78] sm:$0xff]
        %v2786 = vld [vmem:[%s22] sm:$0x3]
        %v2788 = vlaneseq
        %v2789 = vshrl.u32 %v2788, 7
        %v2790 = vsub.s32 0, %v2789
        %v2791 = vrot.slane %v2786, %v2790
        %v2792 = vlaneseq
        %v2793 = vshrl.u32 %v2792, 7
        %v2794 = vsub.s32 1, %v2793
        %v2795 = vrot.slane %v2786, %v2794
        %v2814 = vunpack.c.l.b16 %v2770
        %v2815 = vunpack.c.h.b16 %v2770
        %v2816 = vunpack.c.l.b16 %v2771
        %v2817 = vunpack.c.h.b16 %v2771
        %v2818 = vunpack.c.l.b16 %v2772
        %v2819 = vunpack.c.h.b16 %v2772
        %v2820 = vunpack.c.l.b16 %v2773
        %v2821 = vunpack.c.h.b16 %v2773
        %v2822 = vunpack.c.l.b16 %v2774
        %v2823 = vunpack.c.h.b16 %v2774
        %v2824 = vunpack.c.l.b16 %v2775
        %v2825 = vunpack.c.h.b16 %v2775
        %v2826 = vunpack.c.l.b16 %v2776
        %v2827 = vunpack.c.h.b16 %v2776
        %v2828 = vunpack.c.l.b16 %v2777
        %v2829 = vunpack.c.h.b16 %v2777
        %v2830 = vunpack.c.l.b16 %v2778
        %v2831 = vunpack.c.h.b16 %v2778
        %v2832 = vunpack.c.l.b16 %v2779
        %v2833 = vunpack.c.h.b16 %v2779
        %v2834 = vunpack.c.l.b16 %v2780
        %v2835 = vunpack.c.h.b16 %v2780
        %v2836 = vunpack.c.l.b16 %v2781
        %v2837 = vunpack.c.h.b16 %v2781
        %v2838 = vunpack.c.l.b16 %v2782
        %v2839 = vunpack.c.h.b16 %v2782
        %v2840 = vunpack.c.l.b16 %v2783
        %v2841 = vunpack.c.h.b16 %v2783
        %v2842 = vunpack.c.l.b16 %v2784
        %v2843 = vunpack.c.h.b16 %v2784
        %v2844 = vunpack.c.l.b16 %v2785
        %v2845 = vunpack.c.h.b16 %v2785
        %v2846 = vpack.c.b16 %v2816, %v2814
        %v2847 = vpack.c.b16 %v2817, %v2815
        %v2848 = vpack.c.b16 %v2820, %v2818
        %v2849 = vpack.c.b16 %v2821, %v2819
        %v2850 = vpack.c.b16 %v2824, %v2822
        %v2851 = vpack.c.b16 %v2825, %v2823
        %v2852 = vpack.c.b16 %v2828, %v2826
        %v2853 = vpack.c.b16 %v2829, %v2827
        %v2854 = vpack.c.b16 %v2832, %v2830
        %v2855 = vpack.c.b16 %v2833, %v2831
        %v2856 = vpack.c.b16 %v2836, %v2834
        %v2857 = vpack.c.b16 %v2837, %v2835
        %v2858 = vpack.c.b16 %v2840, %v2838
        %v2859 = vpack.c.b16 %v2841, %v2839
        %v2860 = vpack.c.b16 %v2844, %v2842
        %v2861 = vpack.c.b16 %v2845, %v2843
        %2878 = vmatprep.subr.bf16.mxu0 %v2861
        %2879 = vmatpush1.bf16.msra.mxu0 %v2860
        %2880 = vmatprep.subr.bf16.mxu0 %v2859
        %2881 = vmatpush1.bf16.msra.mxu0 %v2858
        %2882 = vmatprep.subr.bf16.mxu0 %v2857
        %2883 = vmatpush1.bf16.msra.mxu0 %v2856
        %2884 = vmatprep.subr.bf16.mxu0 %v2855
        %2885 = vmatpush1.bf16.msra.mxu0 %v2854
        %2886 = vmatprep.subr.bf16.mxu0 %v2853
        %2887 = vmatpush1.bf16.msra.mxu0 %v2852
        %2888 = vmatprep.subr.bf16.mxu0 %v2851
        %2889 = vmatpush1.bf16.msra.mxu0 %v2850
        %2890 = vmatprep.subr.bf16.mxu0 %v2849
        %2891 = vmatpush1.bf16.msra.mxu0 %v2848
        %2892 = vmatprep.subr.bf16.mxu0 %v2847
        %2893 = vmatpush1.bf16.msra.mxu0 %v2846
        %2894 = vmatprep.subr.bf16.mxu0 0
        %2895 = vmatpush2.bf16.msra.mxu0 0
        %2896 = vmatprep.subr.bf16.mxu0 0
        %2897 = vmatpush2.bf16.msra.mxu0 0
        %2898 = vmatprep.subr.bf16.mxu0 0
        %2899 = vmatpush2.bf16.msra.mxu0 0
        %2900 = vmatprep.subr.bf16.mxu0 0
        %2901 = vmatpush2.bf16.msra.mxu0 0
        %2902 = vmatprep.subr.bf16.mxu0 0
        %2903 = vmatpush2.bf16.msra.mxu0 0
        %2904 = vmatprep.subr.bf16.mxu0 0
        %2905 = vmatpush2.bf16.msra.mxu0 0
        %2906 = vmatprep.subr.bf16.mxu0 0
        %2907 = vmatpush2.bf16.msra.mxu0 0
        %2908 = vmatprep.subr.bf16.mxu0 0
        %2909 = vmatpush2.bf16.msra.mxu0 0
        %2910 = vmatprep.mubr.bf16.mxu0 0
        %2911 = vmatmul.mubr.bf16.gmra.mxu0 %v2769
        %v2912 = vpop.f32.mrf.mxu0
        %v2913 = vadd.f32 %v2791, %v2912
        %v2914 = vpop.f32.mrf.mxu0
        %v2915 = vadd.f32 %v2795, %v2914
        %v2916 = vpop.f32.mrf.mxu0
        %v2917 = vpop.f32.mrf.mxu0
        %2918 = vdwg.mxu0
        %v2919 = vmul.f32 %v2913, 0.5
        %v2920 = vmul.f32 %v2915, 0.5
        %v2921 = vmul.f32 %v2913, 0.044715
        %v2922 = vmul.f32 %v2915, 0.044715
        %v2923 = vmul.f32 %v2921, %v2913
        %v2924 = vmul.f32 %v2922, %v2915
        %v2925 = vmul.f32 %v2923, %v2913
        %v2926 = vmul.f32 %v2924, %v2915
        %v2927 = vadd.f32 %v2913, %v2925
        %v2928 = vadd.f32 %v2915, %v2926
        %v2929 = vmul.f32 %v2927, 0.7978846
        %v2930 = vmul.f32 %v2928, 0.7978846
        %v2931 = vtanh.pop %v2929
        %v2932 = vtanh.pop %v2930
        %v2933 = vadd.f32 %v2931, 1.0
        %v2934 = vadd.f32 %v2932, 1.0
        %v2935 = vmul.f32 %v2919, %v2933
        %v2936 = vmul.f32 %v2920, %v2934
        %v2937 = vpack.c.bf16 %v2935, %v2935
        %v2938 = vpack.c.bf16 %v2936, %v2936
        %v2939 = vld [vmem:[%s23] sm:$0xf]
        %v2940 = vld [vmem:[%s23 + $0x4] sm:$0xf]
        %v2941 = vld [vmem:[%s23 + $0x8] sm:$0xf]
        %v2942 = vld [vmem:[%s23 + $0xc] sm:$0xf]
        %v2943 = vld [vmem:[%s23 + $0x10] sm:$0xf]
        %v2944 = vld [vmem:[%s23 + $0x14] sm:$0xf]
        %v2945 = vld [vmem:[%s23 + $0x18] sm:$0xf]
        %v2946 = vld [vmem:[%s23 + $0x1c] sm:$0xf]
        %v2947 = vld [vmem:[%s23 + $0x20] sm:$0xf]
        %v2948 = vld [vmem:[%s23 + $0x24] sm:$0xf]
        %v2949 = vld [vmem:[%s23 + $0x28] sm:$0xf]
        %v2950 = vld [vmem:[%s23 + $0x2c] sm:$0xf]
        %v2951 = vld [vmem:[%s23 + $0x30] sm:$0xf]
        %v2952 = vld [vmem:[%s23 + $0x34] sm:$0xf]
        %v2953 = vld [vmem:[%s23 + $0x38] sm:$0xf]
        %v2954 = vld [vmem:[%s23 + $0x3c] sm:$0xf]
        %v2955 = vld [vmem:[%s23 + $0x40] sm:$0xf]
        %v2956 = vld [vmem:[%s23 + $0x44] sm:$0xf]
        %v2957 = vld [vmem:[%s23 + $0x48] sm:$0xf]
        %v2958 = vld [vmem:[%s23 + $0x4c] sm:$0xf]
        %v2959 = vld [vmem:[%s23 + $0x50] sm:$0xf]
        %v2960 = vld [vmem:[%s23 + $0x54] sm:$0xf]
        %v2961 = vld [vmem:[%s23 + $0x58] sm:$0xf]
        %v2962 = vld [vmem:[%s23 + $0x5c] sm:$0xf]
        %v2963 = vld [vmem:[%s23 + $0x60] sm:$0xf]
        %v2964 = vld [vmem:[%s23 + $0x64] sm:$0xf]
        %v2965 = vld [vmem:[%s23 + $0x68] sm:$0xf]
        %v2966 = vld [vmem:[%s23 + $0x6c] sm:$0xf]
        %v2967 = vld [vmem:[%s23 + $0x70] sm:$0xf]
        %v2968 = vld [vmem:[%s23 + $0x74] sm:$0xf]
        %v2969 = vld [vmem:[%s23 + $0x78] sm:$0xf]
        %v2970 = vld [vmem:[%s23 + $0x7c] sm:$0xf]
        %v2971 = vld [vmem:[%s24] sm:$0x1]
        %v2973 = vlaneseq
        %v2974 = vshrl.u32 %v2973, 7
        %v2975 = vsub.s32 0, %v2974
        %v2976 = vrot.slane %v2971, %v2975
        %v3010 = vunpack.c.l.b16 %v2939
        %v3011 = vunpack.c.l.b16 %v2940
        %v3012 = vunpack.c.l.b16 %v2941
        %v3013 = vunpack.c.l.b16 %v2942
        %v3014 = vunpack.c.l.b16 %v2943
        %v3015 = vunpack.c.l.b16 %v2944
        %v3016 = vunpack.c.l.b16 %v2945
        %v3017 = vunpack.c.l.b16 %v2946
        %v3018 = vunpack.c.l.b16 %v2947
        %v3019 = vunpack.c.l.b16 %v2948
        %v3020 = vunpack.c.l.b16 %v2949
        %v3021 = vunpack.c.l.b16 %v2950
        %v3022 = vunpack.c.l.b16 %v2951
        %v3023 = vunpack.c.l.b16 %v2952
        %v3024 = vunpack.c.l.b16 %v2953
        %v3025 = vunpack.c.l.b16 %v2954
        %v3026 = vunpack.c.l.b16 %v2955
        %v3027 = vunpack.c.l.b16 %v2956
        %v3028 = vunpack.c.l.b16 %v2957
        %v3029 = vunpack.c.l.b16 %v2958
        %v3030 = vunpack.c.l.b16 %v2959
        %v3031 = vunpack.c.l.b16 %v2960
        %v3032 = vunpack.c.l.b16 %v2961
        %v3033 = vunpack.c.l.b16 %v2962
        %v3034 = vunpack.c.l.b16 %v2963
        %v3035 = vunpack.c.l.b16 %v2964
        %v3036 = vunpack.c.l.b16 %v2965
        %v3037 = vunpack.c.l.b16 %v2966
        %v3038 = vunpack.c.l.b16 %v2967
        %v3039 = vunpack.c.l.b16 %v2968
        %v3040 = vunpack.c.l.b16 %v2969
        %v3041 = vunpack.c.l.b16 %v2970
        %v3042 = vpack.c.b16 %v3011, %v3010
        %v3043 = vpack.c.b16 %v3013, %v3012
        %v3044 = vpack.c.b16 %v3015, %v3014
        %v3045 = vpack.c.b16 %v3017, %v3016
        %v3046 = vpack.c.b16 %v3019, %v3018
        %v3047 = vpack.c.b16 %v3021, %v3020
        %v3048 = vpack.c.b16 %v3023, %v3022
        %v3049 = vpack.c.b16 %v3025, %v3024
        %v3050 = vpack.c.b16 %v3027, %v3026
        %v3051 = vpack.c.b16 %v3029, %v3028
        %v3052 = vpack.c.b16 %v3031, %v3030
        %v3053 = vpack.c.b16 %v3033, %v3032
        %v3054 = vpack.c.b16 %v3035, %v3034
        %v3055 = vpack.c.b16 %v3037, %v3036
        %v3056 = vpack.c.b16 %v3039, %v3038
        %v3057 = vpack.c.b16 %v3041, %v3040
        %3074 = vmatprep.subr.bf16.mxu0 0
        %3075 = vmatpush1.bf16.msra.mxu0 %v3049
        %3076 = vmatprep.subr.bf16.mxu0 0
        %3077 = vmatpush1.bf16.msra.mxu0 %v3048
        %3078 = vmatprep.subr.bf16.mxu0 0
        %3079 = vmatpush1.bf16.msra.mxu0 %v3047
        %3080 = vmatprep.subr.bf16.mxu0 0
        %3081 = vmatpush1.bf16.msra.mxu0 %v3046
        %3082 = vmatprep.subr.bf16.mxu0 0
        %3083 = vmatpush1.bf16.msra.mxu0 %v3045
        %3084 = vmatprep.subr.bf16.mxu0 0
        %3085 = vmatpush1.bf16.msra.mxu0 %v3044
        %3086 = vmatprep.subr.bf16.mxu0 0
        %3087 = vmatpush1.bf16.msra.mxu0 %v3043
        %3088 = vmatprep.subr.bf16.mxu0 0
        %3089 = vmatpush1.bf16.msra.mxu0 %v3042
        %3090 = vmatprep.subr.bf16.mxu0 0
        %3091 = vmatpush2.bf16.msra.mxu0 %v3057
        %3092 = vmatprep.subr.bf16.mxu0 0
        %3093 = vmatpush2.bf16.msra.mxu0 %v3056
        %3094 = vmatprep.subr.bf16.mxu0 0
        %3095 = vmatpush2.bf16.msra.mxu0 %v3055
        %3096 = vmatprep.subr.bf16.mxu0 0
        %3097 = vmatpush2.bf16.msra.mxu0 %v3054
        %3098 = vmatprep.subr.bf16.mxu0 0
        %3099 = vmatpush2.bf16.msra.mxu0 %v3053
        %3100 = vmatprep.subr.bf16.mxu0 0
        %3101 = vmatpush2.bf16.msra.mxu0 %v3052
        %3102 = vmatprep.subr.bf16.mxu0 0
        %3103 = vmatpush2.bf16.msra.mxu0 %v3051
        %3104 = vmatprep.subr.bf16.mxu0 0
        %3105 = vmatpush2.bf16.msra.mxu0 %v3050
        %3106 = vmatprep.mubr.bf16.mxu0 %v2938
        %3107 = vmatmul.mubr.bf16.gmra.mxu0 %v2937
        %v3108 = vpop.f32.mrf.mxu0
        %v3109 = vadd.f32 %v2976, %v3108
        %v3110 = vpop.f32.mrf.mxu0
        %v3111 = vpop.f32.mrf.mxu0
        %v3112 = vpop.f32.mrf.mxu0
        %3113 = vdwg.mxu0
        %v3114 = vadd.f32 %v2741, %v3109
        %v3115 = vrot.slane %v3114, 4
        %v3116 = vadd.f32 %v3114, %v3115
        %v3117 = vrot.slane %v3116, 2
        %v3118 = vadd.f32 %v3116, %v3117
        %v3119 = vrot.slane %v3118, 1
        %v3120 = vadd.f32 %v3118, %v3119
        %v3121 = vrcp.pop 8.0
        %v3122 = vmul.f32 %v3120, %v3121
        %v3123 = vpack.c.bf16 %v3122, %v3122
        %v3124 = vld [vmem:[%s25] sm:$0xf]
        %v3125 = vld [vmem:[%s25 + $0x4] sm:$0xf]
        %v3126 = vld [vmem:[%s25 + $0x8] sm:$0xf]
        %v3127 = vld [vmem:[%s25 + $0xc] sm:$0xf]
        %v3128 = vld [vmem:[%s25 + $0x10] sm:$0xf]
        %v3129 = vld [vmem:[%s25 + $0x14] sm:$0xf]
        %v3130 = vld [vmem:[%s25 + $0x18] sm:$0xf]
        %v3131 = vld [vmem:[%s25 + $0x1c] sm:$0xf]
        %v3132 = vld [vmem:[%s25 + $0x20] sm:$0xf]
        %v3133 = vld [vmem:[%s25 + $0x24] sm:$0xf]
        %v3134 = vld [vmem:[%s25 + $0x28] sm:$0xf]
        %v3135 = vld [vmem:[%s25 + $0x2c] sm:$0xf]
        %v3136 = vld [vmem:[%s25 + $0x30] sm:$0xf]
        %v3137 = vld [vmem:[%s25 + $0x34] sm:$0xf]
        %v3138 = vld [vmem:[%s25 + $0x38] sm:$0xf]
        %v3139 = vld [vmem:[%s25 + $0x3c] sm:$0xf]
        %v3140 = vld [vmem:[%s26] sm:$0x1]
        %v3157 = vunpack.c.l.b16 %v3124
        %v3158 = vunpack.c.l.b16 %v3125
        %v3159 = vunpack.c.l.b16 %v3126
        %v3160 = vunpack.c.l.b16 %v3127
        %v3161 = vunpack.c.l.b16 %v3128
        %v3162 = vunpack.c.l.b16 %v3129
        %v3163 = vunpack.c.l.b16 %v3130
        %v3164 = vunpack.c.l.b16 %v3131
        %v3165 = vunpack.c.l.b16 %v3132
        %v3166 = vunpack.c.l.b16 %v3133
        %v3167 = vunpack.c.l.b16 %v3134
        %v3168 = vunpack.c.l.b16 %v3135
        %v3169 = vunpack.c.l.b16 %v3136
        %v3170 = vunpack.c.l.b16 %v3137
        %v3171 = vunpack.c.l.b16 %v3138
        %v3172 = vunpack.c.l.b16 %v3139
        %v3173 = vpack.c.b16 %v3158, %v3157
        %v3174 = vpack.c.b16 %v3160, %v3159
        %v3175 = vpack.c.b16 %v3162, %v3161
        %v3176 = vpack.c.b16 %v3164, %v3163
        %v3177 = vpack.c.b16 %v3166, %v3165
        %v3178 = vpack.c.b16 %v3168, %v3167
        %v3179 = vpack.c.b16 %v3170, %v3169
        %v3180 = vpack.c.b16 %v3172, %v3171
        %3189 = vmatprep.subr.bf16.mxu0 0
        %3190 = vmatpush1.bf16.msra.mxu0 %v3180
        %3191 = vmatprep.subr.bf16.mxu0 0
        %3192 = vmatpush1.bf16.msra.mxu0 %v3179
        %3193 = vmatprep.subr.bf16.mxu0 0
        %3194 = vmatpush1.bf16.msra.mxu0 %v3178
        %3195 = vmatprep.subr.bf16.mxu0 0
        %3196 = vmatpush1.bf16.msra.mxu0 %v3177
        %3197 = vmatprep.subr.bf16.mxu0 0
        %3198 = vmatpush1.bf16.msra.mxu0 %v3176
        %3199 = vmatprep.subr.bf16.mxu0 0
        %3200 = vmatpush1.bf16.msra.mxu0 %v3175
        %3201 = vmatprep.subr.bf16.mxu0 0
        %3202 = vmatpush1.bf16.msra.mxu0 %v3174
        %3203 = vmatprep.subr.bf16.mxu0 0
        %3204 = vmatpush1.bf16.msra.mxu0 %v3173
        %3205 = vmatprep.subr.bf16.mxu0 0
        %3206 = vmatpush2.bf16.msra.mxu0 0
        %3207 = vmatprep.subr.bf16.mxu0 0
        %3208 = vmatpush2.bf16.msra.mxu0 0
        %3209 = vmatprep.subr.bf16.mxu0 0
        %3210 = vmatpush2.bf16.msra.mxu0 0
        %3211 = vmatprep.subr.bf16.mxu0 0
        %3212 = vmatpush2.bf16.msra.mxu0 0
        %3213 = vmatprep.subr.bf16.mxu0 0
        %3214 = vmatpush2.bf16.msra.mxu0 0
        %3215 = vmatprep.subr.bf16.mxu0 0
        %3216 = vmatpush2.bf16.msra.mxu0 0
        %3217 = vmatprep.subr.bf16.mxu0 0
        %3218 = vmatpush2.bf16.msra.mxu0 0
        %3219 = vmatprep.subr.bf16.mxu0 0
        %3220 = vmatpush2.bf16.msra.mxu0 0
        %3221 = vmatprep.mubr.bf16.mxu0 0
        %3222 = vmatmul.mubr.bf16.gmra.mxu0 %v3123
        %v3223 = vpop.f32.mrf.mxu0
        %v3224 = vadd.f32 %v3140, %v3223
        %v3225 = vpop.f32.mrf.mxu0
        %v3226 = vpop.f32.mrf.mxu0
        %v3227 = vpop.f32.mrf.mxu0
        %3228 = vdwg.mxu0
        %3229 = vst [vmem:[%s825] sm:$0x1] %v3224
        %s3230 = sand.u32 %s626, 1
        %s3231 = scalar_lea.sflag [#allocation3], %s3230
        %s3232 = sand.u32 %s626, 1
        %s3233 = scalar_lea.vmem [#allocation2], %s3232
        // Predicated region
        $region129: #{mmt_forward.3} parent=127 // pred_check
          %p3234 = pneg %p636
        $region130: #{mmt_forward.3} parent=127 // pred_check_branch
          %3236 = sbr.rel (%p3234) target = $region132
        $region131: #{mmt_forward.3} parent=127 // pred_region
          %s3238 = ssub.s32 16, 16
          %3239 = vsyncadd %s3231, %s3238
          %s3240 = smul.addr %s41, 16
          %s3241 = scalar_lea.hbm %s27, %s3240
          %s3243 = sshll.u32 %s3233, 4
          %s3244 = int_to_ptr.vmem [resolvable:$true] %s3243
          %3246 = dma.vmem_to_hbm [thread:$0]  %s3244, 16, %s3241, %s3231
        $region132: #{mmt_forward.3} parent=127 // pred_fallthru
          _
      $region128: #{mmt_forward.3} parent=5 // pred_fallthru
        _
      %p3247 = scmp.le.s32.totalorder 2, %s36
      // Predicated region
      $region133: #{mmt_forward.3} parent=5 // pred_check
        %p3248 = pneg %p3247
      $region134: #{mmt_forward.3} parent=5 // pred_check_branch
        %3250 = sbr.rel (%p3248) target = $region136
      $region135: #{mmt_forward.3} parent=5 // pred_region
        %s3251 = ssub.s32 %s36, 2
        // Predicated region
        $region137: #{mmt_forward.3} parent=135 // pred_check
          %p3252 = pneg %p642
        $region138: #{mmt_forward.3} parent=135 // pred_check_branch
          %3254 = sbr.rel (%p3252) target = $region140
        $region139: #{mmt_forward.3} parent=135 // pred_region
          %s3255 = sand.u32 %s627, 1
          %s3256 = scalar_lea.sflag [#allocation3], %s3255
          %s3257 = sand.u32 %s627, 1
          %s3258 = scalar_lea.vmem [#allocation2], %s3257
          %3259 = dma.done %s3256, 16
        $region140: #{mmt_forward.3} parent=135 // pred_fallthru
          _
      $region136: #{mmt_forward.3} parent=5 // pred_fallthru
        _
    $region6: #{mmt_forward.3} parent=1 // loop_footer
      %s40 = sadd.s32 1, %s36
    $region7: #{mmt_forward.3} parent=1 // loop_footer_branch
      %35 = sbr.rel target = $region3
    $region8: #{mmt_forward.3} parent=1 // loop_exit
      _
    %3260 = vsyncpa [#allocation3], 1
    %s3261 = scalar_lea.sflag [#allocation3], 1
    %3262 = vsyncpa %s3261, 1

</llo_original>
